<compile_context>
chip_gen: v5e
topology: v5e:2x2
jax: 0.10.0
libtpu: 0.0.40
codegen_flags: <defaults>
</compile_context>

<pallas_src>
import jax
import jax.numpy as jnp
from jax.experimental import pallas as pl
from jax.experimental.pallas import tpu as pltpu


# ----------------------------------------------------------------------------
# Small helpers
# ----------------------------------------------------------------------------
def _round_up(x, m):
    return (x + m - 1) // m * m


def _cdiv(a, b):
    return -(-a // b)


def _vmem_capacity_bytes():
    """Physical VMEM per TensorCore; conservative fallback (v7x = 64 MiB)."""
    try:
        cap = int(pltpu.get_tpu_info().vmem_capacity_bytes)
        if cap > 0:
            return cap
    except Exception:
        pass
    return 64 * 1024 * 1024


def _num_tensorcores_per_chip():
    """2 only on v7x-class chips (megacore); 1 on v5e/v6e."""
    try:
        kind = jax.devices()[0].device_kind.lower()
    except Exception:
        return 1
    return 2 if ("v7" in kind or "7x" in kind) else 1


def _choose_batch_block(B_pad, sub):
    # Never split the batch on single-TC chips: the recurrence is serial, so a
    # split only doubles the number of back-to-back time sweeps on one core.
    # On v7x split 2-way for megacore, but only if each half is still a
    # reasonably tall LHS (>= 64 rows).
    if _num_tensorcores_per_chip() >= 2:
        half = B_pad // 2
        if half >= 64 and half % sub == 0:
            return half
    return B_pad


def _choose_time_block(T, batch_block, D, H_pad, O_pad, L, cdt, vmem_cap):
    """Largest time chunk fitting ~55% of VMEM, then the minimal-padding
    equal split of T (avoids the old divisor-search perf cliff)."""
    cb = jnp.dtype(cdt).itemsize
    w_bytes, d_in = 0, D
    for _ in range(L):
        w_bytes += (d_in + H_pad) * 4 * H_pad * cb + 4 * H_pad * 4
        d_in = H_pad
    w_bytes += H_pad * O_pad * cb + O_pad * 4
    fixed = 2 * w_bytes + 2 * L * batch_block * H_pad * 4 + (4 << 20)
    per_t = batch_block * (2 * D * cb          # x block (double-buffered)
                           + 2 * O_pad * 4     # out block (double-buffered, f32)
                           + 4 * H_pad * cb    # xg scratch (compute dtype)
                           + H_pad * cb)       # chunk h-buffer scratch
    budget = int(vmem_cap * 0.55) - fixed
    tk = max(1, budget // per_t)
    tk = int(min(tk, T, 512))
    n_chunks = _cdiv(T, tk)
    tk = _cdiv(T, n_chunks)        # minimal zero-padding of T
    return tk, n_chunks * tk


def _invariant_spec(shape):
    """Grid-invariant (weight) input: single-buffer it to halve VMEM use."""
    try:
        return pl.BlockSpec(shape, lambda bc, tc: (0,) * len(shape),
                            pipeline_mode=pl.Buffered(buffer_count=1))
    except (TypeError, AttributeError, ValueError):   # fallback if unsupported
        return pl.BlockSpec(shape, lambda bc, tc: (0,) * len(shape))


# ----------------------------------------------------------------------------
# Fused multi-layer LSTM + FC kernel (one (batch_chunk, time_chunk) grid step)
# ----------------------------------------------------------------------------
def _make_fused_kernel(num_layers, time_block):
    unroll = True if time_block <= 16 else 8

    def kernel(*refs):
        # refs = x, (wih,whh,b)*L, wfc, bfc, out, h_scr, c_scr, xg_scr, hbuf
        x_ref = refs[0]
        layer_refs = [tuple(refs[1 + 3 * l: 4 + 3 * l]) for l in range(num_layers)]
        wfc_ref = refs[1 + 3 * num_layers]
        bfc_ref = refs[2 + 3 * num_layers]
        out_ref = refs[3 + 3 * num_layers]
        h_scr, c_scr, xg_scr, hbuf_scr = refs[4 + 3 * num_layers:]

        TK, B, D = x_ref.shape
        H = hbuf_scr.shape[-1]

        @pl.when(pl.program_id(1) == 0)       # start of this batch-chunk's sweep
        def _():
            h_scr[...] = jnp.zeros_like(h_scr)
            c_scr[...] = jnp.zeros_like(c_scr)

        for li, (wih_ref, whh_ref, b_ref) in enumerate(layer_refs):
            # (1) Hoisted input projection: one tall MXU matmul for the whole
            #     chunk (TK*B rows).  Layer 0 reads the input block; deeper
            #     layers read the previous layer's h held in VMEM (no HBM trip).
            if li == 0:
                x_all = x_ref[...].reshape(TK * B, D)
            else:
                x_all = hbuf_scr[...].reshape(TK * B, H)
            xg = jnp.dot(x_all, wih_ref[...],
                         preferred_element_type=jnp.float32) + b_ref[...]
            xg_scr[...] = xg.reshape(TK, B, 4 * H).astype(xg_scr.dtype)

            # Pin W_hh in vregs across the step loop only if it actually fits.
            whh_bytes = (whh_ref.shape[0] * whh_ref.shape[1]
                         * jnp.dtype(whh_ref.dtype).itemsize)
            whh_res = whh_ref[...] if whh_bytes <= 32 * 1024 else None

            # (2) Serial recurrence: only (B,H)@(H,4H) + f32 gate math per step.
            def step(t, carry, li=li, whh_res=whh_res, whh_ref=whh_ref):
                h_prev = h_scr[li]
                c_prev = c_scr[li]
                whh = whh_res if whh_res is not None else whh_ref[...]
                gates = xg_scr[t].astype(jnp.float32) + jnp.dot(
                    h_prev.astype(whh.dtype), whh,
                    preferred_element_type=jnp.float32)
                # PyTorch gate order: input, forget, cell(g), output
                # (H is a multiple of 128 -> lane-aligned slice boundaries).
                i_g = jax.nn.sigmoid(gates[:, 0 * H:1 * H])
                f_g = jax.nn.sigmoid(gates[:, 1 * H:2 * H])
                g_g = jnp.tanh(gates[:, 2 * H:3 * H])
                o_g = jax.nn.sigmoid(gates[:, 3 * H:4 * H])
                c_new = f_g * c_prev + i_g * g_g
                h_new = o_g * jnp.tanh(c_new)
                c_scr[li] = c_new
                h_scr[li] = h_new
                hbuf_scr[t] = h_new.astype(hbuf_scr.dtype)
                return carry

            jax.lax.fori_loop(0, TK, step, 0, unroll=unroll)

        # (3) Fused FC head: one lane-dense matmul + unmasked store per chunk.
        h_all = hbuf_scr[...].reshape(TK * B, H).astype(wfc_ref.dtype)
        out = jnp.dot(h_all, wfc_ref[...],
                      preferred_element_type=jnp.float32) + bfc_ref[...]
        out_ref[...] = out.reshape(TK, B, out_ref.shape[-1]).astype(out_ref.dtype)

    return kernel


# ----------------------------------------------------------------------------
# pallas_call wrapper (single call for the whole network)
# ----------------------------------------------------------------------------
def _fused_call(x_tbd, layers, fc, *, time_block, batch_block, vmem_cap):
    T, B, D = x_tbd.shape
    wfc, bfc = fc
    H_pad, O_pad = wfc.shape
    H4 = 4 * H_pad
    L = len(layers)
    cdt = x_tbd.dtype
    cb = jnp.dtype(cdt).itemsize

    in_specs = [pl.BlockSpec((time_block, batch_block, D),
                             lambda bc, tc: (tc, bc, 0))]
    flat_weights = []
    for (wih, whh, b) in layers:
        in_specs += [_invariant_spec(wih.shape),
                     _invariant_spec(whh.shape),
                     _invariant_spec(b.shape)]
        flat_weights += [wih, whh, b]
    in_specs += [_invariant_spec(wfc.shape), _invariant_spec(bfc.shape)]
    flat_weights += [wfc, bfc]

    # Real VMEM requirement (x/out x2 buffers, weights worst-case x2 if the
    # single-buffer request is unsupported, scratch x1) + headroom, capped at
    # 85% of the detected physical VMEM (leaves compiler-internal headroom).
    weight_bytes = sum(int(w.size) * jnp.dtype(w.dtype).itemsize
                       for w in flat_weights)
    need = (2 * time_block * batch_block * D * cb
            + 2 * time_block * batch_block * O_pad * 4
            + 2 * weight_bytes
            + 2 * L * batch_block * H_pad * 4
            + time_block * batch_block * (H4 + H_pad) * cb)
    limit = int(min(max(need + (8 << 20), 32 << 20), int(vmem_cap * 0.85)))

    kernel = _make_fused_kernel(L, time_block)

    return pl.pallas_call(
        kernel,
        out_shape=jax.ShapeDtypeStruct((T, B, O_pad), jnp.float32),
        grid_spec=pltpu.PrefetchScalarGridSpec(
            num_scalar_prefetch=0,
            grid=(B // batch_block, T // time_block),
            in_specs=in_specs,
            out_specs=pl.BlockSpec((time_block, batch_block, O_pad),
                                   lambda bc, tc: (tc, bc, 0)),
            scratch_shapes=[
                pltpu.VMEM((L, batch_block, H_pad), jnp.float32),   # h state
                pltpu.VMEM((L, batch_block, H_pad), jnp.float32),   # c state
                pltpu.VMEM((time_block, batch_block, H4), cdt),     # x@W_ih+b
                pltpu.VMEM((time_block, batch_block, H_pad), cdt),  # chunk h
            ],
        ),
        compiler_params=pltpu.CompilerParams(
            dimension_semantics=("parallel", "arbitrary"),  # batch ||, time seq
            vmem_limit_bytes=limit),
    )(x_tbd, *flat_weights)


# ----------------------------------------------------------------------------
# One-time parameter preparation (transpose / pad / cast -> kernel layout)
# ----------------------------------------------------------------------------
def prepare_params(params, compute_dtype=jnp.bfloat16):
    layer_params, (w_fc, b_fc) = params
    H = layer_params[0][1].shape[1]          # w_hh: (4H, H)
    O = w_fc.shape[0]
    H_pad = _round_up(H, 128)
    O_pad = _round_up(O, 128)

    def place_gates(w_t, rows_pad):          # (rows, 4H) -> (rows_pad, 4*H_pad)
        rows = w_t.shape[0]
        out = jnp.zeros((rows_pad, 4 * H_pad), jnp.float32)
        for g in range(4):
            out = out.at[:rows, g * H_pad:g * H_pad + H].set(
                w_t[:, g * H:(g + 1) * H])
        return out

    layers = []
    for li, (w_ih, w_hh, b_ih, b_hh) in enumerate(layer_params):
        d_in = w_ih.shape[1]
        d_pad = d_in if li == 0 else H_pad   # layer 0 keeps the raw input width
        wih_p = place_gates(jnp.asarray(w_ih, jnp.float32).T, d_pad)
        whh_p = place_gates(jnp.asarray(w_hh, jnp.float32).T, H_pad)
        bsum = jnp.asarray(b_ih + b_hh, jnp.float32)
        b = jnp.zeros((4 * H_pad,), jnp.float32)
        for g in range(4):
            b = b.at[g * H_pad:g * H_pad + H].set(bsum[g * H:(g + 1) * H])
        layers.append((wih_p.astype(compute_dtype),
                       whh_p.astype(compute_dtype),
                       b.reshape(1, 4 * H_pad)))

    wfc_p = jnp.zeros((H_pad, O_pad), jnp.float32)
    wfc_p = wfc_p.at[:H, :O].set(jnp.asarray(w_fc, jnp.float32).T)
    bfc_p = jnp.zeros((1, O_pad), jnp.float32).at[0, :O].set(
        jnp.asarray(b_fc, jnp.float32))

    meta = dict(H=H, H_pad=H_pad, O=O, O_pad=O_pad, compute_dtype=compute_dtype)
    return dict(layers=layers, fc=(wfc_p.astype(compute_dtype), bfc_p), meta=meta)


# ----------------------------------------------------------------------------
# Forward pass (matches LstmModel.forward: zero initial state, fc on all steps)
# ----------------------------------------------------------------------------
def lstm_model_forward(x, prepped):
    """x: (B, T, input_size) -> (B, T, output_size)."""
    meta = prepped["meta"]
    cdt = meta["compute_dtype"]
    H_pad, O_pad, O = meta["H_pad"], meta["O_pad"], meta["O"]
    layers = prepped["layers"]
    L = len(layers)
    sub = 8 if jnp.dtype(cdt).itemsize == 4 else 16   # sublane multiple
    B, T, D = x.shape
    B_pad = _round_up(B, sub)

    vmem_cap = _vmem_capacity_bytes()
    batch_block = _choose_batch_block(B_pad, sub)
    time_block, T_pad = _choose_time_block(T, batch_block, D, H_pad, O_pad,
                                           L, cdt, vmem_cap)

    # Zero padding is inert: padded hidden lanes stay exactly 0, padded batch
    # rows and trailing padded timesteps are sliced off and cannot influence
    # earlier (real) timesteps of the forward recurrence.
    x_f = jnp.pad(jnp.asarray(x, jnp.float32),
                  ((0, B_pad - B), (0, T_pad - T), (0, 0)))
    x_tbd = jnp.transpose(x_f, (1, 0, 2)).astype(cdt)   # (T_pad, B_pad, D)
    # TODO(synk): the in/out (B,T)<->(T,B) transposes could be absorbed as
    # per-chunk XLU transposes inside the kernel to save two small HBM passes.

    out = _fused_call(x_tbd, layers, prepped["fc"],
                      time_block=time_block, batch_block=batch_block,
                      vmem_cap=vmem_cap)                # (T_pad, B_pad, O_pad)
    out = jnp.transpose(out, (1, 0, 2))                 # (B_pad, T_pad, O_pad)
    return out[:B, :T, :O]


# ----------------------------------------------------------------------------
# Pure-JAX reference (correctness check)
# ----------------------------------------------------------------------------
def lstm_model_reference(x, params):
    layer_params, (w_fc, b_fc) = params
    B, T, _ = x.shape
    inp = x.astype(jnp.float32)
    for (w_ih, w_hh, b_ih, b_hh) in layer_params:
        H = w_hh.shape[1]
        h = jnp.zeros((B, H), jnp.float32)
        c = jnp.zeros((B, H), jnp.float32)

        def step(carry, x_t):
            h, c = carry
            gates = x_t @ w_ih.T + h @ w_hh.T + b_ih + b_hh
            i, f, g, o = jnp.split(gates, 4, axis=-1)
            i, f, o = jax.nn.sigmoid(i), jax.nn.sigmoid(f), jax.nn.sigmoid(o)
            g = jnp.tanh(g)
            c = f * c + i * g
            h = o * jnp.tanh(c)
            return (h, c), h

        _, hs = jax.lax.scan(step, (h, c), jnp.transpose(inp, (1, 0, 2)))
        inp = jnp.transpose(hs, (1, 0, 2))
    return inp @ w_fc.T + b_fc


# ----------------------------------------------------------------------------
# Parameter init (matches nn.LSTM / nn.Linear shapes & init ranges)
# ----------------------------------------------------------------------------
def init_params(key, input_size, hidden_size, num_layers, output_size):
    layer_params = []
    bound = 1.0 / jnp.sqrt(hidden_size)
    for layer in range(num_layers):
        d_in = input_size if layer == 0 else hidden_size
        key, k1, k2, k3, k4 = jax.random.split(key, 5)
        w_ih = jax.random.uniform(k1, (4 * hidden_size, d_in), jnp.float32,
                                  -bound, bound)
        w_hh = jax.random.uniform(k2, (4 * hidden_size, hidden_size),
                                  jnp.float32, -bound, bound)
        b_ih = jax.random.uniform(k3, (4 * hidden_size,), jnp.float32,
                                  -bound, bound)
        b_hh = jax.random.uniform(k4, (4 * hidden_size,), jnp.float32,
                                  -bound, bound)
        layer_params.append((w_ih, w_hh, b_ih, b_hh))
    key, k1, k2 = jax.random.split(key, 3)
    w_fc = jax.random.uniform(k1, (output_size, hidden_size), jnp.float32,
                              -bound, bound)
    b_fc = jax.random.uniform(k2, (output_size,), jnp.float32, -bound, bound)
    return layer_params, (w_fc, b_fc)


# ----------------------------------------------------------------------------
if __name__ == "__main__":
    # Small shapes consistent with LstmModel.forward (target_len unused there).
    batch, seq, input_size = 2, 8, 4
    hidden_size, num_layers, output_size = 32, 2, 4

    key = jax.random.PRNGKey(0)
    key, xk = jax.random.split(key)
    x = jax.random.normal(xk, (batch, seq, input_size), jnp.float32)
    params = init_params(key, input_size, hidden_size, num_layers, output_size)

    ref = jax.block_until_ready(lstm_model_reference(x, params))

    # f32 compute path: strict numerical check against the reference.
    prepped_f32 = prepare_params(params, compute_dtype=jnp.float32)
    out_f32 = jax.block_until_ready(lstm_model_forward(x, prepped_f32))
    assert out_f32.shape == (batch, seq, output_size), out_f32.shape
    err_f32 = float(jnp.max(jnp.abs(out_f32 - ref)))
    assert err_f32 < 1e-4, err_f32

    # bf16 production path (MXU-native weights/activations, f32 state/gates).
    prepped_bf16 = prepare_params(params, compute_dtype=jnp.bfloat16)
    out_bf16 = jax.block_until_ready(lstm_model_forward(x, prepped_bf16))
    assert out_bf16.shape == (batch, seq, output_size), out_bf16.shape
    err_bf16 = float(jnp.max(jnp.abs(out_bf16 - ref)))
    assert err_bf16 < 5e-2, err_bf16

    print("KERNEL_OK")
</pallas_src>

<mosaic_0001>
module attributes {stable_mosaic.version = 11 : i64} {
  func.func @kernel(%arg0: i32, %arg1: i32, %arg2: memref<8x8x4xf32, #tpu.memory_space<vmem>>, %arg3: memref<4x512xf32, #tpu.memory_space<vmem>>, %arg4: memref<128x512xf32, #tpu.memory_space<vmem>>, %arg5: memref<1x512xf32, #tpu.memory_space<vmem>>, %arg6: memref<128x512xf32, #tpu.memory_space<vmem>>, %arg7: memref<128x512xf32, #tpu.memory_space<vmem>>, %arg8: memref<1x512xf32, #tpu.memory_space<vmem>>, %arg9: memref<128x128xf32, #tpu.memory_space<vmem>>, %arg10: memref<1x128xf32, #tpu.memory_space<vmem>>, %arg11: memref<8x8x128xf32, #tpu.memory_space<vmem>>, %arg12: memref<2x8x128xf32, #tpu.memory_space<vmem>>, %arg13: memref<2x8x128xf32, #tpu.memory_space<vmem>>, %arg14: memref<8x8x512xf32, #tpu.memory_space<vmem>>, %arg15: memref<8x8x128xf32, #tpu.memory_space<vmem>>) attributes {dimension_semantics = [#tpu.dimension_semantics<parallel>, #tpu.dimension_semantics<arbitrary>], iteration_bounds = array<i64: 1, 1>, scalar_prefetch = 0 : i64, scratch_operands = 4 : i64, tpu.core_type = #tpu.core_type<tc>, window_params = [{transform_indices = @transform_0, window_bounds = array<i64: 8, 8, 4>}, {pipeline_mode = #tpu.pipeline_mode<synchronous>, transform_indices = @transform_1, window_bounds = array<i64: 4, 512>}, {pipeline_mode = #tpu.pipeline_mode<synchronous>, transform_indices = @transform_2, window_bounds = array<i64: 128, 512>}, {pipeline_mode = #tpu.pipeline_mode<synchronous>, transform_indices = @transform_3, window_bounds = array<i64: 1, 512>}, {pipeline_mode = #tpu.pipeline_mode<synchronous>, transform_indices = @transform_4, window_bounds = array<i64: 128, 512>}, {pipeline_mode = #tpu.pipeline_mode<synchronous>, transform_indices = @transform_5, window_bounds = array<i64: 128, 512>}, {pipeline_mode = #tpu.pipeline_mode<synchronous>, transform_indices = @transform_6, window_bounds = array<i64: 1, 512>}, {pipeline_mode = #tpu.pipeline_mode<synchronous>, transform_indices = @transform_7, window_bounds = array<i64: 128, 128>}, {pipeline_mode = #tpu.pipeline_mode<synchronous>, transform_indices = @transform_8, window_bounds = array<i64: 1, 128>}, {transform_indices = @transform_9, window_bounds = array<i64: 8, 8, 128>}]} {
    %c0_i32 = arith.constant 0 : i32
    %0 = arith.cmpi eq, %arg1, %c0_i32 : i32
    %1 = arith.extui %0 : i1 to i32
    %c0_i32_0 = arith.constant 0 : i32
    %2 = arith.cmpi ne, %1, %c0_i32_0 : i32
    scf.if %2 {
      %cst_393 = arith.constant 0.000000e+00 : f32
      %750 = vector.broadcast %cst_393 : f32 to vector<2x8x128xf32>
      %c0_394 = arith.constant 0 : index
      %c0_395 = arith.constant 0 : index
      %c0_396 = arith.constant 0 : index
      %751 = vector.load %arg12[%c0_394, %c0_395, %c0_396] : memref<2x8x128xf32, #tpu.memory_space<vmem>>, vector<2x8x128xf32>
      tpu.vector_store %arg12[%c0_394, %c0_395, %c0_396], %750 {strides = array<i32>} : memref<2x8x128xf32, #tpu.memory_space<vmem>>, vector<2x8x128xf32>,
      %cst_397 = arith.constant 0.000000e+00 : f32
      %752 = vector.broadcast %cst_397 : f32 to vector<2x8x128xf32>
      %c0_398 = arith.constant 0 : index
      %c0_399 = arith.constant 0 : index
      %c0_400 = arith.constant 0 : index
      %753 = vector.load %arg13[%c0_398, %c0_399, %c0_400] : memref<2x8x128xf32, #tpu.memory_space<vmem>>, vector<2x8x128xf32>
      tpu.vector_store %arg13[%c0_398, %c0_399, %c0_400], %752 {strides = array<i32>} : memref<2x8x128xf32, #tpu.memory_space<vmem>>, vector<2x8x128xf32>,
    } else {
    }
    %c0 = arith.constant 0 : index
    %c0_1 = arith.constant 0 : index
    %c0_2 = arith.constant 0 : index
    %3 = vector.load %arg2[%c0, %c0_1, %c0_2] : memref<8x8x4xf32, #tpu.memory_space<vmem>>, vector<8x8x4xf32>
    %4 = vector.shape_cast %3 : vector<8x8x4xf32> to vector<64x4xf32>
    %c0_3 = arith.constant 0 : index
    %c0_4 = arith.constant 0 : index
    %5 = vector.load %arg3[%c0_3, %c0_4] : memref<4x512xf32, #tpu.memory_space<vmem>>, vector<4x512xf32>
    %cst = arith.constant dense<0.000000e+00> : vector<64x512xf32>
    %6 = tpu.matmul %4, %5, %cst {dimension_numbers = #tpu.dot_dimension_numbers<[1], [0], [0], [1], [0, 0, 1, 1], [], []>} : vector<64x4xf32>, vector<4x512xf32>, vector<64x512xf32> -> vector<64x512xf32>
    %c0_5 = arith.constant 0 : index
    %c0_6 = arith.constant 0 : index
    %7 = vector.load %arg5[%c0_5, %c0_6] : memref<1x512xf32, #tpu.memory_space<vmem>>, vector<1x512xf32>
    %8 = vector.broadcast %7 : vector<1x512xf32> to vector<64x512xf32>
    %9 = arith.addf %6, %8 : vector<64x512xf32>
    %10 = vector.shape_cast %9 : vector<64x512xf32> to vector<8x8x512xf32>
    %c0_7 = arith.constant 0 : index
    %c0_8 = arith.constant 0 : index
    %c0_9 = arith.constant 0 : index
    %11 = vector.load %arg14[%c0_7, %c0_8, %c0_9] : memref<8x8x512xf32, #tpu.memory_space<vmem>>, vector<8x8x512xf32>
    tpu.vector_store %arg14[%c0_7, %c0_8, %c0_9], %10 {strides = array<i32>} : memref<8x8x512xf32, #tpu.memory_space<vmem>>, vector<8x8x512xf32>,
    %c0_i32_10 = arith.constant 0 : i32
    %c0_11 = arith.constant 0 : index
    %c0_12 = arith.constant 0 : index
    %c0_13 = arith.constant 0 : index
    %12 = vector.load %arg12[%c0_11, %c0_12, %c0_13] : memref<2x8x128xf32, #tpu.memory_space<vmem>>, vector<1x8x128xf32>
    %13 = vector.shape_cast %12 : vector<1x8x128xf32> to vector<8x128xf32>
    %c0_14 = arith.constant 0 : index
    %c0_15 = arith.constant 0 : index
    %c0_16 = arith.constant 0 : index
    %14 = vector.load %arg13[%c0_14, %c0_15, %c0_16] : memref<2x8x128xf32, #tpu.memory_space<vmem>>, vector<1x8x128xf32>
    %15 = vector.shape_cast %14 : vector<1x8x128xf32> to vector<8x128xf32>
    %c0_17 = arith.constant 0 : index
    %c0_18 = arith.constant 0 : index
    %16 = vector.load %arg4[%c0_17, %c0_18] : memref<128x512xf32, #tpu.memory_space<vmem>>, vector<128x512xf32>
    %17 = arith.index_cast %c0_i32_10 : i32 to index
    %c0_19 = arith.constant 0 : index
    %c0_20 = arith.constant 0 : index
    %18 = vector.load %arg14[%17, %c0_19, %c0_20] : memref<8x8x512xf32, #tpu.memory_space<vmem>>, vector<1x8x512xf32>
    %19 = vector.shape_cast %18 : vector<1x8x512xf32> to vector<8x512xf32>
    %cst_21 = arith.constant dense<0.000000e+00> : vector<8x512xf32>
    %20 = tpu.matmul %13, %16, %cst_21 {dimension_numbers = #tpu.dot_dimension_numbers<[1], [0], [0], [1], [0, 0, 1, 1], [], []>} : vector<8x128xf32>, vector<128x512xf32>, vector<8x512xf32> -> vector<8x512xf32>
    %21 = arith.addf %19, %20 : vector<8x512xf32>
    %22 = vector.extract_strided_slice %21 {offsets = [0, 0], sizes = [8, 128], strides = [1, 1]} : vector<8x512xf32> to vector<8x128xf32>
    %23 = arith.negf %22 : vector<8x128xf32>
    %24 = math.exp %23 : vector<8x128xf32>
    %cst_22 = arith.constant 1.000000e+00 : f32
    %25 = vector.broadcast %cst_22 : f32 to vector<8x128xf32>
    %26 = arith.addf %25, %24 : vector<8x128xf32>
    %27 = arith.divf %25, %26 : vector<8x128xf32>
    %28 = vector.extract_strided_slice %21 {offsets = [0, 128], sizes = [8, 128], strides = [1, 1]} : vector<8x512xf32> to vector<8x128xf32>
    %29 = arith.negf %28 : vector<8x128xf32>
    %30 = math.exp %29 : vector<8x128xf32>
    %cst_23 = arith.constant 1.000000e+00 : f32
    %31 = vector.broadcast %cst_23 : f32 to vector<8x128xf32>
    %32 = arith.addf %31, %30 : vector<8x128xf32>
    %33 = arith.divf %31, %32 : vector<8x128xf32>
    %34 = vector.extract_strided_slice %21 {offsets = [0, 256], sizes = [8, 128], strides = [1, 1]} : vector<8x512xf32> to vector<8x128xf32>
    %35 = math.tanh %34 : vector<8x128xf32>
    %36 = vector.extract_strided_slice %21 {offsets = [0, 384], sizes = [8, 128], strides = [1, 1]} : vector<8x512xf32> to vector<8x128xf32>
    %37 = arith.negf %36 : vector<8x128xf32>
    %38 = math.exp %37 : vector<8x128xf32>
    %cst_24 = arith.constant 1.000000e+00 : f32
    %39 = vector.broadcast %cst_24 : f32 to vector<8x128xf32>
    %40 = arith.addf %39, %38 : vector<8x128xf32>
    %41 = arith.divf %39, %40 : vector<8x128xf32>
    %42 = arith.mulf %33, %15 : vector<8x128xf32>
    %43 = arith.mulf %27, %35 : vector<8x128xf32>
    %44 = arith.addf %42, %43 : vector<8x128xf32>
    %45 = math.tanh %44 : vector<8x128xf32>
    %46 = arith.mulf %41, %45 : vector<8x128xf32>
    %c0_25 = arith.constant 0 : index
    %c0_26 = arith.constant 0 : index
    %c0_27 = arith.constant 0 : index
    %47 = vector.load %arg13[%c0_25, %c0_26, %c0_27] : memref<2x8x128xf32, #tpu.memory_space<vmem>>, vector<1x8x128xf32>
    %48 = vector.shape_cast %47 : vector<1x8x128xf32> to vector<8x128xf32>
    %49 = vector.shape_cast %44 : vector<8x128xf32> to vector<1x8x128xf32>
    tpu.vector_store %arg13[%c0_25, %c0_26, %c0_27], %49 {strides = array<i32>} : memref<2x8x128xf32, #tpu.memory_space<vmem>>, vector<1x8x128xf32>,
    %c0_28 = arith.constant 0 : index
    %c0_29 = arith.constant 0 : index
    %c0_30 = arith.constant 0 : index
    %50 = vector.load %arg12[%c0_28, %c0_29, %c0_30] : memref<2x8x128xf32, #tpu.memory_space<vmem>>, vector<1x8x128xf32>
    %51 = vector.shape_cast %50 : vector<1x8x128xf32> to vector<8x128xf32>
    %52 = vector.shape_cast %46 : vector<8x128xf32> to vector<1x8x128xf32>
    tpu.vector_store %arg12[%c0_28, %c0_29, %c0_30], %52 {strides = array<i32>} : memref<2x8x128xf32, #tpu.memory_space<vmem>>, vector<1x8x128xf32>,
    %53 = arith.index_cast %c0_i32_10 : i32 to index
    %c0_31 = arith.constant 0 : index
    %c0_32 = arith.constant 0 : index
    %54 = vector.load %arg15[%53, %c0_31, %c0_32] : memref<8x8x128xf32, #tpu.memory_space<vmem>>, vector<1x8x128xf32>
    %55 = vector.shape_cast %54 : vector<1x8x128xf32> to vector<8x128xf32>
    %56 = vector.shape_cast %46 : vector<8x128xf32> to vector<1x8x128xf32>
    tpu.vector_store %arg15[%53, %c0_31, %c0_32], %56 {strides = array<i32>} : memref<8x8x128xf32, #tpu.memory_space<vmem>>, vector<1x8x128xf32>,
    %c1_i32 = arith.constant 1 : i32
    %c0_33 = arith.constant 0 : index
    %c0_34 = arith.constant 0 : index
    %c0_35 = arith.constant 0 : index
    %57 = vector.load %arg12[%c0_33, %c0_34, %c0_35] : memref<2x8x128xf32, #tpu.memory_space<vmem>>, vector<1x8x128xf32>
    %58 = vector.shape_cast %57 : vector<1x8x128xf32> to vector<8x128xf32>
    %c0_36 = arith.constant 0 : index
    %c0_37 = arith.constant 0 : index
    %c0_38 = arith.constant 0 : index
    %59 = vector.load %arg13[%c0_36, %c0_37, %c0_38] : memref<2x8x128xf32, #tpu.memory_space<vmem>>, vector<1x8x128xf32>
    %60 = vector.shape_cast %59 : vector<1x8x128xf32> to vector<8x128xf32>
    %c0_39 = arith.constant 0 : index
    %c0_40 = arith.constant 0 : index
    %61 = vector.load %arg4[%c0_39, %c0_40] : memref<128x512xf32, #tpu.memory_space<vmem>>, vector<128x512xf32>
    %62 = arith.index_cast %c1_i32 : i32 to index
    %c0_41 = arith.constant 0 : index
    %c0_42 = arith.constant 0 : index
    %63 = vector.load %arg14[%62, %c0_41, %c0_42] : memref<8x8x512xf32, #tpu.memory_space<vmem>>, vector<1x8x512xf32>
    %64 = vector.shape_cast %63 : vector<1x8x512xf32> to vector<8x512xf32>
    %cst_43 = arith.constant dense<0.000000e+00> : vector<8x512xf32>
    %65 = tpu.matmul %58, %61, %cst_43 {dimension_numbers = #tpu.dot_dimension_numbers<[1], [0], [0], [1], [0, 0, 1, 1], [], []>} : vector<8x128xf32>, vector<128x512xf32>, vector<8x512xf32> -> vector<8x512xf32>
    %66 = arith.addf %64, %65 : vector<8x512xf32>
    %67 = vector.extract_strided_slice %66 {offsets = [0, 0], sizes = [8, 128], strides = [1, 1]} : vector<8x512xf32> to vector<8x128xf32>
    %68 = arith.negf %67 : vector<8x128xf32>
    %69 = math.exp %68 : vector<8x128xf32>
    %cst_44 = arith.constant 1.000000e+00 : f32
    %70 = vector.broadcast %cst_44 : f32 to vector<8x128xf32>
    %71 = arith.addf %70, %69 : vector<8x128xf32>
    %72 = arith.divf %70, %71 : vector<8x128xf32>
    %73 = vector.extract_strided_slice %66 {offsets = [0, 128], sizes = [8, 128], strides = [1, 1]} : vector<8x512xf32> to vector<8x128xf32>
    %74 = arith.negf %73 : vector<8x128xf32>
    %75 = math.exp %74 : vector<8x128xf32>
    %cst_45 = arith.constant 1.000000e+00 : f32
    %76 = vector.broadcast %cst_45 : f32 to vector<8x128xf32>
    %77 = arith.addf %76, %75 : vector<8x128xf32>
    %78 = arith.divf %76, %77 : vector<8x128xf32>
    %79 = vector.extract_strided_slice %66 {offsets = [0, 256], sizes = [8, 128], strides = [1, 1]} : vector<8x512xf32> to vector<8x128xf32>
    %80 = math.tanh %79 : vector<8x128xf32>
    %81 = vector.extract_strided_slice %66 {offsets = [0, 384], sizes = [8, 128], strides = [1, 1]} : vector<8x512xf32> to vector<8x128xf32>
    %82 = arith.negf %81 : vector<8x128xf32>
    %83 = math.exp %82 : vector<8x128xf32>
    %cst_46 = arith.constant 1.000000e+00 : f32
    %84 = vector.broadcast %cst_46 : f32 to vector<8x128xf32>
    %85 = arith.addf %84, %83 : vector<8x128xf32>
    %86 = arith.divf %84, %85 : vector<8x128xf32>
    %87 = arith.mulf %78, %60 : vector<8x128xf32>
    %88 = arith.mulf %72, %80 : vector<8x128xf32>
    %89 = arith.addf %87, %88 : vector<8x128xf32>
    %90 = math.tanh %89 : vector<8x128xf32>
    %91 = arith.mulf %86, %90 : vector<8x128xf32>
    %c0_47 = arith.constant 0 : index
    %c0_48 = arith.constant 0 : index
    %c0_49 = arith.constant 0 : index
    %92 = vector.load %arg13[%c0_47, %c0_48, %c0_49] : memref<2x8x128xf32, #tpu.memory_space<vmem>>, vector<1x8x128xf32>
    %93 = vector.shape_cast %92 : vector<1x8x128xf32> to vector<8x128xf32>
    %94 = vector.shape_cast %89 : vector<8x128xf32> to vector<1x8x128xf32>
    tpu.vector_store %arg13[%c0_47, %c0_48, %c0_49], %94 {strides = array<i32>} : memref<2x8x128xf32, #tpu.memory_space<vmem>>, vector<1x8x128xf32>,
    %c0_50 = arith.constant 0 : index
    %c0_51 = arith.constant 0 : index
    %c0_52 = arith.constant 0 : index
    %95 = vector.load %arg12[%c0_50, %c0_51, %c0_52] : memref<2x8x128xf32, #tpu.memory_space<vmem>>, vector<1x8x128xf32>
    %96 = vector.shape_cast %95 : vector<1x8x128xf32> to vector<8x128xf32>
    %97 = vector.shape_cast %91 : vector<8x128xf32> to vector<1x8x128xf32>
    tpu.vector_store %arg12[%c0_50, %c0_51, %c0_52], %97 {strides = array<i32>} : memref<2x8x128xf32, #tpu.memory_space<vmem>>, vector<1x8x128xf32>,
    %98 = arith.index_cast %c1_i32 : i32 to index
    %c0_53 = arith.constant 0 : index
    %c0_54 = arith.constant 0 : index
    %99 = vector.load %arg15[%98, %c0_53, %c0_54] : memref<8x8x128xf32, #tpu.memory_space<vmem>>, vector<1x8x128xf32>
    %100 = vector.shape_cast %99 : vector<1x8x128xf32> to vector<8x128xf32>
    %101 = vector.shape_cast %91 : vector<8x128xf32> to vector<1x8x128xf32>
    tpu.vector_store %arg15[%98, %c0_53, %c0_54], %101 {strides = array<i32>} : memref<8x8x128xf32, #tpu.memory_space<vmem>>, vector<1x8x128xf32>,
    %c2_i32 = arith.constant 2 : i32
    %c0_55 = arith.constant 0 : index
    %c0_56 = arith.constant 0 : index
    %c0_57 = arith.constant 0 : index
    %102 = vector.load %arg12[%c0_55, %c0_56, %c0_57] : memref<2x8x128xf32, #tpu.memory_space<vmem>>, vector<1x8x128xf32>
    %103 = vector.shape_cast %102 : vector<1x8x128xf32> to vector<8x128xf32>
    %c0_58 = arith.constant 0 : index
    %c0_59 = arith.constant 0 : index
    %c0_60 = arith.constant 0 : index
    %104 = vector.load %arg13[%c0_58, %c0_59, %c0_60] : memref<2x8x128xf32, #tpu.memory_space<vmem>>, vector<1x8x128xf32>
    %105 = vector.shape_cast %104 : vector<1x8x128xf32> to vector<8x128xf32>
    %c0_61 = arith.constant 0 : index
    %c0_62 = arith.constant 0 : index
    %106 = vector.load %arg4[%c0_61, %c0_62] : memref<128x512xf32, #tpu.memory_space<vmem>>, vector<128x512xf32>
    %107 = arith.index_cast %c2_i32 : i32 to index
    %c0_63 = arith.constant 0 : index
    %c0_64 = arith.constant 0 : index
    %108 = vector.load %arg14[%107, %c0_63, %c0_64] : memref<8x8x512xf32, #tpu.memory_space<vmem>>, vector<1x8x512xf32>
    %109 = vector.shape_cast %108 : vector<1x8x512xf32> to vector<8x512xf32>
    %cst_65 = arith.constant dense<0.000000e+00> : vector<8x512xf32>
    %110 = tpu.matmul %103, %106, %cst_65 {dimension_numbers = #tpu.dot_dimension_numbers<[1], [0], [0], [1], [0, 0, 1, 1], [], []>} : vector<8x128xf32>, vector<128x512xf32>, vector<8x512xf32> -> vector<8x512xf32>
    %111 = arith.addf %109, %110 : vector<8x512xf32>
    %112 = vector.extract_strided_slice %111 {offsets = [0, 0], sizes = [8, 128], strides = [1, 1]} : vector<8x512xf32> to vector<8x128xf32>
    %113 = arith.negf %112 : vector<8x128xf32>
    %114 = math.exp %113 : vector<8x128xf32>
    %cst_66 = arith.constant 1.000000e+00 : f32
    %115 = vector.broadcast %cst_66 : f32 to vector<8x128xf32>
    %116 = arith.addf %115, %114 : vector<8x128xf32>
    %117 = arith.divf %115, %116 : vector<8x128xf32>
    %118 = vector.extract_strided_slice %111 {offsets = [0, 128], sizes = [8, 128], strides = [1, 1]} : vector<8x512xf32> to vector<8x128xf32>
    %119 = arith.negf %118 : vector<8x128xf32>
    %120 = math.exp %119 : vector<8x128xf32>
    %cst_67 = arith.constant 1.000000e+00 : f32
    %121 = vector.broadcast %cst_67 : f32 to vector<8x128xf32>
    %122 = arith.addf %121, %120 : vector<8x128xf32>
    %123 = arith.divf %121, %122 : vector<8x128xf32>
    %124 = vector.extract_strided_slice %111 {offsets = [0, 256], sizes = [8, 128], strides = [1, 1]} : vector<8x512xf32> to vector<8x128xf32>
    %125 = math.tanh %124 : vector<8x128xf32>
    %126 = vector.extract_strided_slice %111 {offsets = [0, 384], sizes = [8, 128], strides = [1, 1]} : vector<8x512xf32> to vector<8x128xf32>
    %127 = arith.negf %126 : vector<8x128xf32>
    %128 = math.exp %127 : vector<8x128xf32>
    %cst_68 = arith.constant 1.000000e+00 : f32
    %129 = vector.broadcast %cst_68 : f32 to vector<8x128xf32>
    %130 = arith.addf %129, %128 : vector<8x128xf32>
    %131 = arith.divf %129, %130 : vector<8x128xf32>
    %132 = arith.mulf %123, %105 : vector<8x128xf32>
    %133 = arith.mulf %117, %125 : vector<8x128xf32>
    %134 = arith.addf %132, %133 : vector<8x128xf32>
    %135 = math.tanh %134 : vector<8x128xf32>
    %136 = arith.mulf %131, %135 : vector<8x128xf32>
    %c0_69 = arith.constant 0 : index
    %c0_70 = arith.constant 0 : index
    %c0_71 = arith.constant 0 : index
    %137 = vector.load %arg13[%c0_69, %c0_70, %c0_71] : memref<2x8x128xf32, #tpu.memory_space<vmem>>, vector<1x8x128xf32>
    %138 = vector.shape_cast %137 : vector<1x8x128xf32> to vector<8x128xf32>
    %139 = vector.shape_cast %134 : vector<8x128xf32> to vector<1x8x128xf32>
    tpu.vector_store %arg13[%c0_69, %c0_70, %c0_71], %139 {strides = array<i32>} : memref<2x8x128xf32, #tpu.memory_space<vmem>>, vector<1x8x128xf32>,
    %c0_72 = arith.constant 0 : index
    %c0_73 = arith.constant 0 : index
    %c0_74 = arith.constant 0 : index
    %140 = vector.load %arg12[%c0_72, %c0_73, %c0_74] : memref<2x8x128xf32, #tpu.memory_space<vmem>>, vector<1x8x128xf32>
    %141 = vector.shape_cast %140 : vector<1x8x128xf32> to vector<8x128xf32>
    %142 = vector.shape_cast %136 : vector<8x128xf32> to vector<1x8x128xf32>
    tpu.vector_store %arg12[%c0_72, %c0_73, %c0_74], %142 {strides = array<i32>} : memref<2x8x128xf32, #tpu.memory_space<vmem>>, vector<1x8x128xf32>,
    %143 = arith.index_cast %c2_i32 : i32 to index
    %c0_75 = arith.constant 0 : index
    %c0_76 = arith.constant 0 : index
    %144 = vector.load %arg15[%143, %c0_75, %c0_76] : memref<8x8x128xf32, #tpu.memory_space<vmem>>, vector<1x8x128xf32>
    %145 = vector.shape_cast %144 : vector<1x8x128xf32> to vector<8x128xf32>
    %146 = vector.shape_cast %136 : vector<8x128xf32> to vector<1x8x128xf32>
    tpu.vector_store %arg15[%143, %c0_75, %c0_76], %146 {strides = array<i32>} : memref<8x8x128xf32, #tpu.memory_space<vmem>>, vector<1x8x128xf32>,
    %c3_i32 = arith.constant 3 : i32
    %c0_77 = arith.constant 0 : index
    %c0_78 = arith.constant 0 : index
    %c0_79 = arith.constant 0 : index
    %147 = vector.load %arg12[%c0_77, %c0_78, %c0_79] : memref<2x8x128xf32, #tpu.memory_space<vmem>>, vector<1x8x128xf32>
    %148 = vector.shape_cast %147 : vector<1x8x128xf32> to vector<8x128xf32>
    %c0_80 = arith.constant 0 : index
    %c0_81 = arith.constant 0 : index
    %c0_82 = arith.constant 0 : index
    %149 = vector.load %arg13[%c0_80, %c0_81, %c0_82] : memref<2x8x128xf32, #tpu.memory_space<vmem>>, vector<1x8x128xf32>
    %150 = vector.shape_cast %149 : vector<1x8x128xf32> to vector<8x128xf32>
    %c0_83 = arith.constant 0 : index
    %c0_84 = arith.constant 0 : index
    %151 = vector.load %arg4[%c0_83, %c0_84] : memref<128x512xf32, #tpu.memory_space<vmem>>, vector<128x512xf32>
    %152 = arith.index_cast %c3_i32 : i32 to index
    %c0_85 = arith.constant 0 : index
    %c0_86 = arith.constant 0 : index
    %153 = vector.load %arg14[%152, %c0_85, %c0_86] : memref<8x8x512xf32, #tpu.memory_space<vmem>>, vector<1x8x512xf32>
    %154 = vector.shape_cast %153 : vector<1x8x512xf32> to vector<8x512xf32>
    %cst_87 = arith.constant dense<0.000000e+00> : vector<8x512xf32>
    %155 = tpu.matmul %148, %151, %cst_87 {dimension_numbers = #tpu.dot_dimension_numbers<[1], [0], [0], [1], [0, 0, 1, 1], [], []>} : vector<8x128xf32>, vector<128x512xf32>, vector<8x512xf32> -> vector<8x512xf32>
    %156 = arith.addf %154, %155 : vector<8x512xf32>
    %157 = vector.extract_strided_slice %156 {offsets = [0, 0], sizes = [8, 128], strides = [1, 1]} : vector<8x512xf32> to vector<8x128xf32>
    %158 = arith.negf %157 : vector<8x128xf32>
    %159 = math.exp %158 : vector<8x128xf32>
    %cst_88 = arith.constant 1.000000e+00 : f32
    %160 = vector.broadcast %cst_88 : f32 to vector<8x128xf32>
    %161 = arith.addf %160, %159 : vector<8x128xf32>
    %162 = arith.divf %160, %161 : vector<8x128xf32>
    %163 = vector.extract_strided_slice %156 {offsets = [0, 128], sizes = [8, 128], strides = [1, 1]} : vector<8x512xf32> to vector<8x128xf32>
    %164 = arith.negf %163 : vector<8x128xf32>
    %165 = math.exp %164 : vector<8x128xf32>
    %cst_89 = arith.constant 1.000000e+00 : f32
    %166 = vector.broadcast %cst_89 : f32 to vector<8x128xf32>
    %167 = arith.addf %166, %165 : vector<8x128xf32>
    %168 = arith.divf %166, %167 : vector<8x128xf32>
    %169 = vector.extract_strided_slice %156 {offsets = [0, 256], sizes = [8, 128], strides = [1, 1]} : vector<8x512xf32> to vector<8x128xf32>
    %170 = math.tanh %169 : vector<8x128xf32>
    %171 = vector.extract_strided_slice %156 {offsets = [0, 384], sizes = [8, 128], strides = [1, 1]} : vector<8x512xf32> to vector<8x128xf32>
    %172 = arith.negf %171 : vector<8x128xf32>
    %173 = math.exp %172 : vector<8x128xf32>
    %cst_90 = arith.constant 1.000000e+00 : f32
    %174 = vector.broadcast %cst_90 : f32 to vector<8x128xf32>
    %175 = arith.addf %174, %173 : vector<8x128xf32>
    %176 = arith.divf %174, %175 : vector<8x128xf32>
    %177 = arith.mulf %168, %150 : vector<8x128xf32>
    %178 = arith.mulf %162, %170 : vector<8x128xf32>
    %179 = arith.addf %177, %178 : vector<8x128xf32>
    %180 = math.tanh %179 : vector<8x128xf32>
    %181 = arith.mulf %176, %180 : vector<8x128xf32>
    %c0_91 = arith.constant 0 : index
    %c0_92 = arith.constant 0 : index
    %c0_93 = arith.constant 0 : index
    %182 = vector.load %arg13[%c0_91, %c0_92, %c0_93] : memref<2x8x128xf32, #tpu.memory_space<vmem>>, vector<1x8x128xf32>
    %183 = vector.shape_cast %182 : vector<1x8x128xf32> to vector<8x128xf32>
    %184 = vector.shape_cast %179 : vector<8x128xf32> to vector<1x8x128xf32>
    tpu.vector_store %arg13[%c0_91, %c0_92, %c0_93], %184 {strides = array<i32>} : memref<2x8x128xf32, #tpu.memory_space<vmem>>, vector<1x8x128xf32>,
    %c0_94 = arith.constant 0 : index
    %c0_95 = arith.constant 0 : index
    %c0_96 = arith.constant 0 : index
    %185 = vector.load %arg12[%c0_94, %c0_95, %c0_96] : memref<2x8x128xf32, #tpu.memory_space<vmem>>, vector<1x8x128xf32>
    %186 = vector.shape_cast %185 : vector<1x8x128xf32> to vector<8x128xf32>
    %187 = vector.shape_cast %181 : vector<8x128xf32> to vector<1x8x128xf32>
    tpu.vector_store %arg12[%c0_94, %c0_95, %c0_96], %187 {strides = array<i32>} : memref<2x8x128xf32, #tpu.memory_space<vmem>>, vector<1x8x128xf32>,
    %188 = arith.index_cast %c3_i32 : i32 to index
    %c0_97 = arith.constant 0 : index
    %c0_98 = arith.constant 0 : index
    %189 = vector.load %arg15[%188, %c0_97, %c0_98] : memref<8x8x128xf32, #tpu.memory_space<vmem>>, vector<1x8x128xf32>
    %190 = vector.shape_cast %189 : vector<1x8x128xf32> to vector<8x128xf32>
    %191 = vector.shape_cast %181 : vector<8x128xf32> to vector<1x8x128xf32>
    tpu.vector_store %arg15[%188, %c0_97, %c0_98], %191 {strides = array<i32>} : memref<8x8x128xf32, #tpu.memory_space<vmem>>, vector<1x8x128xf32>,
    %c4_i32 = arith.constant 4 : i32
    %c0_99 = arith.constant 0 : index
    %c0_100 = arith.constant 0 : index
    %c0_101 = arith.constant 0 : index
    %192 = vector.load %arg12[%c0_99, %c0_100, %c0_101] : memref<2x8x128xf32, #tpu.memory_space<vmem>>, vector<1x8x128xf32>
    %193 = vector.shape_cast %192 : vector<1x8x128xf32> to vector<8x128xf32>
    %c0_102 = arith.constant 0 : index
    %c0_103 = arith.constant 0 : index
    %c0_104 = arith.constant 0 : index
    %194 = vector.load %arg13[%c0_102, %c0_103, %c0_104] : memref<2x8x128xf32, #tpu.memory_space<vmem>>, vector<1x8x128xf32>
    %195 = vector.shape_cast %194 : vector<1x8x128xf32> to vector<8x128xf32>
    %c0_105 = arith.constant 0 : index
    %c0_106 = arith.constant 0 : index
    %196 = vector.load %arg4[%c0_105, %c0_106] : memref<128x512xf32, #tpu.memory_space<vmem>>, vector<128x512xf32>
    %197 = arith.index_cast %c4_i32 : i32 to index
    %c0_107 = arith.constant 0 : index
    %c0_108 = arith.constant 0 : index
    %198 = vector.load %arg14[%197, %c0_107, %c0_108] : memref<8x8x512xf32, #tpu.memory_space<vmem>>, vector<1x8x512xf32>
    %199 = vector.shape_cast %198 : vector<1x8x512xf32> to vector<8x512xf32>
    %cst_109 = arith.constant dense<0.000000e+00> : vector<8x512xf32>
    %200 = tpu.matmul %193, %196, %cst_109 {dimension_numbers = #tpu.dot_dimension_numbers<[1], [0], [0], [1], [0, 0, 1, 1], [], []>} : vector<8x128xf32>, vector<128x512xf32>, vector<8x512xf32> -> vector<8x512xf32>
    %201 = arith.addf %199, %200 : vector<8x512xf32>
    %202 = vector.extract_strided_slice %201 {offsets = [0, 0], sizes = [8, 128], strides = [1, 1]} : vector<8x512xf32> to vector<8x128xf32>
    %203 = arith.negf %202 : vector<8x128xf32>
    %204 = math.exp %203 : vector<8x128xf32>
    %cst_110 = arith.constant 1.000000e+00 : f32
    %205 = vector.broadcast %cst_110 : f32 to vector<8x128xf32>
    %206 = arith.addf %205, %204 : vector<8x128xf32>
    %207 = arith.divf %205, %206 : vector<8x128xf32>
    %208 = vector.extract_strided_slice %201 {offsets = [0, 128], sizes = [8, 128], strides = [1, 1]} : vector<8x512xf32> to vector<8x128xf32>
    %209 = arith.negf %208 : vector<8x128xf32>
    %210 = math.exp %209 : vector<8x128xf32>
    %cst_111 = arith.constant 1.000000e+00 : f32
    %211 = vector.broadcast %cst_111 : f32 to vector<8x128xf32>
    %212 = arith.addf %211, %210 : vector<8x128xf32>
    %213 = arith.divf %211, %212 : vector<8x128xf32>
    %214 = vector.extract_strided_slice %201 {offsets = [0, 256], sizes = [8, 128], strides = [1, 1]} : vector<8x512xf32> to vector<8x128xf32>
    %215 = math.tanh %214 : vector<8x128xf32>
    %216 = vector.extract_strided_slice %201 {offsets = [0, 384], sizes = [8, 128], strides = [1, 1]} : vector<8x512xf32> to vector<8x128xf32>
    %217 = arith.negf %216 : vector<8x128xf32>
    %218 = math.exp %217 : vector<8x128xf32>
    %cst_112 = arith.constant 1.000000e+00 : f32
    %219 = vector.broadcast %cst_112 : f32 to vector<8x128xf32>
    %220 = arith.addf %219, %218 : vector<8x128xf32>
    %221 = arith.divf %219, %220 : vector<8x128xf32>
    %222 = arith.mulf %213, %195 : vector<8x128xf32>
    %223 = arith.mulf %207, %215 : vector<8x128xf32>
    %224 = arith.addf %222, %223 : vector<8x128xf32>
    %225 = math.tanh %224 : vector<8x128xf32>
    %226 = arith.mulf %221, %225 : vector<8x128xf32>
    %c0_113 = arith.constant 0 : index
    %c0_114 = arith.constant 0 : index
    %c0_115 = arith.constant 0 : index
    %227 = vector.load %arg13[%c0_113, %c0_114, %c0_115] : memref<2x8x128xf32, #tpu.memory_space<vmem>>, vector<1x8x128xf32>
    %228 = vector.shape_cast %227 : vector<1x8x128xf32> to vector<8x128xf32>
    %229 = vector.shape_cast %224 : vector<8x128xf32> to vector<1x8x128xf32>
    tpu.vector_store %arg13[%c0_113, %c0_114, %c0_115], %229 {strides = array<i32>} : memref<2x8x128xf32, #tpu.memory_space<vmem>>, vector<1x8x128xf32>,
    %c0_116 = arith.constant 0 : index
    %c0_117 = arith.constant 0 : index
    %c0_118 = arith.constant 0 : index
    %230 = vector.load %arg12[%c0_116, %c0_117, %c0_118] : memref<2x8x128xf32, #tpu.memory_space<vmem>>, vector<1x8x128xf32>
    %231 = vector.shape_cast %230 : vector<1x8x128xf32> to vector<8x128xf32>
    %232 = vector.shape_cast %226 : vector<8x128xf32> to vector<1x8x128xf32>
    tpu.vector_store %arg12[%c0_116, %c0_117, %c0_118], %232 {strides = array<i32>} : memref<2x8x128xf32, #tpu.memory_space<vmem>>, vector<1x8x128xf32>,
    %233 = arith.index_cast %c4_i32 : i32 to index
    %c0_119 = arith.constant 0 : index
    %c0_120 = arith.constant 0 : index
    %234 = vector.load %arg15[%233, %c0_119, %c0_120] : memref<8x8x128xf32, #tpu.memory_space<vmem>>, vector<1x8x128xf32>
    %235 = vector.shape_cast %234 : vector<1x8x128xf32> to vector<8x128xf32>
    %236 = vector.shape_cast %226 : vector<8x128xf32> to vector<1x8x128xf32>
    tpu.vector_store %arg15[%233, %c0_119, %c0_120], %236 {strides = array<i32>} : memref<8x8x128xf32, #tpu.memory_space<vmem>>, vector<1x8x128xf32>,
    %c5_i32 = arith.constant 5 : i32
    %c0_121 = arith.constant 0 : index
    %c0_122 = arith.constant 0 : index
    %c0_123 = arith.constant 0 : index
    %237 = vector.load %arg12[%c0_121, %c0_122, %c0_123] : memref<2x8x128xf32, #tpu.memory_space<vmem>>, vector<1x8x128xf32>
    %238 = vector.shape_cast %237 : vector<1x8x128xf32> to vector<8x128xf32>
    %c0_124 = arith.constant 0 : index
    %c0_125 = arith.constant 0 : index
    %c0_126 = arith.constant 0 : index
    %239 = vector.load %arg13[%c0_124, %c0_125, %c0_126] : memref<2x8x128xf32, #tpu.memory_space<vmem>>, vector<1x8x128xf32>
    %240 = vector.shape_cast %239 : vector<1x8x128xf32> to vector<8x128xf32>
    %c0_127 = arith.constant 0 : index
    %c0_128 = arith.constant 0 : index
    %241 = vector.load %arg4[%c0_127, %c0_128] : memref<128x512xf32, #tpu.memory_space<vmem>>, vector<128x512xf32>
    %242 = arith.index_cast %c5_i32 : i32 to index
    %c0_129 = arith.constant 0 : index
    %c0_130 = arith.constant 0 : index
    %243 = vector.load %arg14[%242, %c0_129, %c0_130] : memref<8x8x512xf32, #tpu.memory_space<vmem>>, vector<1x8x512xf32>
    %244 = vector.shape_cast %243 : vector<1x8x512xf32> to vector<8x512xf32>
    %cst_131 = arith.constant dense<0.000000e+00> : vector<8x512xf32>
    %245 = tpu.matmul %238, %241, %cst_131 {dimension_numbers = #tpu.dot_dimension_numbers<[1], [0], [0], [1], [0, 0, 1, 1], [], []>} : vector<8x128xf32>, vector<128x512xf32>, vector<8x512xf32> -> vector<8x512xf32>
    %246 = arith.addf %244, %245 : vector<8x512xf32>
    %247 = vector.extract_strided_slice %246 {offsets = [0, 0], sizes = [8, 128], strides = [1, 1]} : vector<8x512xf32> to vector<8x128xf32>
    %248 = arith.negf %247 : vector<8x128xf32>
    %249 = math.exp %248 : vector<8x128xf32>
    %cst_132 = arith.constant 1.000000e+00 : f32
    %250 = vector.broadcast %cst_132 : f32 to vector<8x128xf32>
    %251 = arith.addf %250, %249 : vector<8x128xf32>
    %252 = arith.divf %250, %251 : vector<8x128xf32>
    %253 = vector.extract_strided_slice %246 {offsets = [0, 128], sizes = [8, 128], strides = [1, 1]} : vector<8x512xf32> to vector<8x128xf32>
    %254 = arith.negf %253 : vector<8x128xf32>
    %255 = math.exp %254 : vector<8x128xf32>
    %cst_133 = arith.constant 1.000000e+00 : f32
    %256 = vector.broadcast %cst_133 : f32 to vector<8x128xf32>
    %257 = arith.addf %256, %255 : vector<8x128xf32>
    %258 = arith.divf %256, %257 : vector<8x128xf32>
    %259 = vector.extract_strided_slice %246 {offsets = [0, 256], sizes = [8, 128], strides = [1, 1]} : vector<8x512xf32> to vector<8x128xf32>
    %260 = math.tanh %259 : vector<8x128xf32>
    %261 = vector.extract_strided_slice %246 {offsets = [0, 384], sizes = [8, 128], strides = [1, 1]} : vector<8x512xf32> to vector<8x128xf32>
    %262 = arith.negf %261 : vector<8x128xf32>
    %263 = math.exp %262 : vector<8x128xf32>
    %cst_134 = arith.constant 1.000000e+00 : f32
    %264 = vector.broadcast %cst_134 : f32 to vector<8x128xf32>
    %265 = arith.addf %264, %263 : vector<8x128xf32>
    %266 = arith.divf %264, %265 : vector<8x128xf32>
    %267 = arith.mulf %258, %240 : vector<8x128xf32>
    %268 = arith.mulf %252, %260 : vector<8x128xf32>
    %269 = arith.addf %267, %268 : vector<8x128xf32>
    %270 = math.tanh %269 : vector<8x128xf32>
    %271 = arith.mulf %266, %270 : vector<8x128xf32>
    %c0_135 = arith.constant 0 : index
    %c0_136 = arith.constant 0 : index
    %c0_137 = arith.constant 0 : index
    %272 = vector.load %arg13[%c0_135, %c0_136, %c0_137] : memref<2x8x128xf32, #tpu.memory_space<vmem>>, vector<1x8x128xf32>
    %273 = vector.shape_cast %272 : vector<1x8x128xf32> to vector<8x128xf32>
    %274 = vector.shape_cast %269 : vector<8x128xf32> to vector<1x8x128xf32>
    tpu.vector_store %arg13[%c0_135, %c0_136, %c0_137], %274 {strides = array<i32>} : memref<2x8x128xf32, #tpu.memory_space<vmem>>, vector<1x8x128xf32>,
    %c0_138 = arith.constant 0 : index
    %c0_139 = arith.constant 0 : index
    %c0_140 = arith.constant 0 : index
    %275 = vector.load %arg12[%c0_138, %c0_139, %c0_140] : memref<2x8x128xf32, #tpu.memory_space<vmem>>, vector<1x8x128xf32>
    %276 = vector.shape_cast %275 : vector<1x8x128xf32> to vector<8x128xf32>
    %277 = vector.shape_cast %271 : vector<8x128xf32> to vector<1x8x128xf32>
    tpu.vector_store %arg12[%c0_138, %c0_139, %c0_140], %277 {strides = array<i32>} : memref<2x8x128xf32, #tpu.memory_space<vmem>>, vector<1x8x128xf32>,
    %278 = arith.index_cast %c5_i32 : i32 to index
    %c0_141 = arith.constant 0 : index
    %c0_142 = arith.constant 0 : index
    %279 = vector.load %arg15[%278, %c0_141, %c0_142] : memref<8x8x128xf32, #tpu.memory_space<vmem>>, vector<1x8x128xf32>
    %280 = vector.shape_cast %279 : vector<1x8x128xf32> to vector<8x128xf32>
    %281 = vector.shape_cast %271 : vector<8x128xf32> to vector<1x8x128xf32>
    tpu.vector_store %arg15[%278, %c0_141, %c0_142], %281 {strides = array<i32>} : memref<8x8x128xf32, #tpu.memory_space<vmem>>, vector<1x8x128xf32>,
    %c6_i32 = arith.constant 6 : i32
    %c0_143 = arith.constant 0 : index
    %c0_144 = arith.constant 0 : index
    %c0_145 = arith.constant 0 : index
    %282 = vector.load %arg12[%c0_143, %c0_144, %c0_145] : memref<2x8x128xf32, #tpu.memory_space<vmem>>, vector<1x8x128xf32>
    %283 = vector.shape_cast %282 : vector<1x8x128xf32> to vector<8x128xf32>
    %c0_146 = arith.constant 0 : index
    %c0_147 = arith.constant 0 : index
    %c0_148 = arith.constant 0 : index
    %284 = vector.load %arg13[%c0_146, %c0_147, %c0_148] : memref<2x8x128xf32, #tpu.memory_space<vmem>>, vector<1x8x128xf32>
    %285 = vector.shape_cast %284 : vector<1x8x128xf32> to vector<8x128xf32>
    %c0_149 = arith.constant 0 : index
    %c0_150 = arith.constant 0 : index
    %286 = vector.load %arg4[%c0_149, %c0_150] : memref<128x512xf32, #tpu.memory_space<vmem>>, vector<128x512xf32>
    %287 = arith.index_cast %c6_i32 : i32 to index
    %c0_151 = arith.constant 0 : index
    %c0_152 = arith.constant 0 : index
    %288 = vector.load %arg14[%287, %c0_151, %c0_152] : memref<8x8x512xf32, #tpu.memory_space<vmem>>, vector<1x8x512xf32>
    %289 = vector.shape_cast %288 : vector<1x8x512xf32> to vector<8x512xf32>
    %cst_153 = arith.constant dense<0.000000e+00> : vector<8x512xf32>
    %290 = tpu.matmul %283, %286, %cst_153 {dimension_numbers = #tpu.dot_dimension_numbers<[1], [0], [0], [1], [0, 0, 1, 1], [], []>} : vector<8x128xf32>, vector<128x512xf32>, vector<8x512xf32> -> vector<8x512xf32>
    %291 = arith.addf %289, %290 : vector<8x512xf32>
    %292 = vector.extract_strided_slice %291 {offsets = [0, 0], sizes = [8, 128], strides = [1, 1]} : vector<8x512xf32> to vector<8x128xf32>
    %293 = arith.negf %292 : vector<8x128xf32>
    %294 = math.exp %293 : vector<8x128xf32>
    %cst_154 = arith.constant 1.000000e+00 : f32
    %295 = vector.broadcast %cst_154 : f32 to vector<8x128xf32>
    %296 = arith.addf %295, %294 : vector<8x128xf32>
    %297 = arith.divf %295, %296 : vector<8x128xf32>
    %298 = vector.extract_strided_slice %291 {offsets = [0, 128], sizes = [8, 128], strides = [1, 1]} : vector<8x512xf32> to vector<8x128xf32>
    %299 = arith.negf %298 : vector<8x128xf32>
    %300 = math.exp %299 : vector<8x128xf32>
    %cst_155 = arith.constant 1.000000e+00 : f32
    %301 = vector.broadcast %cst_155 : f32 to vector<8x128xf32>
    %302 = arith.addf %301, %300 : vector<8x128xf32>
    %303 = arith.divf %301, %302 : vector<8x128xf32>
    %304 = vector.extract_strided_slice %291 {offsets = [0, 256], sizes = [8, 128], strides = [1, 1]} : vector<8x512xf32> to vector<8x128xf32>
    %305 = math.tanh %304 : vector<8x128xf32>
    %306 = vector.extract_strided_slice %291 {offsets = [0, 384], sizes = [8, 128], strides = [1, 1]} : vector<8x512xf32> to vector<8x128xf32>
    %307 = arith.negf %306 : vector<8x128xf32>
    %308 = math.exp %307 : vector<8x128xf32>
    %cst_156 = arith.constant 1.000000e+00 : f32
    %309 = vector.broadcast %cst_156 : f32 to vector<8x128xf32>
    %310 = arith.addf %309, %308 : vector<8x128xf32>
    %311 = arith.divf %309, %310 : vector<8x128xf32>
    %312 = arith.mulf %303, %285 : vector<8x128xf32>
    %313 = arith.mulf %297, %305 : vector<8x128xf32>
    %314 = arith.addf %312, %313 : vector<8x128xf32>
    %315 = math.tanh %314 : vector<8x128xf32>
    %316 = arith.mulf %311, %315 : vector<8x128xf32>
    %c0_157 = arith.constant 0 : index
    %c0_158 = arith.constant 0 : index
    %c0_159 = arith.constant 0 : index
    %317 = vector.load %arg13[%c0_157, %c0_158, %c0_159] : memref<2x8x128xf32, #tpu.memory_space<vmem>>, vector<1x8x128xf32>
    %318 = vector.shape_cast %317 : vector<1x8x128xf32> to vector<8x128xf32>
    %319 = vector.shape_cast %314 : vector<8x128xf32> to vector<1x8x128xf32>
    tpu.vector_store %arg13[%c0_157, %c0_158, %c0_159], %319 {strides = array<i32>} : memref<2x8x128xf32, #tpu.memory_space<vmem>>, vector<1x8x128xf32>,
    %c0_160 = arith.constant 0 : index
    %c0_161 = arith.constant 0 : index
    %c0_162 = arith.constant 0 : index
    %320 = vector.load %arg12[%c0_160, %c0_161, %c0_162] : memref<2x8x128xf32, #tpu.memory_space<vmem>>, vector<1x8x128xf32>
    %321 = vector.shape_cast %320 : vector<1x8x128xf32> to vector<8x128xf32>
    %322 = vector.shape_cast %316 : vector<8x128xf32> to vector<1x8x128xf32>
    tpu.vector_store %arg12[%c0_160, %c0_161, %c0_162], %322 {strides = array<i32>} : memref<2x8x128xf32, #tpu.memory_space<vmem>>, vector<1x8x128xf32>,
    %323 = arith.index_cast %c6_i32 : i32 to index
    %c0_163 = arith.constant 0 : index
    %c0_164 = arith.constant 0 : index
    %324 = vector.load %arg15[%323, %c0_163, %c0_164] : memref<8x8x128xf32, #tpu.memory_space<vmem>>, vector<1x8x128xf32>
    %325 = vector.shape_cast %324 : vector<1x8x128xf32> to vector<8x128xf32>
    %326 = vector.shape_cast %316 : vector<8x128xf32> to vector<1x8x128xf32>
    tpu.vector_store %arg15[%323, %c0_163, %c0_164], %326 {strides = array<i32>} : memref<8x8x128xf32, #tpu.memory_space<vmem>>, vector<1x8x128xf32>,
    %c7_i32 = arith.constant 7 : i32
    %c0_165 = arith.constant 0 : index
    %c0_166 = arith.constant 0 : index
    %c0_167 = arith.constant 0 : index
    %327 = vector.load %arg12[%c0_165, %c0_166, %c0_167] : memref<2x8x128xf32, #tpu.memory_space<vmem>>, vector<1x8x128xf32>
    %328 = vector.shape_cast %327 : vector<1x8x128xf32> to vector<8x128xf32>
    %c0_168 = arith.constant 0 : index
    %c0_169 = arith.constant 0 : index
    %c0_170 = arith.constant 0 : index
    %329 = vector.load %arg13[%c0_168, %c0_169, %c0_170] : memref<2x8x128xf32, #tpu.memory_space<vmem>>, vector<1x8x128xf32>
    %330 = vector.shape_cast %329 : vector<1x8x128xf32> to vector<8x128xf32>
    %c0_171 = arith.constant 0 : index
    %c0_172 = arith.constant 0 : index
    %331 = vector.load %arg4[%c0_171, %c0_172] : memref<128x512xf32, #tpu.memory_space<vmem>>, vector<128x512xf32>
    %332 = arith.index_cast %c7_i32 : i32 to index
    %c0_173 = arith.constant 0 : index
    %c0_174 = arith.constant 0 : index
    %333 = vector.load %arg14[%332, %c0_173, %c0_174] : memref<8x8x512xf32, #tpu.memory_space<vmem>>, vector<1x8x512xf32>
    %334 = vector.shape_cast %333 : vector<1x8x512xf32> to vector<8x512xf32>
    %cst_175 = arith.constant dense<0.000000e+00> : vector<8x512xf32>
    %335 = tpu.matmul %328, %331, %cst_175 {dimension_numbers = #tpu.dot_dimension_numbers<[1], [0], [0], [1], [0, 0, 1, 1], [], []>} : vector<8x128xf32>, vector<128x512xf32>, vector<8x512xf32> -> vector<8x512xf32>
    %336 = arith.addf %334, %335 : vector<8x512xf32>
    %337 = vector.extract_strided_slice %336 {offsets = [0, 0], sizes = [8, 128], strides = [1, 1]} : vector<8x512xf32> to vector<8x128xf32>
    %338 = arith.negf %337 : vector<8x128xf32>
    %339 = math.exp %338 : vector<8x128xf32>
    %cst_176 = arith.constant 1.000000e+00 : f32
    %340 = vector.broadcast %cst_176 : f32 to vector<8x128xf32>
    %341 = arith.addf %340, %339 : vector<8x128xf32>
    %342 = arith.divf %340, %341 : vector<8x128xf32>
    %343 = vector.extract_strided_slice %336 {offsets = [0, 128], sizes = [8, 128], strides = [1, 1]} : vector<8x512xf32> to vector<8x128xf32>
    %344 = arith.negf %343 : vector<8x128xf32>
    %345 = math.exp %344 : vector<8x128xf32>
    %cst_177 = arith.constant 1.000000e+00 : f32
    %346 = vector.broadcast %cst_177 : f32 to vector<8x128xf32>
    %347 = arith.addf %346, %345 : vector<8x128xf32>
    %348 = arith.divf %346, %347 : vector<8x128xf32>
    %349 = vector.extract_strided_slice %336 {offsets = [0, 256], sizes = [8, 128], strides = [1, 1]} : vector<8x512xf32> to vector<8x128xf32>
    %350 = math.tanh %349 : vector<8x128xf32>
    %351 = vector.extract_strided_slice %336 {offsets = [0, 384], sizes = [8, 128], strides = [1, 1]} : vector<8x512xf32> to vector<8x128xf32>
    %352 = arith.negf %351 : vector<8x128xf32>
    %353 = math.exp %352 : vector<8x128xf32>
    %cst_178 = arith.constant 1.000000e+00 : f32
    %354 = vector.broadcast %cst_178 : f32 to vector<8x128xf32>
    %355 = arith.addf %354, %353 : vector<8x128xf32>
    %356 = arith.divf %354, %355 : vector<8x128xf32>
    %357 = arith.mulf %348, %330 : vector<8x128xf32>
    %358 = arith.mulf %342, %350 : vector<8x128xf32>
    %359 = arith.addf %357, %358 : vector<8x128xf32>
    %360 = math.tanh %359 : vector<8x128xf32>
    %361 = arith.mulf %356, %360 : vector<8x128xf32>
    %c0_179 = arith.constant 0 : index
    %c0_180 = arith.constant 0 : index
    %c0_181 = arith.constant 0 : index
    %362 = vector.load %arg13[%c0_179, %c0_180, %c0_181] : memref<2x8x128xf32, #tpu.memory_space<vmem>>, vector<1x8x128xf32>
    %363 = vector.shape_cast %362 : vector<1x8x128xf32> to vector<8x128xf32>
    %364 = vector.shape_cast %359 : vector<8x128xf32> to vector<1x8x128xf32>
    tpu.vector_store %arg13[%c0_179, %c0_180, %c0_181], %364 {strides = array<i32>} : memref<2x8x128xf32, #tpu.memory_space<vmem>>, vector<1x8x128xf32>,
    %c0_182 = arith.constant 0 : index
    %c0_183 = arith.constant 0 : index
    %c0_184 = arith.constant 0 : index
    %365 = vector.load %arg12[%c0_182, %c0_183, %c0_184] : memref<2x8x128xf32, #tpu.memory_space<vmem>>, vector<1x8x128xf32>
    %366 = vector.shape_cast %365 : vector<1x8x128xf32> to vector<8x128xf32>
    %367 = vector.shape_cast %361 : vector<8x128xf32> to vector<1x8x128xf32>
    tpu.vector_store %arg12[%c0_182, %c0_183, %c0_184], %367 {strides = array<i32>} : memref<2x8x128xf32, #tpu.memory_space<vmem>>, vector<1x8x128xf32>,
    %368 = arith.index_cast %c7_i32 : i32 to index
    %c0_185 = arith.constant 0 : index
    %c0_186 = arith.constant 0 : index
    %369 = vector.load %arg15[%368, %c0_185, %c0_186] : memref<8x8x128xf32, #tpu.memory_space<vmem>>, vector<1x8x128xf32>
    %370 = vector.shape_cast %369 : vector<1x8x128xf32> to vector<8x128xf32>
    %371 = vector.shape_cast %361 : vector<8x128xf32> to vector<1x8x128xf32>
    tpu.vector_store %arg15[%368, %c0_185, %c0_186], %371 {strides = array<i32>} : memref<8x8x128xf32, #tpu.memory_space<vmem>>, vector<1x8x128xf32>,
    %c8_i32 = arith.constant 8 : i32
    %c0_187 = arith.constant 0 : index
    %c0_188 = arith.constant 0 : index
    %c0_189 = arith.constant 0 : index
    %372 = vector.load %arg15[%c0_187, %c0_188, %c0_189] : memref<8x8x128xf32, #tpu.memory_space<vmem>>, vector<8x8x128xf32>
    %373 = vector.shape_cast %372 : vector<8x8x128xf32> to vector<64x128xf32>
    %c0_190 = arith.constant 0 : index
    %c0_191 = arith.constant 0 : index
    %374 = vector.load %arg6[%c0_190, %c0_191] : memref<128x512xf32, #tpu.memory_space<vmem>>, vector<128x512xf32>
    %cst_192 = arith.constant dense<0.000000e+00> : vector<64x512xf32>
    %375 = tpu.matmul %373, %374, %cst_192 {dimension_numbers = #tpu.dot_dimension_numbers<[1], [0], [0], [1], [0, 0, 1, 1], [], []>} : vector<64x128xf32>, vector<128x512xf32>, vector<64x512xf32> -> vector<64x512xf32>
    %c0_193 = arith.constant 0 : index
    %c0_194 = arith.constant 0 : index
    %376 = vector.load %arg8[%c0_193, %c0_194] : memref<1x512xf32, #tpu.memory_space<vmem>>, vector<1x512xf32>
    %377 = vector.broadcast %376 : vector<1x512xf32> to vector<64x512xf32>
    %378 = arith.addf %375, %377 : vector<64x512xf32>
    %379 = vector.shape_cast %378 : vector<64x512xf32> to vector<8x8x512xf32>
    %c0_195 = arith.constant 0 : index
    %c0_196 = arith.constant 0 : index
    %c0_197 = arith.constant 0 : index
    %380 = vector.load %arg14[%c0_195, %c0_196, %c0_197] : memref<8x8x512xf32, #tpu.memory_space<vmem>>, vector<8x8x512xf32>
    tpu.vector_store %arg14[%c0_195, %c0_196, %c0_197], %379 {strides = array<i32>} : memref<8x8x512xf32, #tpu.memory_space<vmem>>, vector<8x8x512xf32>,
    %c0_i32_198 = arith.constant 0 : i32
    %c1 = arith.constant 1 : index
    %c0_199 = arith.constant 0 : index
    %c0_200 = arith.constant 0 : index
    %381 = vector.load %arg12[%c1, %c0_199, %c0_200] : memref<2x8x128xf32, #tpu.memory_space<vmem>>, vector<1x8x128xf32>
    %382 = vector.shape_cast %381 : vector<1x8x128xf32> to vector<8x128xf32>
    %c1_201 = arith.constant 1 : index
    %c0_202 = arith.constant 0 : index
    %c0_203 = arith.constant 0 : index
    %383 = vector.load %arg13[%c1_201, %c0_202, %c0_203] : memref<2x8x128xf32, #tpu.memory_space<vmem>>, vector<1x8x128xf32>
    %384 = vector.shape_cast %383 : vector<1x8x128xf32> to vector<8x128xf32>
    %c0_204 = arith.constant 0 : index
    %c0_205 = arith.constant 0 : index
    %385 = vector.load %arg7[%c0_204, %c0_205] : memref<128x512xf32, #tpu.memory_space<vmem>>, vector<128x512xf32>
    %386 = arith.index_cast %c0_i32_198 : i32 to index
    %c0_206 = arith.constant 0 : index
    %c0_207 = arith.constant 0 : index
    %387 = vector.load %arg14[%386, %c0_206, %c0_207] : memref<8x8x512xf32, #tpu.memory_space<vmem>>, vector<1x8x512xf32>
    %388 = vector.shape_cast %387 : vector<1x8x512xf32> to vector<8x512xf32>
    %cst_208 = arith.constant dense<0.000000e+00> : vector<8x512xf32>
    %389 = tpu.matmul %382, %385, %cst_208 {dimension_numbers = #tpu.dot_dimension_numbers<[1], [0], [0], [1], [0, 0, 1, 1], [], []>} : vector<8x128xf32>, vector<128x512xf32>, vector<8x512xf32> -> vector<8x512xf32>
    %390 = arith.addf %388, %389 : vector<8x512xf32>
    %391 = vector.extract_strided_slice %390 {offsets = [0, 0], sizes = [8, 128], strides = [1, 1]} : vector<8x512xf32> to vector<8x128xf32>
    %392 = arith.negf %391 : vector<8x128xf32>
    %393 = math.exp %392 : vector<8x128xf32>
    %cst_209 = arith.constant 1.000000e+00 : f32
    %394 = vector.broadcast %cst_209 : f32 to vector<8x128xf32>
    %395 = arith.addf %394, %393 : vector<8x128xf32>
    %396 = arith.divf %394, %395 : vector<8x128xf32>
    %397 = vector.extract_strided_slice %390 {offsets = [0, 128], sizes = [8, 128], strides = [1, 1]} : vector<8x512xf32> to vector<8x128xf32>
    %398 = arith.negf %397 : vector<8x128xf32>
    %399 = math.exp %398 : vector<8x128xf32>
    %cst_210 = arith.constant 1.000000e+00 : f32
    %400 = vector.broadcast %cst_210 : f32 to vector<8x128xf32>
    %401 = arith.addf %400, %399 : vector<8x128xf32>
    %402 = arith.divf %400, %401 : vector<8x128xf32>
    %403 = vector.extract_strided_slice %390 {offsets = [0, 256], sizes = [8, 128], strides = [1, 1]} : vector<8x512xf32> to vector<8x128xf32>
    %404 = math.tanh %403 : vector<8x128xf32>
    %405 = vector.extract_strided_slice %390 {offsets = [0, 384], sizes = [8, 128], strides = [1, 1]} : vector<8x512xf32> to vector<8x128xf32>
    %406 = arith.negf %405 : vector<8x128xf32>
    %407 = math.exp %406 : vector<8x128xf32>
    %cst_211 = arith.constant 1.000000e+00 : f32
    %408 = vector.broadcast %cst_211 : f32 to vector<8x128xf32>
    %409 = arith.addf %408, %407 : vector<8x128xf32>
    %410 = arith.divf %408, %409 : vector<8x128xf32>
    %411 = arith.mulf %402, %384 : vector<8x128xf32>
    %412 = arith.mulf %396, %404 : vector<8x128xf32>
    %413 = arith.addf %411, %412 : vector<8x128xf32>
    %414 = math.tanh %413 : vector<8x128xf32>
    %415 = arith.mulf %410, %414 : vector<8x128xf32>
    %c1_212 = arith.constant 1 : index
    %c0_213 = arith.constant 0 : index
    %c0_214 = arith.constant 0 : index
    %416 = vector.load %arg13[%c1_212, %c0_213, %c0_214] : memref<2x8x128xf32, #tpu.memory_space<vmem>>, vector<1x8x128xf32>
    %417 = vector.shape_cast %416 : vector<1x8x128xf32> to vector<8x128xf32>
    %418 = vector.shape_cast %413 : vector<8x128xf32> to vector<1x8x128xf32>
    tpu.vector_store %arg13[%c1_212, %c0_213, %c0_214], %418 {strides = array<i32>} : memref<2x8x128xf32, #tpu.memory_space<vmem>>, vector<1x8x128xf32>,
    %c1_215 = arith.constant 1 : index
    %c0_216 = arith.constant 0 : index
    %c0_217 = arith.constant 0 : index
    %419 = vector.load %arg12[%c1_215, %c0_216, %c0_217] : memref<2x8x128xf32, #tpu.memory_space<vmem>>, vector<1x8x128xf32>
    %420 = vector.shape_cast %419 : vector<1x8x128xf32> to vector<8x128xf32>
    %421 = vector.shape_cast %415 : vector<8x128xf32> to vector<1x8x128xf32>
    tpu.vector_store %arg12[%c1_215, %c0_216, %c0_217], %421 {strides = array<i32>} : memref<2x8x128xf32, #tpu.memory_space<vmem>>, vector<1x8x128xf32>,
    %422 = arith.index_cast %c0_i32_198 : i32 to index
    %c0_218 = arith.constant 0 : index
    %c0_219 = arith.constant 0 : index
    %423 = vector.load %arg15[%422, %c0_218, %c0_219] : memref<8x8x128xf32, #tpu.memory_space<vmem>>, vector<1x8x128xf32>
    %424 = vector.shape_cast %423 : vector<1x8x128xf32> to vector<8x128xf32>
    %425 = vector.shape_cast %415 : vector<8x128xf32> to vector<1x8x128xf32>
    tpu.vector_store %arg15[%422, %c0_218, %c0_219], %425 {strides = array<i32>} : memref<8x8x128xf32, #tpu.memory_space<vmem>>, vector<1x8x128xf32>,
    %c1_i32_220 = arith.constant 1 : i32
    %c1_221 = arith.constant 1 : index
    %c0_222 = arith.constant 0 : index
    %c0_223 = arith.constant 0 : index
    %426 = vector.load %arg12[%c1_221, %c0_222, %c0_223] : memref<2x8x128xf32, #tpu.memory_space<vmem>>, vector<1x8x128xf32>
    %427 = vector.shape_cast %426 : vector<1x8x128xf32> to vector<8x128xf32>
    %c1_224 = arith.constant 1 : index
    %c0_225 = arith.constant 0 : index
    %c0_226 = arith.constant 0 : index
    %428 = vector.load %arg13[%c1_224, %c0_225, %c0_226] : memref<2x8x128xf32, #tpu.memory_space<vmem>>, vector<1x8x128xf32>
    %429 = vector.shape_cast %428 : vector<1x8x128xf32> to vector<8x128xf32>
    %c0_227 = arith.constant 0 : index
    %c0_228 = arith.constant 0 : index
    %430 = vector.load %arg7[%c0_227, %c0_228] : memref<128x512xf32, #tpu.memory_space<vmem>>, vector<128x512xf32>
    %431 = arith.index_cast %c1_i32_220 : i32 to index
    %c0_229 = arith.constant 0 : index
    %c0_230 = arith.constant 0 : index
    %432 = vector.load %arg14[%431, %c0_229, %c0_230] : memref<8x8x512xf32, #tpu.memory_space<vmem>>, vector<1x8x512xf32>
    %433 = vector.shape_cast %432 : vector<1x8x512xf32> to vector<8x512xf32>
    %cst_231 = arith.constant dense<0.000000e+00> : vector<8x512xf32>
    %434 = tpu.matmul %427, %430, %cst_231 {dimension_numbers = #tpu.dot_dimension_numbers<[1], [0], [0], [1], [0, 0, 1, 1], [], []>} : vector<8x128xf32>, vector<128x512xf32>, vector<8x512xf32> -> vector<8x512xf32>
    %435 = arith.addf %433, %434 : vector<8x512xf32>
    %436 = vector.extract_strided_slice %435 {offsets = [0, 0], sizes = [8, 128], strides = [1, 1]} : vector<8x512xf32> to vector<8x128xf32>
    %437 = arith.negf %436 : vector<8x128xf32>
    %438 = math.exp %437 : vector<8x128xf32>
    %cst_232 = arith.constant 1.000000e+00 : f32
    %439 = vector.broadcast %cst_232 : f32 to vector<8x128xf32>
    %440 = arith.addf %439, %438 : vector<8x128xf32>
    %441 = arith.divf %439, %440 : vector<8x128xf32>
    %442 = vector.extract_strided_slice %435 {offsets = [0, 128], sizes = [8, 128], strides = [1, 1]} : vector<8x512xf32> to vector<8x128xf32>
    %443 = arith.negf %442 : vector<8x128xf32>
    %444 = math.exp %443 : vector<8x128xf32>
    %cst_233 = arith.constant 1.000000e+00 : f32
    %445 = vector.broadcast %cst_233 : f32 to vector<8x128xf32>
    %446 = arith.addf %445, %444 : vector<8x128xf32>
    %447 = arith.divf %445, %446 : vector<8x128xf32>
    %448 = vector.extract_strided_slice %435 {offsets = [0, 256], sizes = [8, 128], strides = [1, 1]} : vector<8x512xf32> to vector<8x128xf32>
    %449 = math.tanh %448 : vector<8x128xf32>
    %450 = vector.extract_strided_slice %435 {offsets = [0, 384], sizes = [8, 128], strides = [1, 1]} : vector<8x512xf32> to vector<8x128xf32>
    %451 = arith.negf %450 : vector<8x128xf32>
    %452 = math.exp %451 : vector<8x128xf32>
    %cst_234 = arith.constant 1.000000e+00 : f32
    %453 = vector.broadcast %cst_234 : f32 to vector<8x128xf32>
    %454 = arith.addf %453, %452 : vector<8x128xf32>
    %455 = arith.divf %453, %454 : vector<8x128xf32>
    %456 = arith.mulf %447, %429 : vector<8x128xf32>
    %457 = arith.mulf %441, %449 : vector<8x128xf32>
    %458 = arith.addf %456, %457 : vector<8x128xf32>
    %459 = math.tanh %458 : vector<8x128xf32>
    %460 = arith.mulf %455, %459 : vector<8x128xf32>
    %c1_235 = arith.constant 1 : index
    %c0_236 = arith.constant 0 : index
    %c0_237 = arith.constant 0 : index
    %461 = vector.load %arg13[%c1_235, %c0_236, %c0_237] : memref<2x8x128xf32, #tpu.memory_space<vmem>>, vector<1x8x128xf32>
    %462 = vector.shape_cast %461 : vector<1x8x128xf32> to vector<8x128xf32>
    %463 = vector.shape_cast %458 : vector<8x128xf32> to vector<1x8x128xf32>
    tpu.vector_store %arg13[%c1_235, %c0_236, %c0_237], %463 {strides = array<i32>} : memref<2x8x128xf32, #tpu.memory_space<vmem>>, vector<1x8x128xf32>,
    %c1_238 = arith.constant 1 : index
    %c0_239 = arith.constant 0 : index
    %c0_240 = arith.constant 0 : index
    %464 = vector.load %arg12[%c1_238, %c0_239, %c0_240] : memref<2x8x128xf32, #tpu.memory_space<vmem>>, vector<1x8x128xf32>
    %465 = vector.shape_cast %464 : vector<1x8x128xf32> to vector<8x128xf32>
    %466 = vector.shape_cast %460 : vector<8x128xf32> to vector<1x8x128xf32>
    tpu.vector_store %arg12[%c1_238, %c0_239, %c0_240], %466 {strides = array<i32>} : memref<2x8x128xf32, #tpu.memory_space<vmem>>, vector<1x8x128xf32>,
    %467 = arith.index_cast %c1_i32_220 : i32 to index
    %c0_241 = arith.constant 0 : index
    %c0_242 = arith.constant 0 : index
    %468 = vector.load %arg15[%467, %c0_241, %c0_242] : memref<8x8x128xf32, #tpu.memory_space<vmem>>, vector<1x8x128xf32>
    %469 = vector.shape_cast %468 : vector<1x8x128xf32> to vector<8x128xf32>
    %470 = vector.shape_cast %460 : vector<8x128xf32> to vector<1x8x128xf32>
    tpu.vector_store %arg15[%467, %c0_241, %c0_242], %470 {strides = array<i32>} : memref<8x8x128xf32, #tpu.memory_space<vmem>>, vector<1x8x128xf32>,
    %c2_i32_243 = arith.constant 2 : i32
    %c1_244 = arith.constant 1 : index
    %c0_245 = arith.constant 0 : index
    %c0_246 = arith.constant 0 : index
    %471 = vector.load %arg12[%c1_244, %c0_245, %c0_246] : memref<2x8x128xf32, #tpu.memory_space<vmem>>, vector<1x8x128xf32>
    %472 = vector.shape_cast %471 : vector<1x8x128xf32> to vector<8x128xf32>
    %c1_247 = arith.constant 1 : index
    %c0_248 = arith.constant 0 : index
    %c0_249 = arith.constant 0 : index
    %473 = vector.load %arg13[%c1_247, %c0_248, %c0_249] : memref<2x8x128xf32, #tpu.memory_space<vmem>>, vector<1x8x128xf32>
    %474 = vector.shape_cast %473 : vector<1x8x128xf32> to vector<8x128xf32>
    %c0_250 = arith.constant 0 : index
    %c0_251 = arith.constant 0 : index
    %475 = vector.load %arg7[%c0_250, %c0_251] : memref<128x512xf32, #tpu.memory_space<vmem>>, vector<128x512xf32>
    %476 = arith.index_cast %c2_i32_243 : i32 to index
    %c0_252 = arith.constant 0 : index
    %c0_253 = arith.constant 0 : index
    %477 = vector.load %arg14[%476, %c0_252, %c0_253] : memref<8x8x512xf32, #tpu.memory_space<vmem>>, vector<1x8x512xf32>
    %478 = vector.shape_cast %477 : vector<1x8x512xf32> to vector<8x512xf32>
    %cst_254 = arith.constant dense<0.000000e+00> : vector<8x512xf32>
    %479 = tpu.matmul %472, %475, %cst_254 {dimension_numbers = #tpu.dot_dimension_numbers<[1], [0], [0], [1], [0, 0, 1, 1], [], []>} : vector<8x128xf32>, vector<128x512xf32>, vector<8x512xf32> -> vector<8x512xf32>
    %480 = arith.addf %478, %479 : vector<8x512xf32>
    %481 = vector.extract_strided_slice %480 {offsets = [0, 0], sizes = [8, 128], strides = [1, 1]} : vector<8x512xf32> to vector<8x128xf32>
    %482 = arith.negf %481 : vector<8x128xf32>
    %483 = math.exp %482 : vector<8x128xf32>
    %cst_255 = arith.constant 1.000000e+00 : f32
    %484 = vector.broadcast %cst_255 : f32 to vector<8x128xf32>
    %485 = arith.addf %484, %483 : vector<8x128xf32>
    %486 = arith.divf %484, %485 : vector<8x128xf32>
    %487 = vector.extract_strided_slice %480 {offsets = [0, 128], sizes = [8, 128], strides = [1, 1]} : vector<8x512xf32> to vector<8x128xf32>
    %488 = arith.negf %487 : vector<8x128xf32>
    %489 = math.exp %488 : vector<8x128xf32>
    %cst_256 = arith.constant 1.000000e+00 : f32
    %490 = vector.broadcast %cst_256 : f32 to vector<8x128xf32>
    %491 = arith.addf %490, %489 : vector<8x128xf32>
    %492 = arith.divf %490, %491 : vector<8x128xf32>
    %493 = vector.extract_strided_slice %480 {offsets = [0, 256], sizes = [8, 128], strides = [1, 1]} : vector<8x512xf32> to vector<8x128xf32>
    %494 = math.tanh %493 : vector<8x128xf32>
    %495 = vector.extract_strided_slice %480 {offsets = [0, 384], sizes = [8, 128], strides = [1, 1]} : vector<8x512xf32> to vector<8x128xf32>
    %496 = arith.negf %495 : vector<8x128xf32>
    %497 = math.exp %496 : vector<8x128xf32>
    %cst_257 = arith.constant 1.000000e+00 : f32
    %498 = vector.broadcast %cst_257 : f32 to vector<8x128xf32>
    %499 = arith.addf %498, %497 : vector<8x128xf32>
    %500 = arith.divf %498, %499 : vector<8x128xf32>
    %501 = arith.mulf %492, %474 : vector<8x128xf32>
    %502 = arith.mulf %486, %494 : vector<8x128xf32>
    %503 = arith.addf %501, %502 : vector<8x128xf32>
    %504 = math.tanh %503 : vector<8x128xf32>
    %505 = arith.mulf %500, %504 : vector<8x128xf32>
    %c1_258 = arith.constant 1 : index
    %c0_259 = arith.constant 0 : index
    %c0_260 = arith.constant 0 : index
    %506 = vector.load %arg13[%c1_258, %c0_259, %c0_260] : memref<2x8x128xf32, #tpu.memory_space<vmem>>, vector<1x8x128xf32>
    %507 = vector.shape_cast %506 : vector<1x8x128xf32> to vector<8x128xf32>
    %508 = vector.shape_cast %503 : vector<8x128xf32> to vector<1x8x128xf32>
    tpu.vector_store %arg13[%c1_258, %c0_259, %c0_260], %508 {strides = array<i32>} : memref<2x8x128xf32, #tpu.memory_space<vmem>>, vector<1x8x128xf32>,
    %c1_261 = arith.constant 1 : index
    %c0_262 = arith.constant 0 : index
    %c0_263 = arith.constant 0 : index
    %509 = vector.load %arg12[%c1_261, %c0_262, %c0_263] : memref<2x8x128xf32, #tpu.memory_space<vmem>>, vector<1x8x128xf32>
    %510 = vector.shape_cast %509 : vector<1x8x128xf32> to vector<8x128xf32>
    %511 = vector.shape_cast %505 : vector<8x128xf32> to vector<1x8x128xf32>
    tpu.vector_store %arg12[%c1_261, %c0_262, %c0_263], %511 {strides = array<i32>} : memref<2x8x128xf32, #tpu.memory_space<vmem>>, vector<1x8x128xf32>,
    %512 = arith.index_cast %c2_i32_243 : i32 to index
    %c0_264 = arith.constant 0 : index
    %c0_265 = arith.constant 0 : index
    %513 = vector.load %arg15[%512, %c0_264, %c0_265] : memref<8x8x128xf32, #tpu.memory_space<vmem>>, vector<1x8x128xf32>
    %514 = vector.shape_cast %513 : vector<1x8x128xf32> to vector<8x128xf32>
    %515 = vector.shape_cast %505 : vector<8x128xf32> to vector<1x8x128xf32>
    tpu.vector_store %arg15[%512, %c0_264, %c0_265], %515 {strides = array<i32>} : memref<8x8x128xf32, #tpu.memory_space<vmem>>, vector<1x8x128xf32>,
    %c3_i32_266 = arith.constant 3 : i32
    %c1_267 = arith.constant 1 : index
    %c0_268 = arith.constant 0 : index
    %c0_269 = arith.constant 0 : index
    %516 = vector.load %arg12[%c1_267, %c0_268, %c0_269] : memref<2x8x128xf32, #tpu.memory_space<vmem>>, vector<1x8x128xf32>
    %517 = vector.shape_cast %516 : vector<1x8x128xf32> to vector<8x128xf32>
    %c1_270 = arith.constant 1 : index
    %c0_271 = arith.constant 0 : index
    %c0_272 = arith.constant 0 : index
    %518 = vector.load %arg13[%c1_270, %c0_271, %c0_272] : memref<2x8x128xf32, #tpu.memory_space<vmem>>, vector<1x8x128xf32>
    %519 = vector.shape_cast %518 : vector<1x8x128xf32> to vector<8x128xf32>
    %c0_273 = arith.constant 0 : index
    %c0_274 = arith.constant 0 : index
    %520 = vector.load %arg7[%c0_273, %c0_274] : memref<128x512xf32, #tpu.memory_space<vmem>>, vector<128x512xf32>
    %521 = arith.index_cast %c3_i32_266 : i32 to index
    %c0_275 = arith.constant 0 : index
    %c0_276 = arith.constant 0 : index
    %522 = vector.load %arg14[%521, %c0_275, %c0_276] : memref<8x8x512xf32, #tpu.memory_space<vmem>>, vector<1x8x512xf32>
    %523 = vector.shape_cast %522 : vector<1x8x512xf32> to vector<8x512xf32>
    %cst_277 = arith.constant dense<0.000000e+00> : vector<8x512xf32>
    %524 = tpu.matmul %517, %520, %cst_277 {dimension_numbers = #tpu.dot_dimension_numbers<[1], [0], [0], [1], [0, 0, 1, 1], [], []>} : vector<8x128xf32>, vector<128x512xf32>, vector<8x512xf32> -> vector<8x512xf32>
    %525 = arith.addf %523, %524 : vector<8x512xf32>
    %526 = vector.extract_strided_slice %525 {offsets = [0, 0], sizes = [8, 128], strides = [1, 1]} : vector<8x512xf32> to vector<8x128xf32>
    %527 = arith.negf %526 : vector<8x128xf32>
    %528 = math.exp %527 : vector<8x128xf32>
    %cst_278 = arith.constant 1.000000e+00 : f32
    %529 = vector.broadcast %cst_278 : f32 to vector<8x128xf32>
    %530 = arith.addf %529, %528 : vector<8x128xf32>
    %531 = arith.divf %529, %530 : vector<8x128xf32>
    %532 = vector.extract_strided_slice %525 {offsets = [0, 128], sizes = [8, 128], strides = [1, 1]} : vector<8x512xf32> to vector<8x128xf32>
    %533 = arith.negf %532 : vector<8x128xf32>
    %534 = math.exp %533 : vector<8x128xf32>
    %cst_279 = arith.constant 1.000000e+00 : f32
    %535 = vector.broadcast %cst_279 : f32 to vector<8x128xf32>
    %536 = arith.addf %535, %534 : vector<8x128xf32>
    %537 = arith.divf %535, %536 : vector<8x128xf32>
    %538 = vector.extract_strided_slice %525 {offsets = [0, 256], sizes = [8, 128], strides = [1, 1]} : vector<8x512xf32> to vector<8x128xf32>
    %539 = math.tanh %538 : vector<8x128xf32>
    %540 = vector.extract_strided_slice %525 {offsets = [0, 384], sizes = [8, 128], strides = [1, 1]} : vector<8x512xf32> to vector<8x128xf32>
    %541 = arith.negf %540 : vector<8x128xf32>
    %542 = math.exp %541 : vector<8x128xf32>
    %cst_280 = arith.constant 1.000000e+00 : f32
    %543 = vector.broadcast %cst_280 : f32 to vector<8x128xf32>
    %544 = arith.addf %543, %542 : vector<8x128xf32>
    %545 = arith.divf %543, %544 : vector<8x128xf32>
    %546 = arith.mulf %537, %519 : vector<8x128xf32>
    %547 = arith.mulf %531, %539 : vector<8x128xf32>
    %548 = arith.addf %546, %547 : vector<8x128xf32>
    %549 = math.tanh %548 : vector<8x128xf32>
    %550 = arith.mulf %545, %549 : vector<8x128xf32>
    %c1_281 = arith.constant 1 : index
    %c0_282 = arith.constant 0 : index
    %c0_283 = arith.constant 0 : index
    %551 = vector.load %arg13[%c1_281, %c0_282, %c0_283] : memref<2x8x128xf32, #tpu.memory_space<vmem>>, vector<1x8x128xf32>
    %552 = vector.shape_cast %551 : vector<1x8x128xf32> to vector<8x128xf32>
    %553 = vector.shape_cast %548 : vector<8x128xf32> to vector<1x8x128xf32>
    tpu.vector_store %arg13[%c1_281, %c0_282, %c0_283], %553 {strides = array<i32>} : memref<2x8x128xf32, #tpu.memory_space<vmem>>, vector<1x8x128xf32>,
    %c1_284 = arith.constant 1 : index
    %c0_285 = arith.constant 0 : index
    %c0_286 = arith.constant 0 : index
    %554 = vector.load %arg12[%c1_284, %c0_285, %c0_286] : memref<2x8x128xf32, #tpu.memory_space<vmem>>, vector<1x8x128xf32>
    %555 = vector.shape_cast %554 : vector<1x8x128xf32> to vector<8x128xf32>
    %556 = vector.shape_cast %550 : vector<8x128xf32> to vector<1x8x128xf32>
    tpu.vector_store %arg12[%c1_284, %c0_285, %c0_286], %556 {strides = array<i32>} : memref<2x8x128xf32, #tpu.memory_space<vmem>>, vector<1x8x128xf32>,
    %557 = arith.index_cast %c3_i32_266 : i32 to index
    %c0_287 = arith.constant 0 : index
    %c0_288 = arith.constant 0 : index
    %558 = vector.load %arg15[%557, %c0_287, %c0_288] : memref<8x8x128xf32, #tpu.memory_space<vmem>>, vector<1x8x128xf32>
    %559 = vector.shape_cast %558 : vector<1x8x128xf32> to vector<8x128xf32>
    %560 = vector.shape_cast %550 : vector<8x128xf32> to vector<1x8x128xf32>
    tpu.vector_store %arg15[%557, %c0_287, %c0_288], %560 {strides = array<i32>} : memref<8x8x128xf32, #tpu.memory_space<vmem>>, vector<1x8x128xf32>,
    %c4_i32_289 = arith.constant 4 : i32
    %c1_290 = arith.constant 1 : index
    %c0_291 = arith.constant 0 : index
    %c0_292 = arith.constant 0 : index
    %561 = vector.load %arg12[%c1_290, %c0_291, %c0_292] : memref<2x8x128xf32, #tpu.memory_space<vmem>>, vector<1x8x128xf32>
    %562 = vector.shape_cast %561 : vector<1x8x128xf32> to vector<8x128xf32>
    %c1_293 = arith.constant 1 : index
    %c0_294 = arith.constant 0 : index
    %c0_295 = arith.constant 0 : index
    %563 = vector.load %arg13[%c1_293, %c0_294, %c0_295] : memref<2x8x128xf32, #tpu.memory_space<vmem>>, vector<1x8x128xf32>
    %564 = vector.shape_cast %563 : vector<1x8x128xf32> to vector<8x128xf32>
    %c0_296 = arith.constant 0 : index
    %c0_297 = arith.constant 0 : index
    %565 = vector.load %arg7[%c0_296, %c0_297] : memref<128x512xf32, #tpu.memory_space<vmem>>, vector<128x512xf32>
    %566 = arith.index_cast %c4_i32_289 : i32 to index
    %c0_298 = arith.constant 0 : index
    %c0_299 = arith.constant 0 : index
    %567 = vector.load %arg14[%566, %c0_298, %c0_299] : memref<8x8x512xf32, #tpu.memory_space<vmem>>, vector<1x8x512xf32>
    %568 = vector.shape_cast %567 : vector<1x8x512xf32> to vector<8x512xf32>
    %cst_300 = arith.constant dense<0.000000e+00> : vector<8x512xf32>
    %569 = tpu.matmul %562, %565, %cst_300 {dimension_numbers = #tpu.dot_dimension_numbers<[1], [0], [0], [1], [0, 0, 1, 1], [], []>} : vector<8x128xf32>, vector<128x512xf32>, vector<8x512xf32> -> vector<8x512xf32>
    %570 = arith.addf %568, %569 : vector<8x512xf32>
    %571 = vector.extract_strided_slice %570 {offsets = [0, 0], sizes = [8, 128], strides = [1, 1]} : vector<8x512xf32> to vector<8x128xf32>
    %572 = arith.negf %571 : vector<8x128xf32>
    %573 = math.exp %572 : vector<8x128xf32>
    %cst_301 = arith.constant 1.000000e+00 : f32
    %574 = vector.broadcast %cst_301 : f32 to vector<8x128xf32>
    %575 = arith.addf %574, %573 : vector<8x128xf32>
    %576 = arith.divf %574, %575 : vector<8x128xf32>
    %577 = vector.extract_strided_slice %570 {offsets = [0, 128], sizes = [8, 128], strides = [1, 1]} : vector<8x512xf32> to vector<8x128xf32>
    %578 = arith.negf %577 : vector<8x128xf32>
    %579 = math.exp %578 : vector<8x128xf32>
    %cst_302 = arith.constant 1.000000e+00 : f32
    %580 = vector.broadcast %cst_302 : f32 to vector<8x128xf32>
    %581 = arith.addf %580, %579 : vector<8x128xf32>
    %582 = arith.divf %580, %581 : vector<8x128xf32>
    %583 = vector.extract_strided_slice %570 {offsets = [0, 256], sizes = [8, 128], strides = [1, 1]} : vector<8x512xf32> to vector<8x128xf32>
    %584 = math.tanh %583 : vector<8x128xf32>
    %585 = vector.extract_strided_slice %570 {offsets = [0, 384], sizes = [8, 128], strides = [1, 1]} : vector<8x512xf32> to vector<8x128xf32>
    %586 = arith.negf %585 : vector<8x128xf32>
    %587 = math.exp %586 : vector<8x128xf32>
    %cst_303 = arith.constant 1.000000e+00 : f32
    %588 = vector.broadcast %cst_303 : f32 to vector<8x128xf32>
    %589 = arith.addf %588, %587 : vector<8x128xf32>
    %590 = arith.divf %588, %589 : vector<8x128xf32>
    %591 = arith.mulf %582, %564 : vector<8x128xf32>
    %592 = arith.mulf %576, %584 : vector<8x128xf32>
    %593 = arith.addf %591, %592 : vector<8x128xf32>
    %594 = math.tanh %593 : vector<8x128xf32>
    %595 = arith.mulf %590, %594 : vector<8x128xf32>
    %c1_304 = arith.constant 1 : index
    %c0_305 = arith.constant 0 : index
    %c0_306 = arith.constant 0 : index
    %596 = vector.load %arg13[%c1_304, %c0_305, %c0_306] : memref<2x8x128xf32, #tpu.memory_space<vmem>>, vector<1x8x128xf32>
    %597 = vector.shape_cast %596 : vector<1x8x128xf32> to vector<8x128xf32>
    %598 = vector.shape_cast %593 : vector<8x128xf32> to vector<1x8x128xf32>
    tpu.vector_store %arg13[%c1_304, %c0_305, %c0_306], %598 {strides = array<i32>} : memref<2x8x128xf32, #tpu.memory_space<vmem>>, vector<1x8x128xf32>,
    %c1_307 = arith.constant 1 : index
    %c0_308 = arith.constant 0 : index
    %c0_309 = arith.constant 0 : index
    %599 = vector.load %arg12[%c1_307, %c0_308, %c0_309] : memref<2x8x128xf32, #tpu.memory_space<vmem>>, vector<1x8x128xf32>
    %600 = vector.shape_cast %599 : vector<1x8x128xf32> to vector<8x128xf32>
    %601 = vector.shape_cast %595 : vector<8x128xf32> to vector<1x8x128xf32>
    tpu.vector_store %arg12[%c1_307, %c0_308, %c0_309], %601 {strides = array<i32>} : memref<2x8x128xf32, #tpu.memory_space<vmem>>, vector<1x8x128xf32>,
    %602 = arith.index_cast %c4_i32_289 : i32 to index
    %c0_310 = arith.constant 0 : index
    %c0_311 = arith.constant 0 : index
    %603 = vector.load %arg15[%602, %c0_310, %c0_311] : memref<8x8x128xf32, #tpu.memory_space<vmem>>, vector<1x8x128xf32>
    %604 = vector.shape_cast %603 : vector<1x8x128xf32> to vector<8x128xf32>
    %605 = vector.shape_cast %595 : vector<8x128xf32> to vector<1x8x128xf32>
    tpu.vector_store %arg15[%602, %c0_310, %c0_311], %605 {strides = array<i32>} : memref<8x8x128xf32, #tpu.memory_space<vmem>>, vector<1x8x128xf32>,
    %c5_i32_312 = arith.constant 5 : i32
    %c1_313 = arith.constant 1 : index
    %c0_314 = arith.constant 0 : index
    %c0_315 = arith.constant 0 : index
    %606 = vector.load %arg12[%c1_313, %c0_314, %c0_315] : memref<2x8x128xf32, #tpu.memory_space<vmem>>, vector<1x8x128xf32>
    %607 = vector.shape_cast %606 : vector<1x8x128xf32> to vector<8x128xf32>
    %c1_316 = arith.constant 1 : index
    %c0_317 = arith.constant 0 : index
    %c0_318 = arith.constant 0 : index
    %608 = vector.load %arg13[%c1_316, %c0_317, %c0_318] : memref<2x8x128xf32, #tpu.memory_space<vmem>>, vector<1x8x128xf32>
    %609 = vector.shape_cast %608 : vector<1x8x128xf32> to vector<8x128xf32>
    %c0_319 = arith.constant 0 : index
    %c0_320 = arith.constant 0 : index
    %610 = vector.load %arg7[%c0_319, %c0_320] : memref<128x512xf32, #tpu.memory_space<vmem>>, vector<128x512xf32>
    %611 = arith.index_cast %c5_i32_312 : i32 to index
    %c0_321 = arith.constant 0 : index
    %c0_322 = arith.constant 0 : index
    %612 = vector.load %arg14[%611, %c0_321, %c0_322] : memref<8x8x512xf32, #tpu.memory_space<vmem>>, vector<1x8x512xf32>
    %613 = vector.shape_cast %612 : vector<1x8x512xf32> to vector<8x512xf32>
    %cst_323 = arith.constant dense<0.000000e+00> : vector<8x512xf32>
    %614 = tpu.matmul %607, %610, %cst_323 {dimension_numbers = #tpu.dot_dimension_numbers<[1], [0], [0], [1], [0, 0, 1, 1], [], []>} : vector<8x128xf32>, vector<128x512xf32>, vector<8x512xf32> -> vector<8x512xf32>
    %615 = arith.addf %613, %614 : vector<8x512xf32>
    %616 = vector.extract_strided_slice %615 {offsets = [0, 0], sizes = [8, 128], strides = [1, 1]} : vector<8x512xf32> to vector<8x128xf32>
    %617 = arith.negf %616 : vector<8x128xf32>
    %618 = math.exp %617 : vector<8x128xf32>
    %cst_324 = arith.constant 1.000000e+00 : f32
    %619 = vector.broadcast %cst_324 : f32 to vector<8x128xf32>
    %620 = arith.addf %619, %618 : vector<8x128xf32>
    %621 = arith.divf %619, %620 : vector<8x128xf32>
    %622 = vector.extract_strided_slice %615 {offsets = [0, 128], sizes = [8, 128], strides = [1, 1]} : vector<8x512xf32> to vector<8x128xf32>
    %623 = arith.negf %622 : vector<8x128xf32>
    %624 = math.exp %623 : vector<8x128xf32>
    %cst_325 = arith.constant 1.000000e+00 : f32
    %625 = vector.broadcast %cst_325 : f32 to vector<8x128xf32>
    %626 = arith.addf %625, %624 : vector<8x128xf32>
    %627 = arith.divf %625, %626 : vector<8x128xf32>
    %628 = vector.extract_strided_slice %615 {offsets = [0, 256], sizes = [8, 128], strides = [1, 1]} : vector<8x512xf32> to vector<8x128xf32>
    %629 = math.tanh %628 : vector<8x128xf32>
    %630 = vector.extract_strided_slice %615 {offsets = [0, 384], sizes = [8, 128], strides = [1, 1]} : vector<8x512xf32> to vector<8x128xf32>
    %631 = arith.negf %630 : vector<8x128xf32>
    %632 = math.exp %631 : vector<8x128xf32>
    %cst_326 = arith.constant 1.000000e+00 : f32
    %633 = vector.broadcast %cst_326 : f32 to vector<8x128xf32>
    %634 = arith.addf %633, %632 : vector<8x128xf32>
    %635 = arith.divf %633, %634 : vector<8x128xf32>
    %636 = arith.mulf %627, %609 : vector<8x128xf32>
    %637 = arith.mulf %621, %629 : vector<8x128xf32>
    %638 = arith.addf %636, %637 : vector<8x128xf32>
    %639 = math.tanh %638 : vector<8x128xf32>
    %640 = arith.mulf %635, %639 : vector<8x128xf32>
    %c1_327 = arith.constant 1 : index
    %c0_328 = arith.constant 0 : index
    %c0_329 = arith.constant 0 : index
    %641 = vector.load %arg13[%c1_327, %c0_328, %c0_329] : memref<2x8x128xf32, #tpu.memory_space<vmem>>, vector<1x8x128xf32>
    %642 = vector.shape_cast %641 : vector<1x8x128xf32> to vector<8x128xf32>
    %643 = vector.shape_cast %638 : vector<8x128xf32> to vector<1x8x128xf32>
    tpu.vector_store %arg13[%c1_327, %c0_328, %c0_329], %643 {strides = array<i32>} : memref<2x8x128xf32, #tpu.memory_space<vmem>>, vector<1x8x128xf32>,
    %c1_330 = arith.constant 1 : index
    %c0_331 = arith.constant 0 : index
    %c0_332 = arith.constant 0 : index
    %644 = vector.load %arg12[%c1_330, %c0_331, %c0_332] : memref<2x8x128xf32, #tpu.memory_space<vmem>>, vector<1x8x128xf32>
    %645 = vector.shape_cast %644 : vector<1x8x128xf32> to vector<8x128xf32>
    %646 = vector.shape_cast %640 : vector<8x128xf32> to vector<1x8x128xf32>
    tpu.vector_store %arg12[%c1_330, %c0_331, %c0_332], %646 {strides = array<i32>} : memref<2x8x128xf32, #tpu.memory_space<vmem>>, vector<1x8x128xf32>,
    %647 = arith.index_cast %c5_i32_312 : i32 to index
    %c0_333 = arith.constant 0 : index
    %c0_334 = arith.constant 0 : index
    %648 = vector.load %arg15[%647, %c0_333, %c0_334] : memref<8x8x128xf32, #tpu.memory_space<vmem>>, vector<1x8x128xf32>
    %649 = vector.shape_cast %648 : vector<1x8x128xf32> to vector<8x128xf32>
    %650 = vector.shape_cast %640 : vector<8x128xf32> to vector<1x8x128xf32>
    tpu.vector_store %arg15[%647, %c0_333, %c0_334], %650 {strides = array<i32>} : memref<8x8x128xf32, #tpu.memory_space<vmem>>, vector<1x8x128xf32>,
    %c6_i32_335 = arith.constant 6 : i32
    %c1_336 = arith.constant 1 : index
    %c0_337 = arith.constant 0 : index
    %c0_338 = arith.constant 0 : index
    %651 = vector.load %arg12[%c1_336, %c0_337, %c0_338] : memref<2x8x128xf32, #tpu.memory_space<vmem>>, vector<1x8x128xf32>
    %652 = vector.shape_cast %651 : vector<1x8x128xf32> to vector<8x128xf32>
    %c1_339 = arith.constant 1 : index
    %c0_340 = arith.constant 0 : index
    %c0_341 = arith.constant 0 : index
    %653 = vector.load %arg13[%c1_339, %c0_340, %c0_341] : memref<2x8x128xf32, #tpu.memory_space<vmem>>, vector<1x8x128xf32>
    %654 = vector.shape_cast %653 : vector<1x8x128xf32> to vector<8x128xf32>
    %c0_342 = arith.constant 0 : index
    %c0_343 = arith.constant 0 : index
    %655 = vector.load %arg7[%c0_342, %c0_343] : memref<128x512xf32, #tpu.memory_space<vmem>>, vector<128x512xf32>
    %656 = arith.index_cast %c6_i32_335 : i32 to index
    %c0_344 = arith.constant 0 : index
    %c0_345 = arith.constant 0 : index
    %657 = vector.load %arg14[%656, %c0_344, %c0_345] : memref<8x8x512xf32, #tpu.memory_space<vmem>>, vector<1x8x512xf32>
    %658 = vector.shape_cast %657 : vector<1x8x512xf32> to vector<8x512xf32>
    %cst_346 = arith.constant dense<0.000000e+00> : vector<8x512xf32>
    %659 = tpu.matmul %652, %655, %cst_346 {dimension_numbers = #tpu.dot_dimension_numbers<[1], [0], [0], [1], [0, 0, 1, 1], [], []>} : vector<8x128xf32>, vector<128x512xf32>, vector<8x512xf32> -> vector<8x512xf32>
    %660 = arith.addf %658, %659 : vector<8x512xf32>
    %661 = vector.extract_strided_slice %660 {offsets = [0, 0], sizes = [8, 128], strides = [1, 1]} : vector<8x512xf32> to vector<8x128xf32>
    %662 = arith.negf %661 : vector<8x128xf32>
    %663 = math.exp %662 : vector<8x128xf32>
    %cst_347 = arith.constant 1.000000e+00 : f32
    %664 = vector.broadcast %cst_347 : f32 to vector<8x128xf32>
    %665 = arith.addf %664, %663 : vector<8x128xf32>
    %666 = arith.divf %664, %665 : vector<8x128xf32>
    %667 = vector.extract_strided_slice %660 {offsets = [0, 128], sizes = [8, 128], strides = [1, 1]} : vector<8x512xf32> to vector<8x128xf32>
    %668 = arith.negf %667 : vector<8x128xf32>
    %669 = math.exp %668 : vector<8x128xf32>
    %cst_348 = arith.constant 1.000000e+00 : f32
    %670 = vector.broadcast %cst_348 : f32 to vector<8x128xf32>
    %671 = arith.addf %670, %669 : vector<8x128xf32>
    %672 = arith.divf %670, %671 : vector<8x128xf32>
    %673 = vector.extract_strided_slice %660 {offsets = [0, 256], sizes = [8, 128], strides = [1, 1]} : vector<8x512xf32> to vector<8x128xf32>
    %674 = math.tanh %673 : vector<8x128xf32>
    %675 = vector.extract_strided_slice %660 {offsets = [0, 384], sizes = [8, 128], strides = [1, 1]} : vector<8x512xf32> to vector<8x128xf32>
    %676 = arith.negf %675 : vector<8x128xf32>
    %677 = math.exp %676 : vector<8x128xf32>
    %cst_349 = arith.constant 1.000000e+00 : f32
    %678 = vector.broadcast %cst_349 : f32 to vector<8x128xf32>
    %679 = arith.addf %678, %677 : vector<8x128xf32>
    %680 = arith.divf %678, %679 : vector<8x128xf32>
    %681 = arith.mulf %672, %654 : vector<8x128xf32>
    %682 = arith.mulf %666, %674 : vector<8x128xf32>
    %683 = arith.addf %681, %682 : vector<8x128xf32>
    %684 = math.tanh %683 : vector<8x128xf32>
    %685 = arith.mulf %680, %684 : vector<8x128xf32>
    %c1_350 = arith.constant 1 : index
    %c0_351 = arith.constant 0 : index
    %c0_352 = arith.constant 0 : index
    %686 = vector.load %arg13[%c1_350, %c0_351, %c0_352] : memref<2x8x128xf32, #tpu.memory_space<vmem>>, vector<1x8x128xf32>
    %687 = vector.shape_cast %686 : vector<1x8x128xf32> to vector<8x128xf32>
    %688 = vector.shape_cast %683 : vector<8x128xf32> to vector<1x8x128xf32>
    tpu.vector_store %arg13[%c1_350, %c0_351, %c0_352], %688 {strides = array<i32>} : memref<2x8x128xf32, #tpu.memory_space<vmem>>, vector<1x8x128xf32>,
    %c1_353 = arith.constant 1 : index
    %c0_354 = arith.constant 0 : index
    %c0_355 = arith.constant 0 : index
    %689 = vector.load %arg12[%c1_353, %c0_354, %c0_355] : memref<2x8x128xf32, #tpu.memory_space<vmem>>, vector<1x8x128xf32>
    %690 = vector.shape_cast %689 : vector<1x8x128xf32> to vector<8x128xf32>
    %691 = vector.shape_cast %685 : vector<8x128xf32> to vector<1x8x128xf32>
    tpu.vector_store %arg12[%c1_353, %c0_354, %c0_355], %691 {strides = array<i32>} : memref<2x8x128xf32, #tpu.memory_space<vmem>>, vector<1x8x128xf32>,
    %692 = arith.index_cast %c6_i32_335 : i32 to index
    %c0_356 = arith.constant 0 : index
    %c0_357 = arith.constant 0 : index
    %693 = vector.load %arg15[%692, %c0_356, %c0_357] : memref<8x8x128xf32, #tpu.memory_space<vmem>>, vector<1x8x128xf32>
    %694 = vector.shape_cast %693 : vector<1x8x128xf32> to vector<8x128xf32>
    %695 = vector.shape_cast %685 : vector<8x128xf32> to vector<1x8x128xf32>
    tpu.vector_store %arg15[%692, %c0_356, %c0_357], %695 {strides = array<i32>} : memref<8x8x128xf32, #tpu.memory_space<vmem>>, vector<1x8x128xf32>,
    %c7_i32_358 = arith.constant 7 : i32
    %c1_359 = arith.constant 1 : index
    %c0_360 = arith.constant 0 : index
    %c0_361 = arith.constant 0 : index
    %696 = vector.load %arg12[%c1_359, %c0_360, %c0_361] : memref<2x8x128xf32, #tpu.memory_space<vmem>>, vector<1x8x128xf32>
    %697 = vector.shape_cast %696 : vector<1x8x128xf32> to vector<8x128xf32>
    %c1_362 = arith.constant 1 : index
    %c0_363 = arith.constant 0 : index
    %c0_364 = arith.constant 0 : index
    %698 = vector.load %arg13[%c1_362, %c0_363, %c0_364] : memref<2x8x128xf32, #tpu.memory_space<vmem>>, vector<1x8x128xf32>
    %699 = vector.shape_cast %698 : vector<1x8x128xf32> to vector<8x128xf32>
    %c0_365 = arith.constant 0 : index
    %c0_366 = arith.constant 0 : index
    %700 = vector.load %arg7[%c0_365, %c0_366] : memref<128x512xf32, #tpu.memory_space<vmem>>, vector<128x512xf32>
    %701 = arith.index_cast %c7_i32_358 : i32 to index
    %c0_367 = arith.constant 0 : index
    %c0_368 = arith.constant 0 : index
    %702 = vector.load %arg14[%701, %c0_367, %c0_368] : memref<8x8x512xf32, #tpu.memory_space<vmem>>, vector<1x8x512xf32>
    %703 = vector.shape_cast %702 : vector<1x8x512xf32> to vector<8x512xf32>
    %cst_369 = arith.constant dense<0.000000e+00> : vector<8x512xf32>
    %704 = tpu.matmul %697, %700, %cst_369 {dimension_numbers = #tpu.dot_dimension_numbers<[1], [0], [0], [1], [0, 0, 1, 1], [], []>} : vector<8x128xf32>, vector<128x512xf32>, vector<8x512xf32> -> vector<8x512xf32>
    %705 = arith.addf %703, %704 : vector<8x512xf32>
    %706 = vector.extract_strided_slice %705 {offsets = [0, 0], sizes = [8, 128], strides = [1, 1]} : vector<8x512xf32> to vector<8x128xf32>
    %707 = arith.negf %706 : vector<8x128xf32>
    %708 = math.exp %707 : vector<8x128xf32>
    %cst_370 = arith.constant 1.000000e+00 : f32
    %709 = vector.broadcast %cst_370 : f32 to vector<8x128xf32>
    %710 = arith.addf %709, %708 : vector<8x128xf32>
    %711 = arith.divf %709, %710 : vector<8x128xf32>
    %712 = vector.extract_strided_slice %705 {offsets = [0, 128], sizes = [8, 128], strides = [1, 1]} : vector<8x512xf32> to vector<8x128xf32>
    %713 = arith.negf %712 : vector<8x128xf32>
    %714 = math.exp %713 : vector<8x128xf32>
    %cst_371 = arith.constant 1.000000e+00 : f32
    %715 = vector.broadcast %cst_371 : f32 to vector<8x128xf32>
    %716 = arith.addf %715, %714 : vector<8x128xf32>
    %717 = arith.divf %715, %716 : vector<8x128xf32>
    %718 = vector.extract_strided_slice %705 {offsets = [0, 256], sizes = [8, 128], strides = [1, 1]} : vector<8x512xf32> to vector<8x128xf32>
    %719 = math.tanh %718 : vector<8x128xf32>
    %720 = vector.extract_strided_slice %705 {offsets = [0, 384], sizes = [8, 128], strides = [1, 1]} : vector<8x512xf32> to vector<8x128xf32>
    %721 = arith.negf %720 : vector<8x128xf32>
    %722 = math.exp %721 : vector<8x128xf32>
    %cst_372 = arith.constant 1.000000e+00 : f32
    %723 = vector.broadcast %cst_372 : f32 to vector<8x128xf32>
    %724 = arith.addf %723, %722 : vector<8x128xf32>
    %725 = arith.divf %723, %724 : vector<8x128xf32>
    %726 = arith.mulf %717, %699 : vector<8x128xf32>
    %727 = arith.mulf %711, %719 : vector<8x128xf32>
    %728 = arith.addf %726, %727 : vector<8x128xf32>
    %729 = math.tanh %728 : vector<8x128xf32>
    %730 = arith.mulf %725, %729 : vector<8x128xf32>
    %c1_373 = arith.constant 1 : index
    %c0_374 = arith.constant 0 : index
    %c0_375 = arith.constant 0 : index
    %731 = vector.load %arg13[%c1_373, %c0_374, %c0_375] : memref<2x8x128xf32, #tpu.memory_space<vmem>>, vector<1x8x128xf32>
    %732 = vector.shape_cast %731 : vector<1x8x128xf32> to vector<8x128xf32>
    %733 = vector.shape_cast %728 : vector<8x128xf32> to vector<1x8x128xf32>
    tpu.vector_store %arg13[%c1_373, %c0_374, %c0_375], %733 {strides = array<i32>} : memref<2x8x128xf32, #tpu.memory_space<vmem>>, vector<1x8x128xf32>,
    %c1_376 = arith.constant 1 : index
    %c0_377 = arith.constant 0 : index
    %c0_378 = arith.constant 0 : index
    %734 = vector.load %arg12[%c1_376, %c0_377, %c0_378] : memref<2x8x128xf32, #tpu.memory_space<vmem>>, vector<1x8x128xf32>
    %735 = vector.shape_cast %734 : vector<1x8x128xf32> to vector<8x128xf32>
    %736 = vector.shape_cast %730 : vector<8x128xf32> to vector<1x8x128xf32>
    tpu.vector_store %arg12[%c1_376, %c0_377, %c0_378], %736 {strides = array<i32>} : memref<2x8x128xf32, #tpu.memory_space<vmem>>, vector<1x8x128xf32>,
    %737 = arith.index_cast %c7_i32_358 : i32 to index
    %c0_379 = arith.constant 0 : index
    %c0_380 = arith.constant 0 : index
    %738 = vector.load %arg15[%737, %c0_379, %c0_380] : memref<8x8x128xf32, #tpu.memory_space<vmem>>, vector<1x8x128xf32>
    %739 = vector.shape_cast %738 : vector<1x8x128xf32> to vector<8x128xf32>
    %740 = vector.shape_cast %730 : vector<8x128xf32> to vector<1x8x128xf32>
    tpu.vector_store %arg15[%737, %c0_379, %c0_380], %740 {strides = array<i32>} : memref<8x8x128xf32, #tpu.memory_space<vmem>>, vector<1x8x128xf32>,
    %c8_i32_381 = arith.constant 8 : i32
    %c0_382 = arith.constant 0 : index
    %c0_383 = arith.constant 0 : index
    %c0_384 = arith.constant 0 : index
    %741 = vector.load %arg15[%c0_382, %c0_383, %c0_384] : memref<8x8x128xf32, #tpu.memory_space<vmem>>, vector<8x8x128xf32>
    %742 = vector.shape_cast %741 : vector<8x8x128xf32> to vector<64x128xf32>
    %c0_385 = arith.constant 0 : index
    %c0_386 = arith.constant 0 : index
    %743 = vector.load %arg9[%c0_385, %c0_386] : memref<128x128xf32, #tpu.memory_space<vmem>>, vector<128x128xf32>
    %cst_387 = arith.constant dense<0.000000e+00> : vector<64x128xf32>
    %744 = tpu.matmul %742, %743, %cst_387 {dimension_numbers = #tpu.dot_dimension_numbers<[1], [0], [0], [1], [0, 0, 1, 1], [], []>} : vector<64x128xf32>, vector<128x128xf32>, vector<64x128xf32> -> vector<64x128xf32>
    %c0_388 = arith.constant 0 : index
    %c0_389 = arith.constant 0 : index
    %745 = vector.load %arg10[%c0_388, %c0_389] : memref<1x128xf32, #tpu.memory_space<vmem>>, vector<1x128xf32>
    %746 = vector.broadcast %745 : vector<1x128xf32> to vector<64x128xf32>
    %747 = arith.addf %744, %746 : vector<64x128xf32>
    %748 = vector.shape_cast %747 : vector<64x128xf32> to vector<8x8x128xf32>
    %c0_390 = arith.constant 0 : index
    %c0_391 = arith.constant 0 : index
    %c0_392 = arith.constant 0 : index
    %749 = vector.load %arg11[%c0_390, %c0_391, %c0_392] : memref<8x8x128xf32, #tpu.memory_space<vmem>>, vector<8x8x128xf32>
    tpu.vector_store %arg11[%c0_390, %c0_391, %c0_392], %748 {strides = array<i32>} : memref<8x8x128xf32, #tpu.memory_space<vmem>>, vector<8x8x128xf32>,
    return
  }
  func.func @transform_0(%arg0: i32, %arg1: i32) -> (i32, i32, i32) {
    %c0_i32 = arith.constant 0 : i32
    %c0_i32_0 = arith.constant 0 : i32
    return %arg1, %arg0, %c0_i32 : i32, i32, i32
  }
  func.func @transform_1(%arg0: i32, %arg1: i32) -> (i32, i32) {
    %c0_i32 = arith.constant 0 : i32
    %c0_i32_0 = arith.constant 0 : i32
    %c0_i32_1 = arith.constant 0 : i32
    return %c0_i32, %c0_i32_0 : i32, i32
  }
  func.func @transform_2(%arg0: i32, %arg1: i32) -> (i32, i32) {
    %c0_i32 = arith.constant 0 : i32
    %c0_i32_0 = arith.constant 0 : i32
    %c0_i32_1 = arith.constant 0 : i32
    return %c0_i32, %c0_i32_0 : i32, i32
  }
  func.func @transform_3(%arg0: i32, %arg1: i32) -> (i32, i32) {
    %c0_i32 = arith.constant 0 : i32
    %c0_i32_0 = arith.constant 0 : i32
    %c0_i32_1 = arith.constant 0 : i32
    return %c0_i32, %c0_i32_0 : i32, i32
  }
  func.func @transform_4(%arg0: i32, %arg1: i32) -> (i32, i32) {
    %c0_i32 = arith.constant 0 : i32
    %c0_i32_0 = arith.constant 0 : i32
    %c0_i32_1 = arith.constant 0 : i32
    return %c0_i32, %c0_i32_0 : i32, i32
  }
  func.func @transform_5(%arg0: i32, %arg1: i32) -> (i32, i32) {
    %c0_i32 = arith.constant 0 : i32
    %c0_i32_0 = arith.constant 0 : i32
    %c0_i32_1 = arith.constant 0 : i32
    return %c0_i32, %c0_i32_0 : i32, i32
  }
  func.func @transform_6(%arg0: i32, %arg1: i32) -> (i32, i32) {
    %c0_i32 = arith.constant 0 : i32
    %c0_i32_0 = arith.constant 0 : i32
    %c0_i32_1 = arith.constant 0 : i32
    return %c0_i32, %c0_i32_0 : i32, i32
  }
  func.func @transform_7(%arg0: i32, %arg1: i32) -> (i32, i32) {
    %c0_i32 = arith.constant 0 : i32
    %c0_i32_0 = arith.constant 0 : i32
    %c0_i32_1 = arith.constant 0 : i32
    return %c0_i32, %c0_i32_0 : i32, i32
  }
  func.func @transform_8(%arg0: i32, %arg1: i32) -> (i32, i32) {
    %c0_i32 = arith.constant 0 : i32
    %c0_i32_0 = arith.constant 0 : i32
    %c0_i32_1 = arith.constant 0 : i32
    return %c0_i32, %c0_i32_0 : i32, i32
  }
  func.func @transform_9(%arg0: i32, %arg1: i32) -> (i32, i32, i32) {
    %c0_i32 = arith.constant 0 : i32
    %c0_i32_0 = arith.constant 0 : i32
    return %arg1, %arg0, %c0_i32 : i32, i32, i32
  }
}

</mosaic_0001>

<llo_original>
// kernel: tpu_custom_call.1
$region0: #{tpu_custom_call.1}
  #allocation0 [shape = 'u32[]', space=smem, size = 0x4, offset = 0x4, fixed_abs, tag = 'smem constant byte address 0x4 - core index']
  #allocation1 [shape = 'u32[72,128]{1,0:T(1,128)}', space=vmem, size = 0x9000, scoped, tag = 'internal scratch']
  #allocation2 [shape = 'f32[2,8,128]{2,1,0:T(8,128)}', space=vmem, size = 0x2000, scoped, tag = 'scratch operand']
  #allocation3 [shape = 'f32[2,8,128]{2,1,0:T(8,128)}', space=vmem, size = 0x2000, scoped, tag = 'scratch operand']
  #allocation4 [shape = 'f32[8,8,512]{2,1,0:T(8,128)}', space=vmem, size = 0x20000, scoped, tag = 'scratch operand']
  #allocation5 [shape = 'f32[8,8,128]{2,1,0:T(8,128)}', space=vmem, size = 0x8000, scoped, tag = 'scratch operand']
  %s0 = inlined_call_operand.vmem [shape: f32[8,8,4], index: 0, kind: input, shape index: {}]
  %s1 = inlined_call_operand.vmem [shape: f32[4,512], index: 1, kind: input, shape index: {}]
  %s2 = inlined_call_operand.hbm [shape: f32[128,512], index: 2, kind: input, shape index: {}]
  %s3 = inlined_call_operand.vmem [shape: f32[1,512], index: 3, kind: input, shape index: {}]
  %s4 = inlined_call_operand.hbm [shape: f32[128,512], index: 4, kind: input, shape index: {}]
  %s5 = inlined_call_operand.hbm [shape: f32[128,512], index: 5, kind: input, shape index: {}]
  %s6 = inlined_call_operand.vmem [shape: f32[1,512], index: 6, kind: input, shape index: {}]
  %s7 = inlined_call_operand.hbm [shape: f32[128,128], index: 7, kind: input, shape index: {}]
  %s8 = inlined_call_operand.vmem [shape: f32[1,128], index: 8, kind: input, shape index: {}]
  %s9 = inlined_call_operand.hbm [shape: f32[8,8,128], index: 9, kind: output, shape index: {}]
  %s10 = sld [smem:[#allocation0]]
  $region66: #{tpu_custom_call.1} parent=0
    _
  %s12 = ssub.s32 1, %s10
  %s13 = scalar_select 0, %s12, %s10
  $region1: #{tpu_custom_call.1} parent=0
    #allocation6 [shape = 'u8[262144]{0}', space=vmem, size = 0x40000, scoped, tag = 'input window, operand 2, single buffered']
    #allocation7 [shape = 's32[1]{0}', space=sflag, size = 0x4, scoped, tag = 'scoped memory for tpu_custom_call.1']
    #allocation8 [shape = 's32[1]{0}', space=sflag, size = 0x4, scoped, tag = 'scoped memory for tpu_custom_call.1']
    #allocation9 [shape = 'u8[262144]{0}', space=vmem, size = 0x40000, scoped, tag = 'input window, operand 4, single buffered']
    #allocation10 [shape = 's32[1]{0}', space=sflag, size = 0x4, scoped, tag = 'scoped memory for tpu_custom_call.1']
    #allocation11 [shape = 'u8[262144]{0}', space=vmem, size = 0x40000, scoped, tag = 'input window, operand 5, single buffered']
    #allocation12 [shape = 'u8[65536]{0}', space=vmem, size = 0x10000, scoped, tag = 'input window, operand 7, single buffered']
    #allocation13 [shape = 's32[1]{0}', space=sflag, size = 0x4, scoped, tag = 'scoped memory for tpu_custom_call.1']
    #allocation14 [shape = 'u8[32768]{0}', space=vmem, size = 0x8000, scoped, tag = 'output window, operand 0, single buffered']
    %14 = vsyncpa [#allocation7], 0
    %15 = vsyncpa [#allocation10], 0
    %16 = vsyncpa [#allocation13], 0
    %17 = vsyncpa [#allocation8], 0
    // Predicated region
    $region2: #{tpu_custom_call.1} parent=1 // pred_check
      _
    $region3: #{tpu_custom_call.1} parent=1 // pred_check_branch
      %19 = sbr.rel (0) target = $region5
    $region4: #{tpu_custom_call.1} parent=1 // pred_region
      _
    $region5: #{tpu_custom_call.1} parent=1 // pred_fallthru
      _
    // Predicated region
    $region6: #{tpu_custom_call.1} parent=1 // pred_check
      _
    $region7: #{tpu_custom_call.1} parent=1 // pred_check_branch
      %21 = sbr.rel (0) target = $region9
    $region8: #{tpu_custom_call.1} parent=1 // pred_region
      _
    $region9: #{tpu_custom_call.1} parent=1 // pred_fallthru
      _
    // Predicated region
    $region10: #{tpu_custom_call.1} parent=1 // pred_check
      _
    $region11: #{tpu_custom_call.1} parent=1 // pred_check_branch
      %23 = sbr.rel (0) target = $region13
    $region12: #{tpu_custom_call.1} parent=1 // pred_region
      %25 = vsyncadd [#allocation7], 0
      %s26 = sshll.u32 %s2, 4
      %s27 = int_to_ptr.hbm [resolvable:$true] %s26
      %s28 = sshll.u32 [#allocation6], 4
      %s29 = int_to_ptr.vmem [resolvable:$true] %s28
      %34 = dma.hbm_to_vmem [thread:$0]  %s27, 8192, %s29, [#allocation7], 512, 512, 32
    $region13: #{tpu_custom_call.1} parent=1 // pred_fallthru
      _
    // Predicated region
    $region14: #{tpu_custom_call.1} parent=1 // pred_check
      _
    $region15: #{tpu_custom_call.1} parent=1 // pred_check_branch
      %36 = sbr.rel (0) target = $region17
    $region16: #{tpu_custom_call.1} parent=1 // pred_region
      _
    $region17: #{tpu_custom_call.1} parent=1 // pred_fallthru
      _
    // Predicated region
    $region18: #{tpu_custom_call.1} parent=1 // pred_check
      _
    $region19: #{tpu_custom_call.1} parent=1 // pred_check_branch
      %38 = sbr.rel (0) target = $region21
    $region20: #{tpu_custom_call.1} parent=1 // pred_region
      %40 = vsyncadd [#allocation10], 0
      %s41 = sshll.u32 %s4, 4
      %s42 = int_to_ptr.hbm [resolvable:$true] %s41
      %s43 = sshll.u32 [#allocation9], 4
      %s44 = int_to_ptr.vmem [resolvable:$true] %s43
      %49 = dma.hbm_to_vmem [thread:$0]  %s42, 8192, %s44, [#allocation10], 512, 512, 32
    $region21: #{tpu_custom_call.1} parent=1 // pred_fallthru
      _
    // Predicated region
    $region22: #{tpu_custom_call.1} parent=1 // pred_check
      _
    $region23: #{tpu_custom_call.1} parent=1 // pred_check_branch
      %51 = sbr.rel (0) target = $region25
    $region24: #{tpu_custom_call.1} parent=1 // pred_region
      %53 = vsyncadd [#allocation10], 0
      %s54 = sshll.u32 %s5, 4
      %s55 = int_to_ptr.hbm [resolvable:$true] %s54
      %s56 = sshll.u32 [#allocation11], 4
      %s57 = int_to_ptr.vmem [resolvable:$true] %s56
      %62 = dma.hbm_to_vmem [thread:$0]  %s55, 8192, %s57, [#allocation10], 512, 512, 32
    $region25: #{tpu_custom_call.1} parent=1 // pred_fallthru
      _
    // Predicated region
    $region26: #{tpu_custom_call.1} parent=1 // pred_check
      _
    $region27: #{tpu_custom_call.1} parent=1 // pred_check_branch
      %64 = sbr.rel (0) target = $region29
    $region28: #{tpu_custom_call.1} parent=1 // pred_region
      _
    $region29: #{tpu_custom_call.1} parent=1 // pred_fallthru
      _
    // Predicated region
    $region30: #{tpu_custom_call.1} parent=1 // pred_check
      _
    $region31: #{tpu_custom_call.1} parent=1 // pred_check_branch
      %66 = sbr.rel (0) target = $region33
    $region32: #{tpu_custom_call.1} parent=1 // pred_region
      %68 = vsyncadd [#allocation13], 0
      %s69 = sshll.u32 %s7, 4
      %s70 = int_to_ptr.hbm [resolvable:$true] %s69
      %s71 = sshll.u32 [#allocation12], 4
      %s72 = int_to_ptr.vmem [resolvable:$true] %s71
      %77 = dma.hbm_to_vmem [thread:$0]  %s70, 2048, %s72, [#allocation13], 128, 128, 8
    $region33: #{tpu_custom_call.1} parent=1 // pred_fallthru
      _
    // Predicated region
    $region34: #{tpu_custom_call.1} parent=1 // pred_check
      _
    $region35: #{tpu_custom_call.1} parent=1 // pred_check_branch
      %79 = sbr.rel (0) target = $region37
    $region36: #{tpu_custom_call.1} parent=1 // pred_region
      _
    $region37: #{tpu_custom_call.1} parent=1 // pred_fallthru
      _
    // Predicated region
    $region38: #{tpu_custom_call.1} parent=1 // pred_check
      _
    $region39: #{tpu_custom_call.1} parent=1 // pred_check_branch
      %81 = sbr.rel (0) target = $region41
    $region40: #{tpu_custom_call.1} parent=1 // pred_region
      %83 = dma.done [#allocation7], 8192
    $region41: #{tpu_custom_call.1} parent=1 // pred_fallthru
      _
    // Predicated region
    $region42: #{tpu_custom_call.1} parent=1 // pred_check
      _
    $region43: #{tpu_custom_call.1} parent=1 // pred_check_branch
      %85 = sbr.rel (0) target = $region45
    $region44: #{tpu_custom_call.1} parent=1 // pred_region
      %87 = dma.done [#allocation10], 8192
    $region45: #{tpu_custom_call.1} parent=1 // pred_fallthru
      _
    // Predicated region
    $region46: #{tpu_custom_call.1} parent=1 // pred_check
      _
    $region47: #{tpu_custom_call.1} parent=1 // pred_check_branch
      %89 = sbr.rel (0) target = $region49
    $region48: #{tpu_custom_call.1} parent=1 // pred_region
      %91 = dma.done [#allocation10], 8192
    $region49: #{tpu_custom_call.1} parent=1 // pred_fallthru
      _
    // Predicated region
    $region50: #{tpu_custom_call.1} parent=1 // pred_check
      _
    $region51: #{tpu_custom_call.1} parent=1 // pred_check_branch
      %93 = sbr.rel (0) target = $region53
    $region52: #{tpu_custom_call.1} parent=1 // pred_region
      %95 = dma.done [#allocation13], 2048
    $region53: #{tpu_custom_call.1} parent=1 // pred_fallthru
      _
    %p96 = scmp.eq.s32.totalorder 0, 0
    // Predicated region
    $region54: #{tpu_custom_call.1} parent=1 // pred_check
      %p97 = pneg %p96
    $region55: #{tpu_custom_call.1} parent=1 // pred_check_branch
      %99 = sbr.rel (%p97) target = $region57
    $region56: #{tpu_custom_call.1} parent=1 // pred_region
      %100 = vst [vmem:[#allocation2] sm:$0xff] 0.0
      %101 = vst [vmem:[#allocation2 + $0x8] sm:$0xff] 0.0
      %102 = vst [vmem:[#allocation3] sm:$0xff] 0.0
      %103 = vst [vmem:[#allocation3 + $0x8] sm:$0xff] 0.0
    $region57: #{tpu_custom_call.1} parent=1 // pred_fallthru
      _
    %v104 = vld [vmem:[%s0] sm:$0xff]
    %v105 = vld [vmem:[%s0 + $0x8] sm:$0xff]
    %v106 = vld [vmem:[%s0 + $0x10] sm:$0xff]
    %v107 = vld [vmem:[%s0 + $0x18] sm:$0xff]
    %v108 = vld [vmem:[%s0 + $0x20] sm:$0xff]
    %v109 = vld [vmem:[%s0 + $0x28] sm:$0xff]
    %v110 = vld [vmem:[%s0 + $0x30] sm:$0xff]
    %v111 = vld [vmem:[%s0 + $0x38] sm:$0xff]
    %v112 = vld [vmem:[%s1] sm:$0xff]
    %v113 = vld [vmem:[%s1 + $0x8] sm:$0xff]
    %v114 = vld [vmem:[%s3] sm:$0xf]
    %v116 = vperm.slane %v114, 0
    %v117 = vperm.slane %v114, 1
    %v118 = vperm.slane %v114, 2
    %v119 = vperm.slane %v114, 3
    %126 = vst [vmem:[#allocation1] ss:$2 sm:$0xff] %v112
    %s127 = scalar_lea.vmem [#allocation1], 16
    %128 = vst [vmem:[%s127] ss:$2 sm:$0xff] %v113
    %v129 = vld.sshfl [vmem:[#allocation1] sm:$0xff pattern:$0x75316420]
    %v130 = vld.sshfl [vmem:[#allocation1 + $0x8] sm:$0xff pattern:$0x75316420]
    %v131 = vld.sshfl [vmem:[#allocation1 + $0x10] sm:$0xff pattern:$0x75316420]
    %v132 = vld.sshfl [vmem:[#allocation1 + $0x18] sm:$0xff pattern:$0x75316420]
    %vm133 = vcmask 31744
    %v135 = vsel %vm133, %v104, 0
    %v138 = vsel %vm133, %v105, 0
    %v141 = vsel %vm133, %v106, 0
    %v144 = vsel %vm133, %v107, 0
    %v147 = vsel %vm133, %v108, 0
    %v150 = vsel %vm133, %v109, 0
    %v153 = vsel %vm133, %v110, 0
    %v156 = vsel %vm133, %v111, 0
    %vm158 = vcmask 1043456
    %v159 = vsel %vm158, %v129, 0
    %v161 = vsel %vm158, %v130, 0
    %v163 = vsel %vm158, %v131, 0
    %v165 = vsel %vm158, %v132, 0
    %167 = vmatpush.msra.mxu0 0.0
    %168 = vmatpush.msra.mxu0 0.0
    %169 = vmatpush.msra.mxu0 0.0
    %170 = vmatpush.msra.mxu0 0.0
    %171 = vmatpush.msra.mxu0 0.0
    %172 = vmatpush.msra.mxu0 0.0
    %173 = vmatpush.msra.mxu0 0.0
    %174 = vmatpush.msra.mxu0 0.0
    %175 = vmatpush.msra.mxu0 0.0
    %176 = vmatpush.msra.mxu0 0.0
    %177 = vmatpush.msra.mxu0 0.0
    %178 = vmatpush.msra.mxu0 0.0
    %179 = vmatpush.msra.mxu0 0.0
    %180 = vmatpush.msra.mxu0 0.0
    %181 = vmatpush.msra.mxu0 0.0
    %182 = vmatpush.msra.mxu0 %v159
    %183 = vmatmul.f32.gmra.mxu0 %v135
    %v184 = vpop.f32.mrf.mxu0
    %v185 = vadd.f32 %v116, %v184
    %186 = vmatmul.f32.gmra.mxu0 %v138
    %v187 = vpop.f32.mrf.mxu0
    %v188 = vadd.f32 %v116, %v187
    %189 = vmatmul.f32.gmra.mxu0 %v141
    %v190 = vpop.f32.mrf.mxu0
    %v191 = vadd.f32 %v116, %v190
    %192 = vmatmul.f32.gmra.mxu0 %v144
    %v193 = vpop.f32.mrf.mxu0
    %v194 = vadd.f32 %v116, %v193
    %195 = vmatmul.f32.gmra.mxu0 %v147
    %v196 = vpop.f32.mrf.mxu0
    %v197 = vadd.f32 %v116, %v196
    %198 = vmatmul.f32.gmra.mxu0 %v150
    %v199 = vpop.f32.mrf.mxu0
    %v200 = vadd.f32 %v116, %v199
    %201 = vmatmul.f32.gmra.mxu0 %v153
    %v202 = vpop.f32.mrf.mxu0
    %v203 = vadd.f32 %v116, %v202
    %204 = vmatmul.f32.gmra.mxu0 %v156
    %v205 = vpop.f32.mrf.mxu0
    %v206 = vadd.f32 %v116, %v205
    %207 = vdwg.mxu0
    %208 = vmatpush.msra.mxu0 0.0
    %209 = vmatpush.msra.mxu0 0.0
    %210 = vmatpush.msra.mxu0 0.0
    %211 = vmatpush.msra.mxu0 0.0
    %212 = vmatpush.msra.mxu0 0.0
    %213 = vmatpush.msra.mxu0 0.0
    %214 = vmatpush.msra.mxu0 0.0
    %215 = vmatpush.msra.mxu0 0.0
    %216 = vmatpush.msra.mxu0 0.0
    %217 = vmatpush.msra.mxu0 0.0
    %218 = vmatpush.msra.mxu0 0.0
    %219 = vmatpush.msra.mxu0 0.0
    %220 = vmatpush.msra.mxu0 0.0
    %221 = vmatpush.msra.mxu0 0.0
    %222 = vmatpush.msra.mxu0 0.0
    %223 = vmatpush.msra.mxu0 %v161
    %224 = vmatmul.f32.gmra.mxu0 %v135
    %v225 = vpop.f32.mrf.mxu0
    %v226 = vadd.f32 %v117, %v225
    %227 = vmatmul.f32.gmra.mxu0 %v138
    %v228 = vpop.f32.mrf.mxu0
    %v229 = vadd.f32 %v117, %v228
    %230 = vmatmul.f32.gmra.mxu0 %v141
    %v231 = vpop.f32.mrf.mxu0
    %v232 = vadd.f32 %v117, %v231
    %233 = vmatmul.f32.gmra.mxu0 %v144
    %v234 = vpop.f32.mrf.mxu0
    %v235 = vadd.f32 %v117, %v234
    %236 = vmatmul.f32.gmra.mxu0 %v147
    %v237 = vpop.f32.mrf.mxu0
    %v238 = vadd.f32 %v117, %v237
    %239 = vmatmul.f32.gmra.mxu0 %v150
    %v240 = vpop.f32.mrf.mxu0
    %v241 = vadd.f32 %v117, %v240
    %242 = vmatmul.f32.gmra.mxu0 %v153
    %v243 = vpop.f32.mrf.mxu0
    %v244 = vadd.f32 %v117, %v243
    %245 = vmatmul.f32.gmra.mxu0 %v156
    %v246 = vpop.f32.mrf.mxu0
    %v247 = vadd.f32 %v117, %v246
    %248 = vdwg.mxu0
    %249 = vmatpush.msra.mxu0 0.0
    %250 = vmatpush.msra.mxu0 0.0
    %251 = vmatpush.msra.mxu0 0.0
    %252 = vmatpush.msra.mxu0 0.0
    %253 = vmatpush.msra.mxu0 0.0
    %254 = vmatpush.msra.mxu0 0.0
    %255 = vmatpush.msra.mxu0 0.0
    %256 = vmatpush.msra.mxu0 0.0
    %257 = vmatpush.msra.mxu0 0.0
    %258 = vmatpush.msra.mxu0 0.0
    %259 = vmatpush.msra.mxu0 0.0
    %260 = vmatpush.msra.mxu0 0.0
    %261 = vmatpush.msra.mxu0 0.0
    %262 = vmatpush.msra.mxu0 0.0
    %263 = vmatpush.msra.mxu0 0.0
    %264 = vmatpush.msra.mxu0 %v163
    %265 = vmatmul.f32.gmra.mxu0 %v135
    %v266 = vpop.f32.mrf.mxu0
    %v267 = vadd.f32 %v118, %v266
    %268 = vmatmul.f32.gmra.mxu0 %v138
    %v269 = vpop.f32.mrf.mxu0
    %v270 = vadd.f32 %v118, %v269
    %271 = vmatmul.f32.gmra.mxu0 %v141
    %v272 = vpop.f32.mrf.mxu0
    %v273 = vadd.f32 %v118, %v272
    %274 = vmatmul.f32.gmra.mxu0 %v144
    %v275 = vpop.f32.mrf.mxu0
    %v276 = vadd.f32 %v118, %v275
    %277 = vmatmul.f32.gmra.mxu0 %v147
    %v278 = vpop.f32.mrf.mxu0
    %v279 = vadd.f32 %v118, %v278
    %280 = vmatmul.f32.gmra.mxu0 %v150
    %v281 = vpop.f32.mrf.mxu0
    %v282 = vadd.f32 %v118, %v281
    %283 = vmatmul.f32.gmra.mxu0 %v153
    %v284 = vpop.f32.mrf.mxu0
    %v285 = vadd.f32 %v118, %v284
    %286 = vmatmul.f32.gmra.mxu0 %v156
    %v287 = vpop.f32.mrf.mxu0
    %v288 = vadd.f32 %v118, %v287
    %289 = vdwg.mxu0
    %290 = vmatpush.msra.mxu0 0.0
    %291 = vmatpush.msra.mxu0 0.0
    %292 = vmatpush.msra.mxu0 0.0
    %293 = vmatpush.msra.mxu0 0.0
    %294 = vmatpush.msra.mxu0 0.0
    %295 = vmatpush.msra.mxu0 0.0
    %296 = vmatpush.msra.mxu0 0.0
    %297 = vmatpush.msra.mxu0 0.0
    %298 = vmatpush.msra.mxu0 0.0
    %299 = vmatpush.msra.mxu0 0.0
    %300 = vmatpush.msra.mxu0 0.0
    %301 = vmatpush.msra.mxu0 0.0
    %302 = vmatpush.msra.mxu0 0.0
    %303 = vmatpush.msra.mxu0 0.0
    %304 = vmatpush.msra.mxu0 0.0
    %305 = vmatpush.msra.mxu0 %v165
    %306 = vmatmul.f32.gmra.mxu0 %v135
    %v307 = vpop.f32.mrf.mxu0
    %v308 = vadd.f32 %v119, %v307
    %309 = vmatmul.f32.gmra.mxu0 %v138
    %v310 = vpop.f32.mrf.mxu0
    %v311 = vadd.f32 %v119, %v310
    %312 = vmatmul.f32.gmra.mxu0 %v141
    %v313 = vpop.f32.mrf.mxu0
    %v314 = vadd.f32 %v119, %v313
    %315 = vmatmul.f32.gmra.mxu0 %v144
    %v316 = vpop.f32.mrf.mxu0
    %v317 = vadd.f32 %v119, %v316
    %318 = vmatmul.f32.gmra.mxu0 %v147
    %v319 = vpop.f32.mrf.mxu0
    %v320 = vadd.f32 %v119, %v319
    %321 = vmatmul.f32.gmra.mxu0 %v150
    %v322 = vpop.f32.mrf.mxu0
    %v323 = vadd.f32 %v119, %v322
    %324 = vmatmul.f32.gmra.mxu0 %v153
    %v325 = vpop.f32.mrf.mxu0
    %v326 = vadd.f32 %v119, %v325
    %327 = vmatmul.f32.gmra.mxu0 %v156
    %v328 = vpop.f32.mrf.mxu0
    %v329 = vadd.f32 %v119, %v328
    %330 = vdwg.mxu0
    %331 = vst [vmem:[#allocation4] sm:$0xff] %v185
    %332 = vst [vmem:[#allocation4 + $0x8] sm:$0xff] %v226
    %333 = vst [vmem:[#allocation4 + $0x10] sm:$0xff] %v267
    %334 = vst [vmem:[#allocation4 + $0x18] sm:$0xff] %v308
    %335 = vst [vmem:[#allocation4 + $0x20] sm:$0xff] %v188
    %336 = vst [vmem:[#allocation4 + $0x28] sm:$0xff] %v229
    %337 = vst [vmem:[#allocation4 + $0x30] sm:$0xff] %v270
    %338 = vst [vmem:[#allocation4 + $0x38] sm:$0xff] %v311
    %339 = vst [vmem:[#allocation4 + $0x40] sm:$0xff] %v191
    %340 = vst [vmem:[#allocation4 + $0x48] sm:$0xff] %v232
    %341 = vst [vmem:[#allocation4 + $0x50] sm:$0xff] %v273
    %342 = vst [vmem:[#allocation4 + $0x58] sm:$0xff] %v314
    %343 = vst [vmem:[#allocation4 + $0x60] sm:$0xff] %v194
    %344 = vst [vmem:[#allocation4 + $0x68] sm:$0xff] %v235
    %345 = vst [vmem:[#allocation4 + $0x70] sm:$0xff] %v276
    %346 = vst [vmem:[#allocation4 + $0x78] sm:$0xff] %v317
    %347 = vst [vmem:[#allocation4 + $0x80] sm:$0xff] %v197
    %348 = vst [vmem:[#allocation4 + $0x88] sm:$0xff] %v238
    %349 = vst [vmem:[#allocation4 + $0x90] sm:$0xff] %v279
    %350 = vst [vmem:[#allocation4 + $0x98] sm:$0xff] %v320
    %351 = vst [vmem:[#allocation4 + $0xa0] sm:$0xff] %v200
    %352 = vst [vmem:[#allocation4 + $0xa8] sm:$0xff] %v241
    %353 = vst [vmem:[#allocation4 + $0xb0] sm:$0xff] %v282
    %354 = vst [vmem:[#allocation4 + $0xb8] sm:$0xff] %v323
    %355 = vst [vmem:[#allocation4 + $0xc0] sm:$0xff] %v203
    %356 = vst [vmem:[#allocation4 + $0xc8] sm:$0xff] %v244
    %357 = vst [vmem:[#allocation4 + $0xd0] sm:$0xff] %v285
    %358 = vst [vmem:[#allocation4 + $0xd8] sm:$0xff] %v326
    %359 = vst [vmem:[#allocation4 + $0xe0] sm:$0xff] %v206
    %360 = vst [vmem:[#allocation4 + $0xe8] sm:$0xff] %v247
    %361 = vst [vmem:[#allocation4 + $0xf0] sm:$0xff] %v288
    %362 = vst [vmem:[#allocation4 + $0xf8] sm:$0xff] %v329
    %v363 = vld [vmem:[#allocation2] sm:$0xff]
    %v364 = vld [vmem:[#allocation3] sm:$0xff]
    %v365 = vld [vmem:[#allocation6] sm:$0xff]
    %v366 = vld [vmem:[#allocation6 + $0x8] sm:$0xff]
    %v367 = vld [vmem:[#allocation6 + $0x10] sm:$0xff]
    %v368 = vld [vmem:[#allocation6 + $0x18] sm:$0xff]
    %v369 = vld [vmem:[#allocation6 + $0x20] sm:$0xff]
    %v370 = vld [vmem:[#allocation6 + $0x28] sm:$0xff]
    %v371 = vld [vmem:[#allocation6 + $0x30] sm:$0xff]
    %v372 = vld [vmem:[#allocation6 + $0x38] sm:$0xff]
    %v373 = vld [vmem:[#allocation6 + $0x40] sm:$0xff]
    %v374 = vld [vmem:[#allocation6 + $0x48] sm:$0xff]
    %v375 = vld [vmem:[#allocation6 + $0x50] sm:$0xff]
    %v376 = vld [vmem:[#allocation6 + $0x58] sm:$0xff]
    %v377 = vld [vmem:[#allocation6 + $0x60] sm:$0xff]
    %v378 = vld [vmem:[#allocation6 + $0x68] sm:$0xff]
    %v379 = vld [vmem:[#allocation6 + $0x70] sm:$0xff]
    %v380 = vld [vmem:[#allocation6 + $0x78] sm:$0xff]
    %v381 = vld [vmem:[#allocation6 + $0x80] sm:$0xff]
    %v382 = vld [vmem:[#allocation6 + $0x88] sm:$0xff]
    %v383 = vld [vmem:[#allocation6 + $0x90] sm:$0xff]
    %v384 = vld [vmem:[#allocation6 + $0x98] sm:$0xff]
    %v385 = vld [vmem:[#allocation6 + $0xa0] sm:$0xff]
    %v386 = vld [vmem:[#allocation6 + $0xa8] sm:$0xff]
    %v387 = vld [vmem:[#allocation6 + $0xb0] sm:$0xff]
    %v388 = vld [vmem:[#allocation6 + $0xb8] sm:$0xff]
    %v389 = vld [vmem:[#allocation6 + $0xc0] sm:$0xff]
    %v390 = vld [vmem:[#allocation6 + $0xc8] sm:$0xff]
    %v391 = vld [vmem:[#allocation6 + $0xd0] sm:$0xff]
    %v392 = vld [vmem:[#allocation6 + $0xd8] sm:$0xff]
    %v393 = vld [vmem:[#allocation6 + $0xe0] sm:$0xff]
    %v394 = vld [vmem:[#allocation6 + $0xe8] sm:$0xff]
    %v395 = vld [vmem:[#allocation6 + $0xf0] sm:$0xff]
    %v396 = vld [vmem:[#allocation6 + $0xf8] sm:$0xff]
    %v397 = vld [vmem:[#allocation6 + $0x100] sm:$0xff]
    %v398 = vld [vmem:[#allocation6 + $0x108] sm:$0xff]
    %v399 = vld [vmem:[#allocation6 + $0x110] sm:$0xff]
    %v400 = vld [vmem:[#allocation6 + $0x118] sm:$0xff]
    %v401 = vld [vmem:[#allocation6 + $0x120] sm:$0xff]
    %v402 = vld [vmem:[#allocation6 + $0x128] sm:$0xff]
    %v403 = vld [vmem:[#allocation6 + $0x130] sm:$0xff]
    %v404 = vld [vmem:[#allocation6 + $0x138] sm:$0xff]
    %v405 = vld [vmem:[#allocation6 + $0x140] sm:$0xff]
    %v406 = vld [vmem:[#allocation6 + $0x148] sm:$0xff]
    %v407 = vld [vmem:[#allocation6 + $0x150] sm:$0xff]
    %v408 = vld [vmem:[#allocation6 + $0x158] sm:$0xff]
    %v409 = vld [vmem:[#allocation6 + $0x160] sm:$0xff]
    %v410 = vld [vmem:[#allocation6 + $0x168] sm:$0xff]
    %v411 = vld [vmem:[#allocation6 + $0x170] sm:$0xff]
    %v412 = vld [vmem:[#allocation6 + $0x178] sm:$0xff]
    %v413 = vld [vmem:[#allocation6 + $0x180] sm:$0xff]
    %v414 = vld [vmem:[#allocation6 + $0x188] sm:$0xff]
    %v415 = vld [vmem:[#allocation6 + $0x190] sm:$0xff]
    %v416 = vld [vmem:[#allocation6 + $0x198] sm:$0xff]
    %v417 = vld [vmem:[#allocation6 + $0x1a0] sm:$0xff]
    %v418 = vld [vmem:[#allocation6 + $0x1a8] sm:$0xff]
    %v419 = vld [vmem:[#allocation6 + $0x1b0] sm:$0xff]
    %v420 = vld [vmem:[#allocation6 + $0x1b8] sm:$0xff]
    %v421 = vld [vmem:[#allocation6 + $0x1c0] sm:$0xff]
    %v422 = vld [vmem:[#allocation6 + $0x1c8] sm:$0xff]
    %v423 = vld [vmem:[#allocation6 + $0x1d0] sm:$0xff]
    %v424 = vld [vmem:[#allocation6 + $0x1d8] sm:$0xff]
    %v425 = vld [vmem:[#allocation6 + $0x1e0] sm:$0xff]
    %v426 = vld [vmem:[#allocation6 + $0x1e8] sm:$0xff]
    %v427 = vld [vmem:[#allocation6 + $0x1f0] sm:$0xff]
    %v428 = vld [vmem:[#allocation6 + $0x1f8] sm:$0xff]
    %v429 = vld [vmem:[#allocation4] sm:$0xff]
    %v430 = vld [vmem:[#allocation4 + $0x8] sm:$0xff]
    %v431 = vld [vmem:[#allocation4 + $0x10] sm:$0xff]
    %v432 = vld [vmem:[#allocation4 + $0x18] sm:$0xff]
    %433 = vmatpush.msra.mxu0 %v425
    %434 = vmatpush.msra.mxu0 %v421
    %435 = vmatpush.msra.mxu0 %v417
    %436 = vmatpush.msra.mxu0 %v413
    %437 = vmatpush.msra.mxu0 %v409
    %438 = vmatpush.msra.mxu0 %v405
    %439 = vmatpush.msra.mxu0 %v401
    %440 = vmatpush.msra.mxu0 %v397
    %441 = vmatpush.msra.mxu0 %v393
    %442 = vmatpush.msra.mxu0 %v389
    %443 = vmatpush.msra.mxu0 %v385
    %444 = vmatpush.msra.mxu0 %v381
    %445 = vmatpush.msra.mxu0 %v377
    %446 = vmatpush.msra.mxu0 %v373
    %447 = vmatpush.msra.mxu0 %v369
    %448 = vmatpush.msra.mxu0 %v365
    %449 = vmatmul.f32.gmra.mxu0 %v363
    %v450 = vpop.f32.mrf.mxu0
    %v451 = vadd.f32 0.0, %v450
    %452 = vdwg.mxu0
    %453 = vmatpush.msra.mxu0 %v426
    %454 = vmatpush.msra.mxu0 %v422
    %455 = vmatpush.msra.mxu0 %v418
    %456 = vmatpush.msra.mxu0 %v414
    %457 = vmatpush.msra.mxu0 %v410
    %458 = vmatpush.msra.mxu0 %v406
    %459 = vmatpush.msra.mxu0 %v402
    %460 = vmatpush.msra.mxu0 %v398
    %461 = vmatpush.msra.mxu0 %v394
    %462 = vmatpush.msra.mxu0 %v390
    %463 = vmatpush.msra.mxu0 %v386
    %464 = vmatpush.msra.mxu0 %v382
    %465 = vmatpush.msra.mxu0 %v378
    %466 = vmatpush.msra.mxu0 %v374
    %467 = vmatpush.msra.mxu0 %v370
    %468 = vmatpush.msra.mxu0 %v366
    %469 = vmatmul.f32.gmra.mxu0 %v363
    %v470 = vpop.f32.mrf.mxu0
    %v471 = vadd.f32 0.0, %v470
    %472 = vdwg.mxu0
    %473 = vmatpush.msra.mxu0 %v427
    %474 = vmatpush.msra.mxu0 %v423
    %475 = vmatpush.msra.mxu0 %v419
    %476 = vmatpush.msra.mxu0 %v415
    %477 = vmatpush.msra.mxu0 %v411
    %478 = vmatpush.msra.mxu0 %v407
    %479 = vmatpush.msra.mxu0 %v403
    %480 = vmatpush.msra.mxu0 %v399
    %481 = vmatpush.msra.mxu0 %v395
    %482 = vmatpush.msra.mxu0 %v391
    %483 = vmatpush.msra.mxu0 %v387
    %484 = vmatpush.msra.mxu0 %v383
    %485 = vmatpush.msra.mxu0 %v379
    %486 = vmatpush.msra.mxu0 %v375
    %487 = vmatpush.msra.mxu0 %v371
    %488 = vmatpush.msra.mxu0 %v367
    %489 = vmatmul.f32.gmra.mxu0 %v363
    %v490 = vpop.f32.mrf.mxu0
    %v491 = vadd.f32 0.0, %v490
    %492 = vdwg.mxu0
    %493 = vmatpush.msra.mxu0 %v428
    %494 = vmatpush.msra.mxu0 %v424
    %495 = vmatpush.msra.mxu0 %v420
    %496 = vmatpush.msra.mxu0 %v416
    %497 = vmatpush.msra.mxu0 %v412
    %498 = vmatpush.msra.mxu0 %v408
    %499 = vmatpush.msra.mxu0 %v404
    %500 = vmatpush.msra.mxu0 %v400
    %501 = vmatpush.msra.mxu0 %v396
    %502 = vmatpush.msra.mxu0 %v392
    %503 = vmatpush.msra.mxu0 %v388
    %504 = vmatpush.msra.mxu0 %v384
    %505 = vmatpush.msra.mxu0 %v380
    %506 = vmatpush.msra.mxu0 %v376
    %507 = vmatpush.msra.mxu0 %v372
    %508 = vmatpush.msra.mxu0 %v368
    %509 = vmatmul.f32.gmra.mxu0 %v363
    %v510 = vpop.f32.mrf.mxu0
    %v511 = vadd.f32 0.0, %v510
    %512 = vdwg.mxu0
    %v513 = vadd.f32 %v429, %v451
    %v514 = vadd.f32 %v430, %v471
    %v515 = vadd.f32 %v431, %v491
    %v516 = vadd.f32 %v432, %v511
    %v517 = vxor.u32 %v513, 2147483648
    %v518 = vmul.f32 %v517, 1.442695
    %v519 = vpow.pop %v518
    %v520 = vadd.f32 %v519, 1.0
    %v521 = vrcp.pop %v520
    %v522 = vmul.f32 %v520, %v521
    %v523 = vsub.f32 1.0, %v522
    %v524 = vmul.f32 %v521, %v523
    %v525 = vadd.f32 %v521, %v524
    %vm526 = vweird.f32 %v520
    %vm527 = vweird.f32 %v521
    %vm528 = vmor %vm526, %vm527
    %v529 = vsel %vm528, %v521, %v525
    %v530 = vand.u32 2147483647, %v520
    %vm531 = vcmp.eq.f32.partialorder %v530, 8.507059e+37
    %v532 = vand.u32 %v520, 2147483648
    %v533 = vor.u32 1.1754944e-38, %v532
    %v534 = vsel %vm531, %v533, %v529
    %v535 = vmul.f32 1.0, %v534
    %v536 = vxor.u32 %v514, 2147483648
    %v537 = vmul.f32 %v536, 1.442695
    %v538 = vpow.pop %v537
    %v539 = vadd.f32 %v538, 1.0
    %v540 = vrcp.pop %v539
    %v541 = vmul.f32 %v539, %v540
    %v542 = vsub.f32 1.0, %v541
    %v543 = vmul.f32 %v540, %v542
    %v544 = vadd.f32 %v540, %v543
    %vm545 = vweird.f32 %v539
    %vm546 = vweird.f32 %v540
    %vm547 = vmor %vm545, %vm546
    %v548 = vsel %vm547, %v540, %v544
    %v549 = vand.u32 2147483647, %v539
    %vm550 = vcmp.eq.f32.partialorder %v549, 8.507059e+37
    %v551 = vand.u32 %v539, 2147483648
    %v552 = vor.u32 1.1754944e-38, %v551
    %v553 = vsel %vm550, %v552, %v548
    %v554 = vmul.f32 1.0, %v553
    %v555 = vtanh.pop %v515
    %v556 = vxor.u32 %v516, 2147483648
    %v557 = vmul.f32 %v556, 1.442695
    %v558 = vpow.pop %v557
    %v559 = vadd.f32 %v558, 1.0
    %v560 = vrcp.pop %v559
    %v561 = vmul.f32 %v559, %v560
    %v562 = vsub.f32 1.0, %v561
    %v563 = vmul.f32 %v560, %v562
    %v564 = vadd.f32 %v560, %v563
    %vm565 = vweird.f32 %v559
    %vm566 = vweird.f32 %v560
    %vm567 = vmor %vm565, %vm566
    %v568 = vsel %vm567, %v560, %v564
    %v569 = vand.u32 2147483647, %v559
    %vm570 = vcmp.eq.f32.partialorder %v569, 8.507059e+37
    %v571 = vand.u32 %v559, 2147483648
    %v572 = vor.u32 1.1754944e-38, %v571
    %v573 = vsel %vm570, %v572, %v568
    %v574 = vmul.f32 1.0, %v573
    %v575 = vmul.f32 %v554, %v364
    %v576 = vmul.f32 %v535, %v555
    %v577 = vadd.f32 %v575, %v576
    %v578 = vtanh.pop %v577
    %v579 = vmul.f32 %v574, %v578
    %580 = vst [vmem:[#allocation3] sm:$0xff] %v577
    %581 = vst [vmem:[#allocation2] sm:$0xff] %v579
    %582 = vst [vmem:[#allocation5] sm:$0xff] %v579
    %v583 = vld [vmem:[#allocation2] sm:$0xff]
    %v584 = vld [vmem:[#allocation3] sm:$0xff]
    %v585 = vld [vmem:[#allocation6] sm:$0xff]
    %v586 = vld [vmem:[#allocation6 + $0x8] sm:$0xff]
    %v587 = vld [vmem:[#allocation6 + $0x10] sm:$0xff]
    %v588 = vld [vmem:[#allocation6 + $0x18] sm:$0xff]
    %v589 = vld [vmem:[#allocation6 + $0x20] sm:$0xff]
    %v590 = vld [vmem:[#allocation6 + $0x28] sm:$0xff]
    %v591 = vld [vmem:[#allocation6 + $0x30] sm:$0xff]
    %v592 = vld [vmem:[#allocation6 + $0x38] sm:$0xff]
    %v593 = vld [vmem:[#allocation6 + $0x40] sm:$0xff]
    %v594 = vld [vmem:[#allocation6 + $0x48] sm:$0xff]
    %v595 = vld [vmem:[#allocation6 + $0x50] sm:$0xff]
    %v596 = vld [vmem:[#allocation6 + $0x58] sm:$0xff]
    %v597 = vld [vmem:[#allocation6 + $0x60] sm:$0xff]
    %v598 = vld [vmem:[#allocation6 + $0x68] sm:$0xff]
    %v599 = vld [vmem:[#allocation6 + $0x70] sm:$0xff]
    %v600 = vld [vmem:[#allocation6 + $0x78] sm:$0xff]
    %v601 = vld [vmem:[#allocation6 + $0x80] sm:$0xff]
    %v602 = vld [vmem:[#allocation6 + $0x88] sm:$0xff]
    %v603 = vld [vmem:[#allocation6 + $0x90] sm:$0xff]
    %v604 = vld [vmem:[#allocation6 + $0x98] sm:$0xff]
    %v605 = vld [vmem:[#allocation6 + $0xa0] sm:$0xff]
    %v606 = vld [vmem:[#allocation6 + $0xa8] sm:$0xff]
    %v607 = vld [vmem:[#allocation6 + $0xb0] sm:$0xff]
    %v608 = vld [vmem:[#allocation6 + $0xb8] sm:$0xff]
    %v609 = vld [vmem:[#allocation6 + $0xc0] sm:$0xff]
    %v610 = vld [vmem:[#allocation6 + $0xc8] sm:$0xff]
    %v611 = vld [vmem:[#allocation6 + $0xd0] sm:$0xff]
    %v612 = vld [vmem:[#allocation6 + $0xd8] sm:$0xff]
    %v613 = vld [vmem:[#allocation6 + $0xe0] sm:$0xff]
    %v614 = vld [vmem:[#allocation6 + $0xe8] sm:$0xff]
    %v615 = vld [vmem:[#allocation6 + $0xf0] sm:$0xff]
    %v616 = vld [vmem:[#allocation6 + $0xf8] sm:$0xff]
    %v617 = vld [vmem:[#allocation6 + $0x100] sm:$0xff]
    %v618 = vld [vmem:[#allocation6 + $0x108] sm:$0xff]
    %v619 = vld [vmem:[#allocation6 + $0x110] sm:$0xff]
    %v620 = vld [vmem:[#allocation6 + $0x118] sm:$0xff]
    %v621 = vld [vmem:[#allocation6 + $0x120] sm:$0xff]
    %v622 = vld [vmem:[#allocation6 + $0x128] sm:$0xff]
    %v623 = vld [vmem:[#allocation6 + $0x130] sm:$0xff]
    %v624 = vld [vmem:[#allocation6 + $0x138] sm:$0xff]
    %v625 = vld [vmem:[#allocation6 + $0x140] sm:$0xff]
    %v626 = vld [vmem:[#allocation6 + $0x148] sm:$0xff]
    %v627 = vld [vmem:[#allocation6 + $0x150] sm:$0xff]
    %v628 = vld [vmem:[#allocation6 + $0x158] sm:$0xff]
    %v629 = vld [vmem:[#allocation6 + $0x160] sm:$0xff]
    %v630 = vld [vmem:[#allocation6 + $0x168] sm:$0xff]
    %v631 = vld [vmem:[#allocation6 + $0x170] sm:$0xff]
    %v632 = vld [vmem:[#allocation6 + $0x178] sm:$0xff]
    %v633 = vld [vmem:[#allocation6 + $0x180] sm:$0xff]
    %v634 = vld [vmem:[#allocation6 + $0x188] sm:$0xff]
    %v635 = vld [vmem:[#allocation6 + $0x190] sm:$0xff]
    %v636 = vld [vmem:[#allocation6 + $0x198] sm:$0xff]
    %v637 = vld [vmem:[#allocation6 + $0x1a0] sm:$0xff]
    %v638 = vld [vmem:[#allocation6 + $0x1a8] sm:$0xff]
    %v639 = vld [vmem:[#allocation6 + $0x1b0] sm:$0xff]
    %v640 = vld [vmem:[#allocation6 + $0x1b8] sm:$0xff]
    %v641 = vld [vmem:[#allocation6 + $0x1c0] sm:$0xff]
    %v642 = vld [vmem:[#allocation6 + $0x1c8] sm:$0xff]
    %v643 = vld [vmem:[#allocation6 + $0x1d0] sm:$0xff]
    %v644 = vld [vmem:[#allocation6 + $0x1d8] sm:$0xff]
    %v645 = vld [vmem:[#allocation6 + $0x1e0] sm:$0xff]
    %v646 = vld [vmem:[#allocation6 + $0x1e8] sm:$0xff]
    %v647 = vld [vmem:[#allocation6 + $0x1f0] sm:$0xff]
    %v648 = vld [vmem:[#allocation6 + $0x1f8] sm:$0xff]
    %s649 = scalar_lea.vmem [#allocation4], 32
    %v650 = vld [vmem:[%s649] sm:$0xff]
    %v651 = vld [vmem:[%s649 + $0x8] sm:$0xff]
    %v652 = vld [vmem:[%s649 + $0x10] sm:$0xff]
    %v653 = vld [vmem:[%s649 + $0x18] sm:$0xff]
    %654 = vmatpush.msra.mxu0 %v645
    %655 = vmatpush.msra.mxu0 %v641
    %656 = vmatpush.msra.mxu0 %v637
    %657 = vmatpush.msra.mxu0 %v633
    %658 = vmatpush.msra.mxu0 %v629
    %659 = vmatpush.msra.mxu0 %v625
    %660 = vmatpush.msra.mxu0 %v621
    %661 = vmatpush.msra.mxu0 %v617
    %662 = vmatpush.msra.mxu0 %v613
    %663 = vmatpush.msra.mxu0 %v609
    %664 = vmatpush.msra.mxu0 %v605
    %665 = vmatpush.msra.mxu0 %v601
    %666 = vmatpush.msra.mxu0 %v597
    %667 = vmatpush.msra.mxu0 %v593
    %668 = vmatpush.msra.mxu0 %v589
    %669 = vmatpush.msra.mxu0 %v585
    %670 = vmatmul.f32.gmra.mxu0 %v583
    %v671 = vpop.f32.mrf.mxu0
    %v672 = vadd.f32 0.0, %v671
    %673 = vdwg.mxu0
    %674 = vmatpush.msra.mxu0 %v646
    %675 = vmatpush.msra.mxu0 %v642
    %676 = vmatpush.msra.mxu0 %v638
    %677 = vmatpush.msra.mxu0 %v634
    %678 = vmatpush.msra.mxu0 %v630
    %679 = vmatpush.msra.mxu0 %v626
    %680 = vmatpush.msra.mxu0 %v622
    %681 = vmatpush.msra.mxu0 %v618
    %682 = vmatpush.msra.mxu0 %v614
    %683 = vmatpush.msra.mxu0 %v610
    %684 = vmatpush.msra.mxu0 %v606
    %685 = vmatpush.msra.mxu0 %v602
    %686 = vmatpush.msra.mxu0 %v598
    %687 = vmatpush.msra.mxu0 %v594
    %688 = vmatpush.msra.mxu0 %v590
    %689 = vmatpush.msra.mxu0 %v586
    %690 = vmatmul.f32.gmra.mxu0 %v583
    %v691 = vpop.f32.mrf.mxu0
    %v692 = vadd.f32 0.0, %v691
    %693 = vdwg.mxu0
    %694 = vmatpush.msra.mxu0 %v647
    %695 = vmatpush.msra.mxu0 %v643
    %696 = vmatpush.msra.mxu0 %v639
    %697 = vmatpush.msra.mxu0 %v635
    %698 = vmatpush.msra.mxu0 %v631
    %699 = vmatpush.msra.mxu0 %v627
    %700 = vmatpush.msra.mxu0 %v623
    %701 = vmatpush.msra.mxu0 %v619
    %702 = vmatpush.msra.mxu0 %v615
    %703 = vmatpush.msra.mxu0 %v611
    %704 = vmatpush.msra.mxu0 %v607
    %705 = vmatpush.msra.mxu0 %v603
    %706 = vmatpush.msra.mxu0 %v599
    %707 = vmatpush.msra.mxu0 %v595
    %708 = vmatpush.msra.mxu0 %v591
    %709 = vmatpush.msra.mxu0 %v587
    %710 = vmatmul.f32.gmra.mxu0 %v583
    %v711 = vpop.f32.mrf.mxu0
    %v712 = vadd.f32 0.0, %v711
    %713 = vdwg.mxu0
    %714 = vmatpush.msra.mxu0 %v648
    %715 = vmatpush.msra.mxu0 %v644
    %716 = vmatpush.msra.mxu0 %v640
    %717 = vmatpush.msra.mxu0 %v636
    %718 = vmatpush.msra.mxu0 %v632
    %719 = vmatpush.msra.mxu0 %v628
    %720 = vmatpush.msra.mxu0 %v624
    %721 = vmatpush.msra.mxu0 %v620
    %722 = vmatpush.msra.mxu0 %v616
    %723 = vmatpush.msra.mxu0 %v612
    %724 = vmatpush.msra.mxu0 %v608
    %725 = vmatpush.msra.mxu0 %v604
    %726 = vmatpush.msra.mxu0 %v600
    %727 = vmatpush.msra.mxu0 %v596
    %728 = vmatpush.msra.mxu0 %v592
    %729 = vmatpush.msra.mxu0 %v588
    %730 = vmatmul.f32.gmra.mxu0 %v583
    %v731 = vpop.f32.mrf.mxu0
    %v732 = vadd.f32 0.0, %v731
    %733 = vdwg.mxu0
    %v734 = vadd.f32 %v650, %v672
    %v735 = vadd.f32 %v651, %v692
    %v736 = vadd.f32 %v652, %v712
    %v737 = vadd.f32 %v653, %v732
    %v738 = vxor.u32 %v734, 2147483648
    %v739 = vmul.f32 %v738, 1.442695
    %v740 = vpow.pop %v739
    %v741 = vadd.f32 %v740, 1.0
    %v742 = vrcp.pop %v741
    %v743 = vmul.f32 %v741, %v742
    %v744 = vsub.f32 1.0, %v743
    %v745 = vmul.f32 %v742, %v744
    %v746 = vadd.f32 %v742, %v745
    %vm747 = vweird.f32 %v741
    %vm748 = vweird.f32 %v742
    %vm749 = vmor %vm747, %vm748
    %v750 = vsel %vm749, %v742, %v746
    %v751 = vand.u32 2147483647, %v741
    %vm752 = vcmp.eq.f32.partialorder %v751, 8.507059e+37
    %v753 = vand.u32 %v741, 2147483648
    %v754 = vor.u32 1.1754944e-38, %v753
    %v755 = vsel %vm752, %v754, %v750
    %v756 = vmul.f32 1.0, %v755
    %v757 = vxor.u32 %v735, 2147483648
    %v758 = vmul.f32 %v757, 1.442695
    %v759 = vpow.pop %v758
    %v760 = vadd.f32 %v759, 1.0
    %v761 = vrcp.pop %v760
    %v762 = vmul.f32 %v760, %v761
    %v763 = vsub.f32 1.0, %v762
    %v764 = vmul.f32 %v761, %v763
    %v765 = vadd.f32 %v761, %v764
    %vm766 = vweird.f32 %v760
    %vm767 = vweird.f32 %v761
    %vm768 = vmor %vm766, %vm767
    %v769 = vsel %vm768, %v761, %v765
    %v770 = vand.u32 2147483647, %v760
    %vm771 = vcmp.eq.f32.partialorder %v770, 8.507059e+37
    %v772 = vand.u32 %v760, 2147483648
    %v773 = vor.u32 1.1754944e-38, %v772
    %v774 = vsel %vm771, %v773, %v769
    %v775 = vmul.f32 1.0, %v774
    %v776 = vtanh.pop %v736
    %v777 = vxor.u32 %v737, 2147483648
    %v778 = vmul.f32 %v777, 1.442695
    %v779 = vpow.pop %v778
    %v780 = vadd.f32 %v779, 1.0
    %v781 = vrcp.pop %v780
    %v782 = vmul.f32 %v780, %v781
    %v783 = vsub.f32 1.0, %v782
    %v784 = vmul.f32 %v781, %v783
    %v785 = vadd.f32 %v781, %v784
    %vm786 = vweird.f32 %v780
    %vm787 = vweird.f32 %v781
    %vm788 = vmor %vm786, %vm787
    %v789 = vsel %vm788, %v781, %v785
    %v790 = vand.u32 2147483647, %v780
    %vm791 = vcmp.eq.f32.partialorder %v790, 8.507059e+37
    %v792 = vand.u32 %v780, 2147483648
    %v793 = vor.u32 1.1754944e-38, %v792
    %v794 = vsel %vm791, %v793, %v789
    %v795 = vmul.f32 1.0, %v794
    %v796 = vmul.f32 %v775, %v584
    %v797 = vmul.f32 %v756, %v776
    %v798 = vadd.f32 %v796, %v797
    %v799 = vtanh.pop %v798
    %v800 = vmul.f32 %v795, %v799
    %801 = vst [vmem:[#allocation3] sm:$0xff] %v798
    %802 = vst [vmem:[#allocation2] sm:$0xff] %v800
    %s803 = scalar_lea.vmem [#allocation5], 8
    %804 = vst [vmem:[%s803] sm:$0xff] %v800
    %v805 = vld [vmem:[#allocation2] sm:$0xff]
    %v806 = vld [vmem:[#allocation3] sm:$0xff]
    %v807 = vld [vmem:[#allocation6] sm:$0xff]
    %v808 = vld [vmem:[#allocation6 + $0x8] sm:$0xff]
    %v809 = vld [vmem:[#allocation6 + $0x10] sm:$0xff]
    %v810 = vld [vmem:[#allocation6 + $0x18] sm:$0xff]
    %v811 = vld [vmem:[#allocation6 + $0x20] sm:$0xff]
    %v812 = vld [vmem:[#allocation6 + $0x28] sm:$0xff]
    %v813 = vld [vmem:[#allocation6 + $0x30] sm:$0xff]
    %v814 = vld [vmem:[#allocation6 + $0x38] sm:$0xff]
    %v815 = vld [vmem:[#allocation6 + $0x40] sm:$0xff]
    %v816 = vld [vmem:[#allocation6 + $0x48] sm:$0xff]
    %v817 = vld [vmem:[#allocation6 + $0x50] sm:$0xff]
    %v818 = vld [vmem:[#allocation6 + $0x58] sm:$0xff]
    %v819 = vld [vmem:[#allocation6 + $0x60] sm:$0xff]
    %v820 = vld [vmem:[#allocation6 + $0x68] sm:$0xff]
    %v821 = vld [vmem:[#allocation6 + $0x70] sm:$0xff]
    %v822 = vld [vmem:[#allocation6 + $0x78] sm:$0xff]
    %v823 = vld [vmem:[#allocation6 + $0x80] sm:$0xff]
    %v824 = vld [vmem:[#allocation6 + $0x88] sm:$0xff]
    %v825 = vld [vmem:[#allocation6 + $0x90] sm:$0xff]
    %v826 = vld [vmem:[#allocation6 + $0x98] sm:$0xff]
    %v827 = vld [vmem:[#allocation6 + $0xa0] sm:$0xff]
    %v828 = vld [vmem:[#allocation6 + $0xa8] sm:$0xff]
    %v829 = vld [vmem:[#allocation6 + $0xb0] sm:$0xff]
    %v830 = vld [vmem:[#allocation6 + $0xb8] sm:$0xff]
    %v831 = vld [vmem:[#allocation6 + $0xc0] sm:$0xff]
    %v832 = vld [vmem:[#allocation6 + $0xc8] sm:$0xff]
    %v833 = vld [vmem:[#allocation6 + $0xd0] sm:$0xff]
    %v834 = vld [vmem:[#allocation6 + $0xd8] sm:$0xff]
    %v835 = vld [vmem:[#allocation6 + $0xe0] sm:$0xff]
    %v836 = vld [vmem:[#allocation6 + $0xe8] sm:$0xff]
    %v837 = vld [vmem:[#allocation6 + $0xf0] sm:$0xff]
    %v838 = vld [vmem:[#allocation6 + $0xf8] sm:$0xff]
    %v839 = vld [vmem:[#allocation6 + $0x100] sm:$0xff]
    %v840 = vld [vmem:[#allocation6 + $0x108] sm:$0xff]
    %v841 = vld [vmem:[#allocation6 + $0x110] sm:$0xff]
    %v842 = vld [vmem:[#allocation6 + $0x118] sm:$0xff]
    %v843 = vld [vmem:[#allocation6 + $0x120] sm:$0xff]
    %v844 = vld [vmem:[#allocation6 + $0x128] sm:$0xff]
    %v845 = vld [vmem:[#allocation6 + $0x130] sm:$0xff]
    %v846 = vld [vmem:[#allocation6 + $0x138] sm:$0xff]
    %v847 = vld [vmem:[#allocation6 + $0x140] sm:$0xff]
    %v848 = vld [vmem:[#allocation6 + $0x148] sm:$0xff]
    %v849 = vld [vmem:[#allocation6 + $0x150] sm:$0xff]
    %v850 = vld [vmem:[#allocation6 + $0x158] sm:$0xff]
    %v851 = vld [vmem:[#allocation6 + $0x160] sm:$0xff]
    %v852 = vld [vmem:[#allocation6 + $0x168] sm:$0xff]
    %v853 = vld [vmem:[#allocation6 + $0x170] sm:$0xff]
    %v854 = vld [vmem:[#allocation6 + $0x178] sm:$0xff]
    %v855 = vld [vmem:[#allocation6 + $0x180] sm:$0xff]
    %v856 = vld [vmem:[#allocation6 + $0x188] sm:$0xff]
    %v857 = vld [vmem:[#allocation6 + $0x190] sm:$0xff]
    %v858 = vld [vmem:[#allocation6 + $0x198] sm:$0xff]
    %v859 = vld [vmem:[#allocation6 + $0x1a0] sm:$0xff]
    %v860 = vld [vmem:[#allocation6 + $0x1a8] sm:$0xff]
    %v861 = vld [vmem:[#allocation6 + $0x1b0] sm:$0xff]
    %v862 = vld [vmem:[#allocation6 + $0x1b8] sm:$0xff]
    %v863 = vld [vmem:[#allocation6 + $0x1c0] sm:$0xff]
    %v864 = vld [vmem:[#allocation6 + $0x1c8] sm:$0xff]
    %v865 = vld [vmem:[#allocation6 + $0x1d0] sm:$0xff]
    %v866 = vld [vmem:[#allocation6 + $0x1d8] sm:$0xff]
    %v867 = vld [vmem:[#allocation6 + $0x1e0] sm:$0xff]
    %v868 = vld [vmem:[#allocation6 + $0x1e8] sm:$0xff]
    %v869 = vld [vmem:[#allocation6 + $0x1f0] sm:$0xff]
    %v870 = vld [vmem:[#allocation6 + $0x1f8] sm:$0xff]
    %s871 = scalar_lea.vmem [#allocation4], 64
    %v872 = vld [vmem:[%s871] sm:$0xff]
    %v873 = vld [vmem:[%s871 + $0x8] sm:$0xff]
    %v874 = vld [vmem:[%s871 + $0x10] sm:$0xff]
    %v875 = vld [vmem:[%s871 + $0x18] sm:$0xff]
    %876 = vmatpush.msra.mxu0 %v867
    %877 = vmatpush.msra.mxu0 %v863
    %878 = vmatpush.msra.mxu0 %v859
    %879 = vmatpush.msra.mxu0 %v855
    %880 = vmatpush.msra.mxu0 %v851
    %881 = vmatpush.msra.mxu0 %v847
    %882 = vmatpush.msra.mxu0 %v843
    %883 = vmatpush.msra.mxu0 %v839
    %884 = vmatpush.msra.mxu0 %v835
    %885 = vmatpush.msra.mxu0 %v831
    %886 = vmatpush.msra.mxu0 %v827
    %887 = vmatpush.msra.mxu0 %v823
    %888 = vmatpush.msra.mxu0 %v819
    %889 = vmatpush.msra.mxu0 %v815
    %890 = vmatpush.msra.mxu0 %v811
    %891 = vmatpush.msra.mxu0 %v807
    %892 = vmatmul.f32.gmra.mxu0 %v805
    %v893 = vpop.f32.mrf.mxu0
    %v894 = vadd.f32 0.0, %v893
    %895 = vdwg.mxu0
    %896 = vmatpush.msra.mxu0 %v868
    %897 = vmatpush.msra.mxu0 %v864
    %898 = vmatpush.msra.mxu0 %v860
    %899 = vmatpush.msra.mxu0 %v856
    %900 = vmatpush.msra.mxu0 %v852
    %901 = vmatpush.msra.mxu0 %v848
    %902 = vmatpush.msra.mxu0 %v844
    %903 = vmatpush.msra.mxu0 %v840
    %904 = vmatpush.msra.mxu0 %v836
    %905 = vmatpush.msra.mxu0 %v832
    %906 = vmatpush.msra.mxu0 %v828
    %907 = vmatpush.msra.mxu0 %v824
    %908 = vmatpush.msra.mxu0 %v820
    %909 = vmatpush.msra.mxu0 %v816
    %910 = vmatpush.msra.mxu0 %v812
    %911 = vmatpush.msra.mxu0 %v808
    %912 = vmatmul.f32.gmra.mxu0 %v805
    %v913 = vpop.f32.mrf.mxu0
    %v914 = vadd.f32 0.0, %v913
    %915 = vdwg.mxu0
    %916 = vmatpush.msra.mxu0 %v869
    %917 = vmatpush.msra.mxu0 %v865
    %918 = vmatpush.msra.mxu0 %v861
    %919 = vmatpush.msra.mxu0 %v857
    %920 = vmatpush.msra.mxu0 %v853
    %921 = vmatpush.msra.mxu0 %v849
    %922 = vmatpush.msra.mxu0 %v845
    %923 = vmatpush.msra.mxu0 %v841
    %924 = vmatpush.msra.mxu0 %v837
    %925 = vmatpush.msra.mxu0 %v833
    %926 = vmatpush.msra.mxu0 %v829
    %927 = vmatpush.msra.mxu0 %v825
    %928 = vmatpush.msra.mxu0 %v821
    %929 = vmatpush.msra.mxu0 %v817
    %930 = vmatpush.msra.mxu0 %v813
    %931 = vmatpush.msra.mxu0 %v809
    %932 = vmatmul.f32.gmra.mxu0 %v805
    %v933 = vpop.f32.mrf.mxu0
    %v934 = vadd.f32 0.0, %v933
    %935 = vdwg.mxu0
    %936 = vmatpush.msra.mxu0 %v870
    %937 = vmatpush.msra.mxu0 %v866
    %938 = vmatpush.msra.mxu0 %v862
    %939 = vmatpush.msra.mxu0 %v858
    %940 = vmatpush.msra.mxu0 %v854
    %941 = vmatpush.msra.mxu0 %v850
    %942 = vmatpush.msra.mxu0 %v846
    %943 = vmatpush.msra.mxu0 %v842
    %944 = vmatpush.msra.mxu0 %v838
    %945 = vmatpush.msra.mxu0 %v834
    %946 = vmatpush.msra.mxu0 %v830
    %947 = vmatpush.msra.mxu0 %v826
    %948 = vmatpush.msra.mxu0 %v822
    %949 = vmatpush.msra.mxu0 %v818
    %950 = vmatpush.msra.mxu0 %v814
    %951 = vmatpush.msra.mxu0 %v810
    %952 = vmatmul.f32.gmra.mxu0 %v805
    %v953 = vpop.f32.mrf.mxu0
    %v954 = vadd.f32 0.0, %v953
    %955 = vdwg.mxu0
    %v956 = vadd.f32 %v872, %v894
    %v957 = vadd.f32 %v873, %v914
    %v958 = vadd.f32 %v874, %v934
    %v959 = vadd.f32 %v875, %v954
    %v960 = vxor.u32 %v956, 2147483648
    %v961 = vmul.f32 %v960, 1.442695
    %v962 = vpow.pop %v961
    %v963 = vadd.f32 %v962, 1.0
    %v964 = vrcp.pop %v963
    %v965 = vmul.f32 %v963, %v964
    %v966 = vsub.f32 1.0, %v965
    %v967 = vmul.f32 %v964, %v966
    %v968 = vadd.f32 %v964, %v967
    %vm969 = vweird.f32 %v963
    %vm970 = vweird.f32 %v964
    %vm971 = vmor %vm969, %vm970
    %v972 = vsel %vm971, %v964, %v968
    %v973 = vand.u32 2147483647, %v963
    %vm974 = vcmp.eq.f32.partialorder %v973, 8.507059e+37
    %v975 = vand.u32 %v963, 2147483648
    %v976 = vor.u32 1.1754944e-38, %v975
    %v977 = vsel %vm974, %v976, %v972
    %v978 = vmul.f32 1.0, %v977
    %v979 = vxor.u32 %v957, 2147483648
    %v980 = vmul.f32 %v979, 1.442695
    %v981 = vpow.pop %v980
    %v982 = vadd.f32 %v981, 1.0
    %v983 = vrcp.pop %v982
    %v984 = vmul.f32 %v982, %v983
    %v985 = vsub.f32 1.0, %v984
    %v986 = vmul.f32 %v983, %v985
    %v987 = vadd.f32 %v983, %v986
    %vm988 = vweird.f32 %v982
    %vm989 = vweird.f32 %v983
    %vm990 = vmor %vm988, %vm989
    %v991 = vsel %vm990, %v983, %v987
    %v992 = vand.u32 2147483647, %v982
    %vm993 = vcmp.eq.f32.partialorder %v992, 8.507059e+37
    %v994 = vand.u32 %v982, 2147483648
    %v995 = vor.u32 1.1754944e-38, %v994
    %v996 = vsel %vm993, %v995, %v991
    %v997 = vmul.f32 1.0, %v996
    %v998 = vtanh.pop %v958
    %v999 = vxor.u32 %v959, 2147483648
    %v1000 = vmul.f32 %v999, 1.442695
    %v1001 = vpow.pop %v1000
    %v1002 = vadd.f32 %v1001, 1.0
    %v1003 = vrcp.pop %v1002
    %v1004 = vmul.f32 %v1002, %v1003
    %v1005 = vsub.f32 1.0, %v1004
    %v1006 = vmul.f32 %v1003, %v1005
    %v1007 = vadd.f32 %v1003, %v1006
    %vm1008 = vweird.f32 %v1002
    %vm1009 = vweird.f32 %v1003
    %vm1010 = vmor %vm1008, %vm1009
    %v1011 = vsel %vm1010, %v1003, %v1007
    %v1012 = vand.u32 2147483647, %v1002
    %vm1013 = vcmp.eq.f32.partialorder %v1012, 8.507059e+37
    %v1014 = vand.u32 %v1002, 2147483648
    %v1015 = vor.u32 1.1754944e-38, %v1014
    %v1016 = vsel %vm1013, %v1015, %v1011
    %v1017 = vmul.f32 1.0, %v1016
    %v1018 = vmul.f32 %v997, %v806
    %v1019 = vmul.f32 %v978, %v998
    %v1020 = vadd.f32 %v1018, %v1019
    %v1021 = vtanh.pop %v1020
    %v1022 = vmul.f32 %v1017, %v1021
    %1023 = vst [vmem:[#allocation3] sm:$0xff] %v1020
    %1024 = vst [vmem:[#allocation2] sm:$0xff] %v1022
    %s1025 = scalar_lea.vmem [#allocation5], 16
    %1026 = vst [vmem:[%s1025] sm:$0xff] %v1022
    %v1027 = vld [vmem:[#allocation2] sm:$0xff]
    %v1028 = vld [vmem:[#allocation3] sm:$0xff]
    %v1029 = vld [vmem:[#allocation6] sm:$0xff]
    %v1030 = vld [vmem:[#allocation6 + $0x8] sm:$0xff]
    %v1031 = vld [vmem:[#allocation6 + $0x10] sm:$0xff]
    %v1032 = vld [vmem:[#allocation6 + $0x18] sm:$0xff]
    %v1033 = vld [vmem:[#allocation6 + $0x20] sm:$0xff]
    %v1034 = vld [vmem:[#allocation6 + $0x28] sm:$0xff]
    %v1035 = vld [vmem:[#allocation6 + $0x30] sm:$0xff]
    %v1036 = vld [vmem:[#allocation6 + $0x38] sm:$0xff]
    %v1037 = vld [vmem:[#allocation6 + $0x40] sm:$0xff]
    %v1038 = vld [vmem:[#allocation6 + $0x48] sm:$0xff]
    %v1039 = vld [vmem:[#allocation6 + $0x50] sm:$0xff]
    %v1040 = vld [vmem:[#allocation6 + $0x58] sm:$0xff]
    %v1041 = vld [vmem:[#allocation6 + $0x60] sm:$0xff]
    %v1042 = vld [vmem:[#allocation6 + $0x68] sm:$0xff]
    %v1043 = vld [vmem:[#allocation6 + $0x70] sm:$0xff]
    %v1044 = vld [vmem:[#allocation6 + $0x78] sm:$0xff]
    %v1045 = vld [vmem:[#allocation6 + $0x80] sm:$0xff]
    %v1046 = vld [vmem:[#allocation6 + $0x88] sm:$0xff]
    %v1047 = vld [vmem:[#allocation6 + $0x90] sm:$0xff]
    %v1048 = vld [vmem:[#allocation6 + $0x98] sm:$0xff]
    %v1049 = vld [vmem:[#allocation6 + $0xa0] sm:$0xff]
    %v1050 = vld [vmem:[#allocation6 + $0xa8] sm:$0xff]
    %v1051 = vld [vmem:[#allocation6 + $0xb0] sm:$0xff]
    %v1052 = vld [vmem:[#allocation6 + $0xb8] sm:$0xff]
    %v1053 = vld [vmem:[#allocation6 + $0xc0] sm:$0xff]
    %v1054 = vld [vmem:[#allocation6 + $0xc8] sm:$0xff]
    %v1055 = vld [vmem:[#allocation6 + $0xd0] sm:$0xff]
    %v1056 = vld [vmem:[#allocation6 + $0xd8] sm:$0xff]
    %v1057 = vld [vmem:[#allocation6 + $0xe0] sm:$0xff]
    %v1058 = vld [vmem:[#allocation6 + $0xe8] sm:$0xff]
    %v1059 = vld [vmem:[#allocation6 + $0xf0] sm:$0xff]
    %v1060 = vld [vmem:[#allocation6 + $0xf8] sm:$0xff]
    %v1061 = vld [vmem:[#allocation6 + $0x100] sm:$0xff]
    %v1062 = vld [vmem:[#allocation6 + $0x108] sm:$0xff]
    %v1063 = vld [vmem:[#allocation6 + $0x110] sm:$0xff]
    %v1064 = vld [vmem:[#allocation6 + $0x118] sm:$0xff]
    %v1065 = vld [vmem:[#allocation6 + $0x120] sm:$0xff]
    %v1066 = vld [vmem:[#allocation6 + $0x128] sm:$0xff]
    %v1067 = vld [vmem:[#allocation6 + $0x130] sm:$0xff]
    %v1068 = vld [vmem:[#allocation6 + $0x138] sm:$0xff]
    %v1069 = vld [vmem:[#allocation6 + $0x140] sm:$0xff]
    %v1070 = vld [vmem:[#allocation6 + $0x148] sm:$0xff]
    %v1071 = vld [vmem:[#allocation6 + $0x150] sm:$0xff]
    %v1072 = vld [vmem:[#allocation6 + $0x158] sm:$0xff]
    %v1073 = vld [vmem:[#allocation6 + $0x160] sm:$0xff]
    %v1074 = vld [vmem:[#allocation6 + $0x168] sm:$0xff]
    %v1075 = vld [vmem:[#allocation6 + $0x170] sm:$0xff]
    %v1076 = vld [vmem:[#allocation6 + $0x178] sm:$0xff]
    %v1077 = vld [vmem:[#allocation6 + $0x180] sm:$0xff]
    %v1078 = vld [vmem:[#allocation6 + $0x188] sm:$0xff]
    %v1079 = vld [vmem:[#allocation6 + $0x190] sm:$0xff]
    %v1080 = vld [vmem:[#allocation6 + $0x198] sm:$0xff]
    %v1081 = vld [vmem:[#allocation6 + $0x1a0] sm:$0xff]
    %v1082 = vld [vmem:[#allocation6 + $0x1a8] sm:$0xff]
    %v1083 = vld [vmem:[#allocation6 + $0x1b0] sm:$0xff]
    %v1084 = vld [vmem:[#allocation6 + $0x1b8] sm:$0xff]
    %v1085 = vld [vmem:[#allocation6 + $0x1c0] sm:$0xff]
    %v1086 = vld [vmem:[#allocation6 + $0x1c8] sm:$0xff]
    %v1087 = vld [vmem:[#allocation6 + $0x1d0] sm:$0xff]
    %v1088 = vld [vmem:[#allocation6 + $0x1d8] sm:$0xff]
    %v1089 = vld [vmem:[#allocation6 + $0x1e0] sm:$0xff]
    %v1090 = vld [vmem:[#allocation6 + $0x1e8] sm:$0xff]
    %v1091 = vld [vmem:[#allocation6 + $0x1f0] sm:$0xff]
    %v1092 = vld [vmem:[#allocation6 + $0x1f8] sm:$0xff]
    %s1093 = scalar_lea.vmem [#allocation4], 96
    %v1094 = vld [vmem:[%s1093] sm:$0xff]
    %v1095 = vld [vmem:[%s1093 + $0x8] sm:$0xff]
    %v1096 = vld [vmem:[%s1093 + $0x10] sm:$0xff]
    %v1097 = vld [vmem:[%s1093 + $0x18] sm:$0xff]
    %1098 = vmatpush.msra.mxu0 %v1089
    %1099 = vmatpush.msra.mxu0 %v1085
    %1100 = vmatpush.msra.mxu0 %v1081
    %1101 = vmatpush.msra.mxu0 %v1077
    %1102 = vmatpush.msra.mxu0 %v1073
    %1103 = vmatpush.msra.mxu0 %v1069
    %1104 = vmatpush.msra.mxu0 %v1065
    %1105 = vmatpush.msra.mxu0 %v1061
    %1106 = vmatpush.msra.mxu0 %v1057
    %1107 = vmatpush.msra.mxu0 %v1053
    %1108 = vmatpush.msra.mxu0 %v1049
    %1109 = vmatpush.msra.mxu0 %v1045
    %1110 = vmatpush.msra.mxu0 %v1041
    %1111 = vmatpush.msra.mxu0 %v1037
    %1112 = vmatpush.msra.mxu0 %v1033
    %1113 = vmatpush.msra.mxu0 %v1029
    %1114 = vmatmul.f32.gmra.mxu0 %v1027
    %v1115 = vpop.f32.mrf.mxu0
    %v1116 = vadd.f32 0.0, %v1115
    %1117 = vdwg.mxu0
    %1118 = vmatpush.msra.mxu0 %v1090
    %1119 = vmatpush.msra.mxu0 %v1086
    %1120 = vmatpush.msra.mxu0 %v1082
    %1121 = vmatpush.msra.mxu0 %v1078
    %1122 = vmatpush.msra.mxu0 %v1074
    %1123 = vmatpush.msra.mxu0 %v1070
    %1124 = vmatpush.msra.mxu0 %v1066
    %1125 = vmatpush.msra.mxu0 %v1062
    %1126 = vmatpush.msra.mxu0 %v1058
    %1127 = vmatpush.msra.mxu0 %v1054
    %1128 = vmatpush.msra.mxu0 %v1050
    %1129 = vmatpush.msra.mxu0 %v1046
    %1130 = vmatpush.msra.mxu0 %v1042
    %1131 = vmatpush.msra.mxu0 %v1038
    %1132 = vmatpush.msra.mxu0 %v1034
    %1133 = vmatpush.msra.mxu0 %v1030
    %1134 = vmatmul.f32.gmra.mxu0 %v1027
    %v1135 = vpop.f32.mrf.mxu0
    %v1136 = vadd.f32 0.0, %v1135
    %1137 = vdwg.mxu0
    %1138 = vmatpush.msra.mxu0 %v1091
    %1139 = vmatpush.msra.mxu0 %v1087
    %1140 = vmatpush.msra.mxu0 %v1083
    %1141 = vmatpush.msra.mxu0 %v1079
    %1142 = vmatpush.msra.mxu0 %v1075
    %1143 = vmatpush.msra.mxu0 %v1071
    %1144 = vmatpush.msra.mxu0 %v1067
    %1145 = vmatpush.msra.mxu0 %v1063
    %1146 = vmatpush.msra.mxu0 %v1059
    %1147 = vmatpush.msra.mxu0 %v1055
    %1148 = vmatpush.msra.mxu0 %v1051
    %1149 = vmatpush.msra.mxu0 %v1047
    %1150 = vmatpush.msra.mxu0 %v1043
    %1151 = vmatpush.msra.mxu0 %v1039
    %1152 = vmatpush.msra.mxu0 %v1035
    %1153 = vmatpush.msra.mxu0 %v1031
    %1154 = vmatmul.f32.gmra.mxu0 %v1027
    %v1155 = vpop.f32.mrf.mxu0
    %v1156 = vadd.f32 0.0, %v1155
    %1157 = vdwg.mxu0
    %1158 = vmatpush.msra.mxu0 %v1092
    %1159 = vmatpush.msra.mxu0 %v1088
    %1160 = vmatpush.msra.mxu0 %v1084
    %1161 = vmatpush.msra.mxu0 %v1080
    %1162 = vmatpush.msra.mxu0 %v1076
    %1163 = vmatpush.msra.mxu0 %v1072
    %1164 = vmatpush.msra.mxu0 %v1068
    %1165 = vmatpush.msra.mxu0 %v1064
    %1166 = vmatpush.msra.mxu0 %v1060
    %1167 = vmatpush.msra.mxu0 %v1056
    %1168 = vmatpush.msra.mxu0 %v1052
    %1169 = vmatpush.msra.mxu0 %v1048
    %1170 = vmatpush.msra.mxu0 %v1044
    %1171 = vmatpush.msra.mxu0 %v1040
    %1172 = vmatpush.msra.mxu0 %v1036
    %1173 = vmatpush.msra.mxu0 %v1032
    %1174 = vmatmul.f32.gmra.mxu0 %v1027
    %v1175 = vpop.f32.mrf.mxu0
    %v1176 = vadd.f32 0.0, %v1175
    %1177 = vdwg.mxu0
    %v1178 = vadd.f32 %v1094, %v1116
    %v1179 = vadd.f32 %v1095, %v1136
    %v1180 = vadd.f32 %v1096, %v1156
    %v1181 = vadd.f32 %v1097, %v1176
    %v1182 = vxor.u32 %v1178, 2147483648
    %v1183 = vmul.f32 %v1182, 1.442695
    %v1184 = vpow.pop %v1183
    %v1185 = vadd.f32 %v1184, 1.0
    %v1186 = vrcp.pop %v1185
    %v1187 = vmul.f32 %v1185, %v1186
    %v1188 = vsub.f32 1.0, %v1187
    %v1189 = vmul.f32 %v1186, %v1188
    %v1190 = vadd.f32 %v1186, %v1189
    %vm1191 = vweird.f32 %v1185
    %vm1192 = vweird.f32 %v1186
    %vm1193 = vmor %vm1191, %vm1192
    %v1194 = vsel %vm1193, %v1186, %v1190
    %v1195 = vand.u32 2147483647, %v1185
    %vm1196 = vcmp.eq.f32.partialorder %v1195, 8.507059e+37
    %v1197 = vand.u32 %v1185, 2147483648
    %v1198 = vor.u32 1.1754944e-38, %v1197
    %v1199 = vsel %vm1196, %v1198, %v1194
    %v1200 = vmul.f32 1.0, %v1199
    %v1201 = vxor.u32 %v1179, 2147483648
    %v1202 = vmul.f32 %v1201, 1.442695
    %v1203 = vpow.pop %v1202
    %v1204 = vadd.f32 %v1203, 1.0
    %v1205 = vrcp.pop %v1204
    %v1206 = vmul.f32 %v1204, %v1205
    %v1207 = vsub.f32 1.0, %v1206
    %v1208 = vmul.f32 %v1205, %v1207
    %v1209 = vadd.f32 %v1205, %v1208
    %vm1210 = vweird.f32 %v1204
    %vm1211 = vweird.f32 %v1205
    %vm1212 = vmor %vm1210, %vm1211
    %v1213 = vsel %vm1212, %v1205, %v1209
    %v1214 = vand.u32 2147483647, %v1204
    %vm1215 = vcmp.eq.f32.partialorder %v1214, 8.507059e+37
    %v1216 = vand.u32 %v1204, 2147483648
    %v1217 = vor.u32 1.1754944e-38, %v1216
    %v1218 = vsel %vm1215, %v1217, %v1213
    %v1219 = vmul.f32 1.0, %v1218
    %v1220 = vtanh.pop %v1180
    %v1221 = vxor.u32 %v1181, 2147483648
    %v1222 = vmul.f32 %v1221, 1.442695
    %v1223 = vpow.pop %v1222
    %v1224 = vadd.f32 %v1223, 1.0
    %v1225 = vrcp.pop %v1224
    %v1226 = vmul.f32 %v1224, %v1225
    %v1227 = vsub.f32 1.0, %v1226
    %v1228 = vmul.f32 %v1225, %v1227
    %v1229 = vadd.f32 %v1225, %v1228
    %vm1230 = vweird.f32 %v1224
    %vm1231 = vweird.f32 %v1225
    %vm1232 = vmor %vm1230, %vm1231
    %v1233 = vsel %vm1232, %v1225, %v1229
    %v1234 = vand.u32 2147483647, %v1224
    %vm1235 = vcmp.eq.f32.partialorder %v1234, 8.507059e+37
    %v1236 = vand.u32 %v1224, 2147483648
    %v1237 = vor.u32 1.1754944e-38, %v1236
    %v1238 = vsel %vm1235, %v1237, %v1233
    %v1239 = vmul.f32 1.0, %v1238
    %v1240 = vmul.f32 %v1219, %v1028
    %v1241 = vmul.f32 %v1200, %v1220
    %v1242 = vadd.f32 %v1240, %v1241
    %v1243 = vtanh.pop %v1242
    %v1244 = vmul.f32 %v1239, %v1243
    %1245 = vst [vmem:[#allocation3] sm:$0xff] %v1242
    %1246 = vst [vmem:[#allocation2] sm:$0xff] %v1244
    %s1247 = scalar_lea.vmem [#allocation5], 24
    %1248 = vst [vmem:[%s1247] sm:$0xff] %v1244
    %v1249 = vld [vmem:[#allocation2] sm:$0xff]
    %v1250 = vld [vmem:[#allocation3] sm:$0xff]
    %v1251 = vld [vmem:[#allocation6] sm:$0xff]
    %v1252 = vld [vmem:[#allocation6 + $0x8] sm:$0xff]
    %v1253 = vld [vmem:[#allocation6 + $0x10] sm:$0xff]
    %v1254 = vld [vmem:[#allocation6 + $0x18] sm:$0xff]
    %v1255 = vld [vmem:[#allocation6 + $0x20] sm:$0xff]
    %v1256 = vld [vmem:[#allocation6 + $0x28] sm:$0xff]
    %v1257 = vld [vmem:[#allocation6 + $0x30] sm:$0xff]
    %v1258 = vld [vmem:[#allocation6 + $0x38] sm:$0xff]
    %v1259 = vld [vmem:[#allocation6 + $0x40] sm:$0xff]
    %v1260 = vld [vmem:[#allocation6 + $0x48] sm:$0xff]
    %v1261 = vld [vmem:[#allocation6 + $0x50] sm:$0xff]
    %v1262 = vld [vmem:[#allocation6 + $0x58] sm:$0xff]
    %v1263 = vld [vmem:[#allocation6 + $0x60] sm:$0xff]
    %v1264 = vld [vmem:[#allocation6 + $0x68] sm:$0xff]
    %v1265 = vld [vmem:[#allocation6 + $0x70] sm:$0xff]
    %v1266 = vld [vmem:[#allocation6 + $0x78] sm:$0xff]
    %v1267 = vld [vmem:[#allocation6 + $0x80] sm:$0xff]
    %v1268 = vld [vmem:[#allocation6 + $0x88] sm:$0xff]
    %v1269 = vld [vmem:[#allocation6 + $0x90] sm:$0xff]
    %v1270 = vld [vmem:[#allocation6 + $0x98] sm:$0xff]
    %v1271 = vld [vmem:[#allocation6 + $0xa0] sm:$0xff]
    %v1272 = vld [vmem:[#allocation6 + $0xa8] sm:$0xff]
    %v1273 = vld [vmem:[#allocation6 + $0xb0] sm:$0xff]
    %v1274 = vld [vmem:[#allocation6 + $0xb8] sm:$0xff]
    %v1275 = vld [vmem:[#allocation6 + $0xc0] sm:$0xff]
    %v1276 = vld [vmem:[#allocation6 + $0xc8] sm:$0xff]
    %v1277 = vld [vmem:[#allocation6 + $0xd0] sm:$0xff]
    %v1278 = vld [vmem:[#allocation6 + $0xd8] sm:$0xff]
    %v1279 = vld [vmem:[#allocation6 + $0xe0] sm:$0xff]
    %v1280 = vld [vmem:[#allocation6 + $0xe8] sm:$0xff]
    %v1281 = vld [vmem:[#allocation6 + $0xf0] sm:$0xff]
    %v1282 = vld [vmem:[#allocation6 + $0xf8] sm:$0xff]
    %v1283 = vld [vmem:[#allocation6 + $0x100] sm:$0xff]
    %v1284 = vld [vmem:[#allocation6 + $0x108] sm:$0xff]
    %v1285 = vld [vmem:[#allocation6 + $0x110] sm:$0xff]
    %v1286 = vld [vmem:[#allocation6 + $0x118] sm:$0xff]
    %v1287 = vld [vmem:[#allocation6 + $0x120] sm:$0xff]
    %v1288 = vld [vmem:[#allocation6 + $0x128] sm:$0xff]
    %v1289 = vld [vmem:[#allocation6 + $0x130] sm:$0xff]
    %v1290 = vld [vmem:[#allocation6 + $0x138] sm:$0xff]
    %v1291 = vld [vmem:[#allocation6 + $0x140] sm:$0xff]
    %v1292 = vld [vmem:[#allocation6 + $0x148] sm:$0xff]
    %v1293 = vld [vmem:[#allocation6 + $0x150] sm:$0xff]
    %v1294 = vld [vmem:[#allocation6 + $0x158] sm:$0xff]
    %v1295 = vld [vmem:[#allocation6 + $0x160] sm:$0xff]
    %v1296 = vld [vmem:[#allocation6 + $0x168] sm:$0xff]
    %v1297 = vld [vmem:[#allocation6 + $0x170] sm:$0xff]
    %v1298 = vld [vmem:[#allocation6 + $0x178] sm:$0xff]
    %v1299 = vld [vmem:[#allocation6 + $0x180] sm:$0xff]
    %v1300 = vld [vmem:[#allocation6 + $0x188] sm:$0xff]
    %v1301 = vld [vmem:[#allocation6 + $0x190] sm:$0xff]
    %v1302 = vld [vmem:[#allocation6 + $0x198] sm:$0xff]
    %v1303 = vld [vmem:[#allocation6 + $0x1a0] sm:$0xff]
    %v1304 = vld [vmem:[#allocation6 + $0x1a8] sm:$0xff]
    %v1305 = vld [vmem:[#allocation6 + $0x1b0] sm:$0xff]
    %v1306 = vld [vmem:[#allocation6 + $0x1b8] sm:$0xff]
    %v1307 = vld [vmem:[#allocation6 + $0x1c0] sm:$0xff]
    %v1308 = vld [vmem:[#allocation6 + $0x1c8] sm:$0xff]
    %v1309 = vld [vmem:[#allocation6 + $0x1d0] sm:$0xff]
    %v1310 = vld [vmem:[#allocation6 + $0x1d8] sm:$0xff]
    %v1311 = vld [vmem:[#allocation6 + $0x1e0] sm:$0xff]
    %v1312 = vld [vmem:[#allocation6 + $0x1e8] sm:$0xff]
    %v1313 = vld [vmem:[#allocation6 + $0x1f0] sm:$0xff]
    %v1314 = vld [vmem:[#allocation6 + $0x1f8] sm:$0xff]
    %s1315 = scalar_lea.vmem [#allocation4], 128
    %v1316 = vld [vmem:[%s1315] sm:$0xff]
    %v1317 = vld [vmem:[%s1315 + $0x8] sm:$0xff]
    %v1318 = vld [vmem:[%s1315 + $0x10] sm:$0xff]
    %v1319 = vld [vmem:[%s1315 + $0x18] sm:$0xff]
    %1320 = vmatpush.msra.mxu0 %v1311
    %1321 = vmatpush.msra.mxu0 %v1307
    %1322 = vmatpush.msra.mxu0 %v1303
    %1323 = vmatpush.msra.mxu0 %v1299
    %1324 = vmatpush.msra.mxu0 %v1295
    %1325 = vmatpush.msra.mxu0 %v1291
    %1326 = vmatpush.msra.mxu0 %v1287
    %1327 = vmatpush.msra.mxu0 %v1283
    %1328 = vmatpush.msra.mxu0 %v1279
    %1329 = vmatpush.msra.mxu0 %v1275
    %1330 = vmatpush.msra.mxu0 %v1271
    %1331 = vmatpush.msra.mxu0 %v1267
    %1332 = vmatpush.msra.mxu0 %v1263
    %1333 = vmatpush.msra.mxu0 %v1259
    %1334 = vmatpush.msra.mxu0 %v1255
    %1335 = vmatpush.msra.mxu0 %v1251
    %1336 = vmatmul.f32.gmra.mxu0 %v1249
    %v1337 = vpop.f32.mrf.mxu0
    %v1338 = vadd.f32 0.0, %v1337
    %1339 = vdwg.mxu0
    %1340 = vmatpush.msra.mxu0 %v1312
    %1341 = vmatpush.msra.mxu0 %v1308
    %1342 = vmatpush.msra.mxu0 %v1304
    %1343 = vmatpush.msra.mxu0 %v1300
    %1344 = vmatpush.msra.mxu0 %v1296
    %1345 = vmatpush.msra.mxu0 %v1292
    %1346 = vmatpush.msra.mxu0 %v1288
    %1347 = vmatpush.msra.mxu0 %v1284
    %1348 = vmatpush.msra.mxu0 %v1280
    %1349 = vmatpush.msra.mxu0 %v1276
    %1350 = vmatpush.msra.mxu0 %v1272
    %1351 = vmatpush.msra.mxu0 %v1268
    %1352 = vmatpush.msra.mxu0 %v1264
    %1353 = vmatpush.msra.mxu0 %v1260
    %1354 = vmatpush.msra.mxu0 %v1256
    %1355 = vmatpush.msra.mxu0 %v1252
    %1356 = vmatmul.f32.gmra.mxu0 %v1249
    %v1357 = vpop.f32.mrf.mxu0
    %v1358 = vadd.f32 0.0, %v1357
    %1359 = vdwg.mxu0
    %1360 = vmatpush.msra.mxu0 %v1313
    %1361 = vmatpush.msra.mxu0 %v1309
    %1362 = vmatpush.msra.mxu0 %v1305
    %1363 = vmatpush.msra.mxu0 %v1301
    %1364 = vmatpush.msra.mxu0 %v1297
    %1365 = vmatpush.msra.mxu0 %v1293
    %1366 = vmatpush.msra.mxu0 %v1289
    %1367 = vmatpush.msra.mxu0 %v1285
    %1368 = vmatpush.msra.mxu0 %v1281
    %1369 = vmatpush.msra.mxu0 %v1277
    %1370 = vmatpush.msra.mxu0 %v1273
    %1371 = vmatpush.msra.mxu0 %v1269
    %1372 = vmatpush.msra.mxu0 %v1265
    %1373 = vmatpush.msra.mxu0 %v1261
    %1374 = vmatpush.msra.mxu0 %v1257
    %1375 = vmatpush.msra.mxu0 %v1253
    %1376 = vmatmul.f32.gmra.mxu0 %v1249
    %v1377 = vpop.f32.mrf.mxu0
    %v1378 = vadd.f32 0.0, %v1377
    %1379 = vdwg.mxu0
    %1380 = vmatpush.msra.mxu0 %v1314
    %1381 = vmatpush.msra.mxu0 %v1310
    %1382 = vmatpush.msra.mxu0 %v1306
    %1383 = vmatpush.msra.mxu0 %v1302
    %1384 = vmatpush.msra.mxu0 %v1298
    %1385 = vmatpush.msra.mxu0 %v1294
    %1386 = vmatpush.msra.mxu0 %v1290
    %1387 = vmatpush.msra.mxu0 %v1286
    %1388 = vmatpush.msra.mxu0 %v1282
    %1389 = vmatpush.msra.mxu0 %v1278
    %1390 = vmatpush.msra.mxu0 %v1274
    %1391 = vmatpush.msra.mxu0 %v1270
    %1392 = vmatpush.msra.mxu0 %v1266
    %1393 = vmatpush.msra.mxu0 %v1262
    %1394 = vmatpush.msra.mxu0 %v1258
    %1395 = vmatpush.msra.mxu0 %v1254
    %1396 = vmatmul.f32.gmra.mxu0 %v1249
    %v1397 = vpop.f32.mrf.mxu0
    %v1398 = vadd.f32 0.0, %v1397
    %1399 = vdwg.mxu0
    %v1400 = vadd.f32 %v1316, %v1338
    %v1401 = vadd.f32 %v1317, %v1358
    %v1402 = vadd.f32 %v1318, %v1378
    %v1403 = vadd.f32 %v1319, %v1398
    %v1404 = vxor.u32 %v1400, 2147483648
    %v1405 = vmul.f32 %v1404, 1.442695
    %v1406 = vpow.pop %v1405
    %v1407 = vadd.f32 %v1406, 1.0
    %v1408 = vrcp.pop %v1407
    %v1409 = vmul.f32 %v1407, %v1408
    %v1410 = vsub.f32 1.0, %v1409
    %v1411 = vmul.f32 %v1408, %v1410
    %v1412 = vadd.f32 %v1408, %v1411
    %vm1413 = vweird.f32 %v1407
    %vm1414 = vweird.f32 %v1408
    %vm1415 = vmor %vm1413, %vm1414
    %v1416 = vsel %vm1415, %v1408, %v1412
    %v1417 = vand.u32 2147483647, %v1407
    %vm1418 = vcmp.eq.f32.partialorder %v1417, 8.507059e+37
    %v1419 = vand.u32 %v1407, 2147483648
    %v1420 = vor.u32 1.1754944e-38, %v1419
    %v1421 = vsel %vm1418, %v1420, %v1416
    %v1422 = vmul.f32 1.0, %v1421
    %v1423 = vxor.u32 %v1401, 2147483648
    %v1424 = vmul.f32 %v1423, 1.442695
    %v1425 = vpow.pop %v1424
    %v1426 = vadd.f32 %v1425, 1.0
    %v1427 = vrcp.pop %v1426
    %v1428 = vmul.f32 %v1426, %v1427
    %v1429 = vsub.f32 1.0, %v1428
    %v1430 = vmul.f32 %v1427, %v1429
    %v1431 = vadd.f32 %v1427, %v1430
    %vm1432 = vweird.f32 %v1426
    %vm1433 = vweird.f32 %v1427
    %vm1434 = vmor %vm1432, %vm1433
    %v1435 = vsel %vm1434, %v1427, %v1431
    %v1436 = vand.u32 2147483647, %v1426
    %vm1437 = vcmp.eq.f32.partialorder %v1436, 8.507059e+37
    %v1438 = vand.u32 %v1426, 2147483648
    %v1439 = vor.u32 1.1754944e-38, %v1438
    %v1440 = vsel %vm1437, %v1439, %v1435
    %v1441 = vmul.f32 1.0, %v1440
    %v1442 = vtanh.pop %v1402
    %v1443 = vxor.u32 %v1403, 2147483648
    %v1444 = vmul.f32 %v1443, 1.442695
    %v1445 = vpow.pop %v1444
    %v1446 = vadd.f32 %v1445, 1.0
    %v1447 = vrcp.pop %v1446
    %v1448 = vmul.f32 %v1446, %v1447
    %v1449 = vsub.f32 1.0, %v1448
    %v1450 = vmul.f32 %v1447, %v1449
    %v1451 = vadd.f32 %v1447, %v1450
    %vm1452 = vweird.f32 %v1446
    %vm1453 = vweird.f32 %v1447
    %vm1454 = vmor %vm1452, %vm1453
    %v1455 = vsel %vm1454, %v1447, %v1451
    %v1456 = vand.u32 2147483647, %v1446
    %vm1457 = vcmp.eq.f32.partialorder %v1456, 8.507059e+37
    %v1458 = vand.u32 %v1446, 2147483648
    %v1459 = vor.u32 1.1754944e-38, %v1458
    %v1460 = vsel %vm1457, %v1459, %v1455
    %v1461 = vmul.f32 1.0, %v1460
    %v1462 = vmul.f32 %v1441, %v1250
    %v1463 = vmul.f32 %v1422, %v1442
    %v1464 = vadd.f32 %v1462, %v1463
    %v1465 = vtanh.pop %v1464
    %v1466 = vmul.f32 %v1461, %v1465
    %1467 = vst [vmem:[#allocation3] sm:$0xff] %v1464
    %1468 = vst [vmem:[#allocation2] sm:$0xff] %v1466
    %s1469 = scalar_lea.vmem [#allocation5], 32
    %1470 = vst [vmem:[%s1469] sm:$0xff] %v1466
    %v1471 = vld [vmem:[#allocation2] sm:$0xff]
    %v1472 = vld [vmem:[#allocation3] sm:$0xff]
    %v1473 = vld [vmem:[#allocation6] sm:$0xff]
    %v1474 = vld [vmem:[#allocation6 + $0x8] sm:$0xff]
    %v1475 = vld [vmem:[#allocation6 + $0x10] sm:$0xff]
    %v1476 = vld [vmem:[#allocation6 + $0x18] sm:$0xff]
    %v1477 = vld [vmem:[#allocation6 + $0x20] sm:$0xff]
    %v1478 = vld [vmem:[#allocation6 + $0x28] sm:$0xff]
    %v1479 = vld [vmem:[#allocation6 + $0x30] sm:$0xff]
    %v1480 = vld [vmem:[#allocation6 + $0x38] sm:$0xff]
    %v1481 = vld [vmem:[#allocation6 + $0x40] sm:$0xff]
    %v1482 = vld [vmem:[#allocation6 + $0x48] sm:$0xff]
    %v1483 = vld [vmem:[#allocation6 + $0x50] sm:$0xff]
    %v1484 = vld [vmem:[#allocation6 + $0x58] sm:$0xff]
    %v1485 = vld [vmem:[#allocation6 + $0x60] sm:$0xff]
    %v1486 = vld [vmem:[#allocation6 + $0x68] sm:$0xff]
    %v1487 = vld [vmem:[#allocation6 + $0x70] sm:$0xff]
    %v1488 = vld [vmem:[#allocation6 + $0x78] sm:$0xff]
    %v1489 = vld [vmem:[#allocation6 + $0x80] sm:$0xff]
    %v1490 = vld [vmem:[#allocation6 + $0x88] sm:$0xff]
    %v1491 = vld [vmem:[#allocation6 + $0x90] sm:$0xff]
    %v1492 = vld [vmem:[#allocation6 + $0x98] sm:$0xff]
    %v1493 = vld [vmem:[#allocation6 + $0xa0] sm:$0xff]
    %v1494 = vld [vmem:[#allocation6 + $0xa8] sm:$0xff]
    %v1495 = vld [vmem:[#allocation6 + $0xb0] sm:$0xff]
    %v1496 = vld [vmem:[#allocation6 + $0xb8] sm:$0xff]
    %v1497 = vld [vmem:[#allocation6 + $0xc0] sm:$0xff]
    %v1498 = vld [vmem:[#allocation6 + $0xc8] sm:$0xff]
    %v1499 = vld [vmem:[#allocation6 + $0xd0] sm:$0xff]
    %v1500 = vld [vmem:[#allocation6 + $0xd8] sm:$0xff]
    %v1501 = vld [vmem:[#allocation6 + $0xe0] sm:$0xff]
    %v1502 = vld [vmem:[#allocation6 + $0xe8] sm:$0xff]
    %v1503 = vld [vmem:[#allocation6 + $0xf0] sm:$0xff]
    %v1504 = vld [vmem:[#allocation6 + $0xf8] sm:$0xff]
    %v1505 = vld [vmem:[#allocation6 + $0x100] sm:$0xff]
    %v1506 = vld [vmem:[#allocation6 + $0x108] sm:$0xff]
    %v1507 = vld [vmem:[#allocation6 + $0x110] sm:$0xff]
    %v1508 = vld [vmem:[#allocation6 + $0x118] sm:$0xff]
    %v1509 = vld [vmem:[#allocation6 + $0x120] sm:$0xff]
    %v1510 = vld [vmem:[#allocation6 + $0x128] sm:$0xff]
    %v1511 = vld [vmem:[#allocation6 + $0x130] sm:$0xff]
    %v1512 = vld [vmem:[#allocation6 + $0x138] sm:$0xff]
    %v1513 = vld [vmem:[#allocation6 + $0x140] sm:$0xff]
    %v1514 = vld [vmem:[#allocation6 + $0x148] sm:$0xff]
    %v1515 = vld [vmem:[#allocation6 + $0x150] sm:$0xff]
    %v1516 = vld [vmem:[#allocation6 + $0x158] sm:$0xff]
    %v1517 = vld [vmem:[#allocation6 + $0x160] sm:$0xff]
    %v1518 = vld [vmem:[#allocation6 + $0x168] sm:$0xff]
    %v1519 = vld [vmem:[#allocation6 + $0x170] sm:$0xff]
    %v1520 = vld [vmem:[#allocation6 + $0x178] sm:$0xff]
    %v1521 = vld [vmem:[#allocation6 + $0x180] sm:$0xff]
    %v1522 = vld [vmem:[#allocation6 + $0x188] sm:$0xff]
    %v1523 = vld [vmem:[#allocation6 + $0x190] sm:$0xff]
    %v1524 = vld [vmem:[#allocation6 + $0x198] sm:$0xff]
    %v1525 = vld [vmem:[#allocation6 + $0x1a0] sm:$0xff]
    %v1526 = vld [vmem:[#allocation6 + $0x1a8] sm:$0xff]
    %v1527 = vld [vmem:[#allocation6 + $0x1b0] sm:$0xff]
    %v1528 = vld [vmem:[#allocation6 + $0x1b8] sm:$0xff]
    %v1529 = vld [vmem:[#allocation6 + $0x1c0] sm:$0xff]
    %v1530 = vld [vmem:[#allocation6 + $0x1c8] sm:$0xff]
    %v1531 = vld [vmem:[#allocation6 + $0x1d0] sm:$0xff]
    %v1532 = vld [vmem:[#allocation6 + $0x1d8] sm:$0xff]
    %v1533 = vld [vmem:[#allocation6 + $0x1e0] sm:$0xff]
    %v1534 = vld [vmem:[#allocation6 + $0x1e8] sm:$0xff]
    %v1535 = vld [vmem:[#allocation6 + $0x1f0] sm:$0xff]
    %v1536 = vld [vmem:[#allocation6 + $0x1f8] sm:$0xff]
    %s1537 = scalar_lea.vmem [#allocation4], 160
    %v1538 = vld [vmem:[%s1537] sm:$0xff]
    %v1539 = vld [vmem:[%s1537 + $0x8] sm:$0xff]
    %v1540 = vld [vmem:[%s1537 + $0x10] sm:$0xff]
    %v1541 = vld [vmem:[%s1537 + $0x18] sm:$0xff]
    %1542 = vmatpush.msra.mxu0 %v1533
    %1543 = vmatpush.msra.mxu0 %v1529
    %1544 = vmatpush.msra.mxu0 %v1525
    %1545 = vmatpush.msra.mxu0 %v1521
    %1546 = vmatpush.msra.mxu0 %v1517
    %1547 = vmatpush.msra.mxu0 %v1513
    %1548 = vmatpush.msra.mxu0 %v1509
    %1549 = vmatpush.msra.mxu0 %v1505
    %1550 = vmatpush.msra.mxu0 %v1501
    %1551 = vmatpush.msra.mxu0 %v1497
    %1552 = vmatpush.msra.mxu0 %v1493
    %1553 = vmatpush.msra.mxu0 %v1489
    %1554 = vmatpush.msra.mxu0 %v1485
    %1555 = vmatpush.msra.mxu0 %v1481
    %1556 = vmatpush.msra.mxu0 %v1477
    %1557 = vmatpush.msra.mxu0 %v1473
    %1558 = vmatmul.f32.gmra.mxu0 %v1471
    %v1559 = vpop.f32.mrf.mxu0
    %v1560 = vadd.f32 0.0, %v1559
    %1561 = vdwg.mxu0
    %1562 = vmatpush.msra.mxu0 %v1534
    %1563 = vmatpush.msra.mxu0 %v1530
    %1564 = vmatpush.msra.mxu0 %v1526
    %1565 = vmatpush.msra.mxu0 %v1522
    %1566 = vmatpush.msra.mxu0 %v1518
    %1567 = vmatpush.msra.mxu0 %v1514
    %1568 = vmatpush.msra.mxu0 %v1510
    %1569 = vmatpush.msra.mxu0 %v1506
    %1570 = vmatpush.msra.mxu0 %v1502
    %1571 = vmatpush.msra.mxu0 %v1498
    %1572 = vmatpush.msra.mxu0 %v1494
    %1573 = vmatpush.msra.mxu0 %v1490
    %1574 = vmatpush.msra.mxu0 %v1486
    %1575 = vmatpush.msra.mxu0 %v1482
    %1576 = vmatpush.msra.mxu0 %v1478
    %1577 = vmatpush.msra.mxu0 %v1474
    %1578 = vmatmul.f32.gmra.mxu0 %v1471
    %v1579 = vpop.f32.mrf.mxu0
    %v1580 = vadd.f32 0.0, %v1579
    %1581 = vdwg.mxu0
    %1582 = vmatpush.msra.mxu0 %v1535
    %1583 = vmatpush.msra.mxu0 %v1531
    %1584 = vmatpush.msra.mxu0 %v1527
    %1585 = vmatpush.msra.mxu0 %v1523
    %1586 = vmatpush.msra.mxu0 %v1519
    %1587 = vmatpush.msra.mxu0 %v1515
    %1588 = vmatpush.msra.mxu0 %v1511
    %1589 = vmatpush.msra.mxu0 %v1507
    %1590 = vmatpush.msra.mxu0 %v1503
    %1591 = vmatpush.msra.mxu0 %v1499
    %1592 = vmatpush.msra.mxu0 %v1495
    %1593 = vmatpush.msra.mxu0 %v1491
    %1594 = vmatpush.msra.mxu0 %v1487
    %1595 = vmatpush.msra.mxu0 %v1483
    %1596 = vmatpush.msra.mxu0 %v1479
    %1597 = vmatpush.msra.mxu0 %v1475
    %1598 = vmatmul.f32.gmra.mxu0 %v1471
    %v1599 = vpop.f32.mrf.mxu0
    %v1600 = vadd.f32 0.0, %v1599
    %1601 = vdwg.mxu0
    %1602 = vmatpush.msra.mxu0 %v1536
    %1603 = vmatpush.msra.mxu0 %v1532
    %1604 = vmatpush.msra.mxu0 %v1528
    %1605 = vmatpush.msra.mxu0 %v1524
    %1606 = vmatpush.msra.mxu0 %v1520
    %1607 = vmatpush.msra.mxu0 %v1516
    %1608 = vmatpush.msra.mxu0 %v1512
    %1609 = vmatpush.msra.mxu0 %v1508
    %1610 = vmatpush.msra.mxu0 %v1504
    %1611 = vmatpush.msra.mxu0 %v1500
    %1612 = vmatpush.msra.mxu0 %v1496
    %1613 = vmatpush.msra.mxu0 %v1492
    %1614 = vmatpush.msra.mxu0 %v1488
    %1615 = vmatpush.msra.mxu0 %v1484
    %1616 = vmatpush.msra.mxu0 %v1480
    %1617 = vmatpush.msra.mxu0 %v1476
    %1618 = vmatmul.f32.gmra.mxu0 %v1471
    %v1619 = vpop.f32.mrf.mxu0
    %v1620 = vadd.f32 0.0, %v1619
    %1621 = vdwg.mxu0
    %v1622 = vadd.f32 %v1538, %v1560
    %v1623 = vadd.f32 %v1539, %v1580
    %v1624 = vadd.f32 %v1540, %v1600
    %v1625 = vadd.f32 %v1541, %v1620
    %v1626 = vxor.u32 %v1622, 2147483648
    %v1627 = vmul.f32 %v1626, 1.442695
    %v1628 = vpow.pop %v1627
    %v1629 = vadd.f32 %v1628, 1.0
    %v1630 = vrcp.pop %v1629
    %v1631 = vmul.f32 %v1629, %v1630
    %v1632 = vsub.f32 1.0, %v1631
    %v1633 = vmul.f32 %v1630, %v1632
    %v1634 = vadd.f32 %v1630, %v1633
    %vm1635 = vweird.f32 %v1629
    %vm1636 = vweird.f32 %v1630
    %vm1637 = vmor %vm1635, %vm1636
    %v1638 = vsel %vm1637, %v1630, %v1634
    %v1639 = vand.u32 2147483647, %v1629
    %vm1640 = vcmp.eq.f32.partialorder %v1639, 8.507059e+37
    %v1641 = vand.u32 %v1629, 2147483648
    %v1642 = vor.u32 1.1754944e-38, %v1641
    %v1643 = vsel %vm1640, %v1642, %v1638
    %v1644 = vmul.f32 1.0, %v1643
    %v1645 = vxor.u32 %v1623, 2147483648
    %v1646 = vmul.f32 %v1645, 1.442695
    %v1647 = vpow.pop %v1646
    %v1648 = vadd.f32 %v1647, 1.0
    %v1649 = vrcp.pop %v1648
    %v1650 = vmul.f32 %v1648, %v1649
    %v1651 = vsub.f32 1.0, %v1650
    %v1652 = vmul.f32 %v1649, %v1651
    %v1653 = vadd.f32 %v1649, %v1652
    %vm1654 = vweird.f32 %v1648
    %vm1655 = vweird.f32 %v1649
    %vm1656 = vmor %vm1654, %vm1655
    %v1657 = vsel %vm1656, %v1649, %v1653
    %v1658 = vand.u32 2147483647, %v1648
    %vm1659 = vcmp.eq.f32.partialorder %v1658, 8.507059e+37
    %v1660 = vand.u32 %v1648, 2147483648
    %v1661 = vor.u32 1.1754944e-38, %v1660
    %v1662 = vsel %vm1659, %v1661, %v1657
    %v1663 = vmul.f32 1.0, %v1662
    %v1664 = vtanh.pop %v1624
    %v1665 = vxor.u32 %v1625, 2147483648
    %v1666 = vmul.f32 %v1665, 1.442695
    %v1667 = vpow.pop %v1666
    %v1668 = vadd.f32 %v1667, 1.0
    %v1669 = vrcp.pop %v1668
    %v1670 = vmul.f32 %v1668, %v1669
    %v1671 = vsub.f32 1.0, %v1670
    %v1672 = vmul.f32 %v1669, %v1671
    %v1673 = vadd.f32 %v1669, %v1672
    %vm1674 = vweird.f32 %v1668
    %vm1675 = vweird.f32 %v1669
    %vm1676 = vmor %vm1674, %vm1675
    %v1677 = vsel %vm1676, %v1669, %v1673
    %v1678 = vand.u32 2147483647, %v1668
    %vm1679 = vcmp.eq.f32.partialorder %v1678, 8.507059e+37
    %v1680 = vand.u32 %v1668, 2147483648
    %v1681 = vor.u32 1.1754944e-38, %v1680
    %v1682 = vsel %vm1679, %v1681, %v1677
    %v1683 = vmul.f32 1.0, %v1682
    %v1684 = vmul.f32 %v1663, %v1472
    %v1685 = vmul.f32 %v1644, %v1664
    %v1686 = vadd.f32 %v1684, %v1685
    %v1687 = vtanh.pop %v1686
    %v1688 = vmul.f32 %v1683, %v1687
    %1689 = vst [vmem:[#allocation3] sm:$0xff] %v1686
    %1690 = vst [vmem:[#allocation2] sm:$0xff] %v1688
    %s1691 = scalar_lea.vmem [#allocation5], 40
    %1692 = vst [vmem:[%s1691] sm:$0xff] %v1688
    %v1693 = vld [vmem:[#allocation2] sm:$0xff]
    %v1694 = vld [vmem:[#allocation3] sm:$0xff]
    %v1695 = vld [vmem:[#allocation6] sm:$0xff]
    %v1696 = vld [vmem:[#allocation6 + $0x8] sm:$0xff]
    %v1697 = vld [vmem:[#allocation6 + $0x10] sm:$0xff]
    %v1698 = vld [vmem:[#allocation6 + $0x18] sm:$0xff]
    %v1699 = vld [vmem:[#allocation6 + $0x20] sm:$0xff]
    %v1700 = vld [vmem:[#allocation6 + $0x28] sm:$0xff]
    %v1701 = vld [vmem:[#allocation6 + $0x30] sm:$0xff]
    %v1702 = vld [vmem:[#allocation6 + $0x38] sm:$0xff]
    %v1703 = vld [vmem:[#allocation6 + $0x40] sm:$0xff]
    %v1704 = vld [vmem:[#allocation6 + $0x48] sm:$0xff]
    %v1705 = vld [vmem:[#allocation6 + $0x50] sm:$0xff]
    %v1706 = vld [vmem:[#allocation6 + $0x58] sm:$0xff]
    %v1707 = vld [vmem:[#allocation6 + $0x60] sm:$0xff]
    %v1708 = vld [vmem:[#allocation6 + $0x68] sm:$0xff]
    %v1709 = vld [vmem:[#allocation6 + $0x70] sm:$0xff]
    %v1710 = vld [vmem:[#allocation6 + $0x78] sm:$0xff]
    %v1711 = vld [vmem:[#allocation6 + $0x80] sm:$0xff]
    %v1712 = vld [vmem:[#allocation6 + $0x88] sm:$0xff]
    %v1713 = vld [vmem:[#allocation6 + $0x90] sm:$0xff]
    %v1714 = vld [vmem:[#allocation6 + $0x98] sm:$0xff]
    %v1715 = vld [vmem:[#allocation6 + $0xa0] sm:$0xff]
    %v1716 = vld [vmem:[#allocation6 + $0xa8] sm:$0xff]
    %v1717 = vld [vmem:[#allocation6 + $0xb0] sm:$0xff]
    %v1718 = vld [vmem:[#allocation6 + $0xb8] sm:$0xff]
    %v1719 = vld [vmem:[#allocation6 + $0xc0] sm:$0xff]
    %v1720 = vld [vmem:[#allocation6 + $0xc8] sm:$0xff]
    %v1721 = vld [vmem:[#allocation6 + $0xd0] sm:$0xff]
    %v1722 = vld [vmem:[#allocation6 + $0xd8] sm:$0xff]
    %v1723 = vld [vmem:[#allocation6 + $0xe0] sm:$0xff]
    %v1724 = vld [vmem:[#allocation6 + $0xe8] sm:$0xff]
    %v1725 = vld [vmem:[#allocation6 + $0xf0] sm:$0xff]
    %v1726 = vld [vmem:[#allocation6 + $0xf8] sm:$0xff]
    %v1727 = vld [vmem:[#allocation6 + $0x100] sm:$0xff]
    %v1728 = vld [vmem:[#allocation6 + $0x108] sm:$0xff]
    %v1729 = vld [vmem:[#allocation6 + $0x110] sm:$0xff]
    %v1730 = vld [vmem:[#allocation6 + $0x118] sm:$0xff]
    %v1731 = vld [vmem:[#allocation6 + $0x120] sm:$0xff]
    %v1732 = vld [vmem:[#allocation6 + $0x128] sm:$0xff]
    %v1733 = vld [vmem:[#allocation6 + $0x130] sm:$0xff]
    %v1734 = vld [vmem:[#allocation6 + $0x138] sm:$0xff]
    %v1735 = vld [vmem:[#allocation6 + $0x140] sm:$0xff]
    %v1736 = vld [vmem:[#allocation6 + $0x148] sm:$0xff]
    %v1737 = vld [vmem:[#allocation6 + $0x150] sm:$0xff]
    %v1738 = vld [vmem:[#allocation6 + $0x158] sm:$0xff]
    %v1739 = vld [vmem:[#allocation6 + $0x160] sm:$0xff]
    %v1740 = vld [vmem:[#allocation6 + $0x168] sm:$0xff]
    %v1741 = vld [vmem:[#allocation6 + $0x170] sm:$0xff]
    %v1742 = vld [vmem:[#allocation6 + $0x178] sm:$0xff]
    %v1743 = vld [vmem:[#allocation6 + $0x180] sm:$0xff]
    %v1744 = vld [vmem:[#allocation6 + $0x188] sm:$0xff]
    %v1745 = vld [vmem:[#allocation6 + $0x190] sm:$0xff]
    %v1746 = vld [vmem:[#allocation6 + $0x198] sm:$0xff]
    %v1747 = vld [vmem:[#allocation6 + $0x1a0] sm:$0xff]
    %v1748 = vld [vmem:[#allocation6 + $0x1a8] sm:$0xff]
    %v1749 = vld [vmem:[#allocation6 + $0x1b0] sm:$0xff]
    %v1750 = vld [vmem:[#allocation6 + $0x1b8] sm:$0xff]
    %v1751 = vld [vmem:[#allocation6 + $0x1c0] sm:$0xff]
    %v1752 = vld [vmem:[#allocation6 + $0x1c8] sm:$0xff]
    %v1753 = vld [vmem:[#allocation6 + $0x1d0] sm:$0xff]
    %v1754 = vld [vmem:[#allocation6 + $0x1d8] sm:$0xff]
    %v1755 = vld [vmem:[#allocation6 + $0x1e0] sm:$0xff]
    %v1756 = vld [vmem:[#allocation6 + $0x1e8] sm:$0xff]
    %v1757 = vld [vmem:[#allocation6 + $0x1f0] sm:$0xff]
    %v1758 = vld [vmem:[#allocation6 + $0x1f8] sm:$0xff]
    %s1759 = scalar_lea.vmem [#allocation4], 192
    %v1760 = vld [vmem:[%s1759] sm:$0xff]
    %v1761 = vld [vmem:[%s1759 + $0x8] sm:$0xff]
    %v1762 = vld [vmem:[%s1759 + $0x10] sm:$0xff]
    %v1763 = vld [vmem:[%s1759 + $0x18] sm:$0xff]
    %1764 = vmatpush.msra.mxu0 %v1755
    %1765 = vmatpush.msra.mxu0 %v1751
    %1766 = vmatpush.msra.mxu0 %v1747
    %1767 = vmatpush.msra.mxu0 %v1743
    %1768 = vmatpush.msra.mxu0 %v1739
    %1769 = vmatpush.msra.mxu0 %v1735
    %1770 = vmatpush.msra.mxu0 %v1731
    %1771 = vmatpush.msra.mxu0 %v1727
    %1772 = vmatpush.msra.mxu0 %v1723
    %1773 = vmatpush.msra.mxu0 %v1719
    %1774 = vmatpush.msra.mxu0 %v1715
    %1775 = vmatpush.msra.mxu0 %v1711
    %1776 = vmatpush.msra.mxu0 %v1707
    %1777 = vmatpush.msra.mxu0 %v1703
    %1778 = vmatpush.msra.mxu0 %v1699
    %1779 = vmatpush.msra.mxu0 %v1695
    %1780 = vmatmul.f32.gmra.mxu0 %v1693
    %v1781 = vpop.f32.mrf.mxu0
    %v1782 = vadd.f32 0.0, %v1781
    %1783 = vdwg.mxu0
    %1784 = vmatpush.msra.mxu0 %v1756
    %1785 = vmatpush.msra.mxu0 %v1752
    %1786 = vmatpush.msra.mxu0 %v1748
    %1787 = vmatpush.msra.mxu0 %v1744
    %1788 = vmatpush.msra.mxu0 %v1740
    %1789 = vmatpush.msra.mxu0 %v1736
    %1790 = vmatpush.msra.mxu0 %v1732
    %1791 = vmatpush.msra.mxu0 %v1728
    %1792 = vmatpush.msra.mxu0 %v1724
    %1793 = vmatpush.msra.mxu0 %v1720
    %1794 = vmatpush.msra.mxu0 %v1716
    %1795 = vmatpush.msra.mxu0 %v1712
    %1796 = vmatpush.msra.mxu0 %v1708
    %1797 = vmatpush.msra.mxu0 %v1704
    %1798 = vmatpush.msra.mxu0 %v1700
    %1799 = vmatpush.msra.mxu0 %v1696
    %1800 = vmatmul.f32.gmra.mxu0 %v1693
    %v1801 = vpop.f32.mrf.mxu0
    %v1802 = vadd.f32 0.0, %v1801
    %1803 = vdwg.mxu0
    %1804 = vmatpush.msra.mxu0 %v1757
    %1805 = vmatpush.msra.mxu0 %v1753
    %1806 = vmatpush.msra.mxu0 %v1749
    %1807 = vmatpush.msra.mxu0 %v1745
    %1808 = vmatpush.msra.mxu0 %v1741
    %1809 = vmatpush.msra.mxu0 %v1737
    %1810 = vmatpush.msra.mxu0 %v1733
    %1811 = vmatpush.msra.mxu0 %v1729
    %1812 = vmatpush.msra.mxu0 %v1725
    %1813 = vmatpush.msra.mxu0 %v1721
    %1814 = vmatpush.msra.mxu0 %v1717
    %1815 = vmatpush.msra.mxu0 %v1713
    %1816 = vmatpush.msra.mxu0 %v1709
    %1817 = vmatpush.msra.mxu0 %v1705
    %1818 = vmatpush.msra.mxu0 %v1701
    %1819 = vmatpush.msra.mxu0 %v1697
    %1820 = vmatmul.f32.gmra.mxu0 %v1693
    %v1821 = vpop.f32.mrf.mxu0
    %v1822 = vadd.f32 0.0, %v1821
    %1823 = vdwg.mxu0
    %1824 = vmatpush.msra.mxu0 %v1758
    %1825 = vmatpush.msra.mxu0 %v1754
    %1826 = vmatpush.msra.mxu0 %v1750
    %1827 = vmatpush.msra.mxu0 %v1746
    %1828 = vmatpush.msra.mxu0 %v1742
    %1829 = vmatpush.msra.mxu0 %v1738
    %1830 = vmatpush.msra.mxu0 %v1734
    %1831 = vmatpush.msra.mxu0 %v1730
    %1832 = vmatpush.msra.mxu0 %v1726
    %1833 = vmatpush.msra.mxu0 %v1722
    %1834 = vmatpush.msra.mxu0 %v1718
    %1835 = vmatpush.msra.mxu0 %v1714
    %1836 = vmatpush.msra.mxu0 %v1710
    %1837 = vmatpush.msra.mxu0 %v1706
    %1838 = vmatpush.msra.mxu0 %v1702
    %1839 = vmatpush.msra.mxu0 %v1698
    %1840 = vmatmul.f32.gmra.mxu0 %v1693
    %v1841 = vpop.f32.mrf.mxu0
    %v1842 = vadd.f32 0.0, %v1841
    %1843 = vdwg.mxu0
    %v1844 = vadd.f32 %v1760, %v1782
    %v1845 = vadd.f32 %v1761, %v1802
    %v1846 = vadd.f32 %v1762, %v1822
    %v1847 = vadd.f32 %v1763, %v1842
    %v1848 = vxor.u32 %v1844, 2147483648
    %v1849 = vmul.f32 %v1848, 1.442695
    %v1850 = vpow.pop %v1849
    %v1851 = vadd.f32 %v1850, 1.0
    %v1852 = vrcp.pop %v1851
    %v1853 = vmul.f32 %v1851, %v1852
    %v1854 = vsub.f32 1.0, %v1853
    %v1855 = vmul.f32 %v1852, %v1854
    %v1856 = vadd.f32 %v1852, %v1855
    %vm1857 = vweird.f32 %v1851
    %vm1858 = vweird.f32 %v1852
    %vm1859 = vmor %vm1857, %vm1858
    %v1860 = vsel %vm1859, %v1852, %v1856
    %v1861 = vand.u32 2147483647, %v1851
    %vm1862 = vcmp.eq.f32.partialorder %v1861, 8.507059e+37
    %v1863 = vand.u32 %v1851, 2147483648
    %v1864 = vor.u32 1.1754944e-38, %v1863
    %v1865 = vsel %vm1862, %v1864, %v1860
    %v1866 = vmul.f32 1.0, %v1865
    %v1867 = vxor.u32 %v1845, 2147483648
    %v1868 = vmul.f32 %v1867, 1.442695
    %v1869 = vpow.pop %v1868
    %v1870 = vadd.f32 %v1869, 1.0
    %v1871 = vrcp.pop %v1870
    %v1872 = vmul.f32 %v1870, %v1871
    %v1873 = vsub.f32 1.0, %v1872
    %v1874 = vmul.f32 %v1871, %v1873
    %v1875 = vadd.f32 %v1871, %v1874
    %vm1876 = vweird.f32 %v1870
    %vm1877 = vweird.f32 %v1871
    %vm1878 = vmor %vm1876, %vm1877
    %v1879 = vsel %vm1878, %v1871, %v1875
    %v1880 = vand.u32 2147483647, %v1870
    %vm1881 = vcmp.eq.f32.partialorder %v1880, 8.507059e+37
    %v1882 = vand.u32 %v1870, 2147483648
    %v1883 = vor.u32 1.1754944e-38, %v1882
    %v1884 = vsel %vm1881, %v1883, %v1879
    %v1885 = vmul.f32 1.0, %v1884
    %v1886 = vtanh.pop %v1846
    %v1887 = vxor.u32 %v1847, 2147483648
    %v1888 = vmul.f32 %v1887, 1.442695
    %v1889 = vpow.pop %v1888
    %v1890 = vadd.f32 %v1889, 1.0
    %v1891 = vrcp.pop %v1890
    %v1892 = vmul.f32 %v1890, %v1891
    %v1893 = vsub.f32 1.0, %v1892
    %v1894 = vmul.f32 %v1891, %v1893
    %v1895 = vadd.f32 %v1891, %v1894
    %vm1896 = vweird.f32 %v1890
    %vm1897 = vweird.f32 %v1891
    %vm1898 = vmor %vm1896, %vm1897
    %v1899 = vsel %vm1898, %v1891, %v1895
    %v1900 = vand.u32 2147483647, %v1890
    %vm1901 = vcmp.eq.f32.partialorder %v1900, 8.507059e+37
    %v1902 = vand.u32 %v1890, 2147483648
    %v1903 = vor.u32 1.1754944e-38, %v1902
    %v1904 = vsel %vm1901, %v1903, %v1899
    %v1905 = vmul.f32 1.0, %v1904
    %v1906 = vmul.f32 %v1885, %v1694
    %v1907 = vmul.f32 %v1866, %v1886
    %v1908 = vadd.f32 %v1906, %v1907
    %v1909 = vtanh.pop %v1908
    %v1910 = vmul.f32 %v1905, %v1909
    %1911 = vst [vmem:[#allocation3] sm:$0xff] %v1908
    %1912 = vst [vmem:[#allocation2] sm:$0xff] %v1910
    %s1913 = scalar_lea.vmem [#allocation5], 48
    %1914 = vst [vmem:[%s1913] sm:$0xff] %v1910
    %v1915 = vld [vmem:[#allocation2] sm:$0xff]
    %v1916 = vld [vmem:[#allocation3] sm:$0xff]
    %v1917 = vld [vmem:[#allocation6] sm:$0xff]
    %v1918 = vld [vmem:[#allocation6 + $0x8] sm:$0xff]
    %v1919 = vld [vmem:[#allocation6 + $0x10] sm:$0xff]
    %v1920 = vld [vmem:[#allocation6 + $0x18] sm:$0xff]
    %v1921 = vld [vmem:[#allocation6 + $0x20] sm:$0xff]
    %v1922 = vld [vmem:[#allocation6 + $0x28] sm:$0xff]
    %v1923 = vld [vmem:[#allocation6 + $0x30] sm:$0xff]
    %v1924 = vld [vmem:[#allocation6 + $0x38] sm:$0xff]
    %v1925 = vld [vmem:[#allocation6 + $0x40] sm:$0xff]
    %v1926 = vld [vmem:[#allocation6 + $0x48] sm:$0xff]
    %v1927 = vld [vmem:[#allocation6 + $0x50] sm:$0xff]
    %v1928 = vld [vmem:[#allocation6 + $0x58] sm:$0xff]
    %v1929 = vld [vmem:[#allocation6 + $0x60] sm:$0xff]
    %v1930 = vld [vmem:[#allocation6 + $0x68] sm:$0xff]
    %v1931 = vld [vmem:[#allocation6 + $0x70] sm:$0xff]
    %v1932 = vld [vmem:[#allocation6 + $0x78] sm:$0xff]
    %v1933 = vld [vmem:[#allocation6 + $0x80] sm:$0xff]
    %v1934 = vld [vmem:[#allocation6 + $0x88] sm:$0xff]
    %v1935 = vld [vmem:[#allocation6 + $0x90] sm:$0xff]
    %v1936 = vld [vmem:[#allocation6 + $0x98] sm:$0xff]
    %v1937 = vld [vmem:[#allocation6 + $0xa0] sm:$0xff]
    %v1938 = vld [vmem:[#allocation6 + $0xa8] sm:$0xff]
    %v1939 = vld [vmem:[#allocation6 + $0xb0] sm:$0xff]
    %v1940 = vld [vmem:[#allocation6 + $0xb8] sm:$0xff]
    %v1941 = vld [vmem:[#allocation6 + $0xc0] sm:$0xff]
    %v1942 = vld [vmem:[#allocation6 + $0xc8] sm:$0xff]
    %v1943 = vld [vmem:[#allocation6 + $0xd0] sm:$0xff]
    %v1944 = vld [vmem:[#allocation6 + $0xd8] sm:$0xff]
    %v1945 = vld [vmem:[#allocation6 + $0xe0] sm:$0xff]
    %v1946 = vld [vmem:[#allocation6 + $0xe8] sm:$0xff]
    %v1947 = vld [vmem:[#allocation6 + $0xf0] sm:$0xff]
    %v1948 = vld [vmem:[#allocation6 + $0xf8] sm:$0xff]
    %v1949 = vld [vmem:[#allocation6 + $0x100] sm:$0xff]
    %v1950 = vld [vmem:[#allocation6 + $0x108] sm:$0xff]
    %v1951 = vld [vmem:[#allocation6 + $0x110] sm:$0xff]
    %v1952 = vld [vmem:[#allocation6 + $0x118] sm:$0xff]
    %v1953 = vld [vmem:[#allocation6 + $0x120] sm:$0xff]
    %v1954 = vld [vmem:[#allocation6 + $0x128] sm:$0xff]
    %v1955 = vld [vmem:[#allocation6 + $0x130] sm:$0xff]
    %v1956 = vld [vmem:[#allocation6 + $0x138] sm:$0xff]
    %v1957 = vld [vmem:[#allocation6 + $0x140] sm:$0xff]
    %v1958 = vld [vmem:[#allocation6 + $0x148] sm:$0xff]
    %v1959 = vld [vmem:[#allocation6 + $0x150] sm:$0xff]
    %v1960 = vld [vmem:[#allocation6 + $0x158] sm:$0xff]
    %v1961 = vld [vmem:[#allocation6 + $0x160] sm:$0xff]
    %v1962 = vld [vmem:[#allocation6 + $0x168] sm:$0xff]
    %v1963 = vld [vmem:[#allocation6 + $0x170] sm:$0xff]
    %v1964 = vld [vmem:[#allocation6 + $0x178] sm:$0xff]
    %v1965 = vld [vmem:[#allocation6 + $0x180] sm:$0xff]
    %v1966 = vld [vmem:[#allocation6 + $0x188] sm:$0xff]
    %v1967 = vld [vmem:[#allocation6 + $0x190] sm:$0xff]
    %v1968 = vld [vmem:[#allocation6 + $0x198] sm:$0xff]
    %v1969 = vld [vmem:[#allocation6 + $0x1a0] sm:$0xff]
    %v1970 = vld [vmem:[#allocation6 + $0x1a8] sm:$0xff]
    %v1971 = vld [vmem:[#allocation6 + $0x1b0] sm:$0xff]
    %v1972 = vld [vmem:[#allocation6 + $0x1b8] sm:$0xff]
    %v1973 = vld [vmem:[#allocation6 + $0x1c0] sm:$0xff]
    %v1974 = vld [vmem:[#allocation6 + $0x1c8] sm:$0xff]
    %v1975 = vld [vmem:[#allocation6 + $0x1d0] sm:$0xff]
    %v1976 = vld [vmem:[#allocation6 + $0x1d8] sm:$0xff]
    %v1977 = vld [vmem:[#allocation6 + $0x1e0] sm:$0xff]
    %v1978 = vld [vmem:[#allocation6 + $0x1e8] sm:$0xff]
    %v1979 = vld [vmem:[#allocation6 + $0x1f0] sm:$0xff]
    %v1980 = vld [vmem:[#allocation6 + $0x1f8] sm:$0xff]
    %s1981 = scalar_lea.vmem [#allocation4], 224
    %v1982 = vld [vmem:[%s1981] sm:$0xff]
    %v1983 = vld [vmem:[%s1981 + $0x8] sm:$0xff]
    %v1984 = vld [vmem:[%s1981 + $0x10] sm:$0xff]
    %v1985 = vld [vmem:[%s1981 + $0x18] sm:$0xff]
    %1986 = vmatpush.msra.mxu0 %v1977
    %1987 = vmatpush.msra.mxu0 %v1973
    %1988 = vmatpush.msra.mxu0 %v1969
    %1989 = vmatpush.msra.mxu0 %v1965
    %1990 = vmatpush.msra.mxu0 %v1961
    %1991 = vmatpush.msra.mxu0 %v1957
    %1992 = vmatpush.msra.mxu0 %v1953
    %1993 = vmatpush.msra.mxu0 %v1949
    %1994 = vmatpush.msra.mxu0 %v1945
    %1995 = vmatpush.msra.mxu0 %v1941
    %1996 = vmatpush.msra.mxu0 %v1937
    %1997 = vmatpush.msra.mxu0 %v1933
    %1998 = vmatpush.msra.mxu0 %v1929
    %1999 = vmatpush.msra.mxu0 %v1925
    %2000 = vmatpush.msra.mxu0 %v1921
    %2001 = vmatpush.msra.mxu0 %v1917
    %2002 = vmatmul.f32.gmra.mxu0 %v1915
    %v2003 = vpop.f32.mrf.mxu0
    %v2004 = vadd.f32 0.0, %v2003
    %2005 = vdwg.mxu0
    %2006 = vmatpush.msra.mxu0 %v1978
    %2007 = vmatpush.msra.mxu0 %v1974
    %2008 = vmatpush.msra.mxu0 %v1970
    %2009 = vmatpush.msra.mxu0 %v1966
    %2010 = vmatpush.msra.mxu0 %v1962
    %2011 = vmatpush.msra.mxu0 %v1958
    %2012 = vmatpush.msra.mxu0 %v1954
    %2013 = vmatpush.msra.mxu0 %v1950
    %2014 = vmatpush.msra.mxu0 %v1946
    %2015 = vmatpush.msra.mxu0 %v1942
    %2016 = vmatpush.msra.mxu0 %v1938
    %2017 = vmatpush.msra.mxu0 %v1934
    %2018 = vmatpush.msra.mxu0 %v1930
    %2019 = vmatpush.msra.mxu0 %v1926
    %2020 = vmatpush.msra.mxu0 %v1922
    %2021 = vmatpush.msra.mxu0 %v1918
    %2022 = vmatmul.f32.gmra.mxu0 %v1915
    %v2023 = vpop.f32.mrf.mxu0
    %v2024 = vadd.f32 0.0, %v2023
    %2025 = vdwg.mxu0
    %2026 = vmatpush.msra.mxu0 %v1979
    %2027 = vmatpush.msra.mxu0 %v1975
    %2028 = vmatpush.msra.mxu0 %v1971
    %2029 = vmatpush.msra.mxu0 %v1967
    %2030 = vmatpush.msra.mxu0 %v1963
    %2031 = vmatpush.msra.mxu0 %v1959
    %2032 = vmatpush.msra.mxu0 %v1955
    %2033 = vmatpush.msra.mxu0 %v1951
    %2034 = vmatpush.msra.mxu0 %v1947
    %2035 = vmatpush.msra.mxu0 %v1943
    %2036 = vmatpush.msra.mxu0 %v1939
    %2037 = vmatpush.msra.mxu0 %v1935
    %2038 = vmatpush.msra.mxu0 %v1931
    %2039 = vmatpush.msra.mxu0 %v1927
    %2040 = vmatpush.msra.mxu0 %v1923
    %2041 = vmatpush.msra.mxu0 %v1919
    %2042 = vmatmul.f32.gmra.mxu0 %v1915
    %v2043 = vpop.f32.mrf.mxu0
    %v2044 = vadd.f32 0.0, %v2043
    %2045 = vdwg.mxu0
    %2046 = vmatpush.msra.mxu0 %v1980
    %2047 = vmatpush.msra.mxu0 %v1976
    %2048 = vmatpush.msra.mxu0 %v1972
    %2049 = vmatpush.msra.mxu0 %v1968
    %2050 = vmatpush.msra.mxu0 %v1964
    %2051 = vmatpush.msra.mxu0 %v1960
    %2052 = vmatpush.msra.mxu0 %v1956
    %2053 = vmatpush.msra.mxu0 %v1952
    %2054 = vmatpush.msra.mxu0 %v1948
    %2055 = vmatpush.msra.mxu0 %v1944
    %2056 = vmatpush.msra.mxu0 %v1940
    %2057 = vmatpush.msra.mxu0 %v1936
    %2058 = vmatpush.msra.mxu0 %v1932
    %2059 = vmatpush.msra.mxu0 %v1928
    %2060 = vmatpush.msra.mxu0 %v1924
    %2061 = vmatpush.msra.mxu0 %v1920
    %2062 = vmatmul.f32.gmra.mxu0 %v1915
    %v2063 = vpop.f32.mrf.mxu0
    %v2064 = vadd.f32 0.0, %v2063
    %2065 = vdwg.mxu0
    %v2066 = vadd.f32 %v1982, %v2004
    %v2067 = vadd.f32 %v1983, %v2024
    %v2068 = vadd.f32 %v1984, %v2044
    %v2069 = vadd.f32 %v1985, %v2064
    %v2070 = vxor.u32 %v2066, 2147483648
    %v2071 = vmul.f32 %v2070, 1.442695
    %v2072 = vpow.pop %v2071
    %v2073 = vadd.f32 %v2072, 1.0
    %v2074 = vrcp.pop %v2073
    %v2075 = vmul.f32 %v2073, %v2074
    %v2076 = vsub.f32 1.0, %v2075
    %v2077 = vmul.f32 %v2074, %v2076
    %v2078 = vadd.f32 %v2074, %v2077
    %vm2079 = vweird.f32 %v2073
    %vm2080 = vweird.f32 %v2074
    %vm2081 = vmor %vm2079, %vm2080
    %v2082 = vsel %vm2081, %v2074, %v2078
    %v2083 = vand.u32 2147483647, %v2073
    %vm2084 = vcmp.eq.f32.partialorder %v2083, 8.507059e+37
    %v2085 = vand.u32 %v2073, 2147483648
    %v2086 = vor.u32 1.1754944e-38, %v2085
    %v2087 = vsel %vm2084, %v2086, %v2082
    %v2088 = vmul.f32 1.0, %v2087
    %v2089 = vxor.u32 %v2067, 2147483648
    %v2090 = vmul.f32 %v2089, 1.442695
    %v2091 = vpow.pop %v2090
    %v2092 = vadd.f32 %v2091, 1.0
    %v2093 = vrcp.pop %v2092
    %v2094 = vmul.f32 %v2092, %v2093
    %v2095 = vsub.f32 1.0, %v2094
    %v2096 = vmul.f32 %v2093, %v2095
    %v2097 = vadd.f32 %v2093, %v2096
    %vm2098 = vweird.f32 %v2092
    %vm2099 = vweird.f32 %v2093
    %vm2100 = vmor %vm2098, %vm2099
    %v2101 = vsel %vm2100, %v2093, %v2097
    %v2102 = vand.u32 2147483647, %v2092
    %vm2103 = vcmp.eq.f32.partialorder %v2102, 8.507059e+37
    %v2104 = vand.u32 %v2092, 2147483648
    %v2105 = vor.u32 1.1754944e-38, %v2104
    %v2106 = vsel %vm2103, %v2105, %v2101
    %v2107 = vmul.f32 1.0, %v2106
    %v2108 = vtanh.pop %v2068
    %v2109 = vxor.u32 %v2069, 2147483648
    %v2110 = vmul.f32 %v2109, 1.442695
    %v2111 = vpow.pop %v2110
    %v2112 = vadd.f32 %v2111, 1.0
    %v2113 = vrcp.pop %v2112
    %v2114 = vmul.f32 %v2112, %v2113
    %v2115 = vsub.f32 1.0, %v2114
    %v2116 = vmul.f32 %v2113, %v2115
    %v2117 = vadd.f32 %v2113, %v2116
    %vm2118 = vweird.f32 %v2112
    %vm2119 = vweird.f32 %v2113
    %vm2120 = vmor %vm2118, %vm2119
    %v2121 = vsel %vm2120, %v2113, %v2117
    %v2122 = vand.u32 2147483647, %v2112
    %vm2123 = vcmp.eq.f32.partialorder %v2122, 8.507059e+37
    %v2124 = vand.u32 %v2112, 2147483648
    %v2125 = vor.u32 1.1754944e-38, %v2124
    %v2126 = vsel %vm2123, %v2125, %v2121
    %v2127 = vmul.f32 1.0, %v2126
    %v2128 = vmul.f32 %v2107, %v1916
    %v2129 = vmul.f32 %v2088, %v2108
    %v2130 = vadd.f32 %v2128, %v2129
    %v2131 = vtanh.pop %v2130
    %v2132 = vmul.f32 %v2127, %v2131
    %2133 = vst [vmem:[#allocation3] sm:$0xff] %v2130
    %2134 = vst [vmem:[#allocation2] sm:$0xff] %v2132
    %s2135 = scalar_lea.vmem [#allocation5], 56
    %2136 = vst [vmem:[%s2135] sm:$0xff] %v2132
    %v2137 = vld [vmem:[#allocation5] sm:$0xff]
    %v2138 = vld [vmem:[#allocation5 + $0x8] sm:$0xff]
    %v2139 = vld [vmem:[#allocation5 + $0x10] sm:$0xff]
    %v2140 = vld [vmem:[#allocation5 + $0x18] sm:$0xff]
    %v2141 = vld [vmem:[#allocation5 + $0x20] sm:$0xff]
    %v2142 = vld [vmem:[#allocation5 + $0x28] sm:$0xff]
    %v2143 = vld [vmem:[#allocation5 + $0x30] sm:$0xff]
    %v2144 = vld [vmem:[#allocation5 + $0x38] sm:$0xff]
    %v2145 = vld [vmem:[#allocation9] sm:$0xff]
    %v2146 = vld [vmem:[#allocation9 + $0x8] sm:$0xff]
    %v2147 = vld [vmem:[#allocation9 + $0x10] sm:$0xff]
    %v2148 = vld [vmem:[#allocation9 + $0x18] sm:$0xff]
    %v2149 = vld [vmem:[#allocation9 + $0x20] sm:$0xff]
    %v2150 = vld [vmem:[#allocation9 + $0x28] sm:$0xff]
    %v2151 = vld [vmem:[#allocation9 + $0x30] sm:$0xff]
    %v2152 = vld [vmem:[#allocation9 + $0x38] sm:$0xff]
    %v2153 = vld [vmem:[#allocation9 + $0x40] sm:$0xff]
    %v2154 = vld [vmem:[#allocation9 + $0x48] sm:$0xff]
    %v2155 = vld [vmem:[#allocation9 + $0x50] sm:$0xff]
    %v2156 = vld [vmem:[#allocation9 + $0x58] sm:$0xff]
    %v2157 = vld [vmem:[#allocation9 + $0x60] sm:$0xff]
    %v2158 = vld [vmem:[#allocation9 + $0x68] sm:$0xff]
    %v2159 = vld [vmem:[#allocation9 + $0x70] sm:$0xff]
    %v2160 = vld [vmem:[#allocation9 + $0x78] sm:$0xff]
    %v2161 = vld [vmem:[#allocation9 + $0x80] sm:$0xff]
    %v2162 = vld [vmem:[#allocation9 + $0x88] sm:$0xff]
    %v2163 = vld [vmem:[#allocation9 + $0x90] sm:$0xff]
    %v2164 = vld [vmem:[#allocation9 + $0x98] sm:$0xff]
    %v2165 = vld [vmem:[#allocation9 + $0xa0] sm:$0xff]
    %v2166 = vld [vmem:[#allocation9 + $0xa8] sm:$0xff]
    %v2167 = vld [vmem:[#allocation9 + $0xb0] sm:$0xff]
    %v2168 = vld [vmem:[#allocation9 + $0xb8] sm:$0xff]
    %v2169 = vld [vmem:[#allocation9 + $0xc0] sm:$0xff]
    %v2170 = vld [vmem:[#allocation9 + $0xc8] sm:$0xff]
    %v2171 = vld [vmem:[#allocation9 + $0xd0] sm:$0xff]
    %v2172 = vld [vmem:[#allocation9 + $0xd8] sm:$0xff]
    %v2173 = vld [vmem:[#allocation9 + $0xe0] sm:$0xff]
    %v2174 = vld [vmem:[#allocation9 + $0xe8] sm:$0xff]
    %v2175 = vld [vmem:[#allocation9 + $0xf0] sm:$0xff]
    %v2176 = vld [vmem:[#allocation9 + $0xf8] sm:$0xff]
    %v2177 = vld [vmem:[#allocation9 + $0x100] sm:$0xff]
    %v2178 = vld [vmem:[#allocation9 + $0x108] sm:$0xff]
    %v2179 = vld [vmem:[#allocation9 + $0x110] sm:$0xff]
    %v2180 = vld [vmem:[#allocation9 + $0x118] sm:$0xff]
    %v2181 = vld [vmem:[#allocation9 + $0x120] sm:$0xff]
    %v2182 = vld [vmem:[#allocation9 + $0x128] sm:$0xff]
    %v2183 = vld [vmem:[#allocation9 + $0x130] sm:$0xff]
    %v2184 = vld [vmem:[#allocation9 + $0x138] sm:$0xff]
    %v2185 = vld [vmem:[#allocation9 + $0x140] sm:$0xff]
    %v2186 = vld [vmem:[#allocation9 + $0x148] sm:$0xff]
    %v2187 = vld [vmem:[#allocation9 + $0x150] sm:$0xff]
    %v2188 = vld [vmem:[#allocation9 + $0x158] sm:$0xff]
    %v2189 = vld [vmem:[#allocation9 + $0x160] sm:$0xff]
    %v2190 = vld [vmem:[#allocation9 + $0x168] sm:$0xff]
    %v2191 = vld [vmem:[#allocation9 + $0x170] sm:$0xff]
    %v2192 = vld [vmem:[#allocation9 + $0x178] sm:$0xff]
    %v2193 = vld [vmem:[#allocation9 + $0x180] sm:$0xff]
    %v2194 = vld [vmem:[#allocation9 + $0x188] sm:$0xff]
    %v2195 = vld [vmem:[#allocation9 + $0x190] sm:$0xff]
    %v2196 = vld [vmem:[#allocation9 + $0x198] sm:$0xff]
    %v2197 = vld [vmem:[#allocation9 + $0x1a0] sm:$0xff]
    %v2198 = vld [vmem:[#allocation9 + $0x1a8] sm:$0xff]
    %v2199 = vld [vmem:[#allocation9 + $0x1b0] sm:$0xff]
    %v2200 = vld [vmem:[#allocation9 + $0x1b8] sm:$0xff]
    %v2201 = vld [vmem:[#allocation9 + $0x1c0] sm:$0xff]
    %v2202 = vld [vmem:[#allocation9 + $0x1c8] sm:$0xff]
    %v2203 = vld [vmem:[#allocation9 + $0x1d0] sm:$0xff]
    %v2204 = vld [vmem:[#allocation9 + $0x1d8] sm:$0xff]
    %v2205 = vld [vmem:[#allocation9 + $0x1e0] sm:$0xff]
    %v2206 = vld [vmem:[#allocation9 + $0x1e8] sm:$0xff]
    %v2207 = vld [vmem:[#allocation9 + $0x1f0] sm:$0xff]
    %v2208 = vld [vmem:[#allocation9 + $0x1f8] sm:$0xff]
    %v2209 = vld [vmem:[%s6] sm:$0xf]
    %v2211 = vperm.slane %v2209, 0
    %v2212 = vperm.slane %v2209, 1
    %v2213 = vperm.slane %v2209, 2
    %v2214 = vperm.slane %v2209, 3
    %2219 = vmatpush.msra.mxu0 %v2205
    %2220 = vmatpush.msra.mxu0 %v2201
    %2221 = vmatpush.msra.mxu0 %v2197
    %2222 = vmatpush.msra.mxu0 %v2193
    %2223 = vmatpush.msra.mxu0 %v2189
    %2224 = vmatpush.msra.mxu0 %v2185
    %2225 = vmatpush.msra.mxu0 %v2181
    %2226 = vmatpush.msra.mxu0 %v2177
    %2227 = vmatpush.msra.mxu0 %v2173
    %2228 = vmatpush.msra.mxu0 %v2169
    %2229 = vmatpush.msra.mxu0 %v2165
    %2230 = vmatpush.msra.mxu0 %v2161
    %2231 = vmatpush.msra.mxu0 %v2157
    %2232 = vmatpush.msra.mxu0 %v2153
    %2233 = vmatpush.msra.mxu0 %v2149
    %2234 = vmatpush.msra.mxu0 %v2145
    %2235 = vmatmul.f32.gmra.mxu0 %v2137
    %v2236 = vpop.f32.mrf.mxu0
    %v2237 = vadd.f32 %v2211, %v2236
    %2238 = vmatmul.f32.gmra.mxu0 %v2138
    %v2239 = vpop.f32.mrf.mxu0
    %v2240 = vadd.f32 %v2211, %v2239
    %2241 = vmatmul.f32.gmra.mxu0 %v2139
    %v2242 = vpop.f32.mrf.mxu0
    %v2243 = vadd.f32 %v2211, %v2242
    %2244 = vmatmul.f32.gmra.mxu0 %v2140
    %v2245 = vpop.f32.mrf.mxu0
    %v2246 = vadd.f32 %v2211, %v2245
    %2247 = vmatmul.f32.gmra.mxu0 %v2141
    %v2248 = vpop.f32.mrf.mxu0
    %v2249 = vadd.f32 %v2211, %v2248
    %2250 = vmatmul.f32.gmra.mxu0 %v2142
    %v2251 = vpop.f32.mrf.mxu0
    %v2252 = vadd.f32 %v2211, %v2251
    %2253 = vmatmul.f32.gmra.mxu0 %v2143
    %v2254 = vpop.f32.mrf.mxu0
    %v2255 = vadd.f32 %v2211, %v2254
    %2256 = vmatmul.f32.gmra.mxu0 %v2144
    %v2257 = vpop.f32.mrf.mxu0
    %v2258 = vadd.f32 %v2211, %v2257
    %2259 = vdwg.mxu0
    %2260 = vmatpush.msra.mxu0 %v2206
    %2261 = vmatpush.msra.mxu0 %v2202
    %2262 = vmatpush.msra.mxu0 %v2198
    %2263 = vmatpush.msra.mxu0 %v2194
    %2264 = vmatpush.msra.mxu0 %v2190
    %2265 = vmatpush.msra.mxu0 %v2186
    %2266 = vmatpush.msra.mxu0 %v2182
    %2267 = vmatpush.msra.mxu0 %v2178
    %2268 = vmatpush.msra.mxu0 %v2174
    %2269 = vmatpush.msra.mxu0 %v2170
    %2270 = vmatpush.msra.mxu0 %v2166
    %2271 = vmatpush.msra.mxu0 %v2162
    %2272 = vmatpush.msra.mxu0 %v2158
    %2273 = vmatpush.msra.mxu0 %v2154
    %2274 = vmatpush.msra.mxu0 %v2150
    %2275 = vmatpush.msra.mxu0 %v2146
    %2276 = vmatmul.f32.gmra.mxu0 %v2137
    %v2277 = vpop.f32.mrf.mxu0
    %v2278 = vadd.f32 %v2212, %v2277
    %2279 = vmatmul.f32.gmra.mxu0 %v2138
    %v2280 = vpop.f32.mrf.mxu0
    %v2281 = vadd.f32 %v2212, %v2280
    %2282 = vmatmul.f32.gmra.mxu0 %v2139
    %v2283 = vpop.f32.mrf.mxu0
    %v2284 = vadd.f32 %v2212, %v2283
    %2285 = vmatmul.f32.gmra.mxu0 %v2140
    %v2286 = vpop.f32.mrf.mxu0
    %v2287 = vadd.f32 %v2212, %v2286
    %2288 = vmatmul.f32.gmra.mxu0 %v2141
    %v2289 = vpop.f32.mrf.mxu0
    %v2290 = vadd.f32 %v2212, %v2289
    %2291 = vmatmul.f32.gmra.mxu0 %v2142
    %v2292 = vpop.f32.mrf.mxu0
    %v2293 = vadd.f32 %v2212, %v2292
    %2294 = vmatmul.f32.gmra.mxu0 %v2143
    %v2295 = vpop.f32.mrf.mxu0
    %v2296 = vadd.f32 %v2212, %v2295
    %2297 = vmatmul.f32.gmra.mxu0 %v2144
    %v2298 = vpop.f32.mrf.mxu0
    %v2299 = vadd.f32 %v2212, %v2298
    %2300 = vdwg.mxu0
    %2301 = vmatpush.msra.mxu0 %v2207
    %2302 = vmatpush.msra.mxu0 %v2203
    %2303 = vmatpush.msra.mxu0 %v2199
    %2304 = vmatpush.msra.mxu0 %v2195
    %2305 = vmatpush.msra.mxu0 %v2191
    %2306 = vmatpush.msra.mxu0 %v2187
    %2307 = vmatpush.msra.mxu0 %v2183
    %2308 = vmatpush.msra.mxu0 %v2179
    %2309 = vmatpush.msra.mxu0 %v2175
    %2310 = vmatpush.msra.mxu0 %v2171
    %2311 = vmatpush.msra.mxu0 %v2167
    %2312 = vmatpush.msra.mxu0 %v2163
    %2313 = vmatpush.msra.mxu0 %v2159
    %2314 = vmatpush.msra.mxu0 %v2155
    %2315 = vmatpush.msra.mxu0 %v2151
    %2316 = vmatpush.msra.mxu0 %v2147
    %2317 = vmatmul.f32.gmra.mxu0 %v2137
    %v2318 = vpop.f32.mrf.mxu0
    %v2319 = vadd.f32 %v2213, %v2318
    %2320 = vmatmul.f32.gmra.mxu0 %v2138
    %v2321 = vpop.f32.mrf.mxu0
    %v2322 = vadd.f32 %v2213, %v2321
    %2323 = vmatmul.f32.gmra.mxu0 %v2139
    %v2324 = vpop.f32.mrf.mxu0
    %v2325 = vadd.f32 %v2213, %v2324
    %2326 = vmatmul.f32.gmra.mxu0 %v2140
    %v2327 = vpop.f32.mrf.mxu0
    %v2328 = vadd.f32 %v2213, %v2327
    %2329 = vmatmul.f32.gmra.mxu0 %v2141
    %v2330 = vpop.f32.mrf.mxu0
    %v2331 = vadd.f32 %v2213, %v2330
    %2332 = vmatmul.f32.gmra.mxu0 %v2142
    %v2333 = vpop.f32.mrf.mxu0
    %v2334 = vadd.f32 %v2213, %v2333
    %2335 = vmatmul.f32.gmra.mxu0 %v2143
    %v2336 = vpop.f32.mrf.mxu0
    %v2337 = vadd.f32 %v2213, %v2336
    %2338 = vmatmul.f32.gmra.mxu0 %v2144
    %v2339 = vpop.f32.mrf.mxu0
    %v2340 = vadd.f32 %v2213, %v2339
    %2341 = vdwg.mxu0
    %2342 = vmatpush.msra.mxu0 %v2208
    %2343 = vmatpush.msra.mxu0 %v2204
    %2344 = vmatpush.msra.mxu0 %v2200
    %2345 = vmatpush.msra.mxu0 %v2196
    %2346 = vmatpush.msra.mxu0 %v2192
    %2347 = vmatpush.msra.mxu0 %v2188
    %2348 = vmatpush.msra.mxu0 %v2184
    %2349 = vmatpush.msra.mxu0 %v2180
    %2350 = vmatpush.msra.mxu0 %v2176
    %2351 = vmatpush.msra.mxu0 %v2172
    %2352 = vmatpush.msra.mxu0 %v2168
    %2353 = vmatpush.msra.mxu0 %v2164
    %2354 = vmatpush.msra.mxu0 %v2160
    %2355 = vmatpush.msra.mxu0 %v2156
    %2356 = vmatpush.msra.mxu0 %v2152
    %2357 = vmatpush.msra.mxu0 %v2148
    %2358 = vmatmul.f32.gmra.mxu0 %v2137
    %v2359 = vpop.f32.mrf.mxu0
    %v2360 = vadd.f32 %v2214, %v2359
    %2361 = vmatmul.f32.gmra.mxu0 %v2138
    %v2362 = vpop.f32.mrf.mxu0
    %v2363 = vadd.f32 %v2214, %v2362
    %2364 = vmatmul.f32.gmra.mxu0 %v2139
    %v2365 = vpop.f32.mrf.mxu0
    %v2366 = vadd.f32 %v2214, %v2365
    %2367 = vmatmul.f32.gmra.mxu0 %v2140
    %v2368 = vpop.f32.mrf.mxu0
    %v2369 = vadd.f32 %v2214, %v2368
    %2370 = vmatmul.f32.gmra.mxu0 %v2141
    %v2371 = vpop.f32.mrf.mxu0
    %v2372 = vadd.f32 %v2214, %v2371
    %2373 = vmatmul.f32.gmra.mxu0 %v2142
    %v2374 = vpop.f32.mrf.mxu0
    %v2375 = vadd.f32 %v2214, %v2374
    %2376 = vmatmul.f32.gmra.mxu0 %v2143
    %v2377 = vpop.f32.mrf.mxu0
    %v2378 = vadd.f32 %v2214, %v2377
    %2379 = vmatmul.f32.gmra.mxu0 %v2144
    %v2380 = vpop.f32.mrf.mxu0
    %v2381 = vadd.f32 %v2214, %v2380
    %2382 = vdwg.mxu0
    %2383 = vst [vmem:[#allocation4] sm:$0xff] %v2237
    %2384 = vst [vmem:[#allocation4 + $0x8] sm:$0xff] %v2278
    %2385 = vst [vmem:[#allocation4 + $0x10] sm:$0xff] %v2319
    %2386 = vst [vmem:[#allocation4 + $0x18] sm:$0xff] %v2360
    %2387 = vst [vmem:[#allocation4 + $0x20] sm:$0xff] %v2240
    %2388 = vst [vmem:[#allocation4 + $0x28] sm:$0xff] %v2281
    %2389 = vst [vmem:[#allocation4 + $0x30] sm:$0xff] %v2322
    %2390 = vst [vmem:[#allocation4 + $0x38] sm:$0xff] %v2363
    %2391 = vst [vmem:[#allocation4 + $0x40] sm:$0xff] %v2243
    %2392 = vst [vmem:[#allocation4 + $0x48] sm:$0xff] %v2284
    %2393 = vst [vmem:[#allocation4 + $0x50] sm:$0xff] %v2325
    %2394 = vst [vmem:[#allocation4 + $0x58] sm:$0xff] %v2366
    %2395 = vst [vmem:[#allocation4 + $0x60] sm:$0xff] %v2246
    %2396 = vst [vmem:[#allocation4 + $0x68] sm:$0xff] %v2287
    %2397 = vst [vmem:[#allocation4 + $0x70] sm:$0xff] %v2328
    %2398 = vst [vmem:[#allocation4 + $0x78] sm:$0xff] %v2369
    %2399 = vst [vmem:[#allocation4 + $0x80] sm:$0xff] %v2249
    %2400 = vst [vmem:[#allocation4 + $0x88] sm:$0xff] %v2290
    %2401 = vst [vmem:[#allocation4 + $0x90] sm:$0xff] %v2331
    %2402 = vst [vmem:[#allocation4 + $0x98] sm:$0xff] %v2372
    %2403 = vst [vmem:[#allocation4 + $0xa0] sm:$0xff] %v2252
    %2404 = vst [vmem:[#allocation4 + $0xa8] sm:$0xff] %v2293
    %2405 = vst [vmem:[#allocation4 + $0xb0] sm:$0xff] %v2334
    %2406 = vst [vmem:[#allocation4 + $0xb8] sm:$0xff] %v2375
    %2407 = vst [vmem:[#allocation4 + $0xc0] sm:$0xff] %v2255
    %2408 = vst [vmem:[#allocation4 + $0xc8] sm:$0xff] %v2296
    %2409 = vst [vmem:[#allocation4 + $0xd0] sm:$0xff] %v2337
    %2410 = vst [vmem:[#allocation4 + $0xd8] sm:$0xff] %v2378
    %2411 = vst [vmem:[#allocation4 + $0xe0] sm:$0xff] %v2258
    %2412 = vst [vmem:[#allocation4 + $0xe8] sm:$0xff] %v2299
    %2413 = vst [vmem:[#allocation4 + $0xf0] sm:$0xff] %v2340
    %2414 = vst [vmem:[#allocation4 + $0xf8] sm:$0xff] %v2381
    %s2415 = scalar_lea.vmem [#allocation2], 8
    %v2416 = vld [vmem:[%s2415] sm:$0xff]
    %s2417 = scalar_lea.vmem [#allocation3], 8
    %v2418 = vld [vmem:[%s2417] sm:$0xff]
    %v2419 = vld [vmem:[#allocation11] sm:$0xff]
    %v2420 = vld [vmem:[#allocation11 + $0x8] sm:$0xff]
    %v2421 = vld [vmem:[#allocation11 + $0x10] sm:$0xff]
    %v2422 = vld [vmem:[#allocation11 + $0x18] sm:$0xff]
    %v2423 = vld [vmem:[#allocation11 + $0x20] sm:$0xff]
    %v2424 = vld [vmem:[#allocation11 + $0x28] sm:$0xff]
    %v2425 = vld [vmem:[#allocation11 + $0x30] sm:$0xff]
    %v2426 = vld [vmem:[#allocation11 + $0x38] sm:$0xff]
    %v2427 = vld [vmem:[#allocation11 + $0x40] sm:$0xff]
    %v2428 = vld [vmem:[#allocation11 + $0x48] sm:$0xff]
    %v2429 = vld [vmem:[#allocation11 + $0x50] sm:$0xff]
    %v2430 = vld [vmem:[#allocation11 + $0x58] sm:$0xff]
    %v2431 = vld [vmem:[#allocation11 + $0x60] sm:$0xff]
    %v2432 = vld [vmem:[#allocation11 + $0x68] sm:$0xff]
    %v2433 = vld [vmem:[#allocation11 + $0x70] sm:$0xff]
    %v2434 = vld [vmem:[#allocation11 + $0x78] sm:$0xff]
    %v2435 = vld [vmem:[#allocation11 + $0x80] sm:$0xff]
    %v2436 = vld [vmem:[#allocation11 + $0x88] sm:$0xff]
    %v2437 = vld [vmem:[#allocation11 + $0x90] sm:$0xff]
    %v2438 = vld [vmem:[#allocation11 + $0x98] sm:$0xff]
    %v2439 = vld [vmem:[#allocation11 + $0xa0] sm:$0xff]
    %v2440 = vld [vmem:[#allocation11 + $0xa8] sm:$0xff]
    %v2441 = vld [vmem:[#allocation11 + $0xb0] sm:$0xff]
    %v2442 = vld [vmem:[#allocation11 + $0xb8] sm:$0xff]
    %v2443 = vld [vmem:[#allocation11 + $0xc0] sm:$0xff]
    %v2444 = vld [vmem:[#allocation11 + $0xc8] sm:$0xff]
    %v2445 = vld [vmem:[#allocation11 + $0xd0] sm:$0xff]
    %v2446 = vld [vmem:[#allocation11 + $0xd8] sm:$0xff]
    %v2447 = vld [vmem:[#allocation11 + $0xe0] sm:$0xff]
    %v2448 = vld [vmem:[#allocation11 + $0xe8] sm:$0xff]
    %v2449 = vld [vmem:[#allocation11 + $0xf0] sm:$0xff]
    %v2450 = vld [vmem:[#allocation11 + $0xf8] sm:$0xff]
    %v2451 = vld [vmem:[#allocation11 + $0x100] sm:$0xff]
    %v2452 = vld [vmem:[#allocation11 + $0x108] sm:$0xff]
    %v2453 = vld [vmem:[#allocation11 + $0x110] sm:$0xff]
    %v2454 = vld [vmem:[#allocation11 + $0x118] sm:$0xff]
    %v2455 = vld [vmem:[#allocation11 + $0x120] sm:$0xff]
    %v2456 = vld [vmem:[#allocation11 + $0x128] sm:$0xff]
    %v2457 = vld [vmem:[#allocation11 + $0x130] sm:$0xff]
    %v2458 = vld [vmem:[#allocation11 + $0x138] sm:$0xff]
    %v2459 = vld [vmem:[#allocation11 + $0x140] sm:$0xff]
    %v2460 = vld [vmem:[#allocation11 + $0x148] sm:$0xff]
    %v2461 = vld [vmem:[#allocation11 + $0x150] sm:$0xff]
    %v2462 = vld [vmem:[#allocation11 + $0x158] sm:$0xff]
    %v2463 = vld [vmem:[#allocation11 + $0x160] sm:$0xff]
    %v2464 = vld [vmem:[#allocation11 + $0x168] sm:$0xff]
    %v2465 = vld [vmem:[#allocation11 + $0x170] sm:$0xff]
    %v2466 = vld [vmem:[#allocation11 + $0x178] sm:$0xff]
    %v2467 = vld [vmem:[#allocation11 + $0x180] sm:$0xff]
    %v2468 = vld [vmem:[#allocation11 + $0x188] sm:$0xff]
    %v2469 = vld [vmem:[#allocation11 + $0x190] sm:$0xff]
    %v2470 = vld [vmem:[#allocation11 + $0x198] sm:$0xff]
    %v2471 = vld [vmem:[#allocation11 + $0x1a0] sm:$0xff]
    %v2472 = vld [vmem:[#allocation11 + $0x1a8] sm:$0xff]
    %v2473 = vld [vmem:[#allocation11 + $0x1b0] sm:$0xff]
    %v2474 = vld [vmem:[#allocation11 + $0x1b8] sm:$0xff]
    %v2475 = vld [vmem:[#allocation11 + $0x1c0] sm:$0xff]
    %v2476 = vld [vmem:[#allocation11 + $0x1c8] sm:$0xff]
    %v2477 = vld [vmem:[#allocation11 + $0x1d0] sm:$0xff]
    %v2478 = vld [vmem:[#allocation11 + $0x1d8] sm:$0xff]
    %v2479 = vld [vmem:[#allocation11 + $0x1e0] sm:$0xff]
    %v2480 = vld [vmem:[#allocation11 + $0x1e8] sm:$0xff]
    %v2481 = vld [vmem:[#allocation11 + $0x1f0] sm:$0xff]
    %v2482 = vld [vmem:[#allocation11 + $0x1f8] sm:$0xff]
    %v2483 = vld [vmem:[#allocation4] sm:$0xff]
    %v2484 = vld [vmem:[#allocation4 + $0x8] sm:$0xff]
    %v2485 = vld [vmem:[#allocation4 + $0x10] sm:$0xff]
    %v2486 = vld [vmem:[#allocation4 + $0x18] sm:$0xff]
    %2487 = vmatpush.msra.mxu0 %v2479
    %2488 = vmatpush.msra.mxu0 %v2475
    %2489 = vmatpush.msra.mxu0 %v2471
    %2490 = vmatpush.msra.mxu0 %v2467
    %2491 = vmatpush.msra.mxu0 %v2463
    %2492 = vmatpush.msra.mxu0 %v2459
    %2493 = vmatpush.msra.mxu0 %v2455
    %2494 = vmatpush.msra.mxu0 %v2451
    %2495 = vmatpush.msra.mxu0 %v2447
    %2496 = vmatpush.msra.mxu0 %v2443
    %2497 = vmatpush.msra.mxu0 %v2439
    %2498 = vmatpush.msra.mxu0 %v2435
    %2499 = vmatpush.msra.mxu0 %v2431
    %2500 = vmatpush.msra.mxu0 %v2427
    %2501 = vmatpush.msra.mxu0 %v2423
    %2502 = vmatpush.msra.mxu0 %v2419
    %2503 = vmatmul.f32.gmra.mxu0 %v2416
    %v2504 = vpop.f32.mrf.mxu0
    %v2505 = vadd.f32 0.0, %v2504
    %2506 = vdwg.mxu0
    %2507 = vmatpush.msra.mxu0 %v2480
    %2508 = vmatpush.msra.mxu0 %v2476
    %2509 = vmatpush.msra.mxu0 %v2472
    %2510 = vmatpush.msra.mxu0 %v2468
    %2511 = vmatpush.msra.mxu0 %v2464
    %2512 = vmatpush.msra.mxu0 %v2460
    %2513 = vmatpush.msra.mxu0 %v2456
    %2514 = vmatpush.msra.mxu0 %v2452
    %2515 = vmatpush.msra.mxu0 %v2448
    %2516 = vmatpush.msra.mxu0 %v2444
    %2517 = vmatpush.msra.mxu0 %v2440
    %2518 = vmatpush.msra.mxu0 %v2436
    %2519 = vmatpush.msra.mxu0 %v2432
    %2520 = vmatpush.msra.mxu0 %v2428
    %2521 = vmatpush.msra.mxu0 %v2424
    %2522 = vmatpush.msra.mxu0 %v2420
    %2523 = vmatmul.f32.gmra.mxu0 %v2416
    %v2524 = vpop.f32.mrf.mxu0
    %v2525 = vadd.f32 0.0, %v2524
    %2526 = vdwg.mxu0
    %2527 = vmatpush.msra.mxu0 %v2481
    %2528 = vmatpush.msra.mxu0 %v2477
    %2529 = vmatpush.msra.mxu0 %v2473
    %2530 = vmatpush.msra.mxu0 %v2469
    %2531 = vmatpush.msra.mxu0 %v2465
    %2532 = vmatpush.msra.mxu0 %v2461
    %2533 = vmatpush.msra.mxu0 %v2457
    %2534 = vmatpush.msra.mxu0 %v2453
    %2535 = vmatpush.msra.mxu0 %v2449
    %2536 = vmatpush.msra.mxu0 %v2445
    %2537 = vmatpush.msra.mxu0 %v2441
    %2538 = vmatpush.msra.mxu0 %v2437
    %2539 = vmatpush.msra.mxu0 %v2433
    %2540 = vmatpush.msra.mxu0 %v2429
    %2541 = vmatpush.msra.mxu0 %v2425
    %2542 = vmatpush.msra.mxu0 %v2421
    %2543 = vmatmul.f32.gmra.mxu0 %v2416
    %v2544 = vpop.f32.mrf.mxu0
    %v2545 = vadd.f32 0.0, %v2544
    %2546 = vdwg.mxu0
    %2547 = vmatpush.msra.mxu0 %v2482
    %2548 = vmatpush.msra.mxu0 %v2478
    %2549 = vmatpush.msra.mxu0 %v2474
    %2550 = vmatpush.msra.mxu0 %v2470
    %2551 = vmatpush.msra.mxu0 %v2466
    %2552 = vmatpush.msra.mxu0 %v2462
    %2553 = vmatpush.msra.mxu0 %v2458
    %2554 = vmatpush.msra.mxu0 %v2454
    %2555 = vmatpush.msra.mxu0 %v2450
    %2556 = vmatpush.msra.mxu0 %v2446
    %2557 = vmatpush.msra.mxu0 %v2442
    %2558 = vmatpush.msra.mxu0 %v2438
    %2559 = vmatpush.msra.mxu0 %v2434
    %2560 = vmatpush.msra.mxu0 %v2430
    %2561 = vmatpush.msra.mxu0 %v2426
    %2562 = vmatpush.msra.mxu0 %v2422
    %2563 = vmatmul.f32.gmra.mxu0 %v2416
    %v2564 = vpop.f32.mrf.mxu0
    %v2565 = vadd.f32 0.0, %v2564
    %2566 = vdwg.mxu0
    %v2567 = vadd.f32 %v2483, %v2505
    %v2568 = vadd.f32 %v2484, %v2525
    %v2569 = vadd.f32 %v2485, %v2545
    %v2570 = vadd.f32 %v2486, %v2565
    %v2571 = vxor.u32 %v2567, 2147483648
    %v2572 = vmul.f32 %v2571, 1.442695
    %v2573 = vpow.pop %v2572
    %v2574 = vadd.f32 %v2573, 1.0
    %v2575 = vrcp.pop %v2574
    %v2576 = vmul.f32 %v2574, %v2575
    %v2577 = vsub.f32 1.0, %v2576
    %v2578 = vmul.f32 %v2575, %v2577
    %v2579 = vadd.f32 %v2575, %v2578
    %vm2580 = vweird.f32 %v2574
    %vm2581 = vweird.f32 %v2575
    %vm2582 = vmor %vm2580, %vm2581
    %v2583 = vsel %vm2582, %v2575, %v2579
    %v2584 = vand.u32 2147483647, %v2574
    %vm2585 = vcmp.eq.f32.partialorder %v2584, 8.507059e+37
    %v2586 = vand.u32 %v2574, 2147483648
    %v2587 = vor.u32 1.1754944e-38, %v2586
    %v2588 = vsel %vm2585, %v2587, %v2583
    %v2589 = vmul.f32 1.0, %v2588
    %v2590 = vxor.u32 %v2568, 2147483648
    %v2591 = vmul.f32 %v2590, 1.442695
    %v2592 = vpow.pop %v2591
    %v2593 = vadd.f32 %v2592, 1.0
    %v2594 = vrcp.pop %v2593
    %v2595 = vmul.f32 %v2593, %v2594
    %v2596 = vsub.f32 1.0, %v2595
    %v2597 = vmul.f32 %v2594, %v2596
    %v2598 = vadd.f32 %v2594, %v2597
    %vm2599 = vweird.f32 %v2593
    %vm2600 = vweird.f32 %v2594
    %vm2601 = vmor %vm2599, %vm2600
    %v2602 = vsel %vm2601, %v2594, %v2598
    %v2603 = vand.u32 2147483647, %v2593
    %vm2604 = vcmp.eq.f32.partialorder %v2603, 8.507059e+37
    %v2605 = vand.u32 %v2593, 2147483648
    %v2606 = vor.u32 1.1754944e-38, %v2605
    %v2607 = vsel %vm2604, %v2606, %v2602
    %v2608 = vmul.f32 1.0, %v2607
    %v2609 = vtanh.pop %v2569
    %v2610 = vxor.u32 %v2570, 2147483648
    %v2611 = vmul.f32 %v2610, 1.442695
    %v2612 = vpow.pop %v2611
    %v2613 = vadd.f32 %v2612, 1.0
    %v2614 = vrcp.pop %v2613
    %v2615 = vmul.f32 %v2613, %v2614
    %v2616 = vsub.f32 1.0, %v2615
    %v2617 = vmul.f32 %v2614, %v2616
    %v2618 = vadd.f32 %v2614, %v2617
    %vm2619 = vweird.f32 %v2613
    %vm2620 = vweird.f32 %v2614
    %vm2621 = vmor %vm2619, %vm2620
    %v2622 = vsel %vm2621, %v2614, %v2618
    %v2623 = vand.u32 2147483647, %v2613
    %vm2624 = vcmp.eq.f32.partialorder %v2623, 8.507059e+37
    %v2625 = vand.u32 %v2613, 2147483648
    %v2626 = vor.u32 1.1754944e-38, %v2625
    %v2627 = vsel %vm2624, %v2626, %v2622
    %v2628 = vmul.f32 1.0, %v2627
    %v2629 = vmul.f32 %v2608, %v2418
    %v2630 = vmul.f32 %v2589, %v2609
    %v2631 = vadd.f32 %v2629, %v2630
    %v2632 = vtanh.pop %v2631
    %v2633 = vmul.f32 %v2628, %v2632
    %2634 = vst [vmem:[%s2417] sm:$0xff] %v2631
    %2635 = vst [vmem:[%s2415] sm:$0xff] %v2633
    %2636 = vst [vmem:[#allocation5] sm:$0xff] %v2633
    %v2637 = vld [vmem:[%s2415] sm:$0xff]
    %v2638 = vld [vmem:[%s2417] sm:$0xff]
    %v2639 = vld [vmem:[#allocation11] sm:$0xff]
    %v2640 = vld [vmem:[#allocation11 + $0x8] sm:$0xff]
    %v2641 = vld [vmem:[#allocation11 + $0x10] sm:$0xff]
    %v2642 = vld [vmem:[#allocation11 + $0x18] sm:$0xff]
    %v2643 = vld [vmem:[#allocation11 + $0x20] sm:$0xff]
    %v2644 = vld [vmem:[#allocation11 + $0x28] sm:$0xff]
    %v2645 = vld [vmem:[#allocation11 + $0x30] sm:$0xff]
    %v2646 = vld [vmem:[#allocation11 + $0x38] sm:$0xff]
    %v2647 = vld [vmem:[#allocation11 + $0x40] sm:$0xff]
    %v2648 = vld [vmem:[#allocation11 + $0x48] sm:$0xff]
    %v2649 = vld [vmem:[#allocation11 + $0x50] sm:$0xff]
    %v2650 = vld [vmem:[#allocation11 + $0x58] sm:$0xff]
    %v2651 = vld [vmem:[#allocation11 + $0x60] sm:$0xff]
    %v2652 = vld [vmem:[#allocation11 + $0x68] sm:$0xff]
    %v2653 = vld [vmem:[#allocation11 + $0x70] sm:$0xff]
    %v2654 = vld [vmem:[#allocation11 + $0x78] sm:$0xff]
    %v2655 = vld [vmem:[#allocation11 + $0x80] sm:$0xff]
    %v2656 = vld [vmem:[#allocation11 + $0x88] sm:$0xff]
    %v2657 = vld [vmem:[#allocation11 + $0x90] sm:$0xff]
    %v2658 = vld [vmem:[#allocation11 + $0x98] sm:$0xff]
    %v2659 = vld [vmem:[#allocation11 + $0xa0] sm:$0xff]
    %v2660 = vld [vmem:[#allocation11 + $0xa8] sm:$0xff]
    %v2661 = vld [vmem:[#allocation11 + $0xb0] sm:$0xff]
    %v2662 = vld [vmem:[#allocation11 + $0xb8] sm:$0xff]
    %v2663 = vld [vmem:[#allocation11 + $0xc0] sm:$0xff]
    %v2664 = vld [vmem:[#allocation11 + $0xc8] sm:$0xff]
    %v2665 = vld [vmem:[#allocation11 + $0xd0] sm:$0xff]
    %v2666 = vld [vmem:[#allocation11 + $0xd8] sm:$0xff]
    %v2667 = vld [vmem:[#allocation11 + $0xe0] sm:$0xff]
    %v2668 = vld [vmem:[#allocation11 + $0xe8] sm:$0xff]
    %v2669 = vld [vmem:[#allocation11 + $0xf0] sm:$0xff]
    %v2670 = vld [vmem:[#allocation11 + $0xf8] sm:$0xff]
    %v2671 = vld [vmem:[#allocation11 + $0x100] sm:$0xff]
    %v2672 = vld [vmem:[#allocation11 + $0x108] sm:$0xff]
    %v2673 = vld [vmem:[#allocation11 + $0x110] sm:$0xff]
    %v2674 = vld [vmem:[#allocation11 + $0x118] sm:$0xff]
    %v2675 = vld [vmem:[#allocation11 + $0x120] sm:$0xff]
    %v2676 = vld [vmem:[#allocation11 + $0x128] sm:$0xff]
    %v2677 = vld [vmem:[#allocation11 + $0x130] sm:$0xff]
    %v2678 = vld [vmem:[#allocation11 + $0x138] sm:$0xff]
    %v2679 = vld [vmem:[#allocation11 + $0x140] sm:$0xff]
    %v2680 = vld [vmem:[#allocation11 + $0x148] sm:$0xff]
    %v2681 = vld [vmem:[#allocation11 + $0x150] sm:$0xff]
    %v2682 = vld [vmem:[#allocation11 + $0x158] sm:$0xff]
    %v2683 = vld [vmem:[#allocation11 + $0x160] sm:$0xff]
    %v2684 = vld [vmem:[#allocation11 + $0x168] sm:$0xff]
    %v2685 = vld [vmem:[#allocation11 + $0x170] sm:$0xff]
    %v2686 = vld [vmem:[#allocation11 + $0x178] sm:$0xff]
    %v2687 = vld [vmem:[#allocation11 + $0x180] sm:$0xff]
    %v2688 = vld [vmem:[#allocation11 + $0x188] sm:$0xff]
    %v2689 = vld [vmem:[#allocation11 + $0x190] sm:$0xff]
    %v2690 = vld [vmem:[#allocation11 + $0x198] sm:$0xff]
    %v2691 = vld [vmem:[#allocation11 + $0x1a0] sm:$0xff]
    %v2692 = vld [vmem:[#allocation11 + $0x1a8] sm:$0xff]
    %v2693 = vld [vmem:[#allocation11 + $0x1b0] sm:$0xff]
    %v2694 = vld [vmem:[#allocation11 + $0x1b8] sm:$0xff]
    %v2695 = vld [vmem:[#allocation11 + $0x1c0] sm:$0xff]
    %v2696 = vld [vmem:[#allocation11 + $0x1c8] sm:$0xff]
    %v2697 = vld [vmem:[#allocation11 + $0x1d0] sm:$0xff]
    %v2698 = vld [vmem:[#allocation11 + $0x1d8] sm:$0xff]
    %v2699 = vld [vmem:[#allocation11 + $0x1e0] sm:$0xff]
    %v2700 = vld [vmem:[#allocation11 + $0x1e8] sm:$0xff]
    %v2701 = vld [vmem:[#allocation11 + $0x1f0] sm:$0xff]
    %v2702 = vld [vmem:[#allocation11 + $0x1f8] sm:$0xff]
    %v2703 = vld [vmem:[%s649] sm:$0xff]
    %v2704 = vld [vmem:[%s649 + $0x8] sm:$0xff]
    %v2705 = vld [vmem:[%s649 + $0x10] sm:$0xff]
    %v2706 = vld [vmem:[%s649 + $0x18] sm:$0xff]
    %2707 = vmatpush.msra.mxu0 %v2699
    %2708 = vmatpush.msra.mxu0 %v2695
    %2709 = vmatpush.msra.mxu0 %v2691
    %2710 = vmatpush.msra.mxu0 %v2687
    %2711 = vmatpush.msra.mxu0 %v2683
    %2712 = vmatpush.msra.mxu0 %v2679
    %2713 = vmatpush.msra.mxu0 %v2675
    %2714 = vmatpush.msra.mxu0 %v2671
    %2715 = vmatpush.msra.mxu0 %v2667
    %2716 = vmatpush.msra.mxu0 %v2663
    %2717 = vmatpush.msra.mxu0 %v2659
    %2718 = vmatpush.msra.mxu0 %v2655
    %2719 = vmatpush.msra.mxu0 %v2651
    %2720 = vmatpush.msra.mxu0 %v2647
    %2721 = vmatpush.msra.mxu0 %v2643
    %2722 = vmatpush.msra.mxu0 %v2639
    %2723 = vmatmul.f32.gmra.mxu0 %v2637
    %v2724 = vpop.f32.mrf.mxu0
    %v2725 = vadd.f32 0.0, %v2724
    %2726 = vdwg.mxu0
    %2727 = vmatpush.msra.mxu0 %v2700
    %2728 = vmatpush.msra.mxu0 %v2696
    %2729 = vmatpush.msra.mxu0 %v2692
    %2730 = vmatpush.msra.mxu0 %v2688
    %2731 = vmatpush.msra.mxu0 %v2684
    %2732 = vmatpush.msra.mxu0 %v2680
    %2733 = vmatpush.msra.mxu0 %v2676
    %2734 = vmatpush.msra.mxu0 %v2672
    %2735 = vmatpush.msra.mxu0 %v2668
    %2736 = vmatpush.msra.mxu0 %v2664
    %2737 = vmatpush.msra.mxu0 %v2660
    %2738 = vmatpush.msra.mxu0 %v2656
    %2739 = vmatpush.msra.mxu0 %v2652
    %2740 = vmatpush.msra.mxu0 %v2648
    %2741 = vmatpush.msra.mxu0 %v2644
    %2742 = vmatpush.msra.mxu0 %v2640
    %2743 = vmatmul.f32.gmra.mxu0 %v2637
    %v2744 = vpop.f32.mrf.mxu0
    %v2745 = vadd.f32 0.0, %v2744
    %2746 = vdwg.mxu0
    %2747 = vmatpush.msra.mxu0 %v2701
    %2748 = vmatpush.msra.mxu0 %v2697
    %2749 = vmatpush.msra.mxu0 %v2693
    %2750 = vmatpush.msra.mxu0 %v2689
    %2751 = vmatpush.msra.mxu0 %v2685
    %2752 = vmatpush.msra.mxu0 %v2681
    %2753 = vmatpush.msra.mxu0 %v2677
    %2754 = vmatpush.msra.mxu0 %v2673
    %2755 = vmatpush.msra.mxu0 %v2669
    %2756 = vmatpush.msra.mxu0 %v2665
    %2757 = vmatpush.msra.mxu0 %v2661
    %2758 = vmatpush.msra.mxu0 %v2657
    %2759 = vmatpush.msra.mxu0 %v2653
    %2760 = vmatpush.msra.mxu0 %v2649
    %2761 = vmatpush.msra.mxu0 %v2645
    %2762 = vmatpush.msra.mxu0 %v2641
    %2763 = vmatmul.f32.gmra.mxu0 %v2637
    %v2764 = vpop.f32.mrf.mxu0
    %v2765 = vadd.f32 0.0, %v2764
    %2766 = vdwg.mxu0
    %2767 = vmatpush.msra.mxu0 %v2702
    %2768 = vmatpush.msra.mxu0 %v2698
    %2769 = vmatpush.msra.mxu0 %v2694
    %2770 = vmatpush.msra.mxu0 %v2690
    %2771 = vmatpush.msra.mxu0 %v2686
    %2772 = vmatpush.msra.mxu0 %v2682
    %2773 = vmatpush.msra.mxu0 %v2678
    %2774 = vmatpush.msra.mxu0 %v2674
    %2775 = vmatpush.msra.mxu0 %v2670
    %2776 = vmatpush.msra.mxu0 %v2666
    %2777 = vmatpush.msra.mxu0 %v2662
    %2778 = vmatpush.msra.mxu0 %v2658
    %2779 = vmatpush.msra.mxu0 %v2654
    %2780 = vmatpush.msra.mxu0 %v2650
    %2781 = vmatpush.msra.mxu0 %v2646
    %2782 = vmatpush.msra.mxu0 %v2642
    %2783 = vmatmul.f32.gmra.mxu0 %v2637
    %v2784 = vpop.f32.mrf.mxu0
    %v2785 = vadd.f32 0.0, %v2784
    %2786 = vdwg.mxu0
    %v2787 = vadd.f32 %v2703, %v2725
    %v2788 = vadd.f32 %v2704, %v2745
    %v2789 = vadd.f32 %v2705, %v2765
    %v2790 = vadd.f32 %v2706, %v2785
    %v2791 = vxor.u32 %v2787, 2147483648
    %v2792 = vmul.f32 %v2791, 1.442695
    %v2793 = vpow.pop %v2792
    %v2794 = vadd.f32 %v2793, 1.0
    %v2795 = vrcp.pop %v2794
    %v2796 = vmul.f32 %v2794, %v2795
    %v2797 = vsub.f32 1.0, %v2796
    %v2798 = vmul.f32 %v2795, %v2797
    %v2799 = vadd.f32 %v2795, %v2798
    %vm2800 = vweird.f32 %v2794
    %vm2801 = vweird.f32 %v2795
    %vm2802 = vmor %vm2800, %vm2801
    %v2803 = vsel %vm2802, %v2795, %v2799
    %v2804 = vand.u32 2147483647, %v2794
    %vm2805 = vcmp.eq.f32.partialorder %v2804, 8.507059e+37
    %v2806 = vand.u32 %v2794, 2147483648
    %v2807 = vor.u32 1.1754944e-38, %v2806
    %v2808 = vsel %vm2805, %v2807, %v2803
    %v2809 = vmul.f32 1.0, %v2808
    %v2810 = vxor.u32 %v2788, 2147483648
    %v2811 = vmul.f32 %v2810, 1.442695
    %v2812 = vpow.pop %v2811
    %v2813 = vadd.f32 %v2812, 1.0
    %v2814 = vrcp.pop %v2813
    %v2815 = vmul.f32 %v2813, %v2814
    %v2816 = vsub.f32 1.0, %v2815
    %v2817 = vmul.f32 %v2814, %v2816
    %v2818 = vadd.f32 %v2814, %v2817
    %vm2819 = vweird.f32 %v2813
    %vm2820 = vweird.f32 %v2814
    %vm2821 = vmor %vm2819, %vm2820
    %v2822 = vsel %vm2821, %v2814, %v2818
    %v2823 = vand.u32 2147483647, %v2813
    %vm2824 = vcmp.eq.f32.partialorder %v2823, 8.507059e+37
    %v2825 = vand.u32 %v2813, 2147483648
    %v2826 = vor.u32 1.1754944e-38, %v2825
    %v2827 = vsel %vm2824, %v2826, %v2822
    %v2828 = vmul.f32 1.0, %v2827
    %v2829 = vtanh.pop %v2789
    %v2830 = vxor.u32 %v2790, 2147483648
    %v2831 = vmul.f32 %v2830, 1.442695
    %v2832 = vpow.pop %v2831
    %v2833 = vadd.f32 %v2832, 1.0
    %v2834 = vrcp.pop %v2833
    %v2835 = vmul.f32 %v2833, %v2834
    %v2836 = vsub.f32 1.0, %v2835
    %v2837 = vmul.f32 %v2834, %v2836
    %v2838 = vadd.f32 %v2834, %v2837
    %vm2839 = vweird.f32 %v2833
    %vm2840 = vweird.f32 %v2834
    %vm2841 = vmor %vm2839, %vm2840
    %v2842 = vsel %vm2841, %v2834, %v2838
    %v2843 = vand.u32 2147483647, %v2833
    %vm2844 = vcmp.eq.f32.partialorder %v2843, 8.507059e+37
    %v2845 = vand.u32 %v2833, 2147483648
    %v2846 = vor.u32 1.1754944e-38, %v2845
    %v2847 = vsel %vm2844, %v2846, %v2842
    %v2848 = vmul.f32 1.0, %v2847
    %v2849 = vmul.f32 %v2828, %v2638
    %v2850 = vmul.f32 %v2809, %v2829
    %v2851 = vadd.f32 %v2849, %v2850
    %v2852 = vtanh.pop %v2851
    %v2853 = vmul.f32 %v2848, %v2852
    %2854 = vst [vmem:[%s2417] sm:$0xff] %v2851
    %2855 = vst [vmem:[%s2415] sm:$0xff] %v2853
    %2856 = vst [vmem:[%s803] sm:$0xff] %v2853
    %v2857 = vld [vmem:[%s2415] sm:$0xff]
    %v2858 = vld [vmem:[%s2417] sm:$0xff]
    %v2859 = vld [vmem:[#allocation11] sm:$0xff]
    %v2860 = vld [vmem:[#allocation11 + $0x8] sm:$0xff]
    %v2861 = vld [vmem:[#allocation11 + $0x10] sm:$0xff]
    %v2862 = vld [vmem:[#allocation11 + $0x18] sm:$0xff]
    %v2863 = vld [vmem:[#allocation11 + $0x20] sm:$0xff]
    %v2864 = vld [vmem:[#allocation11 + $0x28] sm:$0xff]
    %v2865 = vld [vmem:[#allocation11 + $0x30] sm:$0xff]
    %v2866 = vld [vmem:[#allocation11 + $0x38] sm:$0xff]
    %v2867 = vld [vmem:[#allocation11 + $0x40] sm:$0xff]
    %v2868 = vld [vmem:[#allocation11 + $0x48] sm:$0xff]
    %v2869 = vld [vmem:[#allocation11 + $0x50] sm:$0xff]
    %v2870 = vld [vmem:[#allocation11 + $0x58] sm:$0xff]
    %v2871 = vld [vmem:[#allocation11 + $0x60] sm:$0xff]
    %v2872 = vld [vmem:[#allocation11 + $0x68] sm:$0xff]
    %v2873 = vld [vmem:[#allocation11 + $0x70] sm:$0xff]
    %v2874 = vld [vmem:[#allocation11 + $0x78] sm:$0xff]
    %v2875 = vld [vmem:[#allocation11 + $0x80] sm:$0xff]
    %v2876 = vld [vmem:[#allocation11 + $0x88] sm:$0xff]
    %v2877 = vld [vmem:[#allocation11 + $0x90] sm:$0xff]
    %v2878 = vld [vmem:[#allocation11 + $0x98] sm:$0xff]
    %v2879 = vld [vmem:[#allocation11 + $0xa0] sm:$0xff]
    %v2880 = vld [vmem:[#allocation11 + $0xa8] sm:$0xff]
    %v2881 = vld [vmem:[#allocation11 + $0xb0] sm:$0xff]
    %v2882 = vld [vmem:[#allocation11 + $0xb8] sm:$0xff]
    %v2883 = vld [vmem:[#allocation11 + $0xc0] sm:$0xff]
    %v2884 = vld [vmem:[#allocation11 + $0xc8] sm:$0xff]
    %v2885 = vld [vmem:[#allocation11 + $0xd0] sm:$0xff]
    %v2886 = vld [vmem:[#allocation11 + $0xd8] sm:$0xff]
    %v2887 = vld [vmem:[#allocation11 + $0xe0] sm:$0xff]
    %v2888 = vld [vmem:[#allocation11 + $0xe8] sm:$0xff]
    %v2889 = vld [vmem:[#allocation11 + $0xf0] sm:$0xff]
    %v2890 = vld [vmem:[#allocation11 + $0xf8] sm:$0xff]
    %v2891 = vld [vmem:[#allocation11 + $0x100] sm:$0xff]
    %v2892 = vld [vmem:[#allocation11 + $0x108] sm:$0xff]
    %v2893 = vld [vmem:[#allocation11 + $0x110] sm:$0xff]
    %v2894 = vld [vmem:[#allocation11 + $0x118] sm:$0xff]
    %v2895 = vld [vmem:[#allocation11 + $0x120] sm:$0xff]
    %v2896 = vld [vmem:[#allocation11 + $0x128] sm:$0xff]
    %v2897 = vld [vmem:[#allocation11 + $0x130] sm:$0xff]
    %v2898 = vld [vmem:[#allocation11 + $0x138] sm:$0xff]
    %v2899 = vld [vmem:[#allocation11 + $0x140] sm:$0xff]
    %v2900 = vld [vmem:[#allocation11 + $0x148] sm:$0xff]
    %v2901 = vld [vmem:[#allocation11 + $0x150] sm:$0xff]
    %v2902 = vld [vmem:[#allocation11 + $0x158] sm:$0xff]
    %v2903 = vld [vmem:[#allocation11 + $0x160] sm:$0xff]
    %v2904 = vld [vmem:[#allocation11 + $0x168] sm:$0xff]
    %v2905 = vld [vmem:[#allocation11 + $0x170] sm:$0xff]
    %v2906 = vld [vmem:[#allocation11 + $0x178] sm:$0xff]
    %v2907 = vld [vmem:[#allocation11 + $0x180] sm:$0xff]
    %v2908 = vld [vmem:[#allocation11 + $0x188] sm:$0xff]
    %v2909 = vld [vmem:[#allocation11 + $0x190] sm:$0xff]
    %v2910 = vld [vmem:[#allocation11 + $0x198] sm:$0xff]
    %v2911 = vld [vmem:[#allocation11 + $0x1a0] sm:$0xff]
    %v2912 = vld [vmem:[#allocation11 + $0x1a8] sm:$0xff]
    %v2913 = vld [vmem:[#allocation11 + $0x1b0] sm:$0xff]
    %v2914 = vld [vmem:[#allocation11 + $0x1b8] sm:$0xff]
    %v2915 = vld [vmem:[#allocation11 + $0x1c0] sm:$0xff]
    %v2916 = vld [vmem:[#allocation11 + $0x1c8] sm:$0xff]
    %v2917 = vld [vmem:[#allocation11 + $0x1d0] sm:$0xff]
    %v2918 = vld [vmem:[#allocation11 + $0x1d8] sm:$0xff]
    %v2919 = vld [vmem:[#allocation11 + $0x1e0] sm:$0xff]
    %v2920 = vld [vmem:[#allocation11 + $0x1e8] sm:$0xff]
    %v2921 = vld [vmem:[#allocation11 + $0x1f0] sm:$0xff]
    %v2922 = vld [vmem:[#allocation11 + $0x1f8] sm:$0xff]
    %v2923 = vld [vmem:[%s871] sm:$0xff]
    %v2924 = vld [vmem:[%s871 + $0x8] sm:$0xff]
    %v2925 = vld [vmem:[%s871 + $0x10] sm:$0xff]
    %v2926 = vld [vmem:[%s871 + $0x18] sm:$0xff]
    %2927 = vmatpush.msra.mxu0 %v2919
    %2928 = vmatpush.msra.mxu0 %v2915
    %2929 = vmatpush.msra.mxu0 %v2911
    %2930 = vmatpush.msra.mxu0 %v2907
    %2931 = vmatpush.msra.mxu0 %v2903
    %2932 = vmatpush.msra.mxu0 %v2899
    %2933 = vmatpush.msra.mxu0 %v2895
    %2934 = vmatpush.msra.mxu0 %v2891
    %2935 = vmatpush.msra.mxu0 %v2887
    %2936 = vmatpush.msra.mxu0 %v2883
    %2937 = vmatpush.msra.mxu0 %v2879
    %2938 = vmatpush.msra.mxu0 %v2875
    %2939 = vmatpush.msra.mxu0 %v2871
    %2940 = vmatpush.msra.mxu0 %v2867
    %2941 = vmatpush.msra.mxu0 %v2863
    %2942 = vmatpush.msra.mxu0 %v2859
    %2943 = vmatmul.f32.gmra.mxu0 %v2857
    %v2944 = vpop.f32.mrf.mxu0
    %v2945 = vadd.f32 0.0, %v2944
    %2946 = vdwg.mxu0
    %2947 = vmatpush.msra.mxu0 %v2920
    %2948 = vmatpush.msra.mxu0 %v2916
    %2949 = vmatpush.msra.mxu0 %v2912
    %2950 = vmatpush.msra.mxu0 %v2908
    %2951 = vmatpush.msra.mxu0 %v2904
    %2952 = vmatpush.msra.mxu0 %v2900
    %2953 = vmatpush.msra.mxu0 %v2896
    %2954 = vmatpush.msra.mxu0 %v2892
    %2955 = vmatpush.msra.mxu0 %v2888
    %2956 = vmatpush.msra.mxu0 %v2884
    %2957 = vmatpush.msra.mxu0 %v2880
    %2958 = vmatpush.msra.mxu0 %v2876
    %2959 = vmatpush.msra.mxu0 %v2872
    %2960 = vmatpush.msra.mxu0 %v2868
    %2961 = vmatpush.msra.mxu0 %v2864
    %2962 = vmatpush.msra.mxu0 %v2860
    %2963 = vmatmul.f32.gmra.mxu0 %v2857
    %v2964 = vpop.f32.mrf.mxu0
    %v2965 = vadd.f32 0.0, %v2964
    %2966 = vdwg.mxu0
    %2967 = vmatpush.msra.mxu0 %v2921
    %2968 = vmatpush.msra.mxu0 %v2917
    %2969 = vmatpush.msra.mxu0 %v2913
    %2970 = vmatpush.msra.mxu0 %v2909
    %2971 = vmatpush.msra.mxu0 %v2905
    %2972 = vmatpush.msra.mxu0 %v2901
    %2973 = vmatpush.msra.mxu0 %v2897
    %2974 = vmatpush.msra.mxu0 %v2893
    %2975 = vmatpush.msra.mxu0 %v2889
    %2976 = vmatpush.msra.mxu0 %v2885
    %2977 = vmatpush.msra.mxu0 %v2881
    %2978 = vmatpush.msra.mxu0 %v2877
    %2979 = vmatpush.msra.mxu0 %v2873
    %2980 = vmatpush.msra.mxu0 %v2869
    %2981 = vmatpush.msra.mxu0 %v2865
    %2982 = vmatpush.msra.mxu0 %v2861
    %2983 = vmatmul.f32.gmra.mxu0 %v2857
    %v2984 = vpop.f32.mrf.mxu0
    %v2985 = vadd.f32 0.0, %v2984
    %2986 = vdwg.mxu0
    %2987 = vmatpush.msra.mxu0 %v2922
    %2988 = vmatpush.msra.mxu0 %v2918
    %2989 = vmatpush.msra.mxu0 %v2914
    %2990 = vmatpush.msra.mxu0 %v2910
    %2991 = vmatpush.msra.mxu0 %v2906
    %2992 = vmatpush.msra.mxu0 %v2902
    %2993 = vmatpush.msra.mxu0 %v2898
    %2994 = vmatpush.msra.mxu0 %v2894
    %2995 = vmatpush.msra.mxu0 %v2890
    %2996 = vmatpush.msra.mxu0 %v2886
    %2997 = vmatpush.msra.mxu0 %v2882
    %2998 = vmatpush.msra.mxu0 %v2878
    %2999 = vmatpush.msra.mxu0 %v2874
    %3000 = vmatpush.msra.mxu0 %v2870
    %3001 = vmatpush.msra.mxu0 %v2866
    %3002 = vmatpush.msra.mxu0 %v2862
    %3003 = vmatmul.f32.gmra.mxu0 %v2857
    %v3004 = vpop.f32.mrf.mxu0
    %v3005 = vadd.f32 0.0, %v3004
    %3006 = vdwg.mxu0
    %v3007 = vadd.f32 %v2923, %v2945
    %v3008 = vadd.f32 %v2924, %v2965
    %v3009 = vadd.f32 %v2925, %v2985
    %v3010 = vadd.f32 %v2926, %v3005
    %v3011 = vxor.u32 %v3007, 2147483648
    %v3012 = vmul.f32 %v3011, 1.442695
    %v3013 = vpow.pop %v3012
    %v3014 = vadd.f32 %v3013, 1.0
    %v3015 = vrcp.pop %v3014
    %v3016 = vmul.f32 %v3014, %v3015
    %v3017 = vsub.f32 1.0, %v3016
    %v3018 = vmul.f32 %v3015, %v3017
    %v3019 = vadd.f32 %v3015, %v3018
    %vm3020 = vweird.f32 %v3014
    %vm3021 = vweird.f32 %v3015
    %vm3022 = vmor %vm3020, %vm3021
    %v3023 = vsel %vm3022, %v3015, %v3019
    %v3024 = vand.u32 2147483647, %v3014
    %vm3025 = vcmp.eq.f32.partialorder %v3024, 8.507059e+37
    %v3026 = vand.u32 %v3014, 2147483648
    %v3027 = vor.u32 1.1754944e-38, %v3026
    %v3028 = vsel %vm3025, %v3027, %v3023
    %v3029 = vmul.f32 1.0, %v3028
    %v3030 = vxor.u32 %v3008, 2147483648
    %v3031 = vmul.f32 %v3030, 1.442695
    %v3032 = vpow.pop %v3031
    %v3033 = vadd.f32 %v3032, 1.0
    %v3034 = vrcp.pop %v3033
    %v3035 = vmul.f32 %v3033, %v3034
    %v3036 = vsub.f32 1.0, %v3035
    %v3037 = vmul.f32 %v3034, %v3036
    %v3038 = vadd.f32 %v3034, %v3037
    %vm3039 = vweird.f32 %v3033
    %vm3040 = vweird.f32 %v3034
    %vm3041 = vmor %vm3039, %vm3040
    %v3042 = vsel %vm3041, %v3034, %v3038
    %v3043 = vand.u32 2147483647, %v3033
    %vm3044 = vcmp.eq.f32.partialorder %v3043, 8.507059e+37
    %v3045 = vand.u32 %v3033, 2147483648
    %v3046 = vor.u32 1.1754944e-38, %v3045
    %v3047 = vsel %vm3044, %v3046, %v3042
    %v3048 = vmul.f32 1.0, %v3047
    %v3049 = vtanh.pop %v3009
    %v3050 = vxor.u32 %v3010, 2147483648
    %v3051 = vmul.f32 %v3050, 1.442695
    %v3052 = vpow.pop %v3051
    %v3053 = vadd.f32 %v3052, 1.0
    %v3054 = vrcp.pop %v3053
    %v3055 = vmul.f32 %v3053, %v3054
    %v3056 = vsub.f32 1.0, %v3055
    %v3057 = vmul.f32 %v3054, %v3056
    %v3058 = vadd.f32 %v3054, %v3057
    %vm3059 = vweird.f32 %v3053
    %vm3060 = vweird.f32 %v3054
    %vm3061 = vmor %vm3059, %vm3060
    %v3062 = vsel %vm3061, %v3054, %v3058
    %v3063 = vand.u32 2147483647, %v3053
    %vm3064 = vcmp.eq.f32.partialorder %v3063, 8.507059e+37
    %v3065 = vand.u32 %v3053, 2147483648
    %v3066 = vor.u32 1.1754944e-38, %v3065
    %v3067 = vsel %vm3064, %v3066, %v3062
    %v3068 = vmul.f32 1.0, %v3067
    %v3069 = vmul.f32 %v3048, %v2858
    %v3070 = vmul.f32 %v3029, %v3049
    %v3071 = vadd.f32 %v3069, %v3070
    %v3072 = vtanh.pop %v3071
    %v3073 = vmul.f32 %v3068, %v3072
    %3074 = vst [vmem:[%s2417] sm:$0xff] %v3071
    %3075 = vst [vmem:[%s2415] sm:$0xff] %v3073
    %3076 = vst [vmem:[%s1025] sm:$0xff] %v3073
    %v3077 = vld [vmem:[%s2415] sm:$0xff]
    %v3078 = vld [vmem:[%s2417] sm:$0xff]
    %v3079 = vld [vmem:[#allocation11] sm:$0xff]
    %v3080 = vld [vmem:[#allocation11 + $0x8] sm:$0xff]
    %v3081 = vld [vmem:[#allocation11 + $0x10] sm:$0xff]
    %v3082 = vld [vmem:[#allocation11 + $0x18] sm:$0xff]
    %v3083 = vld [vmem:[#allocation11 + $0x20] sm:$0xff]
    %v3084 = vld [vmem:[#allocation11 + $0x28] sm:$0xff]
    %v3085 = vld [vmem:[#allocation11 + $0x30] sm:$0xff]
    %v3086 = vld [vmem:[#allocation11 + $0x38] sm:$0xff]
    %v3087 = vld [vmem:[#allocation11 + $0x40] sm:$0xff]
    %v3088 = vld [vmem:[#allocation11 + $0x48] sm:$0xff]
    %v3089 = vld [vmem:[#allocation11 + $0x50] sm:$0xff]
    %v3090 = vld [vmem:[#allocation11 + $0x58] sm:$0xff]
    %v3091 = vld [vmem:[#allocation11 + $0x60] sm:$0xff]
    %v3092 = vld [vmem:[#allocation11 + $0x68] sm:$0xff]
    %v3093 = vld [vmem:[#allocation11 + $0x70] sm:$0xff]
    %v3094 = vld [vmem:[#allocation11 + $0x78] sm:$0xff]
    %v3095 = vld [vmem:[#allocation11 + $0x80] sm:$0xff]
    %v3096 = vld [vmem:[#allocation11 + $0x88] sm:$0xff]
    %v3097 = vld [vmem:[#allocation11 + $0x90] sm:$0xff]
    %v3098 = vld [vmem:[#allocation11 + $0x98] sm:$0xff]
    %v3099 = vld [vmem:[#allocation11 + $0xa0] sm:$0xff]
    %v3100 = vld [vmem:[#allocation11 + $0xa8] sm:$0xff]
    %v3101 = vld [vmem:[#allocation11 + $0xb0] sm:$0xff]
    %v3102 = vld [vmem:[#allocation11 + $0xb8] sm:$0xff]
    %v3103 = vld [vmem:[#allocation11 + $0xc0] sm:$0xff]
    %v3104 = vld [vmem:[#allocation11 + $0xc8] sm:$0xff]
    %v3105 = vld [vmem:[#allocation11 + $0xd0] sm:$0xff]
    %v3106 = vld [vmem:[#allocation11 + $0xd8] sm:$0xff]
    %v3107 = vld [vmem:[#allocation11 + $0xe0] sm:$0xff]
    %v3108 = vld [vmem:[#allocation11 + $0xe8] sm:$0xff]
    %v3109 = vld [vmem:[#allocation11 + $0xf0] sm:$0xff]
    %v3110 = vld [vmem:[#allocation11 + $0xf8] sm:$0xff]
    %v3111 = vld [vmem:[#allocation11 + $0x100] sm:$0xff]
    %v3112 = vld [vmem:[#allocation11 + $0x108] sm:$0xff]
    %v3113 = vld [vmem:[#allocation11 + $0x110] sm:$0xff]
    %v3114 = vld [vmem:[#allocation11 + $0x118] sm:$0xff]
    %v3115 = vld [vmem:[#allocation11 + $0x120] sm:$0xff]
    %v3116 = vld [vmem:[#allocation11 + $0x128] sm:$0xff]
    %v3117 = vld [vmem:[#allocation11 + $0x130] sm:$0xff]
    %v3118 = vld [vmem:[#allocation11 + $0x138] sm:$0xff]
    %v3119 = vld [vmem:[#allocation11 + $0x140] sm:$0xff]
    %v3120 = vld [vmem:[#allocation11 + $0x148] sm:$0xff]
    %v3121 = vld [vmem:[#allocation11 + $0x150] sm:$0xff]
    %v3122 = vld [vmem:[#allocation11 + $0x158] sm:$0xff]
    %v3123 = vld [vmem:[#allocation11 + $0x160] sm:$0xff]
    %v3124 = vld [vmem:[#allocation11 + $0x168] sm:$0xff]
    %v3125 = vld [vmem:[#allocation11 + $0x170] sm:$0xff]
    %v3126 = vld [vmem:[#allocation11 + $0x178] sm:$0xff]
    %v3127 = vld [vmem:[#allocation11 + $0x180] sm:$0xff]
    %v3128 = vld [vmem:[#allocation11 + $0x188] sm:$0xff]
    %v3129 = vld [vmem:[#allocation11 + $0x190] sm:$0xff]
    %v3130 = vld [vmem:[#allocation11 + $0x198] sm:$0xff]
    %v3131 = vld [vmem:[#allocation11 + $0x1a0] sm:$0xff]
    %v3132 = vld [vmem:[#allocation11 + $0x1a8] sm:$0xff]
    %v3133 = vld [vmem:[#allocation11 + $0x1b0] sm:$0xff]
    %v3134 = vld [vmem:[#allocation11 + $0x1b8] sm:$0xff]
    %v3135 = vld [vmem:[#allocation11 + $0x1c0] sm:$0xff]
    %v3136 = vld [vmem:[#allocation11 + $0x1c8] sm:$0xff]
    %v3137 = vld [vmem:[#allocation11 + $0x1d0] sm:$0xff]
    %v3138 = vld [vmem:[#allocation11 + $0x1d8] sm:$0xff]
    %v3139 = vld [vmem:[#allocation11 + $0x1e0] sm:$0xff]
    %v3140 = vld [vmem:[#allocation11 + $0x1e8] sm:$0xff]
    %v3141 = vld [vmem:[#allocation11 + $0x1f0] sm:$0xff]
    %v3142 = vld [vmem:[#allocation11 + $0x1f8] sm:$0xff]
    %v3143 = vld [vmem:[%s1093] sm:$0xff]
    %v3144 = vld [vmem:[%s1093 + $0x8] sm:$0xff]
    %v3145 = vld [vmem:[%s1093 + $0x10] sm:$0xff]
    %v3146 = vld [vmem:[%s1093 + $0x18] sm:$0xff]
    %3147 = vmatpush.msra.mxu0 %v3139
    %3148 = vmatpush.msra.mxu0 %v3135
    %3149 = vmatpush.msra.mxu0 %v3131
    %3150 = vmatpush.msra.mxu0 %v3127
    %3151 = vmatpush.msra.mxu0 %v3123
    %3152 = vmatpush.msra.mxu0 %v3119
    %3153 = vmatpush.msra.mxu0 %v3115
    %3154 = vmatpush.msra.mxu0 %v3111
    %3155 = vmatpush.msra.mxu0 %v3107
    %3156 = vmatpush.msra.mxu0 %v3103
    %3157 = vmatpush.msra.mxu0 %v3099
    %3158 = vmatpush.msra.mxu0 %v3095
    %3159 = vmatpush.msra.mxu0 %v3091
    %3160 = vmatpush.msra.mxu0 %v3087
    %3161 = vmatpush.msra.mxu0 %v3083
    %3162 = vmatpush.msra.mxu0 %v3079
    %3163 = vmatmul.f32.gmra.mxu0 %v3077
    %v3164 = vpop.f32.mrf.mxu0
    %v3165 = vadd.f32 0.0, %v3164
    %3166 = vdwg.mxu0
    %3167 = vmatpush.msra.mxu0 %v3140
    %3168 = vmatpush.msra.mxu0 %v3136
    %3169 = vmatpush.msra.mxu0 %v3132
    %3170 = vmatpush.msra.mxu0 %v3128
    %3171 = vmatpush.msra.mxu0 %v3124
    %3172 = vmatpush.msra.mxu0 %v3120
    %3173 = vmatpush.msra.mxu0 %v3116
    %3174 = vmatpush.msra.mxu0 %v3112
    %3175 = vmatpush.msra.mxu0 %v3108
    %3176 = vmatpush.msra.mxu0 %v3104
    %3177 = vmatpush.msra.mxu0 %v3100
    %3178 = vmatpush.msra.mxu0 %v3096
    %3179 = vmatpush.msra.mxu0 %v3092
    %3180 = vmatpush.msra.mxu0 %v3088
    %3181 = vmatpush.msra.mxu0 %v3084
    %3182 = vmatpush.msra.mxu0 %v3080
    %3183 = vmatmul.f32.gmra.mxu0 %v3077
    %v3184 = vpop.f32.mrf.mxu0
    %v3185 = vadd.f32 0.0, %v3184
    %3186 = vdwg.mxu0
    %3187 = vmatpush.msra.mxu0 %v3141
    %3188 = vmatpush.msra.mxu0 %v3137
    %3189 = vmatpush.msra.mxu0 %v3133
    %3190 = vmatpush.msra.mxu0 %v3129
    %3191 = vmatpush.msra.mxu0 %v3125
    %3192 = vmatpush.msra.mxu0 %v3121
    %3193 = vmatpush.msra.mxu0 %v3117
    %3194 = vmatpush.msra.mxu0 %v3113
    %3195 = vmatpush.msra.mxu0 %v3109
    %3196 = vmatpush.msra.mxu0 %v3105
    %3197 = vmatpush.msra.mxu0 %v3101
    %3198 = vmatpush.msra.mxu0 %v3097
    %3199 = vmatpush.msra.mxu0 %v3093
    %3200 = vmatpush.msra.mxu0 %v3089
    %3201 = vmatpush.msra.mxu0 %v3085
    %3202 = vmatpush.msra.mxu0 %v3081
    %3203 = vmatmul.f32.gmra.mxu0 %v3077
    %v3204 = vpop.f32.mrf.mxu0
    %v3205 = vadd.f32 0.0, %v3204
    %3206 = vdwg.mxu0
    %3207 = vmatpush.msra.mxu0 %v3142
    %3208 = vmatpush.msra.mxu0 %v3138
    %3209 = vmatpush.msra.mxu0 %v3134
    %3210 = vmatpush.msra.mxu0 %v3130
    %3211 = vmatpush.msra.mxu0 %v3126
    %3212 = vmatpush.msra.mxu0 %v3122
    %3213 = vmatpush.msra.mxu0 %v3118
    %3214 = vmatpush.msra.mxu0 %v3114
    %3215 = vmatpush.msra.mxu0 %v3110
    %3216 = vmatpush.msra.mxu0 %v3106
    %3217 = vmatpush.msra.mxu0 %v3102
    %3218 = vmatpush.msra.mxu0 %v3098
    %3219 = vmatpush.msra.mxu0 %v3094
    %3220 = vmatpush.msra.mxu0 %v3090
    %3221 = vmatpush.msra.mxu0 %v3086
    %3222 = vmatpush.msra.mxu0 %v3082
    %3223 = vmatmul.f32.gmra.mxu0 %v3077
    %v3224 = vpop.f32.mrf.mxu0
    %v3225 = vadd.f32 0.0, %v3224
    %3226 = vdwg.mxu0
    %v3227 = vadd.f32 %v3143, %v3165
    %v3228 = vadd.f32 %v3144, %v3185
    %v3229 = vadd.f32 %v3145, %v3205
    %v3230 = vadd.f32 %v3146, %v3225
    %v3231 = vxor.u32 %v3227, 2147483648
    %v3232 = vmul.f32 %v3231, 1.442695
    %v3233 = vpow.pop %v3232
    %v3234 = vadd.f32 %v3233, 1.0
    %v3235 = vrcp.pop %v3234
    %v3236 = vmul.f32 %v3234, %v3235
    %v3237 = vsub.f32 1.0, %v3236
    %v3238 = vmul.f32 %v3235, %v3237
    %v3239 = vadd.f32 %v3235, %v3238
    %vm3240 = vweird.f32 %v3234
    %vm3241 = vweird.f32 %v3235
    %vm3242 = vmor %vm3240, %vm3241
    %v3243 = vsel %vm3242, %v3235, %v3239
    %v3244 = vand.u32 2147483647, %v3234
    %vm3245 = vcmp.eq.f32.partialorder %v3244, 8.507059e+37
    %v3246 = vand.u32 %v3234, 2147483648
    %v3247 = vor.u32 1.1754944e-38, %v3246
    %v3248 = vsel %vm3245, %v3247, %v3243
    %v3249 = vmul.f32 1.0, %v3248
    %v3250 = vxor.u32 %v3228, 2147483648
    %v3251 = vmul.f32 %v3250, 1.442695
    %v3252 = vpow.pop %v3251
    %v3253 = vadd.f32 %v3252, 1.0
    %v3254 = vrcp.pop %v3253
    %v3255 = vmul.f32 %v3253, %v3254
    %v3256 = vsub.f32 1.0, %v3255
    %v3257 = vmul.f32 %v3254, %v3256
    %v3258 = vadd.f32 %v3254, %v3257
    %vm3259 = vweird.f32 %v3253
    %vm3260 = vweird.f32 %v3254
    %vm3261 = vmor %vm3259, %vm3260
    %v3262 = vsel %vm3261, %v3254, %v3258
    %v3263 = vand.u32 2147483647, %v3253
    %vm3264 = vcmp.eq.f32.partialorder %v3263, 8.507059e+37
    %v3265 = vand.u32 %v3253, 2147483648
    %v3266 = vor.u32 1.1754944e-38, %v3265
    %v3267 = vsel %vm3264, %v3266, %v3262
    %v3268 = vmul.f32 1.0, %v3267
    %v3269 = vtanh.pop %v3229
    %v3270 = vxor.u32 %v3230, 2147483648
    %v3271 = vmul.f32 %v3270, 1.442695
    %v3272 = vpow.pop %v3271
    %v3273 = vadd.f32 %v3272, 1.0
    %v3274 = vrcp.pop %v3273
    %v3275 = vmul.f32 %v3273, %v3274
    %v3276 = vsub.f32 1.0, %v3275
    %v3277 = vmul.f32 %v3274, %v3276
    %v3278 = vadd.f32 %v3274, %v3277
    %vm3279 = vweird.f32 %v3273
    %vm3280 = vweird.f32 %v3274
    %vm3281 = vmor %vm3279, %vm3280
    %v3282 = vsel %vm3281, %v3274, %v3278
    %v3283 = vand.u32 2147483647, %v3273
    %vm3284 = vcmp.eq.f32.partialorder %v3283, 8.507059e+37
    %v3285 = vand.u32 %v3273, 2147483648
    %v3286 = vor.u32 1.1754944e-38, %v3285
    %v3287 = vsel %vm3284, %v3286, %v3282
    %v3288 = vmul.f32 1.0, %v3287
    %v3289 = vmul.f32 %v3268, %v3078
    %v3290 = vmul.f32 %v3249, %v3269
    %v3291 = vadd.f32 %v3289, %v3290
    %v3292 = vtanh.pop %v3291
    %v3293 = vmul.f32 %v3288, %v3292
    %3294 = vst [vmem:[%s2417] sm:$0xff] %v3291
    %3295 = vst [vmem:[%s2415] sm:$0xff] %v3293
    %3296 = vst [vmem:[%s1247] sm:$0xff] %v3293
    %v3297 = vld [vmem:[%s2415] sm:$0xff]
    %v3298 = vld [vmem:[%s2417] sm:$0xff]
    %v3299 = vld [vmem:[#allocation11] sm:$0xff]
    %v3300 = vld [vmem:[#allocation11 + $0x8] sm:$0xff]
    %v3301 = vld [vmem:[#allocation11 + $0x10] sm:$0xff]
    %v3302 = vld [vmem:[#allocation11 + $0x18] sm:$0xff]
    %v3303 = vld [vmem:[#allocation11 + $0x20] sm:$0xff]
    %v3304 = vld [vmem:[#allocation11 + $0x28] sm:$0xff]
    %v3305 = vld [vmem:[#allocation11 + $0x30] sm:$0xff]
    %v3306 = vld [vmem:[#allocation11 + $0x38] sm:$0xff]
    %v3307 = vld [vmem:[#allocation11 + $0x40] sm:$0xff]
    %v3308 = vld [vmem:[#allocation11 + $0x48] sm:$0xff]
    %v3309 = vld [vmem:[#allocation11 + $0x50] sm:$0xff]
    %v3310 = vld [vmem:[#allocation11 + $0x58] sm:$0xff]
    %v3311 = vld [vmem:[#allocation11 + $0x60] sm:$0xff]
    %v3312 = vld [vmem:[#allocation11 + $0x68] sm:$0xff]
    %v3313 = vld [vmem:[#allocation11 + $0x70] sm:$0xff]
    %v3314 = vld [vmem:[#allocation11 + $0x78] sm:$0xff]
    %v3315 = vld [vmem:[#allocation11 + $0x80] sm:$0xff]
    %v3316 = vld [vmem:[#allocation11 + $0x88] sm:$0xff]
    %v3317 = vld [vmem:[#allocation11 + $0x90] sm:$0xff]
    %v3318 = vld [vmem:[#allocation11 + $0x98] sm:$0xff]
    %v3319 = vld [vmem:[#allocation11 + $0xa0] sm:$0xff]
    %v3320 = vld [vmem:[#allocation11 + $0xa8] sm:$0xff]
    %v3321 = vld [vmem:[#allocation11 + $0xb0] sm:$0xff]
    %v3322 = vld [vmem:[#allocation11 + $0xb8] sm:$0xff]
    %v3323 = vld [vmem:[#allocation11 + $0xc0] sm:$0xff]
    %v3324 = vld [vmem:[#allocation11 + $0xc8] sm:$0xff]
    %v3325 = vld [vmem:[#allocation11 + $0xd0] sm:$0xff]
    %v3326 = vld [vmem:[#allocation11 + $0xd8] sm:$0xff]
    %v3327 = vld [vmem:[#allocation11 + $0xe0] sm:$0xff]
    %v3328 = vld [vmem:[#allocation11 + $0xe8] sm:$0xff]
    %v3329 = vld [vmem:[#allocation11 + $0xf0] sm:$0xff]
    %v3330 = vld [vmem:[#allocation11 + $0xf8] sm:$0xff]
    %v3331 = vld [vmem:[#allocation11 + $0x100] sm:$0xff]
    %v3332 = vld [vmem:[#allocation11 + $0x108] sm:$0xff]
    %v3333 = vld [vmem:[#allocation11 + $0x110] sm:$0xff]
    %v3334 = vld [vmem:[#allocation11 + $0x118] sm:$0xff]
    %v3335 = vld [vmem:[#allocation11 + $0x120] sm:$0xff]
    %v3336 = vld [vmem:[#allocation11 + $0x128] sm:$0xff]
    %v3337 = vld [vmem:[#allocation11 + $0x130] sm:$0xff]
    %v3338 = vld [vmem:[#allocation11 + $0x138] sm:$0xff]
    %v3339 = vld [vmem:[#allocation11 + $0x140] sm:$0xff]
    %v3340 = vld [vmem:[#allocation11 + $0x148] sm:$0xff]
    %v3341 = vld [vmem:[#allocation11 + $0x150] sm:$0xff]
    %v3342 = vld [vmem:[#allocation11 + $0x158] sm:$0xff]
    %v3343 = vld [vmem:[#allocation11 + $0x160] sm:$0xff]
    %v3344 = vld [vmem:[#allocation11 + $0x168] sm:$0xff]
    %v3345 = vld [vmem:[#allocation11 + $0x170] sm:$0xff]
    %v3346 = vld [vmem:[#allocation11 + $0x178] sm:$0xff]
    %v3347 = vld [vmem:[#allocation11 + $0x180] sm:$0xff]
    %v3348 = vld [vmem:[#allocation11 + $0x188] sm:$0xff]
    %v3349 = vld [vmem:[#allocation11 + $0x190] sm:$0xff]
    %v3350 = vld [vmem:[#allocation11 + $0x198] sm:$0xff]
    %v3351 = vld [vmem:[#allocation11 + $0x1a0] sm:$0xff]
    %v3352 = vld [vmem:[#allocation11 + $0x1a8] sm:$0xff]
    %v3353 = vld [vmem:[#allocation11 + $0x1b0] sm:$0xff]
    %v3354 = vld [vmem:[#allocation11 + $0x1b8] sm:$0xff]
    %v3355 = vld [vmem:[#allocation11 + $0x1c0] sm:$0xff]
    %v3356 = vld [vmem:[#allocation11 + $0x1c8] sm:$0xff]
    %v3357 = vld [vmem:[#allocation11 + $0x1d0] sm:$0xff]
    %v3358 = vld [vmem:[#allocation11 + $0x1d8] sm:$0xff]
    %v3359 = vld [vmem:[#allocation11 + $0x1e0] sm:$0xff]
    %v3360 = vld [vmem:[#allocation11 + $0x1e8] sm:$0xff]
    %v3361 = vld [vmem:[#allocation11 + $0x1f0] sm:$0xff]
    %v3362 = vld [vmem:[#allocation11 + $0x1f8] sm:$0xff]
    %v3363 = vld [vmem:[%s1315] sm:$0xff]
    %v3364 = vld [vmem:[%s1315 + $0x8] sm:$0xff]
    %v3365 = vld [vmem:[%s1315 + $0x10] sm:$0xff]
    %v3366 = vld [vmem:[%s1315 + $0x18] sm:$0xff]
    %3367 = vmatpush.msra.mxu0 %v3359
    %3368 = vmatpush.msra.mxu0 %v3355
    %3369 = vmatpush.msra.mxu0 %v3351
    %3370 = vmatpush.msra.mxu0 %v3347
    %3371 = vmatpush.msra.mxu0 %v3343
    %3372 = vmatpush.msra.mxu0 %v3339
    %3373 = vmatpush.msra.mxu0 %v3335
    %3374 = vmatpush.msra.mxu0 %v3331
    %3375 = vmatpush.msra.mxu0 %v3327
    %3376 = vmatpush.msra.mxu0 %v3323
    %3377 = vmatpush.msra.mxu0 %v3319
    %3378 = vmatpush.msra.mxu0 %v3315
    %3379 = vmatpush.msra.mxu0 %v3311
    %3380 = vmatpush.msra.mxu0 %v3307
    %3381 = vmatpush.msra.mxu0 %v3303
    %3382 = vmatpush.msra.mxu0 %v3299
    %3383 = vmatmul.f32.gmra.mxu0 %v3297
    %v3384 = vpop.f32.mrf.mxu0
    %v3385 = vadd.f32 0.0, %v3384
    %3386 = vdwg.mxu0
    %3387 = vmatpush.msra.mxu0 %v3360
    %3388 = vmatpush.msra.mxu0 %v3356
    %3389 = vmatpush.msra.mxu0 %v3352
    %3390 = vmatpush.msra.mxu0 %v3348
    %3391 = vmatpush.msra.mxu0 %v3344
    %3392 = vmatpush.msra.mxu0 %v3340
    %3393 = vmatpush.msra.mxu0 %v3336
    %3394 = vmatpush.msra.mxu0 %v3332
    %3395 = vmatpush.msra.mxu0 %v3328
    %3396 = vmatpush.msra.mxu0 %v3324
    %3397 = vmatpush.msra.mxu0 %v3320
    %3398 = vmatpush.msra.mxu0 %v3316
    %3399 = vmatpush.msra.mxu0 %v3312
    %3400 = vmatpush.msra.mxu0 %v3308
    %3401 = vmatpush.msra.mxu0 %v3304
    %3402 = vmatpush.msra.mxu0 %v3300
    %3403 = vmatmul.f32.gmra.mxu0 %v3297
    %v3404 = vpop.f32.mrf.mxu0
    %v3405 = vadd.f32 0.0, %v3404
    %3406 = vdwg.mxu0
    %3407 = vmatpush.msra.mxu0 %v3361
    %3408 = vmatpush.msra.mxu0 %v3357
    %3409 = vmatpush.msra.mxu0 %v3353
    %3410 = vmatpush.msra.mxu0 %v3349
    %3411 = vmatpush.msra.mxu0 %v3345
    %3412 = vmatpush.msra.mxu0 %v3341
    %3413 = vmatpush.msra.mxu0 %v3337
    %3414 = vmatpush.msra.mxu0 %v3333
    %3415 = vmatpush.msra.mxu0 %v3329
    %3416 = vmatpush.msra.mxu0 %v3325
    %3417 = vmatpush.msra.mxu0 %v3321
    %3418 = vmatpush.msra.mxu0 %v3317
    %3419 = vmatpush.msra.mxu0 %v3313
    %3420 = vmatpush.msra.mxu0 %v3309
    %3421 = vmatpush.msra.mxu0 %v3305
    %3422 = vmatpush.msra.mxu0 %v3301
    %3423 = vmatmul.f32.gmra.mxu0 %v3297
    %v3424 = vpop.f32.mrf.mxu0
    %v3425 = vadd.f32 0.0, %v3424
    %3426 = vdwg.mxu0
    %3427 = vmatpush.msra.mxu0 %v3362
    %3428 = vmatpush.msra.mxu0 %v3358
    %3429 = vmatpush.msra.mxu0 %v3354
    %3430 = vmatpush.msra.mxu0 %v3350
    %3431 = vmatpush.msra.mxu0 %v3346
    %3432 = vmatpush.msra.mxu0 %v3342
    %3433 = vmatpush.msra.mxu0 %v3338
    %3434 = vmatpush.msra.mxu0 %v3334
    %3435 = vmatpush.msra.mxu0 %v3330
    %3436 = vmatpush.msra.mxu0 %v3326
    %3437 = vmatpush.msra.mxu0 %v3322
    %3438 = vmatpush.msra.mxu0 %v3318
    %3439 = vmatpush.msra.mxu0 %v3314
    %3440 = vmatpush.msra.mxu0 %v3310
    %3441 = vmatpush.msra.mxu0 %v3306
    %3442 = vmatpush.msra.mxu0 %v3302
    %3443 = vmatmul.f32.gmra.mxu0 %v3297
    %v3444 = vpop.f32.mrf.mxu0
    %v3445 = vadd.f32 0.0, %v3444
    %3446 = vdwg.mxu0
    %v3447 = vadd.f32 %v3363, %v3385
    %v3448 = vadd.f32 %v3364, %v3405
    %v3449 = vadd.f32 %v3365, %v3425
    %v3450 = vadd.f32 %v3366, %v3445
    %v3451 = vxor.u32 %v3447, 2147483648
    %v3452 = vmul.f32 %v3451, 1.442695
    %v3453 = vpow.pop %v3452
    %v3454 = vadd.f32 %v3453, 1.0
    %v3455 = vrcp.pop %v3454
    %v3456 = vmul.f32 %v3454, %v3455
    %v3457 = vsub.f32 1.0, %v3456
    %v3458 = vmul.f32 %v3455, %v3457
    %v3459 = vadd.f32 %v3455, %v3458
    %vm3460 = vweird.f32 %v3454
    %vm3461 = vweird.f32 %v3455
    %vm3462 = vmor %vm3460, %vm3461
    %v3463 = vsel %vm3462, %v3455, %v3459
    %v3464 = vand.u32 2147483647, %v3454
    %vm3465 = vcmp.eq.f32.partialorder %v3464, 8.507059e+37
    %v3466 = vand.u32 %v3454, 2147483648
    %v3467 = vor.u32 1.1754944e-38, %v3466
    %v3468 = vsel %vm3465, %v3467, %v3463
    %v3469 = vmul.f32 1.0, %v3468
    %v3470 = vxor.u32 %v3448, 2147483648
    %v3471 = vmul.f32 %v3470, 1.442695
    %v3472 = vpow.pop %v3471
    %v3473 = vadd.f32 %v3472, 1.0
    %v3474 = vrcp.pop %v3473
    %v3475 = vmul.f32 %v3473, %v3474
    %v3476 = vsub.f32 1.0, %v3475
    %v3477 = vmul.f32 %v3474, %v3476
    %v3478 = vadd.f32 %v3474, %v3477
    %vm3479 = vweird.f32 %v3473
    %vm3480 = vweird.f32 %v3474
    %vm3481 = vmor %vm3479, %vm3480
    %v3482 = vsel %vm3481, %v3474, %v3478
    %v3483 = vand.u32 2147483647, %v3473
    %vm3484 = vcmp.eq.f32.partialorder %v3483, 8.507059e+37
    %v3485 = vand.u32 %v3473, 2147483648
    %v3486 = vor.u32 1.1754944e-38, %v3485
    %v3487 = vsel %vm3484, %v3486, %v3482
    %v3488 = vmul.f32 1.0, %v3487
    %v3489 = vtanh.pop %v3449
    %v3490 = vxor.u32 %v3450, 2147483648
    %v3491 = vmul.f32 %v3490, 1.442695
    %v3492 = vpow.pop %v3491
    %v3493 = vadd.f32 %v3492, 1.0
    %v3494 = vrcp.pop %v3493
    %v3495 = vmul.f32 %v3493, %v3494
    %v3496 = vsub.f32 1.0, %v3495
    %v3497 = vmul.f32 %v3494, %v3496
    %v3498 = vadd.f32 %v3494, %v3497
    %vm3499 = vweird.f32 %v3493
    %vm3500 = vweird.f32 %v3494
    %vm3501 = vmor %vm3499, %vm3500
    %v3502 = vsel %vm3501, %v3494, %v3498
    %v3503 = vand.u32 2147483647, %v3493
    %vm3504 = vcmp.eq.f32.partialorder %v3503, 8.507059e+37
    %v3505 = vand.u32 %v3493, 2147483648
    %v3506 = vor.u32 1.1754944e-38, %v3505
    %v3507 = vsel %vm3504, %v3506, %v3502
    %v3508 = vmul.f32 1.0, %v3507
    %v3509 = vmul.f32 %v3488, %v3298
    %v3510 = vmul.f32 %v3469, %v3489
    %v3511 = vadd.f32 %v3509, %v3510
    %v3512 = vtanh.pop %v3511
    %v3513 = vmul.f32 %v3508, %v3512
    %3514 = vst [vmem:[%s2417] sm:$0xff] %v3511
    %3515 = vst [vmem:[%s2415] sm:$0xff] %v3513
    %3516 = vst [vmem:[%s1469] sm:$0xff] %v3513
    %v3517 = vld [vmem:[%s2415] sm:$0xff]
    %v3518 = vld [vmem:[%s2417] sm:$0xff]
    %v3519 = vld [vmem:[#allocation11] sm:$0xff]
    %v3520 = vld [vmem:[#allocation11 + $0x8] sm:$0xff]
    %v3521 = vld [vmem:[#allocation11 + $0x10] sm:$0xff]
    %v3522 = vld [vmem:[#allocation11 + $0x18] sm:$0xff]
    %v3523 = vld [vmem:[#allocation11 + $0x20] sm:$0xff]
    %v3524 = vld [vmem:[#allocation11 + $0x28] sm:$0xff]
    %v3525 = vld [vmem:[#allocation11 + $0x30] sm:$0xff]
    %v3526 = vld [vmem:[#allocation11 + $0x38] sm:$0xff]
    %v3527 = vld [vmem:[#allocation11 + $0x40] sm:$0xff]
    %v3528 = vld [vmem:[#allocation11 + $0x48] sm:$0xff]
    %v3529 = vld [vmem:[#allocation11 + $0x50] sm:$0xff]
    %v3530 = vld [vmem:[#allocation11 + $0x58] sm:$0xff]
    %v3531 = vld [vmem:[#allocation11 + $0x60] sm:$0xff]
    %v3532 = vld [vmem:[#allocation11 + $0x68] sm:$0xff]
    %v3533 = vld [vmem:[#allocation11 + $0x70] sm:$0xff]
    %v3534 = vld [vmem:[#allocation11 + $0x78] sm:$0xff]
    %v3535 = vld [vmem:[#allocation11 + $0x80] sm:$0xff]
    %v3536 = vld [vmem:[#allocation11 + $0x88] sm:$0xff]
    %v3537 = vld [vmem:[#allocation11 + $0x90] sm:$0xff]
    %v3538 = vld [vmem:[#allocation11 + $0x98] sm:$0xff]
    %v3539 = vld [vmem:[#allocation11 + $0xa0] sm:$0xff]
    %v3540 = vld [vmem:[#allocation11 + $0xa8] sm:$0xff]
    %v3541 = vld [vmem:[#allocation11 + $0xb0] sm:$0xff]
    %v3542 = vld [vmem:[#allocation11 + $0xb8] sm:$0xff]
    %v3543 = vld [vmem:[#allocation11 + $0xc0] sm:$0xff]
    %v3544 = vld [vmem:[#allocation11 + $0xc8] sm:$0xff]
    %v3545 = vld [vmem:[#allocation11 + $0xd0] sm:$0xff]
    %v3546 = vld [vmem:[#allocation11 + $0xd8] sm:$0xff]
    %v3547 = vld [vmem:[#allocation11 + $0xe0] sm:$0xff]
    %v3548 = vld [vmem:[#allocation11 + $0xe8] sm:$0xff]
    %v3549 = vld [vmem:[#allocation11 + $0xf0] sm:$0xff]
    %v3550 = vld [vmem:[#allocation11 + $0xf8] sm:$0xff]
    %v3551 = vld [vmem:[#allocation11 + $0x100] sm:$0xff]
    %v3552 = vld [vmem:[#allocation11 + $0x108] sm:$0xff]
    %v3553 = vld [vmem:[#allocation11 + $0x110] sm:$0xff]
    %v3554 = vld [vmem:[#allocation11 + $0x118] sm:$0xff]
    %v3555 = vld [vmem:[#allocation11 + $0x120] sm:$0xff]
    %v3556 = vld [vmem:[#allocation11 + $0x128] sm:$0xff]
    %v3557 = vld [vmem:[#allocation11 + $0x130] sm:$0xff]
    %v3558 = vld [vmem:[#allocation11 + $0x138] sm:$0xff]
    %v3559 = vld [vmem:[#allocation11 + $0x140] sm:$0xff]
    %v3560 = vld [vmem:[#allocation11 + $0x148] sm:$0xff]
    %v3561 = vld [vmem:[#allocation11 + $0x150] sm:$0xff]
    %v3562 = vld [vmem:[#allocation11 + $0x158] sm:$0xff]
    %v3563 = vld [vmem:[#allocation11 + $0x160] sm:$0xff]
    %v3564 = vld [vmem:[#allocation11 + $0x168] sm:$0xff]
    %v3565 = vld [vmem:[#allocation11 + $0x170] sm:$0xff]
    %v3566 = vld [vmem:[#allocation11 + $0x178] sm:$0xff]
    %v3567 = vld [vmem:[#allocation11 + $0x180] sm:$0xff]
    %v3568 = vld [vmem:[#allocation11 + $0x188] sm:$0xff]
    %v3569 = vld [vmem:[#allocation11 + $0x190] sm:$0xff]
    %v3570 = vld [vmem:[#allocation11 + $0x198] sm:$0xff]
    %v3571 = vld [vmem:[#allocation11 + $0x1a0] sm:$0xff]
    %v3572 = vld [vmem:[#allocation11 + $0x1a8] sm:$0xff]
    %v3573 = vld [vmem:[#allocation11 + $0x1b0] sm:$0xff]
    %v3574 = vld [vmem:[#allocation11 + $0x1b8] sm:$0xff]
    %v3575 = vld [vmem:[#allocation11 + $0x1c0] sm:$0xff]
    %v3576 = vld [vmem:[#allocation11 + $0x1c8] sm:$0xff]
    %v3577 = vld [vmem:[#allocation11 + $0x1d0] sm:$0xff]
    %v3578 = vld [vmem:[#allocation11 + $0x1d8] sm:$0xff]
    %v3579 = vld [vmem:[#allocation11 + $0x1e0] sm:$0xff]
    %v3580 = vld [vmem:[#allocation11 + $0x1e8] sm:$0xff]
    %v3581 = vld [vmem:[#allocation11 + $0x1f0] sm:$0xff]
    %v3582 = vld [vmem:[#allocation11 + $0x1f8] sm:$0xff]
    %v3583 = vld [vmem:[%s1537] sm:$0xff]
    %v3584 = vld [vmem:[%s1537 + $0x8] sm:$0xff]
    %v3585 = vld [vmem:[%s1537 + $0x10] sm:$0xff]
    %v3586 = vld [vmem:[%s1537 + $0x18] sm:$0xff]
    %3587 = vmatpush.msra.mxu0 %v3579
    %3588 = vmatpush.msra.mxu0 %v3575
    %3589 = vmatpush.msra.mxu0 %v3571
    %3590 = vmatpush.msra.mxu0 %v3567
    %3591 = vmatpush.msra.mxu0 %v3563
    %3592 = vmatpush.msra.mxu0 %v3559
    %3593 = vmatpush.msra.mxu0 %v3555
    %3594 = vmatpush.msra.mxu0 %v3551
    %3595 = vmatpush.msra.mxu0 %v3547
    %3596 = vmatpush.msra.mxu0 %v3543
    %3597 = vmatpush.msra.mxu0 %v3539
    %3598 = vmatpush.msra.mxu0 %v3535
    %3599 = vmatpush.msra.mxu0 %v3531
    %3600 = vmatpush.msra.mxu0 %v3527
    %3601 = vmatpush.msra.mxu0 %v3523
    %3602 = vmatpush.msra.mxu0 %v3519
    %3603 = vmatmul.f32.gmra.mxu0 %v3517
    %v3604 = vpop.f32.mrf.mxu0
    %v3605 = vadd.f32 0.0, %v3604
    %3606 = vdwg.mxu0
    %3607 = vmatpush.msra.mxu0 %v3580
    %3608 = vmatpush.msra.mxu0 %v3576
    %3609 = vmatpush.msra.mxu0 %v3572
    %3610 = vmatpush.msra.mxu0 %v3568
    %3611 = vmatpush.msra.mxu0 %v3564
    %3612 = vmatpush.msra.mxu0 %v3560
    %3613 = vmatpush.msra.mxu0 %v3556
    %3614 = vmatpush.msra.mxu0 %v3552
    %3615 = vmatpush.msra.mxu0 %v3548
    %3616 = vmatpush.msra.mxu0 %v3544
    %3617 = vmatpush.msra.mxu0 %v3540
    %3618 = vmatpush.msra.mxu0 %v3536
    %3619 = vmatpush.msra.mxu0 %v3532
    %3620 = vmatpush.msra.mxu0 %v3528
    %3621 = vmatpush.msra.mxu0 %v3524
    %3622 = vmatpush.msra.mxu0 %v3520
    %3623 = vmatmul.f32.gmra.mxu0 %v3517
    %v3624 = vpop.f32.mrf.mxu0
    %v3625 = vadd.f32 0.0, %v3624
    %3626 = vdwg.mxu0
    %3627 = vmatpush.msra.mxu0 %v3581
    %3628 = vmatpush.msra.mxu0 %v3577
    %3629 = vmatpush.msra.mxu0 %v3573
    %3630 = vmatpush.msra.mxu0 %v3569
    %3631 = vmatpush.msra.mxu0 %v3565
    %3632 = vmatpush.msra.mxu0 %v3561
    %3633 = vmatpush.msra.mxu0 %v3557
    %3634 = vmatpush.msra.mxu0 %v3553
    %3635 = vmatpush.msra.mxu0 %v3549
    %3636 = vmatpush.msra.mxu0 %v3545
    %3637 = vmatpush.msra.mxu0 %v3541
    %3638 = vmatpush.msra.mxu0 %v3537
    %3639 = vmatpush.msra.mxu0 %v3533
    %3640 = vmatpush.msra.mxu0 %v3529
    %3641 = vmatpush.msra.mxu0 %v3525
    %3642 = vmatpush.msra.mxu0 %v3521
    %3643 = vmatmul.f32.gmra.mxu0 %v3517
    %v3644 = vpop.f32.mrf.mxu0
    %v3645 = vadd.f32 0.0, %v3644
    %3646 = vdwg.mxu0
    %3647 = vmatpush.msra.mxu0 %v3582
    %3648 = vmatpush.msra.mxu0 %v3578
    %3649 = vmatpush.msra.mxu0 %v3574
    %3650 = vmatpush.msra.mxu0 %v3570
    %3651 = vmatpush.msra.mxu0 %v3566
    %3652 = vmatpush.msra.mxu0 %v3562
    %3653 = vmatpush.msra.mxu0 %v3558
    %3654 = vmatpush.msra.mxu0 %v3554
    %3655 = vmatpush.msra.mxu0 %v3550
    %3656 = vmatpush.msra.mxu0 %v3546
    %3657 = vmatpush.msra.mxu0 %v3542
    %3658 = vmatpush.msra.mxu0 %v3538
    %3659 = vmatpush.msra.mxu0 %v3534
    %3660 = vmatpush.msra.mxu0 %v3530
    %3661 = vmatpush.msra.mxu0 %v3526
    %3662 = vmatpush.msra.mxu0 %v3522
    %3663 = vmatmul.f32.gmra.mxu0 %v3517
    %v3664 = vpop.f32.mrf.mxu0
    %v3665 = vadd.f32 0.0, %v3664
    %3666 = vdwg.mxu0
    %v3667 = vadd.f32 %v3583, %v3605
    %v3668 = vadd.f32 %v3584, %v3625
    %v3669 = vadd.f32 %v3585, %v3645
    %v3670 = vadd.f32 %v3586, %v3665
    %v3671 = vxor.u32 %v3667, 2147483648
    %v3672 = vmul.f32 %v3671, 1.442695
    %v3673 = vpow.pop %v3672
    %v3674 = vadd.f32 %v3673, 1.0
    %v3675 = vrcp.pop %v3674
    %v3676 = vmul.f32 %v3674, %v3675
    %v3677 = vsub.f32 1.0, %v3676
    %v3678 = vmul.f32 %v3675, %v3677
    %v3679 = vadd.f32 %v3675, %v3678
    %vm3680 = vweird.f32 %v3674
    %vm3681 = vweird.f32 %v3675
    %vm3682 = vmor %vm3680, %vm3681
    %v3683 = vsel %vm3682, %v3675, %v3679
    %v3684 = vand.u32 2147483647, %v3674
    %vm3685 = vcmp.eq.f32.partialorder %v3684, 8.507059e+37
    %v3686 = vand.u32 %v3674, 2147483648
    %v3687 = vor.u32 1.1754944e-38, %v3686
    %v3688 = vsel %vm3685, %v3687, %v3683
    %v3689 = vmul.f32 1.0, %v3688
    %v3690 = vxor.u32 %v3668, 2147483648
    %v3691 = vmul.f32 %v3690, 1.442695
    %v3692 = vpow.pop %v3691
    %v3693 = vadd.f32 %v3692, 1.0
    %v3694 = vrcp.pop %v3693
    %v3695 = vmul.f32 %v3693, %v3694
    %v3696 = vsub.f32 1.0, %v3695
    %v3697 = vmul.f32 %v3694, %v3696
    %v3698 = vadd.f32 %v3694, %v3697
    %vm3699 = vweird.f32 %v3693
    %vm3700 = vweird.f32 %v3694
    %vm3701 = vmor %vm3699, %vm3700
    %v3702 = vsel %vm3701, %v3694, %v3698
    %v3703 = vand.u32 2147483647, %v3693
    %vm3704 = vcmp.eq.f32.partialorder %v3703, 8.507059e+37
    %v3705 = vand.u32 %v3693, 2147483648
    %v3706 = vor.u32 1.1754944e-38, %v3705
    %v3707 = vsel %vm3704, %v3706, %v3702
    %v3708 = vmul.f32 1.0, %v3707
    %v3709 = vtanh.pop %v3669
    %v3710 = vxor.u32 %v3670, 2147483648
    %v3711 = vmul.f32 %v3710, 1.442695
    %v3712 = vpow.pop %v3711
    %v3713 = vadd.f32 %v3712, 1.0
    %v3714 = vrcp.pop %v3713
    %v3715 = vmul.f32 %v3713, %v3714
    %v3716 = vsub.f32 1.0, %v3715
    %v3717 = vmul.f32 %v3714, %v3716
    %v3718 = vadd.f32 %v3714, %v3717
    %vm3719 = vweird.f32 %v3713
    %vm3720 = vweird.f32 %v3714
    %vm3721 = vmor %vm3719, %vm3720
    %v3722 = vsel %vm3721, %v3714, %v3718
    %v3723 = vand.u32 2147483647, %v3713
    %vm3724 = vcmp.eq.f32.partialorder %v3723, 8.507059e+37
    %v3725 = vand.u32 %v3713, 2147483648
    %v3726 = vor.u32 1.1754944e-38, %v3725
    %v3727 = vsel %vm3724, %v3726, %v3722
    %v3728 = vmul.f32 1.0, %v3727
    %v3729 = vmul.f32 %v3708, %v3518
    %v3730 = vmul.f32 %v3689, %v3709
    %v3731 = vadd.f32 %v3729, %v3730
    %v3732 = vtanh.pop %v3731
    %v3733 = vmul.f32 %v3728, %v3732
    %3734 = vst [vmem:[%s2417] sm:$0xff] %v3731
    %3735 = vst [vmem:[%s2415] sm:$0xff] %v3733
    %3736 = vst [vmem:[%s1691] sm:$0xff] %v3733
    %v3737 = vld [vmem:[%s2415] sm:$0xff]
    %v3738 = vld [vmem:[%s2417] sm:$0xff]
    %v3739 = vld [vmem:[#allocation11] sm:$0xff]
    %v3740 = vld [vmem:[#allocation11 + $0x8] sm:$0xff]
    %v3741 = vld [vmem:[#allocation11 + $0x10] sm:$0xff]
    %v3742 = vld [vmem:[#allocation11 + $0x18] sm:$0xff]
    %v3743 = vld [vmem:[#allocation11 + $0x20] sm:$0xff]
    %v3744 = vld [vmem:[#allocation11 + $0x28] sm:$0xff]
    %v3745 = vld [vmem:[#allocation11 + $0x30] sm:$0xff]
    %v3746 = vld [vmem:[#allocation11 + $0x38] sm:$0xff]
    %v3747 = vld [vmem:[#allocation11 + $0x40] sm:$0xff]
    %v3748 = vld [vmem:[#allocation11 + $0x48] sm:$0xff]
    %v3749 = vld [vmem:[#allocation11 + $0x50] sm:$0xff]
    %v3750 = vld [vmem:[#allocation11 + $0x58] sm:$0xff]
    %v3751 = vld [vmem:[#allocation11 + $0x60] sm:$0xff]
    %v3752 = vld [vmem:[#allocation11 + $0x68] sm:$0xff]
    %v3753 = vld [vmem:[#allocation11 + $0x70] sm:$0xff]
    %v3754 = vld [vmem:[#allocation11 + $0x78] sm:$0xff]
    %v3755 = vld [vmem:[#allocation11 + $0x80] sm:$0xff]
    %v3756 = vld [vmem:[#allocation11 + $0x88] sm:$0xff]
    %v3757 = vld [vmem:[#allocation11 + $0x90] sm:$0xff]
    %v3758 = vld [vmem:[#allocation11 + $0x98] sm:$0xff]
    %v3759 = vld [vmem:[#allocation11 + $0xa0] sm:$0xff]
    %v3760 = vld [vmem:[#allocation11 + $0xa8] sm:$0xff]
    %v3761 = vld [vmem:[#allocation11 + $0xb0] sm:$0xff]
    %v3762 = vld [vmem:[#allocation11 + $0xb8] sm:$0xff]
    %v3763 = vld [vmem:[#allocation11 + $0xc0] sm:$0xff]
    %v3764 = vld [vmem:[#allocation11 + $0xc8] sm:$0xff]
    %v3765 = vld [vmem:[#allocation11 + $0xd0] sm:$0xff]
    %v3766 = vld [vmem:[#allocation11 + $0xd8] sm:$0xff]
    %v3767 = vld [vmem:[#allocation11 + $0xe0] sm:$0xff]
    %v3768 = vld [vmem:[#allocation11 + $0xe8] sm:$0xff]
    %v3769 = vld [vmem:[#allocation11 + $0xf0] sm:$0xff]
    %v3770 = vld [vmem:[#allocation11 + $0xf8] sm:$0xff]
    %v3771 = vld [vmem:[#allocation11 + $0x100] sm:$0xff]
    %v3772 = vld [vmem:[#allocation11 + $0x108] sm:$0xff]
    %v3773 = vld [vmem:[#allocation11 + $0x110] sm:$0xff]
    %v3774 = vld [vmem:[#allocation11 + $0x118] sm:$0xff]
    %v3775 = vld [vmem:[#allocation11 + $0x120] sm:$0xff]
    %v3776 = vld [vmem:[#allocation11 + $0x128] sm:$0xff]
    %v3777 = vld [vmem:[#allocation11 + $0x130] sm:$0xff]
    %v3778 = vld [vmem:[#allocation11 + $0x138] sm:$0xff]
    %v3779 = vld [vmem:[#allocation11 + $0x140] sm:$0xff]
    %v3780 = vld [vmem:[#allocation11 + $0x148] sm:$0xff]
    %v3781 = vld [vmem:[#allocation11 + $0x150] sm:$0xff]
    %v3782 = vld [vmem:[#allocation11 + $0x158] sm:$0xff]
    %v3783 = vld [vmem:[#allocation11 + $0x160] sm:$0xff]
    %v3784 = vld [vmem:[#allocation11 + $0x168] sm:$0xff]
    %v3785 = vld [vmem:[#allocation11 + $0x170] sm:$0xff]
    %v3786 = vld [vmem:[#allocation11 + $0x178] sm:$0xff]
    %v3787 = vld [vmem:[#allocation11 + $0x180] sm:$0xff]
    %v3788 = vld [vmem:[#allocation11 + $0x188] sm:$0xff]
    %v3789 = vld [vmem:[#allocation11 + $0x190] sm:$0xff]
    %v3790 = vld [vmem:[#allocation11 + $0x198] sm:$0xff]
    %v3791 = vld [vmem:[#allocation11 + $0x1a0] sm:$0xff]
    %v3792 = vld [vmem:[#allocation11 + $0x1a8] sm:$0xff]
    %v3793 = vld [vmem:[#allocation11 + $0x1b0] sm:$0xff]
    %v3794 = vld [vmem:[#allocation11 + $0x1b8] sm:$0xff]
    %v3795 = vld [vmem:[#allocation11 + $0x1c0] sm:$0xff]
    %v3796 = vld [vmem:[#allocation11 + $0x1c8] sm:$0xff]
    %v3797 = vld [vmem:[#allocation11 + $0x1d0] sm:$0xff]
    %v3798 = vld [vmem:[#allocation11 + $0x1d8] sm:$0xff]
    %v3799 = vld [vmem:[#allocation11 + $0x1e0] sm:$0xff]
    %v3800 = vld [vmem:[#allocation11 + $0x1e8] sm:$0xff]
    %v3801 = vld [vmem:[#allocation11 + $0x1f0] sm:$0xff]
    %v3802 = vld [vmem:[#allocation11 + $0x1f8] sm:$0xff]
    %v3803 = vld [vmem:[%s1759] sm:$0xff]
    %v3804 = vld [vmem:[%s1759 + $0x8] sm:$0xff]
    %v3805 = vld [vmem:[%s1759 + $0x10] sm:$0xff]
    %v3806 = vld [vmem:[%s1759 + $0x18] sm:$0xff]
    %3807 = vmatpush.msra.mxu0 %v3799
    %3808 = vmatpush.msra.mxu0 %v3795
    %3809 = vmatpush.msra.mxu0 %v3791
    %3810 = vmatpush.msra.mxu0 %v3787
    %3811 = vmatpush.msra.mxu0 %v3783
    %3812 = vmatpush.msra.mxu0 %v3779
    %3813 = vmatpush.msra.mxu0 %v3775
    %3814 = vmatpush.msra.mxu0 %v3771
    %3815 = vmatpush.msra.mxu0 %v3767
    %3816 = vmatpush.msra.mxu0 %v3763
    %3817 = vmatpush.msra.mxu0 %v3759
    %3818 = vmatpush.msra.mxu0 %v3755
    %3819 = vmatpush.msra.mxu0 %v3751
    %3820 = vmatpush.msra.mxu0 %v3747
    %3821 = vmatpush.msra.mxu0 %v3743
    %3822 = vmatpush.msra.mxu0 %v3739
    %3823 = vmatmul.f32.gmra.mxu0 %v3737
    %v3824 = vpop.f32.mrf.mxu0
    %v3825 = vadd.f32 0.0, %v3824
    %3826 = vdwg.mxu0
    %3827 = vmatpush.msra.mxu0 %v3800
    %3828 = vmatpush.msra.mxu0 %v3796
    %3829 = vmatpush.msra.mxu0 %v3792
    %3830 = vmatpush.msra.mxu0 %v3788
    %3831 = vmatpush.msra.mxu0 %v3784
    %3832 = vmatpush.msra.mxu0 %v3780
    %3833 = vmatpush.msra.mxu0 %v3776
    %3834 = vmatpush.msra.mxu0 %v3772
    %3835 = vmatpush.msra.mxu0 %v3768
    %3836 = vmatpush.msra.mxu0 %v3764
    %3837 = vmatpush.msra.mxu0 %v3760
    %3838 = vmatpush.msra.mxu0 %v3756
    %3839 = vmatpush.msra.mxu0 %v3752
    %3840 = vmatpush.msra.mxu0 %v3748
    %3841 = vmatpush.msra.mxu0 %v3744
    %3842 = vmatpush.msra.mxu0 %v3740
    %3843 = vmatmul.f32.gmra.mxu0 %v3737
    %v3844 = vpop.f32.mrf.mxu0
    %v3845 = vadd.f32 0.0, %v3844
    %3846 = vdwg.mxu0
    %3847 = vmatpush.msra.mxu0 %v3801
    %3848 = vmatpush.msra.mxu0 %v3797
    %3849 = vmatpush.msra.mxu0 %v3793
    %3850 = vmatpush.msra.mxu0 %v3789
    %3851 = vmatpush.msra.mxu0 %v3785
    %3852 = vmatpush.msra.mxu0 %v3781
    %3853 = vmatpush.msra.mxu0 %v3777
    %3854 = vmatpush.msra.mxu0 %v3773
    %3855 = vmatpush.msra.mxu0 %v3769
    %3856 = vmatpush.msra.mxu0 %v3765
    %3857 = vmatpush.msra.mxu0 %v3761
    %3858 = vmatpush.msra.mxu0 %v3757
    %3859 = vmatpush.msra.mxu0 %v3753
    %3860 = vmatpush.msra.mxu0 %v3749
    %3861 = vmatpush.msra.mxu0 %v3745
    %3862 = vmatpush.msra.mxu0 %v3741
    %3863 = vmatmul.f32.gmra.mxu0 %v3737
    %v3864 = vpop.f32.mrf.mxu0
    %v3865 = vadd.f32 0.0, %v3864
    %3866 = vdwg.mxu0
    %3867 = vmatpush.msra.mxu0 %v3802
    %3868 = vmatpush.msra.mxu0 %v3798
    %3869 = vmatpush.msra.mxu0 %v3794
    %3870 = vmatpush.msra.mxu0 %v3790
    %3871 = vmatpush.msra.mxu0 %v3786
    %3872 = vmatpush.msra.mxu0 %v3782
    %3873 = vmatpush.msra.mxu0 %v3778
    %3874 = vmatpush.msra.mxu0 %v3774
    %3875 = vmatpush.msra.mxu0 %v3770
    %3876 = vmatpush.msra.mxu0 %v3766
    %3877 = vmatpush.msra.mxu0 %v3762
    %3878 = vmatpush.msra.mxu0 %v3758
    %3879 = vmatpush.msra.mxu0 %v3754
    %3880 = vmatpush.msra.mxu0 %v3750
    %3881 = vmatpush.msra.mxu0 %v3746
    %3882 = vmatpush.msra.mxu0 %v3742
    %3883 = vmatmul.f32.gmra.mxu0 %v3737
    %v3884 = vpop.f32.mrf.mxu0
    %v3885 = vadd.f32 0.0, %v3884
    %3886 = vdwg.mxu0
    %v3887 = vadd.f32 %v3803, %v3825
    %v3888 = vadd.f32 %v3804, %v3845
    %v3889 = vadd.f32 %v3805, %v3865
    %v3890 = vadd.f32 %v3806, %v3885
    %v3891 = vxor.u32 %v3887, 2147483648
    %v3892 = vmul.f32 %v3891, 1.442695
    %v3893 = vpow.pop %v3892
    %v3894 = vadd.f32 %v3893, 1.0
    %v3895 = vrcp.pop %v3894
    %v3896 = vmul.f32 %v3894, %v3895
    %v3897 = vsub.f32 1.0, %v3896
    %v3898 = vmul.f32 %v3895, %v3897
    %v3899 = vadd.f32 %v3895, %v3898
    %vm3900 = vweird.f32 %v3894
    %vm3901 = vweird.f32 %v3895
    %vm3902 = vmor %vm3900, %vm3901
    %v3903 = vsel %vm3902, %v3895, %v3899
    %v3904 = vand.u32 2147483647, %v3894
    %vm3905 = vcmp.eq.f32.partialorder %v3904, 8.507059e+37
    %v3906 = vand.u32 %v3894, 2147483648
    %v3907 = vor.u32 1.1754944e-38, %v3906
    %v3908 = vsel %vm3905, %v3907, %v3903
    %v3909 = vmul.f32 1.0, %v3908
    %v3910 = vxor.u32 %v3888, 2147483648
    %v3911 = vmul.f32 %v3910, 1.442695
    %v3912 = vpow.pop %v3911
    %v3913 = vadd.f32 %v3912, 1.0
    %v3914 = vrcp.pop %v3913
    %v3915 = vmul.f32 %v3913, %v3914
    %v3916 = vsub.f32 1.0, %v3915
    %v3917 = vmul.f32 %v3914, %v3916
    %v3918 = vadd.f32 %v3914, %v3917
    %vm3919 = vweird.f32 %v3913
    %vm3920 = vweird.f32 %v3914
    %vm3921 = vmor %vm3919, %vm3920
    %v3922 = vsel %vm3921, %v3914, %v3918
    %v3923 = vand.u32 2147483647, %v3913
    %vm3924 = vcmp.eq.f32.partialorder %v3923, 8.507059e+37
    %v3925 = vand.u32 %v3913, 2147483648
    %v3926 = vor.u32 1.1754944e-38, %v3925
    %v3927 = vsel %vm3924, %v3926, %v3922
    %v3928 = vmul.f32 1.0, %v3927
    %v3929 = vtanh.pop %v3889
    %v3930 = vxor.u32 %v3890, 2147483648
    %v3931 = vmul.f32 %v3930, 1.442695
    %v3932 = vpow.pop %v3931
    %v3933 = vadd.f32 %v3932, 1.0
    %v3934 = vrcp.pop %v3933
    %v3935 = vmul.f32 %v3933, %v3934
    %v3936 = vsub.f32 1.0, %v3935
    %v3937 = vmul.f32 %v3934, %v3936
    %v3938 = vadd.f32 %v3934, %v3937
    %vm3939 = vweird.f32 %v3933
    %vm3940 = vweird.f32 %v3934
    %vm3941 = vmor %vm3939, %vm3940
    %v3942 = vsel %vm3941, %v3934, %v3938
    %v3943 = vand.u32 2147483647, %v3933
    %vm3944 = vcmp.eq.f32.partialorder %v3943, 8.507059e+37
    %v3945 = vand.u32 %v3933, 2147483648
    %v3946 = vor.u32 1.1754944e-38, %v3945
    %v3947 = vsel %vm3944, %v3946, %v3942
    %v3948 = vmul.f32 1.0, %v3947
    %v3949 = vmul.f32 %v3928, %v3738
    %v3950 = vmul.f32 %v3909, %v3929
    %v3951 = vadd.f32 %v3949, %v3950
    %v3952 = vtanh.pop %v3951
    %v3953 = vmul.f32 %v3948, %v3952
    %3954 = vst [vmem:[%s2417] sm:$0xff] %v3951
    %3955 = vst [vmem:[%s2415] sm:$0xff] %v3953
    %3956 = vst [vmem:[%s1913] sm:$0xff] %v3953
    %v3957 = vld [vmem:[%s2415] sm:$0xff]
    %v3958 = vld [vmem:[%s2417] sm:$0xff]
    %v3959 = vld [vmem:[#allocation11] sm:$0xff]
    %v3960 = vld [vmem:[#allocation11 + $0x8] sm:$0xff]
    %v3961 = vld [vmem:[#allocation11 + $0x10] sm:$0xff]
    %v3962 = vld [vmem:[#allocation11 + $0x18] sm:$0xff]
    %v3963 = vld [vmem:[#allocation11 + $0x20] sm:$0xff]
    %v3964 = vld [vmem:[#allocation11 + $0x28] sm:$0xff]
    %v3965 = vld [vmem:[#allocation11 + $0x30] sm:$0xff]
    %v3966 = vld [vmem:[#allocation11 + $0x38] sm:$0xff]
    %v3967 = vld [vmem:[#allocation11 + $0x40] sm:$0xff]
    %v3968 = vld [vmem:[#allocation11 + $0x48] sm:$0xff]
    %v3969 = vld [vmem:[#allocation11 + $0x50] sm:$0xff]
    %v3970 = vld [vmem:[#allocation11 + $0x58] sm:$0xff]
    %v3971 = vld [vmem:[#allocation11 + $0x60] sm:$0xff]
    %v3972 = vld [vmem:[#allocation11 + $0x68] sm:$0xff]
    %v3973 = vld [vmem:[#allocation11 + $0x70] sm:$0xff]
    %v3974 = vld [vmem:[#allocation11 + $0x78] sm:$0xff]
    %v3975 = vld [vmem:[#allocation11 + $0x80] sm:$0xff]
    %v3976 = vld [vmem:[#allocation11 + $0x88] sm:$0xff]
    %v3977 = vld [vmem:[#allocation11 + $0x90] sm:$0xff]
    %v3978 = vld [vmem:[#allocation11 + $0x98] sm:$0xff]
    %v3979 = vld [vmem:[#allocation11 + $0xa0] sm:$0xff]
    %v3980 = vld [vmem:[#allocation11 + $0xa8] sm:$0xff]
    %v3981 = vld [vmem:[#allocation11 + $0xb0] sm:$0xff]
    %v3982 = vld [vmem:[#allocation11 + $0xb8] sm:$0xff]
    %v3983 = vld [vmem:[#allocation11 + $0xc0] sm:$0xff]
    %v3984 = vld [vmem:[#allocation11 + $0xc8] sm:$0xff]
    %v3985 = vld [vmem:[#allocation11 + $0xd0] sm:$0xff]
    %v3986 = vld [vmem:[#allocation11 + $0xd8] sm:$0xff]
    %v3987 = vld [vmem:[#allocation11 + $0xe0] sm:$0xff]
    %v3988 = vld [vmem:[#allocation11 + $0xe8] sm:$0xff]
    %v3989 = vld [vmem:[#allocation11 + $0xf0] sm:$0xff]
    %v3990 = vld [vmem:[#allocation11 + $0xf8] sm:$0xff]
    %v3991 = vld [vmem:[#allocation11 + $0x100] sm:$0xff]
    %v3992 = vld [vmem:[#allocation11 + $0x108] sm:$0xff]
    %v3993 = vld [vmem:[#allocation11 + $0x110] sm:$0xff]
    %v3994 = vld [vmem:[#allocation11 + $0x118] sm:$0xff]
    %v3995 = vld [vmem:[#allocation11 + $0x120] sm:$0xff]
    %v3996 = vld [vmem:[#allocation11 + $0x128] sm:$0xff]
    %v3997 = vld [vmem:[#allocation11 + $0x130] sm:$0xff]
    %v3998 = vld [vmem:[#allocation11 + $0x138] sm:$0xff]
    %v3999 = vld [vmem:[#allocation11 + $0x140] sm:$0xff]
    %v4000 = vld [vmem:[#allocation11 + $0x148] sm:$0xff]
    %v4001 = vld [vmem:[#allocation11 + $0x150] sm:$0xff]
    %v4002 = vld [vmem:[#allocation11 + $0x158] sm:$0xff]
    %v4003 = vld [vmem:[#allocation11 + $0x160] sm:$0xff]
    %v4004 = vld [vmem:[#allocation11 + $0x168] sm:$0xff]
    %v4005 = vld [vmem:[#allocation11 + $0x170] sm:$0xff]
    %v4006 = vld [vmem:[#allocation11 + $0x178] sm:$0xff]
    %v4007 = vld [vmem:[#allocation11 + $0x180] sm:$0xff]
    %v4008 = vld [vmem:[#allocation11 + $0x188] sm:$0xff]
    %v4009 = vld [vmem:[#allocation11 + $0x190] sm:$0xff]
    %v4010 = vld [vmem:[#allocation11 + $0x198] sm:$0xff]
    %v4011 = vld [vmem:[#allocation11 + $0x1a0] sm:$0xff]
    %v4012 = vld [vmem:[#allocation11 + $0x1a8] sm:$0xff]
    %v4013 = vld [vmem:[#allocation11 + $0x1b0] sm:$0xff]
    %v4014 = vld [vmem:[#allocation11 + $0x1b8] sm:$0xff]
    %v4015 = vld [vmem:[#allocation11 + $0x1c0] sm:$0xff]
    %v4016 = vld [vmem:[#allocation11 + $0x1c8] sm:$0xff]
    %v4017 = vld [vmem:[#allocation11 + $0x1d0] sm:$0xff]
    %v4018 = vld [vmem:[#allocation11 + $0x1d8] sm:$0xff]
    %v4019 = vld [vmem:[#allocation11 + $0x1e0] sm:$0xff]
    %v4020 = vld [vmem:[#allocation11 + $0x1e8] sm:$0xff]
    %v4021 = vld [vmem:[#allocation11 + $0x1f0] sm:$0xff]
    %v4022 = vld [vmem:[#allocation11 + $0x1f8] sm:$0xff]
    %v4023 = vld [vmem:[%s1981] sm:$0xff]
    %v4024 = vld [vmem:[%s1981 + $0x8] sm:$0xff]
    %v4025 = vld [vmem:[%s1981 + $0x10] sm:$0xff]
    %v4026 = vld [vmem:[%s1981 + $0x18] sm:$0xff]
    %4027 = vmatpush.msra.mxu0 %v4019
    %4028 = vmatpush.msra.mxu0 %v4015
    %4029 = vmatpush.msra.mxu0 %v4011
    %4030 = vmatpush.msra.mxu0 %v4007
    %4031 = vmatpush.msra.mxu0 %v4003
    %4032 = vmatpush.msra.mxu0 %v3999
    %4033 = vmatpush.msra.mxu0 %v3995
    %4034 = vmatpush.msra.mxu0 %v3991
    %4035 = vmatpush.msra.mxu0 %v3987
    %4036 = vmatpush.msra.mxu0 %v3983
    %4037 = vmatpush.msra.mxu0 %v3979
    %4038 = vmatpush.msra.mxu0 %v3975
    %4039 = vmatpush.msra.mxu0 %v3971
    %4040 = vmatpush.msra.mxu0 %v3967
    %4041 = vmatpush.msra.mxu0 %v3963
    %4042 = vmatpush.msra.mxu0 %v3959
    %4043 = vmatmul.f32.gmra.mxu0 %v3957
    %v4044 = vpop.f32.mrf.mxu0
    %v4045 = vadd.f32 0.0, %v4044
    %4046 = vdwg.mxu0
    %4047 = vmatpush.msra.mxu0 %v4020
    %4048 = vmatpush.msra.mxu0 %v4016
    %4049 = vmatpush.msra.mxu0 %v4012
    %4050 = vmatpush.msra.mxu0 %v4008
    %4051 = vmatpush.msra.mxu0 %v4004
    %4052 = vmatpush.msra.mxu0 %v4000
    %4053 = vmatpush.msra.mxu0 %v3996
    %4054 = vmatpush.msra.mxu0 %v3992
    %4055 = vmatpush.msra.mxu0 %v3988
    %4056 = vmatpush.msra.mxu0 %v3984
    %4057 = vmatpush.msra.mxu0 %v3980
    %4058 = vmatpush.msra.mxu0 %v3976
    %4059 = vmatpush.msra.mxu0 %v3972
    %4060 = vmatpush.msra.mxu0 %v3968
    %4061 = vmatpush.msra.mxu0 %v3964
    %4062 = vmatpush.msra.mxu0 %v3960
    %4063 = vmatmul.f32.gmra.mxu0 %v3957
    %v4064 = vpop.f32.mrf.mxu0
    %v4065 = vadd.f32 0.0, %v4064
    %4066 = vdwg.mxu0
    %4067 = vmatpush.msra.mxu0 %v4021
    %4068 = vmatpush.msra.mxu0 %v4017
    %4069 = vmatpush.msra.mxu0 %v4013
    %4070 = vmatpush.msra.mxu0 %v4009
    %4071 = vmatpush.msra.mxu0 %v4005
    %4072 = vmatpush.msra.mxu0 %v4001
    %4073 = vmatpush.msra.mxu0 %v3997
    %4074 = vmatpush.msra.mxu0 %v3993
    %4075 = vmatpush.msra.mxu0 %v3989
    %4076 = vmatpush.msra.mxu0 %v3985
    %4077 = vmatpush.msra.mxu0 %v3981
    %4078 = vmatpush.msra.mxu0 %v3977
    %4079 = vmatpush.msra.mxu0 %v3973
    %4080 = vmatpush.msra.mxu0 %v3969
    %4081 = vmatpush.msra.mxu0 %v3965
    %4082 = vmatpush.msra.mxu0 %v3961
    %4083 = vmatmul.f32.gmra.mxu0 %v3957
    %v4084 = vpop.f32.mrf.mxu0
    %v4085 = vadd.f32 0.0, %v4084
    %4086 = vdwg.mxu0
    %4087 = vmatpush.msra.mxu0 %v4022
    %4088 = vmatpush.msra.mxu0 %v4018
    %4089 = vmatpush.msra.mxu0 %v4014
    %4090 = vmatpush.msra.mxu0 %v4010
    %4091 = vmatpush.msra.mxu0 %v4006
    %4092 = vmatpush.msra.mxu0 %v4002
    %4093 = vmatpush.msra.mxu0 %v3998
    %4094 = vmatpush.msra.mxu0 %v3994
    %4095 = vmatpush.msra.mxu0 %v3990
    %4096 = vmatpush.msra.mxu0 %v3986
    %4097 = vmatpush.msra.mxu0 %v3982
    %4098 = vmatpush.msra.mxu0 %v3978
    %4099 = vmatpush.msra.mxu0 %v3974
    %4100 = vmatpush.msra.mxu0 %v3970
    %4101 = vmatpush.msra.mxu0 %v3966
    %4102 = vmatpush.msra.mxu0 %v3962
    %4103 = vmatmul.f32.gmra.mxu0 %v3957
    %v4104 = vpop.f32.mrf.mxu0
    %v4105 = vadd.f32 0.0, %v4104
    %4106 = vdwg.mxu0
    %v4107 = vadd.f32 %v4023, %v4045
    %v4108 = vadd.f32 %v4024, %v4065
    %v4109 = vadd.f32 %v4025, %v4085
    %v4110 = vadd.f32 %v4026, %v4105
    %v4111 = vxor.u32 %v4107, 2147483648
    %v4112 = vmul.f32 %v4111, 1.442695
    %v4113 = vpow.pop %v4112
    %v4114 = vadd.f32 %v4113, 1.0
    %v4115 = vrcp.pop %v4114
    %v4116 = vmul.f32 %v4114, %v4115
    %v4117 = vsub.f32 1.0, %v4116
    %v4118 = vmul.f32 %v4115, %v4117
    %v4119 = vadd.f32 %v4115, %v4118
    %vm4120 = vweird.f32 %v4114
    %vm4121 = vweird.f32 %v4115
    %vm4122 = vmor %vm4120, %vm4121
    %v4123 = vsel %vm4122, %v4115, %v4119
    %v4124 = vand.u32 2147483647, %v4114
    %vm4125 = vcmp.eq.f32.partialorder %v4124, 8.507059e+37
    %v4126 = vand.u32 %v4114, 2147483648
    %v4127 = vor.u32 1.1754944e-38, %v4126
    %v4128 = vsel %vm4125, %v4127, %v4123
    %v4129 = vmul.f32 1.0, %v4128
    %v4130 = vxor.u32 %v4108, 2147483648
    %v4131 = vmul.f32 %v4130, 1.442695
    %v4132 = vpow.pop %v4131
    %v4133 = vadd.f32 %v4132, 1.0
    %v4134 = vrcp.pop %v4133
    %v4135 = vmul.f32 %v4133, %v4134
    %v4136 = vsub.f32 1.0, %v4135
    %v4137 = vmul.f32 %v4134, %v4136
    %v4138 = vadd.f32 %v4134, %v4137
    %vm4139 = vweird.f32 %v4133
    %vm4140 = vweird.f32 %v4134
    %vm4141 = vmor %vm4139, %vm4140
    %v4142 = vsel %vm4141, %v4134, %v4138
    %v4143 = vand.u32 2147483647, %v4133
    %vm4144 = vcmp.eq.f32.partialorder %v4143, 8.507059e+37
    %v4145 = vand.u32 %v4133, 2147483648
    %v4146 = vor.u32 1.1754944e-38, %v4145
    %v4147 = vsel %vm4144, %v4146, %v4142
    %v4148 = vmul.f32 1.0, %v4147
    %v4149 = vtanh.pop %v4109
    %v4150 = vxor.u32 %v4110, 2147483648
    %v4151 = vmul.f32 %v4150, 1.442695
    %v4152 = vpow.pop %v4151
    %v4153 = vadd.f32 %v4152, 1.0
    %v4154 = vrcp.pop %v4153
    %v4155 = vmul.f32 %v4153, %v4154
    %v4156 = vsub.f32 1.0, %v4155
    %v4157 = vmul.f32 %v4154, %v4156
    %v4158 = vadd.f32 %v4154, %v4157
    %vm4159 = vweird.f32 %v4153
    %vm4160 = vweird.f32 %v4154
    %vm4161 = vmor %vm4159, %vm4160
    %v4162 = vsel %vm4161, %v4154, %v4158
    %v4163 = vand.u32 2147483647, %v4153
    %vm4164 = vcmp.eq.f32.partialorder %v4163, 8.507059e+37
    %v4165 = vand.u32 %v4153, 2147483648
    %v4166 = vor.u32 1.1754944e-38, %v4165
    %v4167 = vsel %vm4164, %v4166, %v4162
    %v4168 = vmul.f32 1.0, %v4167
    %v4169 = vmul.f32 %v4148, %v3958
    %v4170 = vmul.f32 %v4129, %v4149
    %v4171 = vadd.f32 %v4169, %v4170
    %v4172 = vtanh.pop %v4171
    %v4173 = vmul.f32 %v4168, %v4172
    %4174 = vst [vmem:[%s2417] sm:$0xff] %v4171
    %4175 = vst [vmem:[%s2415] sm:$0xff] %v4173
    %4176 = vst [vmem:[%s2135] sm:$0xff] %v4173
    %v4177 = vld [vmem:[#allocation5] sm:$0xff]
    %v4178 = vld [vmem:[#allocation5 + $0x8] sm:$0xff]
    %v4179 = vld [vmem:[#allocation5 + $0x10] sm:$0xff]
    %v4180 = vld [vmem:[#allocation5 + $0x18] sm:$0xff]
    %v4181 = vld [vmem:[#allocation5 + $0x20] sm:$0xff]
    %v4182 = vld [vmem:[#allocation5 + $0x28] sm:$0xff]
    %v4183 = vld [vmem:[#allocation5 + $0x30] sm:$0xff]
    %v4184 = vld [vmem:[#allocation5 + $0x38] sm:$0xff]
    %v4185 = vld [vmem:[#allocation12] sm:$0xff]
    %v4186 = vld [vmem:[#allocation12 + $0x8] sm:$0xff]
    %v4187 = vld [vmem:[#allocation12 + $0x10] sm:$0xff]
    %v4188 = vld [vmem:[#allocation12 + $0x18] sm:$0xff]
    %v4189 = vld [vmem:[#allocation12 + $0x20] sm:$0xff]
    %v4190 = vld [vmem:[#allocation12 + $0x28] sm:$0xff]
    %v4191 = vld [vmem:[#allocation12 + $0x30] sm:$0xff]
    %v4192 = vld [vmem:[#allocation12 + $0x38] sm:$0xff]
    %v4193 = vld [vmem:[#allocation12 + $0x40] sm:$0xff]
    %v4194 = vld [vmem:[#allocation12 + $0x48] sm:$0xff]
    %v4195 = vld [vmem:[#allocation12 + $0x50] sm:$0xff]
    %v4196 = vld [vmem:[#allocation12 + $0x58] sm:$0xff]
    %v4197 = vld [vmem:[#allocation12 + $0x60] sm:$0xff]
    %v4198 = vld [vmem:[#allocation12 + $0x68] sm:$0xff]
    %v4199 = vld [vmem:[#allocation12 + $0x70] sm:$0xff]
    %v4200 = vld [vmem:[#allocation12 + $0x78] sm:$0xff]
    %v4201 = vld [vmem:[%s8] sm:$0x1]
    %v4203 = vperm.slane %v4201, 0
    %4205 = vmatpush.msra.mxu0 %v4200
    %4206 = vmatpush.msra.mxu0 %v4199
    %4207 = vmatpush.msra.mxu0 %v4198
    %4208 = vmatpush.msra.mxu0 %v4197
    %4209 = vmatpush.msra.mxu0 %v4196
    %4210 = vmatpush.msra.mxu0 %v4195
    %4211 = vmatpush.msra.mxu0 %v4194
    %4212 = vmatpush.msra.mxu0 %v4193
    %4213 = vmatpush.msra.mxu0 %v4192
    %4214 = vmatpush.msra.mxu0 %v4191
    %4215 = vmatpush.msra.mxu0 %v4190
    %4216 = vmatpush.msra.mxu0 %v4189
    %4217 = vmatpush.msra.mxu0 %v4188
    %4218 = vmatpush.msra.mxu0 %v4187
    %4219 = vmatpush.msra.mxu0 %v4186
    %4220 = vmatpush.msra.mxu0 %v4185
    %4221 = vmatmul.f32.gmra.mxu0 %v4177
    %v4222 = vpop.f32.mrf.mxu0
    %v4223 = vadd.f32 %v4203, %v4222
    %4224 = vmatmul.f32.gmra.mxu0 %v4178
    %v4225 = vpop.f32.mrf.mxu0
    %v4226 = vadd.f32 %v4203, %v4225
    %4227 = vmatmul.f32.gmra.mxu0 %v4179
    %v4228 = vpop.f32.mrf.mxu0
    %v4229 = vadd.f32 %v4203, %v4228
    %4230 = vmatmul.f32.gmra.mxu0 %v4180
    %v4231 = vpop.f32.mrf.mxu0
    %v4232 = vadd.f32 %v4203, %v4231
    %4233 = vmatmul.f32.gmra.mxu0 %v4181
    %v4234 = vpop.f32.mrf.mxu0
    %v4235 = vadd.f32 %v4203, %v4234
    %4236 = vmatmul.f32.gmra.mxu0 %v4182
    %v4237 = vpop.f32.mrf.mxu0
    %v4238 = vadd.f32 %v4203, %v4237
    %4239 = vmatmul.f32.gmra.mxu0 %v4183
    %v4240 = vpop.f32.mrf.mxu0
    %v4241 = vadd.f32 %v4203, %v4240
    %4242 = vmatmul.f32.gmra.mxu0 %v4184
    %v4243 = vpop.f32.mrf.mxu0
    %v4244 = vadd.f32 %v4203, %v4243
    %4245 = vdwg.mxu0
    %4246 = vst [vmem:[#allocation14] sm:$0xff] %v4223
    %4247 = vst [vmem:[#allocation14 + $0x8] sm:$0xff] %v4226
    %4248 = vst [vmem:[#allocation14 + $0x10] sm:$0xff] %v4229
    %4249 = vst [vmem:[#allocation14 + $0x18] sm:$0xff] %v4232
    %4250 = vst [vmem:[#allocation14 + $0x20] sm:$0xff] %v4235
    %4251 = vst [vmem:[#allocation14 + $0x28] sm:$0xff] %v4238
    %4252 = vst [vmem:[#allocation14 + $0x30] sm:$0xff] %v4241
    %4253 = vst [vmem:[#allocation14 + $0x38] sm:$0xff] %v4244
    // Predicated region
    $region58: #{tpu_custom_call.1} parent=1 // pred_check
      _
    $region59: #{tpu_custom_call.1} parent=1 // pred_check_branch
      %4255 = sbr.rel (0) target = $region61
    $region60: #{tpu_custom_call.1} parent=1 // pred_region
      %4257 = vsyncadd [#allocation8], 0
      %s4258 = sshll.u32 [#allocation14], 4
      %s4259 = int_to_ptr.vmem [resolvable:$true] %s4258
      %s4260 = sshll.u32 %s9, 4
      %s4261 = int_to_ptr.hbm [resolvable:$true] %s4260
      %4266 = dma.vmem_to_hbm [thread:$0]  %s4259, 1024, %s4261, [#allocation8], 128, 128, 8
    $region61: #{tpu_custom_call.1} parent=1 // pred_fallthru
      _
    // Predicated region
    $region62: #{tpu_custom_call.1} parent=1 // pred_check
      _
    $region63: #{tpu_custom_call.1} parent=1 // pred_check_branch
      %4268 = sbr.rel (0) target = $region65
    $region64: #{tpu_custom_call.1} parent=1 // pred_region
      %4270 = dma.done [#allocation8], 1024
    $region65: #{tpu_custom_call.1} parent=1 // pred_fallthru
      _
    %4271 = vsyncpa [#allocation7], 1
    %4272 = vsyncpa [#allocation10], 1
    %4273 = vsyncpa [#allocation13], 1
    %4274 = vsyncpa [#allocation8], 1

</llo_original>
